<compile_context>
chip_gen: v6e
topology: v6e:2x2x1
jax: 0.10.0
libtpu: 0.0.40
codegen_flags: <defaults>
</compile_context>

<pallas_src>
import functools

import jax
import jax.numpy as jnp
from jax import lax
from jax.experimental import pallas as pl
from jax.experimental.pallas import tpu as pltpu

INPUT_SIZE = 89401   # from the PyTorch module
HIDDEN = 50
NUM_CLASSES = 4
H_PAD = 64           # hidden padded to a sublane-friendly size (zero rows are exact)
TK = 22528           # K tile (multiple of 128): 89401 -> Kp = 90112 = 4 * TK


def _num_splits_for_device():
    # Split-K across a leading "parallel" grid axis only pays off on v7x
    # (2 TensorCores / chip); on single-core v5e / v6e it is pure overhead.
    try:
        kind = jax.devices()[0].device_kind.lower()
    except Exception:
        return 1
    return 2 if ("v7" in kind or "7x" in kind) else 1


NUM_SPLITS = _num_splits_for_device()


def _fused_mlp_kernel(x_ref, w1t_ref, b1_ref, w2_ref, b2_ref, o_ref, acc_ref):
    """Single-TC path: stream W1^T over K, fuse the whole epilogue in-kernel.

    Grid = (k_steps,).  acc (H_PAD, B) f32 lives in VMEM scratch across the
    reduction; on the final K step we add b1, apply ReLU, do the tiny (64, 4)
    second linear + b2 and write the (B, C) output directly.
    """
    k = pl.program_id(0)

    @pl.when(k == 0)
    def _():
        acc_ref[...] = jnp.zeros_like(acc_ref)

    # bf16 cast of the small activation happens in-kernel (hidden under DMA).
    x_bf = x_ref[...].astype(jnp.bfloat16)                         # (B, TK)
    # Big operand (W1^T tile) is the MXU LHS with its minor dim contracted, so
    # the streamed weight never needs an in-kernel transpose; only the tiny
    # X tile gets transposed by Mosaic.
    acc_ref[...] += lax.dot_general(
        w1t_ref[...], x_bf,
        dimension_numbers=(((1,), (1,)), ((), ())),
        preferred_element_type=jnp.float32)                        # (H_PAD, B)

    @pl.when(k == pl.num_programs(0) - 1)
    def _():
        h = jnp.maximum(acc_ref[...] + b1_ref[...], 0.0)           # (H_PAD, B)
        out = lax.dot_general(                                     # (B, C)
            h, w2_ref[...],
            dimension_numbers=(((0,), (0,)), ((), ())),
            preferred_element_type=jnp.float32)
        o_ref[...] = out + b2_ref[...]


def _split_matmul_kernel(x_ref, w1t_ref, o_ref):
    """v7x path: one (H_PAD, B) partial accumulation of W1^T @ X^T per K-split."""
    @pl.when(pl.program_id(1) == 0)
    def _():
        o_ref[...] = jnp.zeros_like(o_ref)

    x_bf = x_ref[...].astype(jnp.bfloat16)
    o_ref[...] += lax.dot_general(
        w1t_ref[...], x_bf,
        dimension_numbers=(((1,), (1,)), ((), ())),
        preferred_element_type=jnp.float32)


def prepare_params(w1, b1, w2, b2, *, tk=TK, num_splits=NUM_SPLITS):
    """One-time parameter prep, OUTSIDE the forward pass.

    * W1 stored transposed (H_PAD, Kp) bf16 so the streamed bytes are
      lane-dense; K zero-padded to a (tk * num_splits) multiple (exact).
    * Hidden zero-padded 50 -> 64; W2's extra rows zero-padded so the epilogue
      stays exact.
    """
    K, H = w1.shape
    k_pad = (-K) % (tk * num_splits)
    h_pad = H_PAD - H
    w1t = jnp.pad(w1.T.astype(jnp.float32), ((0, h_pad), (0, k_pad)))
    w1t = w1t.astype(jnp.bfloat16)                                 # (H_PAD, Kp)
    b1p = jnp.pad(b1.astype(jnp.float32), (0, h_pad)).reshape(H_PAD, 1)
    w2p = jnp.pad(w2.astype(jnp.float32), ((0, h_pad), (0, 0)))    # (H_PAD, C)
    b2p = b2.astype(jnp.float32).reshape(1, -1)                    # (1, C)
    return w1t, b1p, w2p, b2p


@functools.partial(jax.jit, static_argnames=("num_splits",))
def mlp_forward(x, w1t, b1p, w2p, b2p, *, num_splits=NUM_SPLITS):
    B, K = x.shape
    Hp, Kp = w1t.shape
    C = w2p.shape[1]
    assert Hp == H_PAD and Kp % (TK * num_splits) == 0 and Kp >= K

    if Kp != K:
        # Keep the explicit zero pad: never rely on OOB garbage (NaN * 0 = NaN).
        x = jnp.pad(x, ((0, 0), (0, Kp - K)))

    n_k = Kp // TK

    # Accurate bytes: lane-dense bf16 W1^T once + f32 X once per split + tiny IO.
    cost = pl.CostEstimate(
        flops=2 * B * Kp * H_PAD + 2 * B * H_PAD * C,
        transcendentals=0,
        bytes_accessed=(Kp * H_PAD * 2 + num_splits * B * Kp * 4
                        + num_splits * H_PAD * B * 4 + B * C * 4),
    )

    if num_splits == 1:
        # Single pallas_call does the whole forward (v5e / v6e).
        return pl.pallas_call(
            _fused_mlp_kernel,
            out_shape=jax.ShapeDtypeStruct((B, C), jnp.float32),
            grid_spec=pltpu.PrefetchScalarGridSpec(
                num_scalar_prefetch=0,
                grid=(n_k,),
                in_specs=[
                    pl.BlockSpec((B, TK), lambda k: (0, k)),         # X
                    pl.BlockSpec((H_PAD, TK), lambda k: (0, k)),     # W1^T
                    pl.BlockSpec((H_PAD, 1), lambda k: (0, 0)),      # b1
                    pl.BlockSpec((H_PAD, C), lambda k: (0, 0)),      # W2
                    pl.BlockSpec((1, C), lambda k: (0, 0)),          # b2
                ],
                out_specs=pl.BlockSpec((B, C), lambda k: (0, 0)),
                scratch_shapes=[pltpu.VMEM((H_PAD, B), jnp.float32)],
            ),
            compiler_params=pltpu.CompilerParams(
                dimension_semantics=("arbitrary",),
                vmem_limit_bytes=32 * 1024 * 1024,
            ),
            cost_estimate=cost,
        )(x, w1t, b1p, w2p, b2p)

    # v7x: 2-way split-K across the two TensorCores; tiny combine stays in XLA.
    k_per_split = n_k // num_splits
    partial = pl.pallas_call(
        _split_matmul_kernel,
        out_shape=jax.ShapeDtypeStruct((num_splits, H_PAD, B), jnp.float32),
        grid_spec=pltpu.PrefetchScalarGridSpec(
            num_scalar_prefetch=0,
            grid=(num_splits, k_per_split),
            in_specs=[
                pl.BlockSpec((B, TK), lambda c, k: (0, c * k_per_split + k)),
                pl.BlockSpec((H_PAD, TK), lambda c, k: (0, c * k_per_split + k)),
            ],
            out_specs=pl.BlockSpec((None, H_PAD, B), lambda c, k: (c, 0, 0)),
        ),
        compiler_params=pltpu.CompilerParams(
            dimension_semantics=("parallel", "arbitrary"),
            vmem_limit_bytes=32 * 1024 * 1024,
        ),
        cost_estimate=cost,
    )(x, w1t)
    # TODO(synk): on v7x the 2-way combine + tiny fit2 stays in XLA; it could be
    # folded into a trailing reduce grid step if dispatch overhead dominates.
    acc = partial.sum(axis=0)                                       # (H_PAD, B)
    h = jnp.maximum(acc + b1p, 0.0)
    return h.T @ w2p + b2p


def init_params(key, in_features, hidden, num_classes):
    """Deterministic init mimicking nn.Linear's U(-1/sqrt(fan_in), 1/sqrt(fan_in))."""
    k1, k2, k3, k4 = jax.random.split(key, 4)
    bound1 = 1.0 / (in_features ** 0.5)
    bound2 = 1.0 / (hidden ** 0.5)
    w1 = jax.random.uniform(k1, (in_features, hidden), jnp.float32,
                            minval=-bound1, maxval=bound1)
    b1 = jax.random.uniform(k2, (hidden,), jnp.float32,
                            minval=-bound1, maxval=bound1)
    w2 = jax.random.uniform(k3, (hidden, num_classes), jnp.float32,
                            minval=-bound2, maxval=bound2)
    b2 = jax.random.uniform(k4, (num_classes,), jnp.float32,
                            minval=-bound2, maxval=bound2)
    return w1, b1, w2, b2


if __name__ == "__main__":
    key = jax.random.PRNGKey(0)
    kx, kparams = jax.random.split(key)

    batch = 2
    x = jax.random.normal(kx, (batch, INPUT_SIZE), jnp.float32)
    w1, b1, w2, b2 = init_params(kparams, INPUT_SIZE, HIDDEN, NUM_CLASSES)

    # One-time weight prep (transpose + pad + bf16 cast) — outside the forward.
    w1t, b1p, w2p, b2p = jax.block_until_ready(prepare_params(w1, b1, w2, b2))

    out = mlp_forward(x, w1t, b1p, w2p, b2p)
    out = jax.block_until_ready(out)
    assert out.shape == (batch, NUM_CLASSES), out.shape

    # Tight check against a reference using the same bf16-rounded streaming
    # operands (isolates kernel correctness from quantization).
    x_bf = x.astype(jnp.bfloat16).astype(jnp.float32)
    w1_bf = w1.astype(jnp.bfloat16).astype(jnp.float32)
    ref_bf = jnp.maximum(x_bf @ w1_bf + b1, 0.0) @ w2 + b2
    assert jnp.allclose(out, ref_bf, rtol=1e-3, atol=1e-3), (
        float(jnp.max(jnp.abs(out - ref_bf))))

    # Loose sanity check against the full-precision f32 reference.
    ref_f32 = jnp.maximum(x @ w1 + b1, 0.0) @ w2 + b2
    assert jnp.allclose(out, ref_f32, rtol=5e-2, atol=5e-2), (
        float(jnp.max(jnp.abs(out - ref_f32))))

    print("KERNEL_OK")
</pallas_src>

<mosaic_0001>
module attributes {stable_mosaic.version = 11 : i64} {
  func.func @_fused_mlp_kernel(%arg0: i32, %arg1: memref<2x22528xf32, #tpu.memory_space<vmem>>, %arg2: memref<64x22528xbf16, #tpu.memory_space<vmem>>, %arg3: memref<64x1xf32, #tpu.memory_space<vmem>>, %arg4: memref<64x4xf32, #tpu.memory_space<vmem>>, %arg5: memref<1x4xf32, #tpu.memory_space<vmem>>, %arg6: memref<2x4xf32, #tpu.memory_space<vmem>>, %arg7: memref<64x2xf32, #tpu.memory_space<vmem>>) attributes {dimension_semantics = [#tpu.dimension_semantics<arbitrary>], iteration_bounds = array<i64: 4>, scalar_prefetch = 0 : i64, scratch_operands = 1 : i64, tpu.core_type = #tpu.core_type<tc>, window_params = [{transform_indices = @transform_0, window_bounds = array<i64: 2, 22528>}, {transform_indices = @transform_1, window_bounds = array<i64: 64, 22528>}, {pipeline_mode = #tpu.pipeline_mode<synchronous>, transform_indices = @transform_2, window_bounds = array<i64: 64, 1>}, {pipeline_mode = #tpu.pipeline_mode<synchronous>, transform_indices = @transform_3, window_bounds = array<i64: 64, 4>}, {pipeline_mode = #tpu.pipeline_mode<synchronous>, transform_indices = @transform_4, window_bounds = array<i64: 1, 4>}, {pipeline_mode = #tpu.pipeline_mode<synchronous>, transform_indices = @transform_5, window_bounds = array<i64: 2, 4>}]} {
    %c0_i32 = arith.constant 0 : i32
    %0 = arith.cmpi eq, %arg0, %c0_i32 : i32
    %1 = arith.extui %0 : i1 to i32
    %c0_i32_0 = arith.constant 0 : i32
    %2 = arith.cmpi ne, %1, %c0_i32_0 : i32
    scf.if %2 {
      %cst_9 = arith.constant 0.000000e+00 : f32
      %13 = vector.broadcast %cst_9 : f32 to vector<64x2xf32>
      %c0_10 = arith.constant 0 : index
      %c0_11 = arith.constant 0 : index
      %14 = vector.load %arg7[%c0_10, %c0_11] : memref<64x2xf32, #tpu.memory_space<vmem>>, vector<64x2xf32>
      tpu.vector_store %arg7[%c0_10, %c0_11], %13 {strides = array<i32>} : memref<64x2xf32, #tpu.memory_space<vmem>>, vector<64x2xf32>,
    } else {
    }
    %c0 = arith.constant 0 : index
    %c0_1 = arith.constant 0 : index
    %3 = vector.load %arg1[%c0, %c0_1] : memref<2x22528xf32, #tpu.memory_space<vmem>>, vector<2x22528xf32>
    %4 = arith.truncf %3 : vector<2x22528xf32> to vector<2x22528xbf16>
    %c0_2 = arith.constant 0 : index
    %c0_3 = arith.constant 0 : index
    %5 = vector.load %arg7[%c0_2, %c0_3] : memref<64x2xf32, #tpu.memory_space<vmem>>, vector<64x2xf32>
    %c0_4 = arith.constant 0 : index
    %c0_5 = arith.constant 0 : index
    %6 = vector.load %arg2[%c0_4, %c0_5] : memref<64x22528xbf16, #tpu.memory_space<vmem>>, vector<64x22528xbf16>
    %cst = arith.constant dense<0.000000e+00> : vector<64x2xf32>
    %7 = tpu.matmul %6, %4, %cst {dimension_numbers = #tpu.dot_dimension_numbers<[1], [1], [0], [0], [0, 0, 1, 0], [], []>} : vector<64x22528xbf16>, vector<2x22528xbf16>, vector<64x2xf32> -> vector<64x2xf32>
    %8 = arith.addf %5, %7 : vector<64x2xf32>
    %c0_6 = arith.constant 0 : index
    %c0_7 = arith.constant 0 : index
    %9 = vector.load %arg7[%c0_6, %c0_7] : memref<64x2xf32, #tpu.memory_space<vmem>>, vector<64x2xf32>
    tpu.vector_store %arg7[%c0_6, %c0_7], %8 {strides = array<i32>} : memref<64x2xf32, #tpu.memory_space<vmem>>, vector<64x2xf32>,
    %c3_i32 = arith.constant 3 : i32
    %10 = arith.cmpi eq, %arg0, %c3_i32 : i32
    %11 = arith.extui %10 : i1 to i32
    %c0_i32_8 = arith.constant 0 : i32
    %12 = arith.cmpi ne, %11, %c0_i32_8 : i32
    scf.if %12 {
      %c0_9 = arith.constant 0 : index
      %c0_10 = arith.constant 0 : index
      %13 = vector.load %arg7[%c0_9, %c0_10] : memref<64x2xf32, #tpu.memory_space<vmem>>, vector<64x2xf32>
      %c0_11 = arith.constant 0 : index
      %c0_12 = arith.constant 0 : index
      %14 = vector.load %arg3[%c0_11, %c0_12] : memref<64x1xf32, #tpu.memory_space<vmem>>, vector<64x1xf32>
      %15 = vector.broadcast %14 : vector<64x1xf32> to vector<64x2xf32>
      %16 = arith.addf %13, %15 : vector<64x2xf32>
      %cst_13 = arith.constant 0.000000e+00 : f32
      %17 = vector.broadcast %cst_13 : f32 to vector<64x2xf32>
      %18 = arith.maximumf %16, %17 : vector<64x2xf32>
      %c0_14 = arith.constant 0 : index
      %c0_15 = arith.constant 0 : index
      %19 = vector.load %arg4[%c0_14, %c0_15] : memref<64x4xf32, #tpu.memory_space<vmem>>, vector<64x4xf32>
      %cst_16 = arith.constant dense<0.000000e+00> : vector<2x4xf32>
      %20 = tpu.matmul %18, %19, %cst_16 {dimension_numbers = #tpu.dot_dimension_numbers<[0], [0], [1], [1], [0, 1, 1, 1], [], []>} : vector<64x2xf32>, vector<64x4xf32>, vector<2x4xf32> -> vector<2x4xf32>
      %c0_17 = arith.constant 0 : index
      %c0_18 = arith.constant 0 : index
      %21 = vector.load %arg5[%c0_17, %c0_18] : memref<1x4xf32, #tpu.memory_space<vmem>>, vector<1x4xf32>
      %22 = vector.broadcast %21 : vector<1x4xf32> to vector<2x4xf32>
      %23 = arith.addf %20, %22 : vector<2x4xf32>
      %c0_19 = arith.constant 0 : index
      %c0_20 = arith.constant 0 : index
      %24 = vector.load %arg6[%c0_19, %c0_20] : memref<2x4xf32, #tpu.memory_space<vmem>>, vector<2x4xf32>
      tpu.vector_store %arg6[%c0_19, %c0_20], %23 {strides = array<i32>} : memref<2x4xf32, #tpu.memory_space<vmem>>, vector<2x4xf32>,
    } else {
    }
    return
  }
  func.func @transform_0(%arg0: i32) -> (i32, i32) {
    %c0_i32 = arith.constant 0 : i32
    %c0_i32_0 = arith.constant 0 : i32
    return %c0_i32, %arg0 : i32, i32
  }
  func.func @transform_1(%arg0: i32) -> (i32, i32) {
    %c0_i32 = arith.constant 0 : i32
    %c0_i32_0 = arith.constant 0 : i32
    return %c0_i32, %arg0 : i32, i32
  }
  func.func @transform_2(%arg0: i32) -> (i32, i32) {
    %c0_i32 = arith.constant 0 : i32
    %c0_i32_0 = arith.constant 0 : i32
    %c0_i32_1 = arith.constant 0 : i32
    return %c0_i32, %c0_i32_0 : i32, i32
  }
  func.func @transform_3(%arg0: i32) -> (i32, i32) {
    %c0_i32 = arith.constant 0 : i32
    %c0_i32_0 = arith.constant 0 : i32
    %c0_i32_1 = arith.constant 0 : i32
    return %c0_i32, %c0_i32_0 : i32, i32
  }
  func.func @transform_4(%arg0: i32) -> (i32, i32) {
    %c0_i32 = arith.constant 0 : i32
    %c0_i32_0 = arith.constant 0 : i32
    %c0_i32_1 = arith.constant 0 : i32
    return %c0_i32, %c0_i32_0 : i32, i32
  }
  func.func @transform_5(%arg0: i32) -> (i32, i32) {
    %c0_i32 = arith.constant 0 : i32
    %c0_i32_0 = arith.constant 0 : i32
    %c0_i32_1 = arith.constant 0 : i32
    return %c0_i32, %c0_i32_0 : i32, i32
  }
}

</mosaic_0001>

<llo_original>
// kernel: mlp_forward.1
$region0: #{mlp_forward.1}
  #allocation0 [shape = 'u32[]', space=smem, size = 0x4, offset = 0x4, fixed_abs, tag = 'smem constant byte address 0x4 - core index']
  #allocation1 [shape = 'u32[144,128]{1,0:T(1,128)}', space=vmem, size = 0x12000, scoped, tag = 'internal scratch']
  #allocation2 [shape = 'f32[64,2]{1,0:T(8,128)}', space=vmem, size = 0x8000, scoped, tag = 'scratch operand']
  %s0 = inlined_call_operand.vmem [shape: f32[2,90112], index: 0, kind: input, shape index: {}]
  %s1 = inlined_call_operand.hbm [shape: bf16[64,90112], index: 1, kind: input, shape index: {}]
  %s2 = inlined_call_operand.vmem [shape: f32[64,1], index: 2, kind: input, shape index: {}]
  %s3 = inlined_call_operand.vmem [shape: f32[64,4], index: 3, kind: input, shape index: {}]
  %s4 = inlined_call_operand.hbm [shape: f32[1,4], index: 4, kind: input, shape index: {}]
  %s5 = inlined_call_operand.hbm [shape: f32[2,4], index: 5, kind: output, shape index: {}]
  %s6 = sld [smem:[#allocation0]]
  $region69: #{mlp_forward.1} parent=0
    _
  %s8 = ssub.s32 1, %s6
  %s9 = scalar_select 0, %s8, %s6
  $region1: #{mlp_forward.1} parent=0
    #allocation3 [shape = 'u8[5767168]{0}', space=vmem, size = 0x580000, scoped, tag = 'input window, operand 1']
    #allocation4 [shape = 's32[2]{0}', space=sflag, size = 0x8, scoped, tag = 'scoped memory for mlp_forward.1']
    #allocation5 [shape = 's32[2]{0}', space=sflag, size = 0x8, scoped, tag = 'scoped memory for mlp_forward.1']
    #allocation6 [shape = 'u8[512]{0}', space=vmem, size = 0x400, scoped, tag = 'input window, operand 4, single buffered']
    #allocation7 [shape = 's32[1]{0}', space=sflag, size = 0x4, scoped, tag = 'scoped memory for mlp_forward.1']
    #allocation8 [shape = 'u8[1024]{0}', space=vmem, size = 0x400, scoped, tag = 'output window, operand 0, single buffered']
    %10 = vsyncpa [#allocation4], 0
    %s11 = scalar_lea.sflag [#allocation4], 1
    %12 = vsyncpa %s11, 0
    %13 = vsyncpa [#allocation7], 0
    %14 = vsyncpa [#allocation5], 0
    loop: start=0, step=1, limit=6
    $region2: #{mlp_forward.1} parent=1 // loop_pre_header
      _
    $region3: #{mlp_forward.1} parent=1 // loop_header
      %s16 = sphi 0, %s20
      %p17 = scmp.ge.s32.totalorder %s16, 6
      %s26 = sphi 0, %s28
      %s29 = sphi 0, %s26
      %s30 = sphi 0, %s29
      %s46 = sphi 0, %s30
      %s52 = sphi 0, %s54
      %s55 = sphi 0, %s52
      %s56 = sphi 0, %s55
      %s72 = sphi 0, %s56
      %s76 = sphi 0, %s76
      %s78 = sphi 0, %s76
      %s79 = sphi 0, %s78
      %s93 = sphi 0, %s79
      %s97 = sphi 0, %s97
      %s99 = sphi 0, %s97
      %s100 = sphi 0, %s99
      %s114 = sphi 0, %s100
      %s118 = sphi 0, %s118
      %s120 = sphi 0, %s118
      %s121 = sphi 0, %s120
      %s135 = sphi 0, %s121
      %s139 = sphi 0, %s139
      %s141 = sphi 0, %s139
      %s142 = sphi 0, %s141
      %s156 = sphi 0, %s142
    $region4: #{mlp_forward.1} parent=1 // loop_header_branch
      %19 = sbr.rel (%p17) target = $region8
    $region5: #{mlp_forward.1} parent=1 // loop_body
      %s21 = ssub.s32 %s16, 1
      %s22 = ssub.s32 %s16, 2
      %s23 = sadd.s32 %s16, 1
      %s24 = ssub.s32 %s16, %s23
      %p25 = scmp.eq.s32.totalorder %s24, 0
      %s27 = sadd.s32 %s26, 1
      %s28 = scalar_select %p25, %s26, %s27
      %p31 = pneg %p25
      %p32 = scmp.eq.s32.totalorder %s16, 3
      %p33 = por %p31, %p32
      %p34 = scmp.ne.s32.totalorder %s26, %s29
      %p35 = scmp.eq.s32.totalorder %s16, 0
      %p36 = por %p34, %p35
      %p37 = scmp.ne.s32.totalorder %s26, %s29
      %p38 = scmp.eq.s32.totalorder %s21, 3
      %p39 = por %p37, %p38
      %p40 = scmp.ne.s32.totalorder %s29, %s30
      %p41 = scmp.eq.s32.totalorder %s21, 0
      %p42 = por %p40, %p41
      %p43 = scmp.ne.s32.totalorder %s29, %s30
      %p44 = scmp.eq.s32.totalorder %s22, 3
      %p45 = por %p43, %p44
      %p47 = scmp.ne.s32.totalorder %s30, %s46
      %p48 = scmp.eq.s32.totalorder %s22, 0
      %p49 = por %p47, %p48
      %s50 = ssub.s32 %s16, %s23
      %p51 = scmp.eq.s32.totalorder %s50, 0
      %s53 = sadd.s32 %s52, 1
      %s54 = scalar_select %p51, %s52, %s53
      %p57 = pneg %p51
      %p58 = scmp.eq.s32.totalorder %s16, 3
      %p59 = por %p57, %p58
      %p60 = scmp.ne.s32.totalorder %s52, %s55
      %p61 = scmp.eq.s32.totalorder %s16, 0
      %p62 = por %p60, %p61
      %p63 = scmp.ne.s32.totalorder %s52, %s55
      %p64 = scmp.eq.s32.totalorder %s21, 3
      %p65 = por %p63, %p64
      %p66 = scmp.ne.s32.totalorder %s55, %s56
      %p67 = scmp.eq.s32.totalorder %s21, 0
      %p68 = por %p66, %p67
      %p69 = scmp.ne.s32.totalorder %s55, %s56
      %p70 = scmp.eq.s32.totalorder %s22, 3
      %p71 = por %p69, %p70
      %p73 = scmp.ne.s32.totalorder %s56, %s72
      %p74 = scmp.eq.s32.totalorder %s22, 0
      %p75 = por %p73, %p74
      %s77 = sadd.s32 %s76, 1
      %p80 = scmp.eq.s32.totalorder %s16, 3
      %p81 = scmp.ne.s32.totalorder %s76, %s78
      %p82 = scmp.eq.s32.totalorder %s16, 0
      %p83 = por %p81, %p82
      %p84 = scmp.ne.s32.totalorder %s76, %s78
      %p85 = scmp.eq.s32.totalorder %s21, 3
      %p86 = por %p84, %p85
      %p87 = scmp.ne.s32.totalorder %s78, %s79
      %p88 = scmp.eq.s32.totalorder %s21, 0
      %p89 = por %p87, %p88
      %p90 = scmp.ne.s32.totalorder %s78, %s79
      %p91 = scmp.eq.s32.totalorder %s22, 3
      %p92 = por %p90, %p91
      %p94 = scmp.ne.s32.totalorder %s79, %s93
      %p95 = scmp.eq.s32.totalorder %s22, 0
      %p96 = por %p94, %p95
      %s98 = sadd.s32 %s97, 1
      %p101 = scmp.eq.s32.totalorder %s16, 3
      %p102 = scmp.ne.s32.totalorder %s97, %s99
      %p103 = scmp.eq.s32.totalorder %s16, 0
      %p104 = por %p102, %p103
      %p105 = scmp.ne.s32.totalorder %s97, %s99
      %p106 = scmp.eq.s32.totalorder %s21, 3
      %p107 = por %p105, %p106
      %p108 = scmp.ne.s32.totalorder %s99, %s100
      %p109 = scmp.eq.s32.totalorder %s21, 0
      %p110 = por %p108, %p109
      %p111 = scmp.ne.s32.totalorder %s99, %s100
      %p112 = scmp.eq.s32.totalorder %s22, 3
      %p113 = por %p111, %p112
      %p115 = scmp.ne.s32.totalorder %s100, %s114
      %p116 = scmp.eq.s32.totalorder %s22, 0
      %p117 = por %p115, %p116
      %s119 = sadd.s32 %s118, 1
      %p122 = scmp.eq.s32.totalorder %s16, 3
      %p123 = scmp.ne.s32.totalorder %s118, %s120
      %p124 = scmp.eq.s32.totalorder %s16, 0
      %p125 = por %p123, %p124
      %p126 = scmp.ne.s32.totalorder %s118, %s120
      %p127 = scmp.eq.s32.totalorder %s21, 3
      %p128 = por %p126, %p127
      %p129 = scmp.ne.s32.totalorder %s120, %s121
      %p130 = scmp.eq.s32.totalorder %s21, 0
      %p131 = por %p129, %p130
      %p132 = scmp.ne.s32.totalorder %s120, %s121
      %p133 = scmp.eq.s32.totalorder %s22, 3
      %p134 = por %p132, %p133
      %p136 = scmp.ne.s32.totalorder %s121, %s135
      %p137 = scmp.eq.s32.totalorder %s22, 0
      %p138 = por %p136, %p137
      %s140 = sadd.s32 %s139, 1
      %p143 = scmp.eq.s32.totalorder %s16, 3
      %p144 = scmp.ne.s32.totalorder %s139, %s141
      %p145 = scmp.eq.s32.totalorder %s16, 0
      %p146 = por %p144, %p145
      %p147 = scmp.ne.s32.totalorder %s139, %s141
      %p148 = scmp.eq.s32.totalorder %s21, 3
      %p149 = por %p147, %p148
      %p150 = scmp.ne.s32.totalorder %s141, %s142
      %p151 = scmp.eq.s32.totalorder %s21, 0
      %p152 = por %p150, %p151
      %p153 = scmp.ne.s32.totalorder %s141, %s142
      %p154 = scmp.eq.s32.totalorder %s22, 3
      %p155 = por %p153, %p154
      %p157 = scmp.ne.s32.totalorder %s142, %s156
      %p158 = scmp.eq.s32.totalorder %s22, 0
      %p159 = por %p157, %p158
      %p160 = scmp.le.s32.totalorder 1, %s16
      %p161 = scmp.lt.s32.totalorder %s16, 5
      %p162 = pnand %p160, %p161
      %p163 = pneg %p162
      // Predicated region
      $region9: #{mlp_forward.1} parent=5 // pred_check
        _
      $region10: #{mlp_forward.1} parent=5 // pred_check_branch
        %165 = sbr.rel (%p162) target = $region12
      $region11: #{mlp_forward.1} parent=5 // pred_region
        %s166 = ssub.s32 %s16, 1
        // Predicated region
        $region13: #{mlp_forward.1} parent=11 // pred_check
          %p167 = pneg %p89
        $region14: #{mlp_forward.1} parent=11 // pred_check_branch
          %169 = sbr.rel (%p167) target = $region16
        $region15: #{mlp_forward.1} parent=11 // pred_region
          _
        $region16: #{mlp_forward.1} parent=11 // pred_fallthru
          _
        // Predicated region
        $region17: #{mlp_forward.1} parent=11 // pred_check
          %p170 = pneg %p110
        $region18: #{mlp_forward.1} parent=11 // pred_check_branch
          %172 = sbr.rel (%p170) target = $region20
        $region19: #{mlp_forward.1} parent=11 // pred_region
          _
        $region20: #{mlp_forward.1} parent=11 // pred_fallthru
          _
        // Predicated region
        $region21: #{mlp_forward.1} parent=11 // pred_check
          %p173 = pneg %p131
        $region22: #{mlp_forward.1} parent=11 // pred_check_branch
          %175 = sbr.rel (%p173) target = $region24
        $region23: #{mlp_forward.1} parent=11 // pred_region
          %s177 = ssub.s32 16, 16
          %178 = vsyncadd [#allocation7], %s177
          %s180 = sshll.u32 [#allocation6], 4
          %s181 = int_to_ptr.vmem [resolvable:$true] %s180
          %183 = dma.hbm_to_vmem [thread:$0]  %s4, 16, %s181, [#allocation7]
        $region24: #{mlp_forward.1} parent=11 // pred_fallthru
          _
      $region12: #{mlp_forward.1} parent=5 // pred_fallthru
        _
      %p184 = scmp.lt.s32.totalorder %s16, 4
      // Predicated region
      $region25: #{mlp_forward.1} parent=5 // pred_check
        %p185 = pneg %p184
      $region26: #{mlp_forward.1} parent=5 // pred_check_branch
        %187 = sbr.rel (%p185) target = $region28
      $region27: #{mlp_forward.1} parent=5 // pred_region
        // Predicated region
        $region29: #{mlp_forward.1} parent=27 // pred_check
          %p188 = pneg %p36
        $region30: #{mlp_forward.1} parent=27 // pred_check_branch
          %190 = sbr.rel (%p188) target = $region32
        $region31: #{mlp_forward.1} parent=27 // pred_region
          %s191 = smul.u32 176, %s16
          %p192 = scmp.lt.s32.totalorder %s191, 703
          %s193 = scalar_select %p192, %s191, 703
          %s194 = smul.addr %s193, 2
          %s195 = scalar_lea.vmem %s0, %s194
          %s196 = smul.u32 176, %s16
        $region32: #{mlp_forward.1} parent=27 // pred_fallthru
          _
        // Predicated region
        $region33: #{mlp_forward.1} parent=27 // pred_check
          %p197 = pneg %p62
        $region34: #{mlp_forward.1} parent=27 // pred_check_branch
          %199 = sbr.rel (%p197) target = $region36
        $region35: #{mlp_forward.1} parent=27 // pred_region
          %s200 = sand.u32 %s52, 1
          %s201 = scalar_lea.sflag [#allocation4], %s200
          %s202 = sand.u32 %s52, 1
          %s203 = smul.addr %s202, 5632
          %s204 = scalar_lea.vmem [#allocation3], %s203
          %s205 = smul.u32 176, %s16
          %s207 = ssub.s32 90112, 90112
          %208 = vsyncadd %s201, %s207
          %s209 = smul.addr %s205, 64
          %s210 = scalar_lea.hbm %s1, %s209
          %s211 = sshll.u32 %s204, 4
          %s212 = int_to_ptr.vmem [resolvable:$true] %s211
          %217 = dma.hbm_to_vmem [thread:$0]  %s210, 90112, %s212, %s201, 45056, 11264, 704
        $region36: #{mlp_forward.1} parent=27 // pred_fallthru
          _
      $region28: #{mlp_forward.1} parent=5 // pred_fallthru
        _
      %p218 = scmp.le.s32.totalorder 1, %s16
      %p219 = scmp.lt.s32.totalorder %s16, 5
      %p220 = pnand %p218, %p219
      %p221 = pneg %p220
      // Predicated region
      $region37: #{mlp_forward.1} parent=5 // pred_check
        _
      $region38: #{mlp_forward.1} parent=5 // pred_check_branch
        %223 = sbr.rel (%p220) target = $region40
      $region39: #{mlp_forward.1} parent=5 // pred_region
        %s224 = ssub.s32 %s16, 1
        %s225 = sand.u32 %s55, 1
        %s226 = scalar_lea.sflag [#allocation4], %s225
        %s227 = sand.u32 %s55, 1
        %s228 = smul.addr %s227, 5632
        %s229 = scalar_lea.vmem [#allocation3], %s228
        // Predicated region
        $region41: #{mlp_forward.1} parent=39 // pred_check
          %p230 = pneg %p68
        $region42: #{mlp_forward.1} parent=39 // pred_check_branch
          %232 = sbr.rel (%p230) target = $region44
        $region43: #{mlp_forward.1} parent=39 // pred_region
          %233 = dma.done %s226, 90112
        $region44: #{mlp_forward.1} parent=39 // pred_fallthru
          _
        // Predicated region
        $region45: #{mlp_forward.1} parent=39 // pred_check
          %p234 = pneg %p131
        $region46: #{mlp_forward.1} parent=39 // pred_check_branch
          %236 = sbr.rel (%p234) target = $region48
        $region47: #{mlp_forward.1} parent=39 // pred_region
          %237 = dma.done [#allocation7], 16
        $region48: #{mlp_forward.1} parent=39 // pred_fallthru
          _
        %s238 = smul.u32 176, %s21
        %p239 = scmp.lt.s32.totalorder %s238, 703
        %s240 = scalar_select %p239, %s238, 703
        %s241 = smul.addr %s240, 2
        %s242 = scalar_lea.vmem %s0, %s241
        %p243 = pneg %p42
        %p244 = pneg %p39
        %s245 = sand.u32 %s55, 1
        %s246 = scalar_lea.sflag [#allocation4], %s245
        %s247 = sand.u32 %s55, 1
        %s248 = smul.addr %s247, 5632
        %s249 = scalar_lea.vmem [#allocation3], %s248
        %p250 = pneg %p68
        %p251 = pneg %p65
        %p252 = pneg %p89
        %p253 = pneg %p86
        %p254 = pneg %p110
        %p255 = pneg %p107
        %p256 = pneg %p131
        %p257 = pneg %p128
        %p258 = pneg %p152
        %p259 = pneg %p149
        %s260 = smul.u32 176, %s21
        %p261 = scmp.lt.s32.totalorder %s260, 703
        %s262 = scalar_select %p261, %s260, 703
        %s263 = smul.addr %s262, 2
        %s264 = scalar_lea.vmem %s0, %s263
        %s265 = smul.u32 176, %s21
        %s266 = smul.u32 176, %s21
        %p268 = scmp.eq.s32.totalorder %s21, 0
        // Predicated region
        $region49: #{mlp_forward.1} parent=39 // pred_check
          %p269 = pneg %p268
        $region50: #{mlp_forward.1} parent=39 // pred_check_branch
          %271 = sbr.rel (%p269) target = $region52
        $region51: #{mlp_forward.1} parent=39 // pred_region
          %vm272 = vcmask 15360
          %273 = vst.msk [vmem:[#allocation2] sm:$0xff] %vm272, 0.0
          %274 = vst.msk [vmem:[#allocation2 + $0x8] sm:$0xff] %vm272, 0.0
          %275 = vst.msk [vmem:[#allocation2 + $0x10] sm:$0xff] %vm272, 0.0
          %276 = vst.msk [vmem:[#allocation2 + $0x18] sm:$0xff] %vm272, 0.0
          %277 = vst.msk [vmem:[#allocation2 + $0x20] sm:$0xff] %vm272, 0.0
          %278 = vst.msk [vmem:[#allocation2 + $0x28] sm:$0xff] %vm272, 0.0
          %279 = vst.msk [vmem:[#allocation2 + $0x30] sm:$0xff] %vm272, 0.0
          %280 = vst.msk [vmem:[#allocation2 + $0x38] sm:$0xff] %vm272, 0.0
        $region52: #{mlp_forward.1} parent=39 // pred_fallthru
          _
        %v281 = vld [vmem:[%s264] sm:$0xff]
        %v282 = vld [vmem:[%s264 + $0x8] sm:$0xff]
        %v283 = vld [vmem:[%s264 + $0x10] sm:$0xff]
        %v284 = vld [vmem:[%s264 + $0x18] sm:$0xff]
        %v285 = vld [vmem:[%s264 + $0x20] sm:$0xff]
        %v286 = vld [vmem:[%s264 + $0x28] sm:$0xff]
        %v287 = vld [vmem:[%s264 + $0x30] sm:$0xff]
        %v288 = vld [vmem:[%s264 + $0x38] sm:$0xff]
        %v289 = vld [vmem:[%s264 + $0x40] sm:$0xff]
        %v290 = vld [vmem:[%s264 + $0x48] sm:$0xff]
        %v291 = vld [vmem:[%s264 + $0x50] sm:$0xff]
        %v292 = vld [vmem:[%s264 + $0x58] sm:$0xff]
        %v293 = vld [vmem:[%s264 + $0x60] sm:$0xff]
        %v294 = vld [vmem:[%s264 + $0x68] sm:$0xff]
        %v295 = vld [vmem:[%s264 + $0x70] sm:$0xff]
        %v296 = vld [vmem:[%s264 + $0x78] sm:$0xff]
        %v297 = vld [vmem:[%s264 + $0x80] sm:$0xff]
        %v298 = vld [vmem:[%s264 + $0x88] sm:$0xff]
        %v299 = vld [vmem:[%s264 + $0x90] sm:$0xff]
        %v300 = vld [vmem:[%s264 + $0x98] sm:$0xff]
        %v301 = vld [vmem:[%s264 + $0xa0] sm:$0xff]
        %v302 = vld [vmem:[%s264 + $0xa8] sm:$0xff]
        %v303 = vld [vmem:[%s264 + $0xb0] sm:$0xff]
        %v304 = vld [vmem:[%s264 + $0xb8] sm:$0xff]
        %v305 = vld [vmem:[%s264 + $0xc0] sm:$0xff]
        %v306 = vld [vmem:[%s264 + $0xc8] sm:$0xff]
        %v307 = vld [vmem:[%s264 + $0xd0] sm:$0xff]
        %v308 = vld [vmem:[%s264 + $0xd8] sm:$0xff]
        %v309 = vld [vmem:[%s264 + $0xe0] sm:$0xff]
        %v310 = vld [vmem:[%s264 + $0xe8] sm:$0xff]
        %v311 = vld [vmem:[%s264 + $0xf0] sm:$0xff]
        %v312 = vld [vmem:[%s264 + $0xf8] sm:$0xff]
        %v313 = vld [vmem:[%s264 + $0x100] sm:$0xff]
        %v314 = vld [vmem:[%s264 + $0x108] sm:$0xff]
        %v315 = vld [vmem:[%s264 + $0x110] sm:$0xff]
        %v316 = vld [vmem:[%s264 + $0x118] sm:$0xff]
        %v317 = vld [vmem:[%s264 + $0x120] sm:$0xff]
        %v318 = vld [vmem:[%s264 + $0x128] sm:$0xff]
        %v319 = vld [vmem:[%s264 + $0x130] sm:$0xff]
        %v320 = vld [vmem:[%s264 + $0x138] sm:$0xff]
        %v321 = vld [vmem:[%s264 + $0x140] sm:$0xff]
        %v322 = vld [vmem:[%s264 + $0x148] sm:$0xff]
        %v323 = vld [vmem:[%s264 + $0x150] sm:$0xff]
        %v324 = vld [vmem:[%s264 + $0x158] sm:$0xff]
        %v369 = vcombine.high %v281, %v281
        %v371 = vunpack.c.l.s4 1983009808
        %v372 = vunpack.c.0.s8 %v371
        %v373 = vlaneseq
        %v374 = vshrl.u32 %v373, 7
        %v375 = vsub.s32 %v372, %v374
        %v376 = vrot.slane %v281, %v375
        %v378 = vunpack.c.l.s4 1983009808
        %v379 = vunpack.c.0.s8 %v378
        %v380 = vlaneseq
        %v381 = vshrl.u32 %v380, 7
        %v382 = vsub.s32 %v379, %v381
        %v383 = vrot.slane %v369, %v382
        %v384 = vcombine.high %v376, %v376
        %v385 = vcombine.high %v383, %v383
        %v386 = vcombine.high %v282, %v282
        %v388 = vunpack.c.l.s4 1983009808
        %v389 = vunpack.c.0.s8 %v388
        %v390 = vlaneseq
        %v391 = vshrl.u32 %v390, 7
        %v392 = vsub.s32 %v389, %v391
        %v393 = vrot.slane %v282, %v392
        %v395 = vunpack.c.l.s4 1983009808
        %v396 = vunpack.c.0.s8 %v395
        %v397 = vlaneseq
        %v398 = vshrl.u32 %v397, 7
        %v399 = vsub.s32 %v396, %v398
        %v400 = vrot.slane %v386, %v399
        %v401 = vcombine.high %v393, %v393
        %v402 = vcombine.high %v400, %v400
        %v403 = vcombine.high %v283, %v283
        %v405 = vunpack.c.l.s4 1983009808
        %v406 = vunpack.c.0.s8 %v405
        %v407 = vlaneseq
        %v408 = vshrl.u32 %v407, 7
        %v409 = vsub.s32 %v406, %v408
        %v410 = vrot.slane %v283, %v409
        %v412 = vunpack.c.l.s4 1983009808
        %v413 = vunpack.c.0.s8 %v412
        %v414 = vlaneseq
        %v415 = vshrl.u32 %v414, 7
        %v416 = vsub.s32 %v413, %v415
        %v417 = vrot.slane %v403, %v416
        %v418 = vcombine.high %v410, %v410
        %v419 = vcombine.high %v417, %v417
        %v420 = vcombine.high %v284, %v284
        %v422 = vunpack.c.l.s4 1983009808
        %v423 = vunpack.c.0.s8 %v422
        %v424 = vlaneseq
        %v425 = vshrl.u32 %v424, 7
        %v426 = vsub.s32 %v423, %v425
        %v427 = vrot.slane %v284, %v426
        %v429 = vunpack.c.l.s4 1983009808
        %v430 = vunpack.c.0.s8 %v429
        %v431 = vlaneseq
        %v432 = vshrl.u32 %v431, 7
        %v433 = vsub.s32 %v430, %v432
        %v434 = vrot.slane %v420, %v433
        %v435 = vcombine.high %v427, %v427
        %v436 = vcombine.high %v434, %v434
        %v437 = vcombine.high %v285, %v285
        %v439 = vunpack.c.l.s4 1983009808
        %v440 = vunpack.c.0.s8 %v439
        %v441 = vlaneseq
        %v442 = vshrl.u32 %v441, 7
        %v443 = vsub.s32 %v440, %v442
        %v444 = vrot.slane %v285, %v443
        %v446 = vunpack.c.l.s4 1983009808
        %v447 = vunpack.c.0.s8 %v446
        %v448 = vlaneseq
        %v449 = vshrl.u32 %v448, 7
        %v450 = vsub.s32 %v447, %v449
        %v451 = vrot.slane %v437, %v450
        %v452 = vcombine.high %v444, %v444
        %v453 = vcombine.high %v451, %v451
        %v454 = vcombine.high %v286, %v286
        %v456 = vunpack.c.l.s4 1983009808
        %v457 = vunpack.c.0.s8 %v456
        %v458 = vlaneseq
        %v459 = vshrl.u32 %v458, 7
        %v460 = vsub.s32 %v457, %v459
        %v461 = vrot.slane %v286, %v460
        %v463 = vunpack.c.l.s4 1983009808
        %v464 = vunpack.c.0.s8 %v463
        %v465 = vlaneseq
        %v466 = vshrl.u32 %v465, 7
        %v467 = vsub.s32 %v464, %v466
        %v468 = vrot.slane %v454, %v467
        %v469 = vcombine.high %v461, %v461
        %v470 = vcombine.high %v468, %v468
        %v471 = vcombine.high %v287, %v287
        %v473 = vunpack.c.l.s4 1983009808
        %v474 = vunpack.c.0.s8 %v473
        %v475 = vlaneseq
        %v476 = vshrl.u32 %v475, 7
        %v477 = vsub.s32 %v474, %v476
        %v478 = vrot.slane %v287, %v477
        %v480 = vunpack.c.l.s4 1983009808
        %v481 = vunpack.c.0.s8 %v480
        %v482 = vlaneseq
        %v483 = vshrl.u32 %v482, 7
        %v484 = vsub.s32 %v481, %v483
        %v485 = vrot.slane %v471, %v484
        %v486 = vcombine.high %v478, %v478
        %v487 = vcombine.high %v485, %v485
        %v488 = vcombine.high %v288, %v288
        %v490 = vunpack.c.l.s4 1983009808
        %v491 = vunpack.c.0.s8 %v490
        %v492 = vlaneseq
        %v493 = vshrl.u32 %v492, 7
        %v494 = vsub.s32 %v491, %v493
        %v495 = vrot.slane %v288, %v494
        %v497 = vunpack.c.l.s4 1983009808
        %v498 = vunpack.c.0.s8 %v497
        %v499 = vlaneseq
        %v500 = vshrl.u32 %v499, 7
        %v501 = vsub.s32 %v498, %v500
        %v502 = vrot.slane %v488, %v501
        %v503 = vcombine.high %v495, %v495
        %v504 = vcombine.high %v502, %v502
        %v505 = vcombine.high %v289, %v289
        %v507 = vunpack.c.l.s4 1983009808
        %v508 = vunpack.c.0.s8 %v507
        %v509 = vlaneseq
        %v510 = vshrl.u32 %v509, 7
        %v511 = vsub.s32 %v508, %v510
        %v512 = vrot.slane %v289, %v511
        %v514 = vunpack.c.l.s4 1983009808
        %v515 = vunpack.c.0.s8 %v514
        %v516 = vlaneseq
        %v517 = vshrl.u32 %v516, 7
        %v518 = vsub.s32 %v515, %v517
        %v519 = vrot.slane %v505, %v518
        %v520 = vcombine.high %v512, %v512
        %v521 = vcombine.high %v519, %v519
        %v522 = vcombine.high %v290, %v290
        %v524 = vunpack.c.l.s4 1983009808
        %v525 = vunpack.c.0.s8 %v524
        %v526 = vlaneseq
        %v527 = vshrl.u32 %v526, 7
        %v528 = vsub.s32 %v525, %v527
        %v529 = vrot.slane %v290, %v528
        %v531 = vunpack.c.l.s4 1983009808
        %v532 = vunpack.c.0.s8 %v531
        %v533 = vlaneseq
        %v534 = vshrl.u32 %v533, 7
        %v535 = vsub.s32 %v532, %v534
        %v536 = vrot.slane %v522, %v535
        %v537 = vcombine.high %v529, %v529
        %v538 = vcombine.high %v536, %v536
        %v539 = vcombine.high %v291, %v291
        %v541 = vunpack.c.l.s4 1983009808
        %v542 = vunpack.c.0.s8 %v541
        %v543 = vlaneseq
        %v544 = vshrl.u32 %v543, 7
        %v545 = vsub.s32 %v542, %v544
        %v546 = vrot.slane %v291, %v545
        %v548 = vunpack.c.l.s4 1983009808
        %v549 = vunpack.c.0.s8 %v548
        %v550 = vlaneseq
        %v551 = vshrl.u32 %v550, 7
        %v552 = vsub.s32 %v549, %v551
        %v553 = vrot.slane %v539, %v552
        %v554 = vcombine.high %v546, %v546
        %v555 = vcombine.high %v553, %v553
        %v556 = vcombine.high %v292, %v292
        %v558 = vunpack.c.l.s4 1983009808
        %v559 = vunpack.c.0.s8 %v558
        %v560 = vlaneseq
        %v561 = vshrl.u32 %v560, 7
        %v562 = vsub.s32 %v559, %v561
        %v563 = vrot.slane %v292, %v562
        %v565 = vunpack.c.l.s4 1983009808
        %v566 = vunpack.c.0.s8 %v565
        %v567 = vlaneseq
        %v568 = vshrl.u32 %v567, 7
        %v569 = vsub.s32 %v566, %v568
        %v570 = vrot.slane %v556, %v569
        %v571 = vcombine.high %v563, %v563
        %v572 = vcombine.high %v570, %v570
        %v573 = vcombine.high %v293, %v293
        %v575 = vunpack.c.l.s4 1983009808
        %v576 = vunpack.c.0.s8 %v575
        %v577 = vlaneseq
        %v578 = vshrl.u32 %v577, 7
        %v579 = vsub.s32 %v576, %v578
        %v580 = vrot.slane %v293, %v579
        %v582 = vunpack.c.l.s4 1983009808
        %v583 = vunpack.c.0.s8 %v582
        %v584 = vlaneseq
        %v585 = vshrl.u32 %v584, 7
        %v586 = vsub.s32 %v583, %v585
        %v587 = vrot.slane %v573, %v586
        %v588 = vcombine.high %v580, %v580
        %v589 = vcombine.high %v587, %v587
        %v590 = vcombine.high %v294, %v294
        %v592 = vunpack.c.l.s4 1983009808
        %v593 = vunpack.c.0.s8 %v592
        %v594 = vlaneseq
        %v595 = vshrl.u32 %v594, 7
        %v596 = vsub.s32 %v593, %v595
        %v597 = vrot.slane %v294, %v596
        %v599 = vunpack.c.l.s4 1983009808
        %v600 = vunpack.c.0.s8 %v599
        %v601 = vlaneseq
        %v602 = vshrl.u32 %v601, 7
        %v603 = vsub.s32 %v600, %v602
        %v604 = vrot.slane %v590, %v603
        %v605 = vcombine.high %v597, %v597
        %v606 = vcombine.high %v604, %v604
        %v607 = vcombine.high %v295, %v295
        %v609 = vunpack.c.l.s4 1983009808
        %v610 = vunpack.c.0.s8 %v609
        %v611 = vlaneseq
        %v612 = vshrl.u32 %v611, 7
        %v613 = vsub.s32 %v610, %v612
        %v614 = vrot.slane %v295, %v613
        %v616 = vunpack.c.l.s4 1983009808
        %v617 = vunpack.c.0.s8 %v616
        %v618 = vlaneseq
        %v619 = vshrl.u32 %v618, 7
        %v620 = vsub.s32 %v617, %v619
        %v621 = vrot.slane %v607, %v620
        %v622 = vcombine.high %v614, %v614
        %v623 = vcombine.high %v621, %v621
        %v624 = vcombine.high %v296, %v296
        %v626 = vunpack.c.l.s4 1983009808
        %v627 = vunpack.c.0.s8 %v626
        %v628 = vlaneseq
        %v629 = vshrl.u32 %v628, 7
        %v630 = vsub.s32 %v627, %v629
        %v631 = vrot.slane %v296, %v630
        %v633 = vunpack.c.l.s4 1983009808
        %v634 = vunpack.c.0.s8 %v633
        %v635 = vlaneseq
        %v636 = vshrl.u32 %v635, 7
        %v637 = vsub.s32 %v634, %v636
        %v638 = vrot.slane %v624, %v637
        %v639 = vcombine.high %v631, %v631
        %v640 = vcombine.high %v638, %v638
        %v641 = vcombine.high %v297, %v297
        %v643 = vunpack.c.l.s4 1983009808
        %v644 = vunpack.c.0.s8 %v643
        %v645 = vlaneseq
        %v646 = vshrl.u32 %v645, 7
        %v647 = vsub.s32 %v644, %v646
        %v648 = vrot.slane %v297, %v647
        %v650 = vunpack.c.l.s4 1983009808
        %v651 = vunpack.c.0.s8 %v650
        %v652 = vlaneseq
        %v653 = vshrl.u32 %v652, 7
        %v654 = vsub.s32 %v651, %v653
        %v655 = vrot.slane %v641, %v654
        %v656 = vcombine.high %v648, %v648
        %v657 = vcombine.high %v655, %v655
        %v658 = vcombine.high %v298, %v298
        %v660 = vunpack.c.l.s4 1983009808
        %v661 = vunpack.c.0.s8 %v660
        %v662 = vlaneseq
        %v663 = vshrl.u32 %v662, 7
        %v664 = vsub.s32 %v661, %v663
        %v665 = vrot.slane %v298, %v664
        %v667 = vunpack.c.l.s4 1983009808
        %v668 = vunpack.c.0.s8 %v667
        %v669 = vlaneseq
        %v670 = vshrl.u32 %v669, 7
        %v671 = vsub.s32 %v668, %v670
        %v672 = vrot.slane %v658, %v671
        %v673 = vcombine.high %v665, %v665
        %v674 = vcombine.high %v672, %v672
        %v675 = vcombine.high %v299, %v299
        %v677 = vunpack.c.l.s4 1983009808
        %v678 = vunpack.c.0.s8 %v677
        %v679 = vlaneseq
        %v680 = vshrl.u32 %v679, 7
        %v681 = vsub.s32 %v678, %v680
        %v682 = vrot.slane %v299, %v681
        %v684 = vunpack.c.l.s4 1983009808
        %v685 = vunpack.c.0.s8 %v684
        %v686 = vlaneseq
        %v687 = vshrl.u32 %v686, 7
        %v688 = vsub.s32 %v685, %v687
        %v689 = vrot.slane %v675, %v688
        %v690 = vcombine.high %v682, %v682
        %v691 = vcombine.high %v689, %v689
        %v692 = vcombine.high %v300, %v300
        %v694 = vunpack.c.l.s4 1983009808
        %v695 = vunpack.c.0.s8 %v694
        %v696 = vlaneseq
        %v697 = vshrl.u32 %v696, 7
        %v698 = vsub.s32 %v695, %v697
        %v699 = vrot.slane %v300, %v698
        %v701 = vunpack.c.l.s4 1983009808
        %v702 = vunpack.c.0.s8 %v701
        %v703 = vlaneseq
        %v704 = vshrl.u32 %v703, 7
        %v705 = vsub.s32 %v702, %v704
        %v706 = vrot.slane %v692, %v705
        %v707 = vcombine.high %v699, %v699
        %v708 = vcombine.high %v706, %v706
        %v709 = vcombine.high %v301, %v301
        %v711 = vunpack.c.l.s4 1983009808
        %v712 = vunpack.c.0.s8 %v711
        %v713 = vlaneseq
        %v714 = vshrl.u32 %v713, 7
        %v715 = vsub.s32 %v712, %v714
        %v716 = vrot.slane %v301, %v715
        %v718 = vunpack.c.l.s4 1983009808
        %v719 = vunpack.c.0.s8 %v718
        %v720 = vlaneseq
        %v721 = vshrl.u32 %v720, 7
        %v722 = vsub.s32 %v719, %v721
        %v723 = vrot.slane %v709, %v722
        %v724 = vcombine.high %v716, %v716
        %v725 = vcombine.high %v723, %v723
        %v726 = vcombine.high %v302, %v302
        %v728 = vunpack.c.l.s4 1983009808
        %v729 = vunpack.c.0.s8 %v728
        %v730 = vlaneseq
        %v731 = vshrl.u32 %v730, 7
        %v732 = vsub.s32 %v729, %v731
        %v733 = vrot.slane %v302, %v732
        %v735 = vunpack.c.l.s4 1983009808
        %v736 = vunpack.c.0.s8 %v735
        %v737 = vlaneseq
        %v738 = vshrl.u32 %v737, 7
        %v739 = vsub.s32 %v736, %v738
        %v740 = vrot.slane %v726, %v739
        %v741 = vcombine.high %v733, %v733
        %v742 = vcombine.high %v740, %v740
        %v743 = vcombine.high %v303, %v303
        %v745 = vunpack.c.l.s4 1983009808
        %v746 = vunpack.c.0.s8 %v745
        %v747 = vlaneseq
        %v748 = vshrl.u32 %v747, 7
        %v749 = vsub.s32 %v746, %v748
        %v750 = vrot.slane %v303, %v749
        %v752 = vunpack.c.l.s4 1983009808
        %v753 = vunpack.c.0.s8 %v752
        %v754 = vlaneseq
        %v755 = vshrl.u32 %v754, 7
        %v756 = vsub.s32 %v753, %v755
        %v757 = vrot.slane %v743, %v756
        %v758 = vcombine.high %v750, %v750
        %v759 = vcombine.high %v757, %v757
        %v760 = vcombine.high %v304, %v304
        %v762 = vunpack.c.l.s4 1983009808
        %v763 = vunpack.c.0.s8 %v762
        %v764 = vlaneseq
        %v765 = vshrl.u32 %v764, 7
        %v766 = vsub.s32 %v763, %v765
        %v767 = vrot.slane %v304, %v766
        %v769 = vunpack.c.l.s4 1983009808
        %v770 = vunpack.c.0.s8 %v769
        %v771 = vlaneseq
        %v772 = vshrl.u32 %v771, 7
        %v773 = vsub.s32 %v770, %v772
        %v774 = vrot.slane %v760, %v773
        %v775 = vcombine.high %v767, %v767
        %v776 = vcombine.high %v774, %v774
        %v777 = vcombine.high %v305, %v305
        %v779 = vunpack.c.l.s4 1983009808
        %v780 = vunpack.c.0.s8 %v779
        %v781 = vlaneseq
        %v782 = vshrl.u32 %v781, 7
        %v783 = vsub.s32 %v780, %v782
        %v784 = vrot.slane %v305, %v783
        %v786 = vunpack.c.l.s4 1983009808
        %v787 = vunpack.c.0.s8 %v786
        %v788 = vlaneseq
        %v789 = vshrl.u32 %v788, 7
        %v790 = vsub.s32 %v787, %v789
        %v791 = vrot.slane %v777, %v790
        %v792 = vcombine.high %v784, %v784
        %v793 = vcombine.high %v791, %v791
        %v794 = vcombine.high %v306, %v306
        %v796 = vunpack.c.l.s4 1983009808
        %v797 = vunpack.c.0.s8 %v796
        %v798 = vlaneseq
        %v799 = vshrl.u32 %v798, 7
        %v800 = vsub.s32 %v797, %v799
        %v801 = vrot.slane %v306, %v800
        %v803 = vunpack.c.l.s4 1983009808
        %v804 = vunpack.c.0.s8 %v803
        %v805 = vlaneseq
        %v806 = vshrl.u32 %v805, 7
        %v807 = vsub.s32 %v804, %v806
        %v808 = vrot.slane %v794, %v807
        %v809 = vcombine.high %v801, %v801
        %v810 = vcombine.high %v808, %v808
        %v811 = vcombine.high %v307, %v307
        %v813 = vunpack.c.l.s4 1983009808
        %v814 = vunpack.c.0.s8 %v813
        %v815 = vlaneseq
        %v816 = vshrl.u32 %v815, 7
        %v817 = vsub.s32 %v814, %v816
        %v818 = vrot.slane %v307, %v817
        %v820 = vunpack.c.l.s4 1983009808
        %v821 = vunpack.c.0.s8 %v820
        %v822 = vlaneseq
        %v823 = vshrl.u32 %v822, 7
        %v824 = vsub.s32 %v821, %v823
        %v825 = vrot.slane %v811, %v824
        %v826 = vcombine.high %v818, %v818
        %v827 = vcombine.high %v825, %v825
        %v828 = vcombine.high %v308, %v308
        %v830 = vunpack.c.l.s4 1983009808
        %v831 = vunpack.c.0.s8 %v830
        %v832 = vlaneseq
        %v833 = vshrl.u32 %v832, 7
        %v834 = vsub.s32 %v831, %v833
        %v835 = vrot.slane %v308, %v834
        %v837 = vunpack.c.l.s4 1983009808
        %v838 = vunpack.c.0.s8 %v837
        %v839 = vlaneseq
        %v840 = vshrl.u32 %v839, 7
        %v841 = vsub.s32 %v838, %v840
        %v842 = vrot.slane %v828, %v841
        %v843 = vcombine.high %v835, %v835
        %v844 = vcombine.high %v842, %v842
        %v845 = vcombine.high %v309, %v309
        %v847 = vunpack.c.l.s4 1983009808
        %v848 = vunpack.c.0.s8 %v847
        %v849 = vlaneseq
        %v850 = vshrl.u32 %v849, 7
        %v851 = vsub.s32 %v848, %v850
        %v852 = vrot.slane %v309, %v851
        %v854 = vunpack.c.l.s4 1983009808
        %v855 = vunpack.c.0.s8 %v854
        %v856 = vlaneseq
        %v857 = vshrl.u32 %v856, 7
        %v858 = vsub.s32 %v855, %v857
        %v859 = vrot.slane %v845, %v858
        %v860 = vcombine.high %v852, %v852
        %v861 = vcombine.high %v859, %v859
        %v862 = vcombine.high %v310, %v310
        %v864 = vunpack.c.l.s4 1983009808
        %v865 = vunpack.c.0.s8 %v864
        %v866 = vlaneseq
        %v867 = vshrl.u32 %v866, 7
        %v868 = vsub.s32 %v865, %v867
        %v869 = vrot.slane %v310, %v868
        %v871 = vunpack.c.l.s4 1983009808
        %v872 = vunpack.c.0.s8 %v871
        %v873 = vlaneseq
        %v874 = vshrl.u32 %v873, 7
        %v875 = vsub.s32 %v872, %v874
        %v876 = vrot.slane %v862, %v875
        %v877 = vcombine.high %v869, %v869
        %v878 = vcombine.high %v876, %v876
        %v879 = vcombine.high %v311, %v311
        %v881 = vunpack.c.l.s4 1983009808
        %v882 = vunpack.c.0.s8 %v881
        %v883 = vlaneseq
        %v884 = vshrl.u32 %v883, 7
        %v885 = vsub.s32 %v882, %v884
        %v886 = vrot.slane %v311, %v885
        %v888 = vunpack.c.l.s4 1983009808
        %v889 = vunpack.c.0.s8 %v888
        %v890 = vlaneseq
        %v891 = vshrl.u32 %v890, 7
        %v892 = vsub.s32 %v889, %v891
        %v893 = vrot.slane %v879, %v892
        %v894 = vcombine.high %v886, %v886
        %v895 = vcombine.high %v893, %v893
        %v896 = vcombine.high %v312, %v312
        %v898 = vunpack.c.l.s4 1983009808
        %v899 = vunpack.c.0.s8 %v898
        %v900 = vlaneseq
        %v901 = vshrl.u32 %v900, 7
        %v902 = vsub.s32 %v899, %v901
        %v903 = vrot.slane %v312, %v902
        %v905 = vunpack.c.l.s4 1983009808
        %v906 = vunpack.c.0.s8 %v905
        %v907 = vlaneseq
        %v908 = vshrl.u32 %v907, 7
        %v909 = vsub.s32 %v906, %v908
        %v910 = vrot.slane %v896, %v909
        %v911 = vcombine.high %v903, %v903
        %v912 = vcombine.high %v910, %v910
        %v913 = vcombine.high %v313, %v313
        %v915 = vunpack.c.l.s4 1983009808
        %v916 = vunpack.c.0.s8 %v915
        %v917 = vlaneseq
        %v918 = vshrl.u32 %v917, 7
        %v919 = vsub.s32 %v916, %v918
        %v920 = vrot.slane %v313, %v919
        %v922 = vunpack.c.l.s4 1983009808
        %v923 = vunpack.c.0.s8 %v922
        %v924 = vlaneseq
        %v925 = vshrl.u32 %v924, 7
        %v926 = vsub.s32 %v923, %v925
        %v927 = vrot.slane %v913, %v926
        %v928 = vcombine.high %v920, %v920
        %v929 = vcombine.high %v927, %v927
        %v930 = vcombine.high %v314, %v314
        %v932 = vunpack.c.l.s4 1983009808
        %v933 = vunpack.c.0.s8 %v932
        %v934 = vlaneseq
        %v935 = vshrl.u32 %v934, 7
        %v936 = vsub.s32 %v933, %v935
        %v937 = vrot.slane %v314, %v936
        %v939 = vunpack.c.l.s4 1983009808
        %v940 = vunpack.c.0.s8 %v939
        %v941 = vlaneseq
        %v942 = vshrl.u32 %v941, 7
        %v943 = vsub.s32 %v940, %v942
        %v944 = vrot.slane %v930, %v943
        %v945 = vcombine.high %v937, %v937
        %v946 = vcombine.high %v944, %v944
        %v947 = vcombine.high %v315, %v315
        %v949 = vunpack.c.l.s4 1983009808
        %v950 = vunpack.c.0.s8 %v949
        %v951 = vlaneseq
        %v952 = vshrl.u32 %v951, 7
        %v953 = vsub.s32 %v950, %v952
        %v954 = vrot.slane %v315, %v953
        %v956 = vunpack.c.l.s4 1983009808
        %v957 = vunpack.c.0.s8 %v956
        %v958 = vlaneseq
        %v959 = vshrl.u32 %v958, 7
        %v960 = vsub.s32 %v957, %v959
        %v961 = vrot.slane %v947, %v960
        %v962 = vcombine.high %v954, %v954
        %v963 = vcombine.high %v961, %v961
        %v964 = vcombine.high %v316, %v316
        %v966 = vunpack.c.l.s4 1983009808
        %v967 = vunpack.c.0.s8 %v966
        %v968 = vlaneseq
        %v969 = vshrl.u32 %v968, 7
        %v970 = vsub.s32 %v967, %v969
        %v971 = vrot.slane %v316, %v970
        %v973 = vunpack.c.l.s4 1983009808
        %v974 = vunpack.c.0.s8 %v973
        %v975 = vlaneseq
        %v976 = vshrl.u32 %v975, 7
        %v977 = vsub.s32 %v974, %v976
        %v978 = vrot.slane %v964, %v977
        %v979 = vcombine.high %v971, %v971
        %v980 = vcombine.high %v978, %v978
        %v981 = vcombine.high %v317, %v317
        %v983 = vunpack.c.l.s4 1983009808
        %v984 = vunpack.c.0.s8 %v983
        %v985 = vlaneseq
        %v986 = vshrl.u32 %v985, 7
        %v987 = vsub.s32 %v984, %v986
        %v988 = vrot.slane %v317, %v987
        %v990 = vunpack.c.l.s4 1983009808
        %v991 = vunpack.c.0.s8 %v990
        %v992 = vlaneseq
        %v993 = vshrl.u32 %v992, 7
        %v994 = vsub.s32 %v991, %v993
        %v995 = vrot.slane %v981, %v994
        %v996 = vcombine.high %v988, %v988
        %v997 = vcombine.high %v995, %v995
        %v998 = vcombine.high %v318, %v318
        %v1000 = vunpack.c.l.s4 1983009808
        %v1001 = vunpack.c.0.s8 %v1000
        %v1002 = vlaneseq
        %v1003 = vshrl.u32 %v1002, 7
        %v1004 = vsub.s32 %v1001, %v1003
        %v1005 = vrot.slane %v318, %v1004
        %v1007 = vunpack.c.l.s4 1983009808
        %v1008 = vunpack.c.0.s8 %v1007
        %v1009 = vlaneseq
        %v1010 = vshrl.u32 %v1009, 7
        %v1011 = vsub.s32 %v1008, %v1010
        %v1012 = vrot.slane %v998, %v1011
        %v1013 = vcombine.high %v1005, %v1005
        %v1014 = vcombine.high %v1012, %v1012
        %v1015 = vcombine.high %v319, %v319
        %v1017 = vunpack.c.l.s4 1983009808
        %v1018 = vunpack.c.0.s8 %v1017
        %v1019 = vlaneseq
        %v1020 = vshrl.u32 %v1019, 7
        %v1021 = vsub.s32 %v1018, %v1020
        %v1022 = vrot.slane %v319, %v1021
        %v1024 = vunpack.c.l.s4 1983009808
        %v1025 = vunpack.c.0.s8 %v1024
        %v1026 = vlaneseq
        %v1027 = vshrl.u32 %v1026, 7
        %v1028 = vsub.s32 %v1025, %v1027
        %v1029 = vrot.slane %v1015, %v1028
        %v1030 = vcombine.high %v1022, %v1022
        %v1031 = vcombine.high %v1029, %v1029
        %v1032 = vcombine.high %v320, %v320
        %v1034 = vunpack.c.l.s4 1983009808
        %v1035 = vunpack.c.0.s8 %v1034
        %v1036 = vlaneseq
        %v1037 = vshrl.u32 %v1036, 7
        %v1038 = vsub.s32 %v1035, %v1037
        %v1039 = vrot.slane %v320, %v1038
        %v1041 = vunpack.c.l.s4 1983009808
        %v1042 = vunpack.c.0.s8 %v1041
        %v1043 = vlaneseq
        %v1044 = vshrl.u32 %v1043, 7
        %v1045 = vsub.s32 %v1042, %v1044
        %v1046 = vrot.slane %v1032, %v1045
        %v1047 = vcombine.high %v1039, %v1039
        %v1048 = vcombine.high %v1046, %v1046
        %v1049 = vcombine.high %v321, %v321
        %v1051 = vunpack.c.l.s4 1983009808
        %v1052 = vunpack.c.0.s8 %v1051
        %v1053 = vlaneseq
        %v1054 = vshrl.u32 %v1053, 7
        %v1055 = vsub.s32 %v1052, %v1054
        %v1056 = vrot.slane %v321, %v1055
        %v1058 = vunpack.c.l.s4 1983009808
        %v1059 = vunpack.c.0.s8 %v1058
        %v1060 = vlaneseq
        %v1061 = vshrl.u32 %v1060, 7
        %v1062 = vsub.s32 %v1059, %v1061
        %v1063 = vrot.slane %v1049, %v1062
        %v1064 = vcombine.high %v1056, %v1056
        %v1065 = vcombine.high %v1063, %v1063
        %v1066 = vcombine.high %v322, %v322
        %v1068 = vunpack.c.l.s4 1983009808
        %v1069 = vunpack.c.0.s8 %v1068
        %v1070 = vlaneseq
        %v1071 = vshrl.u32 %v1070, 7
        %v1072 = vsub.s32 %v1069, %v1071
        %v1073 = vrot.slane %v322, %v1072
        %v1075 = vunpack.c.l.s4 1983009808
        %v1076 = vunpack.c.0.s8 %v1075
        %v1077 = vlaneseq
        %v1078 = vshrl.u32 %v1077, 7
        %v1079 = vsub.s32 %v1076, %v1078
        %v1080 = vrot.slane %v1066, %v1079
        %v1081 = vcombine.high %v1073, %v1073
        %v1082 = vcombine.high %v1080, %v1080
        %v1083 = vcombine.high %v323, %v323
        %v1085 = vunpack.c.l.s4 1983009808
        %v1086 = vunpack.c.0.s8 %v1085
        %v1087 = vlaneseq
        %v1088 = vshrl.u32 %v1087, 7
        %v1089 = vsub.s32 %v1086, %v1088
        %v1090 = vrot.slane %v323, %v1089
        %v1092 = vunpack.c.l.s4 1983009808
        %v1093 = vunpack.c.0.s8 %v1092
        %v1094 = vlaneseq
        %v1095 = vshrl.u32 %v1094, 7
        %v1096 = vsub.s32 %v1093, %v1095
        %v1097 = vrot.slane %v1083, %v1096
        %v1098 = vcombine.high %v1090, %v1090
        %v1099 = vcombine.high %v1097, %v1097
        %v1100 = vcombine.high %v324, %v324
        %v1102 = vunpack.c.l.s4 1983009808
        %v1103 = vunpack.c.0.s8 %v1102
        %v1104 = vlaneseq
        %v1105 = vshrl.u32 %v1104, 7
        %v1106 = vsub.s32 %v1103, %v1105
        %v1107 = vrot.slane %v324, %v1106
        %v1109 = vunpack.c.l.s4 1983009808
        %v1110 = vunpack.c.0.s8 %v1109
        %v1111 = vlaneseq
        %v1112 = vshrl.u32 %v1111, 7
        %v1113 = vsub.s32 %v1110, %v1112
        %v1114 = vrot.slane %v1100, %v1113
        %v1115 = vcombine.high %v1107, %v1107
        %v1116 = vcombine.high %v1114, %v1114
        %v1293 = vpack.c.bf16 %v376, %v376
        %v1294 = vpack.c.bf16 %v384, %v384
        %v1295 = vpack.c.bf16 %v383, %v383
        %v1296 = vpack.c.bf16 %v385, %v385
        %v1297 = vpack.c.bf16 %v393, %v393
        %v1298 = vpack.c.bf16 %v401, %v401
        %v1299 = vpack.c.bf16 %v400, %v400
        %v1300 = vpack.c.bf16 %v402, %v402
        %v1301 = vpack.c.bf16 %v410, %v410
        %v1302 = vpack.c.bf16 %v418, %v418
        %v1303 = vpack.c.bf16 %v417, %v417
        %v1304 = vpack.c.bf16 %v419, %v419
        %v1305 = vpack.c.bf16 %v427, %v427
        %v1306 = vpack.c.bf16 %v435, %v435
        %v1307 = vpack.c.bf16 %v434, %v434
        %v1308 = vpack.c.bf16 %v436, %v436
        %v1309 = vpack.c.bf16 %v444, %v444
        %v1310 = vpack.c.bf16 %v452, %v452
        %v1311 = vpack.c.bf16 %v451, %v451
        %v1312 = vpack.c.bf16 %v453, %v453
        %v1313 = vpack.c.bf16 %v461, %v461
        %v1314 = vpack.c.bf16 %v469, %v469
        %v1315 = vpack.c.bf16 %v468, %v468
        %v1316 = vpack.c.bf16 %v470, %v470
        %v1317 = vpack.c.bf16 %v478, %v478
        %v1318 = vpack.c.bf16 %v486, %v486
        %v1319 = vpack.c.bf16 %v485, %v485
        %v1320 = vpack.c.bf16 %v487, %v487
        %v1321 = vpack.c.bf16 %v495, %v495
        %v1322 = vpack.c.bf16 %v503, %v503
        %v1323 = vpack.c.bf16 %v502, %v502
        %v1324 = vpack.c.bf16 %v504, %v504
        %v1325 = vpack.c.bf16 %v512, %v512
        %v1326 = vpack.c.bf16 %v520, %v520
        %v1327 = vpack.c.bf16 %v519, %v519
        %v1328 = vpack.c.bf16 %v521, %v521
        %v1329 = vpack.c.bf16 %v529, %v529
        %v1330 = vpack.c.bf16 %v537, %v537
        %v1331 = vpack.c.bf16 %v536, %v536
        %v1332 = vpack.c.bf16 %v538, %v538
        %v1333 = vpack.c.bf16 %v546, %v546
        %v1334 = vpack.c.bf16 %v554, %v554
        %v1335 = vpack.c.bf16 %v553, %v553
        %v1336 = vpack.c.bf16 %v555, %v555
        %v1337 = vpack.c.bf16 %v563, %v563
        %v1338 = vpack.c.bf16 %v571, %v571
        %v1339 = vpack.c.bf16 %v570, %v570
        %v1340 = vpack.c.bf16 %v572, %v572
        %v1341 = vpack.c.bf16 %v580, %v580
        %v1342 = vpack.c.bf16 %v588, %v588
        %v1343 = vpack.c.bf16 %v587, %v587
        %v1344 = vpack.c.bf16 %v589, %v589
        %v1345 = vpack.c.bf16 %v597, %v597
        %v1346 = vpack.c.bf16 %v605, %v605
        %v1347 = vpack.c.bf16 %v604, %v604
        %v1348 = vpack.c.bf16 %v606, %v606
        %v1349 = vpack.c.bf16 %v614, %v614
        %v1350 = vpack.c.bf16 %v622, %v622
        %v1351 = vpack.c.bf16 %v621, %v621
        %v1352 = vpack.c.bf16 %v623, %v623
        %v1353 = vpack.c.bf16 %v631, %v631
        %v1354 = vpack.c.bf16 %v639, %v639
        %v1355 = vpack.c.bf16 %v638, %v638
        %v1356 = vpack.c.bf16 %v640, %v640
        %v1357 = vpack.c.bf16 %v648, %v648
        %v1358 = vpack.c.bf16 %v656, %v656
        %v1359 = vpack.c.bf16 %v655, %v655
        %v1360 = vpack.c.bf16 %v657, %v657
        %v1361 = vpack.c.bf16 %v665, %v665
        %v1362 = vpack.c.bf16 %v673, %v673
        %v1363 = vpack.c.bf16 %v672, %v672
        %v1364 = vpack.c.bf16 %v674, %v674
        %v1365 = vpack.c.bf16 %v682, %v682
        %v1366 = vpack.c.bf16 %v690, %v690
        %v1367 = vpack.c.bf16 %v689, %v689
        %v1368 = vpack.c.bf16 %v691, %v691
        %v1369 = vpack.c.bf16 %v699, %v699
        %v1370 = vpack.c.bf16 %v707, %v707
        %v1371 = vpack.c.bf16 %v706, %v706
        %v1372 = vpack.c.bf16 %v708, %v708
        %v1373 = vpack.c.bf16 %v716, %v716
        %v1374 = vpack.c.bf16 %v724, %v724
        %v1375 = vpack.c.bf16 %v723, %v723
        %v1376 = vpack.c.bf16 %v725, %v725
        %v1377 = vpack.c.bf16 %v733, %v733
        %v1378 = vpack.c.bf16 %v741, %v741
        %v1379 = vpack.c.bf16 %v740, %v740
        %v1380 = vpack.c.bf16 %v742, %v742
        %v1381 = vpack.c.bf16 %v750, %v750
        %v1382 = vpack.c.bf16 %v758, %v758
        %v1383 = vpack.c.bf16 %v757, %v757
        %v1384 = vpack.c.bf16 %v759, %v759
        %v1385 = vpack.c.bf16 %v767, %v767
        %v1386 = vpack.c.bf16 %v775, %v775
        %v1387 = vpack.c.bf16 %v774, %v774
        %v1388 = vpack.c.bf16 %v776, %v776
        %v1389 = vpack.c.bf16 %v784, %v784
        %v1390 = vpack.c.bf16 %v792, %v792
        %v1391 = vpack.c.bf16 %v791, %v791
        %v1392 = vpack.c.bf16 %v793, %v793
        %v1393 = vpack.c.bf16 %v801, %v801
        %v1394 = vpack.c.bf16 %v809, %v809
        %v1395 = vpack.c.bf16 %v808, %v808
        %v1396 = vpack.c.bf16 %v810, %v810
        %v1397 = vpack.c.bf16 %v818, %v818
        %v1398 = vpack.c.bf16 %v826, %v826
        %v1399 = vpack.c.bf16 %v825, %v825
        %v1400 = vpack.c.bf16 %v827, %v827
        %v1401 = vpack.c.bf16 %v835, %v835
        %v1402 = vpack.c.bf16 %v843, %v843
        %v1403 = vpack.c.bf16 %v842, %v842
        %v1404 = vpack.c.bf16 %v844, %v844
        %v1405 = vpack.c.bf16 %v852, %v852
        %v1406 = vpack.c.bf16 %v860, %v860
        %v1407 = vpack.c.bf16 %v859, %v859
        %v1408 = vpack.c.bf16 %v861, %v861
        %v1409 = vpack.c.bf16 %v869, %v869
        %v1410 = vpack.c.bf16 %v877, %v877
        %v1411 = vpack.c.bf16 %v876, %v876
        %v1412 = vpack.c.bf16 %v878, %v878
        %v1413 = vpack.c.bf16 %v886, %v886
        %v1414 = vpack.c.bf16 %v894, %v894
        %v1415 = vpack.c.bf16 %v893, %v893
        %v1416 = vpack.c.bf16 %v895, %v895
        %v1417 = vpack.c.bf16 %v903, %v903
        %v1418 = vpack.c.bf16 %v911, %v911
        %v1419 = vpack.c.bf16 %v910, %v910
        %v1420 = vpack.c.bf16 %v912, %v912
        %v1421 = vpack.c.bf16 %v920, %v920
        %v1422 = vpack.c.bf16 %v928, %v928
        %v1423 = vpack.c.bf16 %v927, %v927
        %v1424 = vpack.c.bf16 %v929, %v929
        %v1425 = vpack.c.bf16 %v937, %v937
        %v1426 = vpack.c.bf16 %v945, %v945
        %v1427 = vpack.c.bf16 %v944, %v944
        %v1428 = vpack.c.bf16 %v946, %v946
        %v1429 = vpack.c.bf16 %v954, %v954
        %v1430 = vpack.c.bf16 %v962, %v962
        %v1431 = vpack.c.bf16 %v961, %v961
        %v1432 = vpack.c.bf16 %v963, %v963
        %v1433 = vpack.c.bf16 %v971, %v971
        %v1434 = vpack.c.bf16 %v979, %v979
        %v1435 = vpack.c.bf16 %v978, %v978
        %v1436 = vpack.c.bf16 %v980, %v980
        %v1437 = vpack.c.bf16 %v988, %v988
        %v1438 = vpack.c.bf16 %v996, %v996
        %v1439 = vpack.c.bf16 %v995, %v995
        %v1440 = vpack.c.bf16 %v997, %v997
        %v1441 = vpack.c.bf16 %v1005, %v1005
        %v1442 = vpack.c.bf16 %v1013, %v1013
        %v1443 = vpack.c.bf16 %v1012, %v1012
        %v1444 = vpack.c.bf16 %v1014, %v1014
        %v1445 = vpack.c.bf16 %v1022, %v1022
        %v1446 = vpack.c.bf16 %v1030, %v1030
        %v1447 = vpack.c.bf16 %v1029, %v1029
        %v1448 = vpack.c.bf16 %v1031, %v1031
        %v1449 = vpack.c.bf16 %v1039, %v1039
        %v1450 = vpack.c.bf16 %v1047, %v1047
        %v1451 = vpack.c.bf16 %v1046, %v1046
        %v1452 = vpack.c.bf16 %v1048, %v1048
        %v1453 = vpack.c.bf16 %v1056, %v1056
        %v1454 = vpack.c.bf16 %v1064, %v1064
        %v1455 = vpack.c.bf16 %v1063, %v1063
        %v1456 = vpack.c.bf16 %v1065, %v1065
        %v1457 = vpack.c.bf16 %v1073, %v1073
        %v1458 = vpack.c.bf16 %v1081, %v1081
        %v1459 = vpack.c.bf16 %v1080, %v1080
        %v1460 = vpack.c.bf16 %v1082, %v1082
        %v1461 = vpack.c.bf16 %v1090, %v1090
        %v1462 = vpack.c.bf16 %v1098, %v1098
        %v1463 = vpack.c.bf16 %v1097, %v1097
        %v1464 = vpack.c.bf16 %v1099, %v1099
        %v1465 = vpack.c.bf16 %v1107, %v1107
        %v1466 = vpack.c.bf16 %v1115, %v1115
        %v1467 = vpack.c.bf16 %v1114, %v1114
        %v1468 = vpack.c.bf16 %v1116, %v1116
        %v1469 = vld [vmem:[#allocation2] sm:$0xff]
        %v1470 = vld [vmem:[#allocation2 + $0x8] sm:$0xff]
        %v1471 = vld [vmem:[#allocation2 + $0x10] sm:$0xff]
        %v1472 = vld [vmem:[#allocation2 + $0x18] sm:$0xff]
        %v1473 = vld [vmem:[#allocation2 + $0x20] sm:$0xff]
        %v1474 = vld [vmem:[#allocation2 + $0x28] sm:$0xff]
        %v1475 = vld [vmem:[#allocation2 + $0x30] sm:$0xff]
        %v1476 = vld [vmem:[#allocation2 + $0x38] sm:$0xff]
        %v1477 = vld [vmem:[%s229] sm:$0xff]
        %v1478 = vld [vmem:[%s229 + $0x8] sm:$0xff]
        %v1479 = vld [vmem:[%s229 + $0x10] sm:$0xff]
        %v1480 = vld [vmem:[%s229 + $0x18] sm:$0xff]
        %v1481 = vld [vmem:[%s229 + $0x20] sm:$0xff]
        %v1482 = vld [vmem:[%s229 + $0x28] sm:$0xff]
        %v1483 = vld [vmem:[%s229 + $0x30] sm:$0xff]
        %v1484 = vld [vmem:[%s229 + $0x38] sm:$0xff]
        %v1485 = vld [vmem:[%s229 + $0x40] sm:$0xff]
        %v1486 = vld [vmem:[%s229 + $0x48] sm:$0xff]
        %v1487 = vld [vmem:[%s229 + $0x50] sm:$0xff]
        %v1488 = vld [vmem:[%s229 + $0x58] sm:$0xff]
        %v1489 = vld [vmem:[%s229 + $0x60] sm:$0xff]
        %v1490 = vld [vmem:[%s229 + $0x68] sm:$0xff]
        %v1491 = vld [vmem:[%s229 + $0x70] sm:$0xff]
        %v1492 = vld [vmem:[%s229 + $0x78] sm:$0xff]
        %v1493 = vld [vmem:[%s229 + $0x80] sm:$0xff]
        %v1494 = vld [vmem:[%s229 + $0x88] sm:$0xff]
        %v1495 = vld [vmem:[%s229 + $0x90] sm:$0xff]
        %v1496 = vld [vmem:[%s229 + $0x98] sm:$0xff]
        %v1497 = vld [vmem:[%s229 + $0xa0] sm:$0xff]
        %v1498 = vld [vmem:[%s229 + $0xa8] sm:$0xff]
        %v1499 = vld [vmem:[%s229 + $0xb0] sm:$0xff]
        %v1500 = vld [vmem:[%s229 + $0xb8] sm:$0xff]
        %v1501 = vld [vmem:[%s229 + $0xc0] sm:$0xff]
        %v1502 = vld [vmem:[%s229 + $0xc8] sm:$0xff]
        %v1503 = vld [vmem:[%s229 + $0xd0] sm:$0xff]
        %v1504 = vld [vmem:[%s229 + $0xd8] sm:$0xff]
        %v1505 = vld [vmem:[%s229 + $0xe0] sm:$0xff]
        %v1506 = vld [vmem:[%s229 + $0xe8] sm:$0xff]
        %v1507 = vld [vmem:[%s229 + $0xf0] sm:$0xff]
        %v1508 = vld [vmem:[%s229 + $0xf8] sm:$0xff]
        %v1509 = vld [vmem:[%s229 + $0x100] sm:$0xff]
        %v1510 = vld [vmem:[%s229 + $0x108] sm:$0xff]
        %v1511 = vld [vmem:[%s229 + $0x110] sm:$0xff]
        %v1512 = vld [vmem:[%s229 + $0x118] sm:$0xff]
        %v1513 = vld [vmem:[%s229 + $0x120] sm:$0xff]
        %v1514 = vld [vmem:[%s229 + $0x128] sm:$0xff]
        %v1515 = vld [vmem:[%s229 + $0x130] sm:$0xff]
        %v1516 = vld [vmem:[%s229 + $0x138] sm:$0xff]
        %v1517 = vld [vmem:[%s229 + $0x140] sm:$0xff]
        %v1518 = vld [vmem:[%s229 + $0x148] sm:$0xff]
        %v1519 = vld [vmem:[%s229 + $0x150] sm:$0xff]
        %v1520 = vld [vmem:[%s229 + $0x158] sm:$0xff]
        %v1521 = vld [vmem:[%s229 + $0x160] sm:$0xff]
        %v1522 = vld [vmem:[%s229 + $0x168] sm:$0xff]
        %v1523 = vld [vmem:[%s229 + $0x170] sm:$0xff]
        %v1524 = vld [vmem:[%s229 + $0x178] sm:$0xff]
        %v1525 = vld [vmem:[%s229 + $0x180] sm:$0xff]
        %v1526 = vld [vmem:[%s229 + $0x188] sm:$0xff]
        %v1527 = vld [vmem:[%s229 + $0x190] sm:$0xff]
        %v1528 = vld [vmem:[%s229 + $0x198] sm:$0xff]
        %v1529 = vld [vmem:[%s229 + $0x1a0] sm:$0xff]
        %v1530 = vld [vmem:[%s229 + $0x1a8] sm:$0xff]
        %v1531 = vld [vmem:[%s229 + $0x1b0] sm:$0xff]
        %v1532 = vld [vmem:[%s229 + $0x1b8] sm:$0xff]
        %v1533 = vld [vmem:[%s229 + $0x1c0] sm:$0xff]
        %v1534 = vld [vmem:[%s229 + $0x1c8] sm:$0xff]
        %v1535 = vld [vmem:[%s229 + $0x1d0] sm:$0xff]
        %v1536 = vld [vmem:[%s229 + $0x1d8] sm:$0xff]
        %v1537 = vld [vmem:[%s229 + $0x1e0] sm:$0xff]
        %v1538 = vld [vmem:[%s229 + $0x1e8] sm:$0xff]
        %v1539 = vld [vmem:[%s229 + $0x1f0] sm:$0xff]
        %v1540 = vld [vmem:[%s229 + $0x1f8] sm:$0xff]
        %v1541 = vld [vmem:[%s229 + $0x200] sm:$0xff]
        %v1542 = vld [vmem:[%s229 + $0x208] sm:$0xff]
        %v1543 = vld [vmem:[%s229 + $0x210] sm:$0xff]
        %v1544 = vld [vmem:[%s229 + $0x218] sm:$0xff]
        %v1545 = vld [vmem:[%s229 + $0x220] sm:$0xff]
        %v1546 = vld [vmem:[%s229 + $0x228] sm:$0xff]
        %v1547 = vld [vmem:[%s229 + $0x230] sm:$0xff]
        %v1548 = vld [vmem:[%s229 + $0x238] sm:$0xff]
        %v1549 = vld [vmem:[%s229 + $0x240] sm:$0xff]
        %v1550 = vld [vmem:[%s229 + $0x248] sm:$0xff]
        %v1551 = vld [vmem:[%s229 + $0x250] sm:$0xff]
        %v1552 = vld [vmem:[%s229 + $0x258] sm:$0xff]
        %v1553 = vld [vmem:[%s229 + $0x260] sm:$0xff]
        %v1554 = vld [vmem:[%s229 + $0x268] sm:$0xff]
        %v1555 = vld [vmem:[%s229 + $0x270] sm:$0xff]
        %v1556 = vld [vmem:[%s229 + $0x278] sm:$0xff]
        %v1557 = vld [vmem:[%s229 + $0x280] sm:$0xff]
        %v1558 = vld [vmem:[%s229 + $0x288] sm:$0xff]
        %v1559 = vld [vmem:[%s229 + $0x290] sm:$0xff]
        %v1560 = vld [vmem:[%s229 + $0x298] sm:$0xff]
        %v1561 = vld [vmem:[%s229 + $0x2a0] sm:$0xff]
        %v1562 = vld [vmem:[%s229 + $0x2a8] sm:$0xff]
        %v1563 = vld [vmem:[%s229 + $0x2b0] sm:$0xff]
        %v1564 = vld [vmem:[%s229 + $0x2b8] sm:$0xff]
        %v1565 = vld [vmem:[%s229 + $0x2c0] sm:$0xff]
        %v1566 = vld [vmem:[%s229 + $0x2c8] sm:$0xff]
        %v1567 = vld [vmem:[%s229 + $0x2d0] sm:$0xff]
        %v1568 = vld [vmem:[%s229 + $0x2d8] sm:$0xff]
        %v1569 = vld [vmem:[%s229 + $0x2e0] sm:$0xff]
        %v1570 = vld [vmem:[%s229 + $0x2e8] sm:$0xff]
        %v1571 = vld [vmem:[%s229 + $0x2f0] sm:$0xff]
        %v1572 = vld [vmem:[%s229 + $0x2f8] sm:$0xff]
        %v1573 = vld [vmem:[%s229 + $0x300] sm:$0xff]
        %v1574 = vld [vmem:[%s229 + $0x308] sm:$0xff]
        %v1575 = vld [vmem:[%s229 + $0x310] sm:$0xff]
        %v1576 = vld [vmem:[%s229 + $0x318] sm:$0xff]
        %v1577 = vld [vmem:[%s229 + $0x320] sm:$0xff]
        %v1578 = vld [vmem:[%s229 + $0x328] sm:$0xff]
        %v1579 = vld [vmem:[%s229 + $0x330] sm:$0xff]
        %v1580 = vld [vmem:[%s229 + $0x338] sm:$0xff]
        %v1581 = vld [vmem:[%s229 + $0x340] sm:$0xff]
        %v1582 = vld [vmem:[%s229 + $0x348] sm:$0xff]
        %v1583 = vld [vmem:[%s229 + $0x350] sm:$0xff]
        %v1584 = vld [vmem:[%s229 + $0x358] sm:$0xff]
        %v1585 = vld [vmem:[%s229 + $0x360] sm:$0xff]
        %v1586 = vld [vmem:[%s229 + $0x368] sm:$0xff]
        %v1587 = vld [vmem:[%s229 + $0x370] sm:$0xff]
        %v1588 = vld [vmem:[%s229 + $0x378] sm:$0xff]
        %v1589 = vld [vmem:[%s229 + $0x380] sm:$0xff]
        %v1590 = vld [vmem:[%s229 + $0x388] sm:$0xff]
        %v1591 = vld [vmem:[%s229 + $0x390] sm:$0xff]
        %v1592 = vld [vmem:[%s229 + $0x398] sm:$0xff]
        %v1593 = vld [vmem:[%s229 + $0x3a0] sm:$0xff]
        %v1594 = vld [vmem:[%s229 + $0x3a8] sm:$0xff]
        %v1595 = vld [vmem:[%s229 + $0x3b0] sm:$0xff]
        %v1596 = vld [vmem:[%s229 + $0x3b8] sm:$0xff]
        %v1597 = vld [vmem:[%s229 + $0x3c0] sm:$0xff]
        %v1598 = vld [vmem:[%s229 + $0x3c8] sm:$0xff]
        %v1599 = vld [vmem:[%s229 + $0x3d0] sm:$0xff]
        %v1600 = vld [vmem:[%s229 + $0x3d8] sm:$0xff]
        %v1601 = vld [vmem:[%s229 + $0x3e0] sm:$0xff]
        %v1602 = vld [vmem:[%s229 + $0x3e8] sm:$0xff]
        %v1603 = vld [vmem:[%s229 + $0x3f0] sm:$0xff]
        %v1604 = vld [vmem:[%s229 + $0x3f8] sm:$0xff]
        %v1605 = vld [vmem:[%s229 + $0x400] sm:$0xff]
        %v1606 = vld [vmem:[%s229 + $0x408] sm:$0xff]
        %v1607 = vld [vmem:[%s229 + $0x410] sm:$0xff]
        %v1608 = vld [vmem:[%s229 + $0x418] sm:$0xff]
        %v1609 = vld [vmem:[%s229 + $0x420] sm:$0xff]
        %v1610 = vld [vmem:[%s229 + $0x428] sm:$0xff]
        %v1611 = vld [vmem:[%s229 + $0x430] sm:$0xff]
        %v1612 = vld [vmem:[%s229 + $0x438] sm:$0xff]
        %v1613 = vld [vmem:[%s229 + $0x440] sm:$0xff]
        %v1614 = vld [vmem:[%s229 + $0x448] sm:$0xff]
        %v1615 = vld [vmem:[%s229 + $0x450] sm:$0xff]
        %v1616 = vld [vmem:[%s229 + $0x458] sm:$0xff]
        %v1617 = vld [vmem:[%s229 + $0x460] sm:$0xff]
        %v1618 = vld [vmem:[%s229 + $0x468] sm:$0xff]
        %v1619 = vld [vmem:[%s229 + $0x470] sm:$0xff]
        %v1620 = vld [vmem:[%s229 + $0x478] sm:$0xff]
        %v1621 = vld [vmem:[%s229 + $0x480] sm:$0xff]
        %v1622 = vld [vmem:[%s229 + $0x488] sm:$0xff]
        %v1623 = vld [vmem:[%s229 + $0x490] sm:$0xff]
        %v1624 = vld [vmem:[%s229 + $0x498] sm:$0xff]
        %v1625 = vld [vmem:[%s229 + $0x4a0] sm:$0xff]
        %v1626 = vld [vmem:[%s229 + $0x4a8] sm:$0xff]
        %v1627 = vld [vmem:[%s229 + $0x4b0] sm:$0xff]
        %v1628 = vld [vmem:[%s229 + $0x4b8] sm:$0xff]
        %v1629 = vld [vmem:[%s229 + $0x4c0] sm:$0xff]
        %v1630 = vld [vmem:[%s229 + $0x4c8] sm:$0xff]
        %v1631 = vld [vmem:[%s229 + $0x4d0] sm:$0xff]
        %v1632 = vld [vmem:[%s229 + $0x4d8] sm:$0xff]
        %v1633 = vld [vmem:[%s229 + $0x4e0] sm:$0xff]
        %v1634 = vld [vmem:[%s229 + $0x4e8] sm:$0xff]
        %v1635 = vld [vmem:[%s229 + $0x4f0] sm:$0xff]
        %v1636 = vld [vmem:[%s229 + $0x4f8] sm:$0xff]
        %v1637 = vld [vmem:[%s229 + $0x500] sm:$0xff]
        %v1638 = vld [vmem:[%s229 + $0x508] sm:$0xff]
        %v1639 = vld [vmem:[%s229 + $0x510] sm:$0xff]
        %v1640 = vld [vmem:[%s229 + $0x518] sm:$0xff]
        %v1641 = vld [vmem:[%s229 + $0x520] sm:$0xff]
        %v1642 = vld [vmem:[%s229 + $0x528] sm:$0xff]
        %v1643 = vld [vmem:[%s229 + $0x530] sm:$0xff]
        %v1644 = vld [vmem:[%s229 + $0x538] sm:$0xff]
        %v1645 = vld [vmem:[%s229 + $0x540] sm:$0xff]
        %v1646 = vld [vmem:[%s229 + $0x548] sm:$0xff]
        %v1647 = vld [vmem:[%s229 + $0x550] sm:$0xff]
        %v1648 = vld [vmem:[%s229 + $0x558] sm:$0xff]
        %v1649 = vld [vmem:[%s229 + $0x560] sm:$0xff]
        %v1650 = vld [vmem:[%s229 + $0x568] sm:$0xff]
        %v1651 = vld [vmem:[%s229 + $0x570] sm:$0xff]
        %v1652 = vld [vmem:[%s229 + $0x578] sm:$0xff]
        %v1653 = vld [vmem:[%s229 + $0x580] sm:$0xff]
        %v1654 = vld [vmem:[%s229 + $0x588] sm:$0xff]
        %v1655 = vld [vmem:[%s229 + $0x590] sm:$0xff]
        %v1656 = vld [vmem:[%s229 + $0x598] sm:$0xff]
        %v1657 = vld [vmem:[%s229 + $0x5a0] sm:$0xff]
        %v1658 = vld [vmem:[%s229 + $0x5a8] sm:$0xff]
        %v1659 = vld [vmem:[%s229 + $0x5b0] sm:$0xff]
        %v1660 = vld [vmem:[%s229 + $0x5b8] sm:$0xff]
        %v1661 = vld [vmem:[%s229 + $0x5c0] sm:$0xff]
        %v1662 = vld [vmem:[%s229 + $0x5c8] sm:$0xff]
        %v1663 = vld [vmem:[%s229 + $0x5d0] sm:$0xff]
        %v1664 = vld [vmem:[%s229 + $0x5d8] sm:$0xff]
        %v1665 = vld [vmem:[%s229 + $0x5e0] sm:$0xff]
        %v1666 = vld [vmem:[%s229 + $0x5e8] sm:$0xff]
        %v1667 = vld [vmem:[%s229 + $0x5f0] sm:$0xff]
        %v1668 = vld [vmem:[%s229 + $0x5f8] sm:$0xff]
        %v1669 = vld [vmem:[%s229 + $0x600] sm:$0xff]
        %v1670 = vld [vmem:[%s229 + $0x608] sm:$0xff]
        %v1671 = vld [vmem:[%s229 + $0x610] sm:$0xff]
        %v1672 = vld [vmem:[%s229 + $0x618] sm:$0xff]
        %v1673 = vld [vmem:[%s229 + $0x620] sm:$0xff]
        %v1674 = vld [vmem:[%s229 + $0x628] sm:$0xff]
        %v1675 = vld [vmem:[%s229 + $0x630] sm:$0xff]
        %v1676 = vld [vmem:[%s229 + $0x638] sm:$0xff]
        %v1677 = vld [vmem:[%s229 + $0x640] sm:$0xff]
        %v1678 = vld [vmem:[%s229 + $0x648] sm:$0xff]
        %v1679 = vld [vmem:[%s229 + $0x650] sm:$0xff]
        %v1680 = vld [vmem:[%s229 + $0x658] sm:$0xff]
        %v1681 = vld [vmem:[%s229 + $0x660] sm:$0xff]
        %v1682 = vld [vmem:[%s229 + $0x668] sm:$0xff]
        %v1683 = vld [vmem:[%s229 + $0x670] sm:$0xff]
        %v1684 = vld [vmem:[%s229 + $0x678] sm:$0xff]
        %v1685 = vld [vmem:[%s229 + $0x680] sm:$0xff]
        %v1686 = vld [vmem:[%s229 + $0x688] sm:$0xff]
        %v1687 = vld [vmem:[%s229 + $0x690] sm:$0xff]
        %v1688 = vld [vmem:[%s229 + $0x698] sm:$0xff]
        %v1689 = vld [vmem:[%s229 + $0x6a0] sm:$0xff]
        %v1690 = vld [vmem:[%s229 + $0x6a8] sm:$0xff]
        %v1691 = vld [vmem:[%s229 + $0x6b0] sm:$0xff]
        %v1692 = vld [vmem:[%s229 + $0x6b8] sm:$0xff]
        %v1693 = vld [vmem:[%s229 + $0x6c0] sm:$0xff]
        %v1694 = vld [vmem:[%s229 + $0x6c8] sm:$0xff]
        %v1695 = vld [vmem:[%s229 + $0x6d0] sm:$0xff]
        %v1696 = vld [vmem:[%s229 + $0x6d8] sm:$0xff]
        %v1697 = vld [vmem:[%s229 + $0x6e0] sm:$0xff]
        %v1698 = vld [vmem:[%s229 + $0x6e8] sm:$0xff]
        %v1699 = vld [vmem:[%s229 + $0x6f0] sm:$0xff]
        %v1700 = vld [vmem:[%s229 + $0x6f8] sm:$0xff]
        %v1701 = vld [vmem:[%s229 + $0x700] sm:$0xff]
        %v1702 = vld [vmem:[%s229 + $0x708] sm:$0xff]
        %v1703 = vld [vmem:[%s229 + $0x710] sm:$0xff]
        %v1704 = vld [vmem:[%s229 + $0x718] sm:$0xff]
        %v1705 = vld [vmem:[%s229 + $0x720] sm:$0xff]
        %v1706 = vld [vmem:[%s229 + $0x728] sm:$0xff]
        %v1707 = vld [vmem:[%s229 + $0x730] sm:$0xff]
        %v1708 = vld [vmem:[%s229 + $0x738] sm:$0xff]
        %v1709 = vld [vmem:[%s229 + $0x740] sm:$0xff]
        %v1710 = vld [vmem:[%s229 + $0x748] sm:$0xff]
        %v1711 = vld [vmem:[%s229 + $0x750] sm:$0xff]
        %v1712 = vld [vmem:[%s229 + $0x758] sm:$0xff]
        %v1713 = vld [vmem:[%s229 + $0x760] sm:$0xff]
        %v1714 = vld [vmem:[%s229 + $0x768] sm:$0xff]
        %v1715 = vld [vmem:[%s229 + $0x770] sm:$0xff]
        %v1716 = vld [vmem:[%s229 + $0x778] sm:$0xff]
        %v1717 = vld [vmem:[%s229 + $0x780] sm:$0xff]
        %v1718 = vld [vmem:[%s229 + $0x788] sm:$0xff]
        %v1719 = vld [vmem:[%s229 + $0x790] sm:$0xff]
        %v1720 = vld [vmem:[%s229 + $0x798] sm:$0xff]
        %v1721 = vld [vmem:[%s229 + $0x7a0] sm:$0xff]
        %v1722 = vld [vmem:[%s229 + $0x7a8] sm:$0xff]
        %v1723 = vld [vmem:[%s229 + $0x7b0] sm:$0xff]
        %v1724 = vld [vmem:[%s229 + $0x7b8] sm:$0xff]
        %v1725 = vld [vmem:[%s229 + $0x7c0] sm:$0xff]
        %v1726 = vld [vmem:[%s229 + $0x7c8] sm:$0xff]
        %v1727 = vld [vmem:[%s229 + $0x7d0] sm:$0xff]
        %v1728 = vld [vmem:[%s229 + $0x7d8] sm:$0xff]
        %v1729 = vld [vmem:[%s229 + $0x7e0] sm:$0xff]
        %v1730 = vld [vmem:[%s229 + $0x7e8] sm:$0xff]
        %v1731 = vld [vmem:[%s229 + $0x7f0] sm:$0xff]
        %v1732 = vld [vmem:[%s229 + $0x7f8] sm:$0xff]
        %v1733 = vld [vmem:[%s229 + $0x800] sm:$0xff]
        %v1734 = vld [vmem:[%s229 + $0x808] sm:$0xff]
        %v1735 = vld [vmem:[%s229 + $0x810] sm:$0xff]
        %v1736 = vld [vmem:[%s229 + $0x818] sm:$0xff]
        %v1737 = vld [vmem:[%s229 + $0x820] sm:$0xff]
        %v1738 = vld [vmem:[%s229 + $0x828] sm:$0xff]
        %v1739 = vld [vmem:[%s229 + $0x830] sm:$0xff]
        %v1740 = vld [vmem:[%s229 + $0x838] sm:$0xff]
        %v1741 = vld [vmem:[%s229 + $0x840] sm:$0xff]
        %v1742 = vld [vmem:[%s229 + $0x848] sm:$0xff]
        %v1743 = vld [vmem:[%s229 + $0x850] sm:$0xff]
        %v1744 = vld [vmem:[%s229 + $0x858] sm:$0xff]
        %v1745 = vld [vmem:[%s229 + $0x860] sm:$0xff]
        %v1746 = vld [vmem:[%s229 + $0x868] sm:$0xff]
        %v1747 = vld [vmem:[%s229 + $0x870] sm:$0xff]
        %v1748 = vld [vmem:[%s229 + $0x878] sm:$0xff]
        %v1749 = vld [vmem:[%s229 + $0x880] sm:$0xff]
        %v1750 = vld [vmem:[%s229 + $0x888] sm:$0xff]
        %v1751 = vld [vmem:[%s229 + $0x890] sm:$0xff]
        %v1752 = vld [vmem:[%s229 + $0x898] sm:$0xff]
        %v1753 = vld [vmem:[%s229 + $0x8a0] sm:$0xff]
        %v1754 = vld [vmem:[%s229 + $0x8a8] sm:$0xff]
        %v1755 = vld [vmem:[%s229 + $0x8b0] sm:$0xff]
        %v1756 = vld [vmem:[%s229 + $0x8b8] sm:$0xff]
        %v1757 = vld [vmem:[%s229 + $0x8c0] sm:$0xff]
        %v1758 = vld [vmem:[%s229 + $0x8c8] sm:$0xff]
        %v1759 = vld [vmem:[%s229 + $0x8d0] sm:$0xff]
        %v1760 = vld [vmem:[%s229 + $0x8d8] sm:$0xff]
        %v1761 = vld [vmem:[%s229 + $0x8e0] sm:$0xff]
        %v1762 = vld [vmem:[%s229 + $0x8e8] sm:$0xff]
        %v1763 = vld [vmem:[%s229 + $0x8f0] sm:$0xff]
        %v1764 = vld [vmem:[%s229 + $0x8f8] sm:$0xff]
        %v1765 = vld [vmem:[%s229 + $0x900] sm:$0xff]
        %v1766 = vld [vmem:[%s229 + $0x908] sm:$0xff]
        %v1767 = vld [vmem:[%s229 + $0x910] sm:$0xff]
        %v1768 = vld [vmem:[%s229 + $0x918] sm:$0xff]
        %v1769 = vld [vmem:[%s229 + $0x920] sm:$0xff]
        %v1770 = vld [vmem:[%s229 + $0x928] sm:$0xff]
        %v1771 = vld [vmem:[%s229 + $0x930] sm:$0xff]
        %v1772 = vld [vmem:[%s229 + $0x938] sm:$0xff]
        %v1773 = vld [vmem:[%s229 + $0x940] sm:$0xff]
        %v1774 = vld [vmem:[%s229 + $0x948] sm:$0xff]
        %v1775 = vld [vmem:[%s229 + $0x950] sm:$0xff]
        %v1776 = vld [vmem:[%s229 + $0x958] sm:$0xff]
        %v1777 = vld [vmem:[%s229 + $0x960] sm:$0xff]
        %v1778 = vld [vmem:[%s229 + $0x968] sm:$0xff]
        %v1779 = vld [vmem:[%s229 + $0x970] sm:$0xff]
        %v1780 = vld [vmem:[%s229 + $0x978] sm:$0xff]
        %v1781 = vld [vmem:[%s229 + $0x980] sm:$0xff]
        %v1782 = vld [vmem:[%s229 + $0x988] sm:$0xff]
        %v1783 = vld [vmem:[%s229 + $0x990] sm:$0xff]
        %v1784 = vld [vmem:[%s229 + $0x998] sm:$0xff]
        %v1785 = vld [vmem:[%s229 + $0x9a0] sm:$0xff]
        %v1786 = vld [vmem:[%s229 + $0x9a8] sm:$0xff]
        %v1787 = vld [vmem:[%s229 + $0x9b0] sm:$0xff]
        %v1788 = vld [vmem:[%s229 + $0x9b8] sm:$0xff]
        %v1789 = vld [vmem:[%s229 + $0x9c0] sm:$0xff]
        %v1790 = vld [vmem:[%s229 + $0x9c8] sm:$0xff]
        %v1791 = vld [vmem:[%s229 + $0x9d0] sm:$0xff]
        %v1792 = vld [vmem:[%s229 + $0x9d8] sm:$0xff]
        %v1793 = vld [vmem:[%s229 + $0x9e0] sm:$0xff]
        %v1794 = vld [vmem:[%s229 + $0x9e8] sm:$0xff]
        %v1795 = vld [vmem:[%s229 + $0x9f0] sm:$0xff]
        %v1796 = vld [vmem:[%s229 + $0x9f8] sm:$0xff]
        %v1797 = vld [vmem:[%s229 + $0xa00] sm:$0xff]
        %v1798 = vld [vmem:[%s229 + $0xa08] sm:$0xff]
        %v1799 = vld [vmem:[%s229 + $0xa10] sm:$0xff]
        %v1800 = vld [vmem:[%s229 + $0xa18] sm:$0xff]
        %v1801 = vld [vmem:[%s229 + $0xa20] sm:$0xff]
        %v1802 = vld [vmem:[%s229 + $0xa28] sm:$0xff]
        %v1803 = vld [vmem:[%s229 + $0xa30] sm:$0xff]
        %v1804 = vld [vmem:[%s229 + $0xa38] sm:$0xff]
        %v1805 = vld [vmem:[%s229 + $0xa40] sm:$0xff]
        %v1806 = vld [vmem:[%s229 + $0xa48] sm:$0xff]
        %v1807 = vld [vmem:[%s229 + $0xa50] sm:$0xff]
        %v1808 = vld [vmem:[%s229 + $0xa58] sm:$0xff]
        %v1809 = vld [vmem:[%s229 + $0xa60] sm:$0xff]
        %v1810 = vld [vmem:[%s229 + $0xa68] sm:$0xff]
        %v1811 = vld [vmem:[%s229 + $0xa70] sm:$0xff]
        %v1812 = vld [vmem:[%s229 + $0xa78] sm:$0xff]
        %v1813 = vld [vmem:[%s229 + $0xa80] sm:$0xff]
        %v1814 = vld [vmem:[%s229 + $0xa88] sm:$0xff]
        %v1815 = vld [vmem:[%s229 + $0xa90] sm:$0xff]
        %v1816 = vld [vmem:[%s229 + $0xa98] sm:$0xff]
        %v1817 = vld [vmem:[%s229 + $0xaa0] sm:$0xff]
        %v1818 = vld [vmem:[%s229 + $0xaa8] sm:$0xff]
        %v1819 = vld [vmem:[%s229 + $0xab0] sm:$0xff]
        %v1820 = vld [vmem:[%s229 + $0xab8] sm:$0xff]
        %v1821 = vld [vmem:[%s229 + $0xac0] sm:$0xff]
        %v1822 = vld [vmem:[%s229 + $0xac8] sm:$0xff]
        %v1823 = vld [vmem:[%s229 + $0xad0] sm:$0xff]
        %v1824 = vld [vmem:[%s229 + $0xad8] sm:$0xff]
        %v1825 = vld [vmem:[%s229 + $0xae0] sm:$0xff]
        %v1826 = vld [vmem:[%s229 + $0xae8] sm:$0xff]
        %v1827 = vld [vmem:[%s229 + $0xaf0] sm:$0xff]
        %v1828 = vld [vmem:[%s229 + $0xaf8] sm:$0xff]
        %v1829 = vld [vmem:[%s229 + $0xb00] sm:$0xff]
        %v1830 = vld [vmem:[%s229 + $0xb08] sm:$0xff]
        %v1831 = vld [vmem:[%s229 + $0xb10] sm:$0xff]
        %v1832 = vld [vmem:[%s229 + $0xb18] sm:$0xff]
        %v1833 = vld [vmem:[%s229 + $0xb20] sm:$0xff]
        %v1834 = vld [vmem:[%s229 + $0xb28] sm:$0xff]
        %v1835 = vld [vmem:[%s229 + $0xb30] sm:$0xff]
        %v1836 = vld [vmem:[%s229 + $0xb38] sm:$0xff]
        %v1837 = vld [vmem:[%s229 + $0xb40] sm:$0xff]
        %v1838 = vld [vmem:[%s229 + $0xb48] sm:$0xff]
        %v1839 = vld [vmem:[%s229 + $0xb50] sm:$0xff]
        %v1840 = vld [vmem:[%s229 + $0xb58] sm:$0xff]
        %v1841 = vld [vmem:[%s229 + $0xb60] sm:$0xff]
        %v1842 = vld [vmem:[%s229 + $0xb68] sm:$0xff]
        %v1843 = vld [vmem:[%s229 + $0xb70] sm:$0xff]
        %v1844 = vld [vmem:[%s229 + $0xb78] sm:$0xff]
        %v1845 = vld [vmem:[%s229 + $0xb80] sm:$0xff]
        %v1846 = vld [vmem:[%s229 + $0xb88] sm:$0xff]
        %v1847 = vld [vmem:[%s229 + $0xb90] sm:$0xff]
        %v1848 = vld [vmem:[%s229 + $0xb98] sm:$0xff]
        %v1849 = vld [vmem:[%s229 + $0xba0] sm:$0xff]
        %v1850 = vld [vmem:[%s229 + $0xba8] sm:$0xff]
        %v1851 = vld [vmem:[%s229 + $0xbb0] sm:$0xff]
        %v1852 = vld [vmem:[%s229 + $0xbb8] sm:$0xff]
        %v1853 = vld [vmem:[%s229 + $0xbc0] sm:$0xff]
        %v1854 = vld [vmem:[%s229 + $0xbc8] sm:$0xff]
        %v1855 = vld [vmem:[%s229 + $0xbd0] sm:$0xff]
        %v1856 = vld [vmem:[%s229 + $0xbd8] sm:$0xff]
        %v1857 = vld [vmem:[%s229 + $0xbe0] sm:$0xff]
        %v1858 = vld [vmem:[%s229 + $0xbe8] sm:$0xff]
        %v1859 = vld [vmem:[%s229 + $0xbf0] sm:$0xff]
        %v1860 = vld [vmem:[%s229 + $0xbf8] sm:$0xff]
        %v1861 = vld [vmem:[%s229 + $0xc00] sm:$0xff]
        %v1862 = vld [vmem:[%s229 + $0xc08] sm:$0xff]
        %v1863 = vld [vmem:[%s229 + $0xc10] sm:$0xff]
        %v1864 = vld [vmem:[%s229 + $0xc18] sm:$0xff]
        %v1865 = vld [vmem:[%s229 + $0xc20] sm:$0xff]
        %v1866 = vld [vmem:[%s229 + $0xc28] sm:$0xff]
        %v1867 = vld [vmem:[%s229 + $0xc30] sm:$0xff]
        %v1868 = vld [vmem:[%s229 + $0xc38] sm:$0xff]
        %v1869 = vld [vmem:[%s229 + $0xc40] sm:$0xff]
        %v1870 = vld [vmem:[%s229 + $0xc48] sm:$0xff]
        %v1871 = vld [vmem:[%s229 + $0xc50] sm:$0xff]
        %v1872 = vld [vmem:[%s229 + $0xc58] sm:$0xff]
        %v1873 = vld [vmem:[%s229 + $0xc60] sm:$0xff]
        %v1874 = vld [vmem:[%s229 + $0xc68] sm:$0xff]
        %v1875 = vld [vmem:[%s229 + $0xc70] sm:$0xff]
        %v1876 = vld [vmem:[%s229 + $0xc78] sm:$0xff]
        %v1877 = vld [vmem:[%s229 + $0xc80] sm:$0xff]
        %v1878 = vld [vmem:[%s229 + $0xc88] sm:$0xff]
        %v1879 = vld [vmem:[%s229 + $0xc90] sm:$0xff]
        %v1880 = vld [vmem:[%s229 + $0xc98] sm:$0xff]
        %v1881 = vld [vmem:[%s229 + $0xca0] sm:$0xff]
        %v1882 = vld [vmem:[%s229 + $0xca8] sm:$0xff]
        %v1883 = vld [vmem:[%s229 + $0xcb0] sm:$0xff]
        %v1884 = vld [vmem:[%s229 + $0xcb8] sm:$0xff]
        %v1885 = vld [vmem:[%s229 + $0xcc0] sm:$0xff]
        %v1886 = vld [vmem:[%s229 + $0xcc8] sm:$0xff]
        %v1887 = vld [vmem:[%s229 + $0xcd0] sm:$0xff]
        %v1888 = vld [vmem:[%s229 + $0xcd8] sm:$0xff]
        %v1889 = vld [vmem:[%s229 + $0xce0] sm:$0xff]
        %v1890 = vld [vmem:[%s229 + $0xce8] sm:$0xff]
        %v1891 = vld [vmem:[%s229 + $0xcf0] sm:$0xff]
        %v1892 = vld [vmem:[%s229 + $0xcf8] sm:$0xff]
        %v1893 = vld [vmem:[%s229 + $0xd00] sm:$0xff]
        %v1894 = vld [vmem:[%s229 + $0xd08] sm:$0xff]
        %v1895 = vld [vmem:[%s229 + $0xd10] sm:$0xff]
        %v1896 = vld [vmem:[%s229 + $0xd18] sm:$0xff]
        %v1897 = vld [vmem:[%s229 + $0xd20] sm:$0xff]
        %v1898 = vld [vmem:[%s229 + $0xd28] sm:$0xff]
        %v1899 = vld [vmem:[%s229 + $0xd30] sm:$0xff]
        %v1900 = vld [vmem:[%s229 + $0xd38] sm:$0xff]
        %v1901 = vld [vmem:[%s229 + $0xd40] sm:$0xff]
        %v1902 = vld [vmem:[%s229 + $0xd48] sm:$0xff]
        %v1903 = vld [vmem:[%s229 + $0xd50] sm:$0xff]
        %v1904 = vld [vmem:[%s229 + $0xd58] sm:$0xff]
        %v1905 = vld [vmem:[%s229 + $0xd60] sm:$0xff]
        %v1906 = vld [vmem:[%s229 + $0xd68] sm:$0xff]
        %v1907 = vld [vmem:[%s229 + $0xd70] sm:$0xff]
        %v1908 = vld [vmem:[%s229 + $0xd78] sm:$0xff]
        %v1909 = vld [vmem:[%s229 + $0xd80] sm:$0xff]
        %v1910 = vld [vmem:[%s229 + $0xd88] sm:$0xff]
        %v1911 = vld [vmem:[%s229 + $0xd90] sm:$0xff]
        %v1912 = vld [vmem:[%s229 + $0xd98] sm:$0xff]
        %v1913 = vld [vmem:[%s229 + $0xda0] sm:$0xff]
        %v1914 = vld [vmem:[%s229 + $0xda8] sm:$0xff]
        %v1915 = vld [vmem:[%s229 + $0xdb0] sm:$0xff]
        %v1916 = vld [vmem:[%s229 + $0xdb8] sm:$0xff]
        %v1917 = vld [vmem:[%s229 + $0xdc0] sm:$0xff]
        %v1918 = vld [vmem:[%s229 + $0xdc8] sm:$0xff]
        %v1919 = vld [vmem:[%s229 + $0xdd0] sm:$0xff]
        %v1920 = vld [vmem:[%s229 + $0xdd8] sm:$0xff]
        %v1921 = vld [vmem:[%s229 + $0xde0] sm:$0xff]
        %v1922 = vld [vmem:[%s229 + $0xde8] sm:$0xff]
        %v1923 = vld [vmem:[%s229 + $0xdf0] sm:$0xff]
        %v1924 = vld [vmem:[%s229 + $0xdf8] sm:$0xff]
        %v1925 = vld [vmem:[%s229 + $0xe00] sm:$0xff]
        %v1926 = vld [vmem:[%s229 + $0xe08] sm:$0xff]
        %v1927 = vld [vmem:[%s229 + $0xe10] sm:$0xff]
        %v1928 = vld [vmem:[%s229 + $0xe18] sm:$0xff]
        %v1929 = vld [vmem:[%s229 + $0xe20] sm:$0xff]
        %v1930 = vld [vmem:[%s229 + $0xe28] sm:$0xff]
        %v1931 = vld [vmem:[%s229 + $0xe30] sm:$0xff]
        %v1932 = vld [vmem:[%s229 + $0xe38] sm:$0xff]
        %v1933 = vld [vmem:[%s229 + $0xe40] sm:$0xff]
        %v1934 = vld [vmem:[%s229 + $0xe48] sm:$0xff]
        %v1935 = vld [vmem:[%s229 + $0xe50] sm:$0xff]
        %v1936 = vld [vmem:[%s229 + $0xe58] sm:$0xff]
        %v1937 = vld [vmem:[%s229 + $0xe60] sm:$0xff]
        %v1938 = vld [vmem:[%s229 + $0xe68] sm:$0xff]
        %v1939 = vld [vmem:[%s229 + $0xe70] sm:$0xff]
        %v1940 = vld [vmem:[%s229 + $0xe78] sm:$0xff]
        %v1941 = vld [vmem:[%s229 + $0xe80] sm:$0xff]
        %v1942 = vld [vmem:[%s229 + $0xe88] sm:$0xff]
        %v1943 = vld [vmem:[%s229 + $0xe90] sm:$0xff]
        %v1944 = vld [vmem:[%s229 + $0xe98] sm:$0xff]
        %v1945 = vld [vmem:[%s229 + $0xea0] sm:$0xff]
        %v1946 = vld [vmem:[%s229 + $0xea8] sm:$0xff]
        %v1947 = vld [vmem:[%s229 + $0xeb0] sm:$0xff]
        %v1948 = vld [vmem:[%s229 + $0xeb8] sm:$0xff]
        %v1949 = vld [vmem:[%s229 + $0xec0] sm:$0xff]
        %v1950 = vld [vmem:[%s229 + $0xec8] sm:$0xff]
        %v1951 = vld [vmem:[%s229 + $0xed0] sm:$0xff]
        %v1952 = vld [vmem:[%s229 + $0xed8] sm:$0xff]
        %v1953 = vld [vmem:[%s229 + $0xee0] sm:$0xff]
        %v1954 = vld [vmem:[%s229 + $0xee8] sm:$0xff]
        %v1955 = vld [vmem:[%s229 + $0xef0] sm:$0xff]
        %v1956 = vld [vmem:[%s229 + $0xef8] sm:$0xff]
        %v1957 = vld [vmem:[%s229 + $0xf00] sm:$0xff]
        %v1958 = vld [vmem:[%s229 + $0xf08] sm:$0xff]
        %v1959 = vld [vmem:[%s229 + $0xf10] sm:$0xff]
        %v1960 = vld [vmem:[%s229 + $0xf18] sm:$0xff]
        %v1961 = vld [vmem:[%s229 + $0xf20] sm:$0xff]
        %v1962 = vld [vmem:[%s229 + $0xf28] sm:$0xff]
        %v1963 = vld [vmem:[%s229 + $0xf30] sm:$0xff]
        %v1964 = vld [vmem:[%s229 + $0xf38] sm:$0xff]
        %v1965 = vld [vmem:[%s229 + $0xf40] sm:$0xff]
        %v1966 = vld [vmem:[%s229 + $0xf48] sm:$0xff]
        %v1967 = vld [vmem:[%s229 + $0xf50] sm:$0xff]
        %v1968 = vld [vmem:[%s229 + $0xf58] sm:$0xff]
        %v1969 = vld [vmem:[%s229 + $0xf60] sm:$0xff]
        %v1970 = vld [vmem:[%s229 + $0xf68] sm:$0xff]
        %v1971 = vld [vmem:[%s229 + $0xf70] sm:$0xff]
        %v1972 = vld [vmem:[%s229 + $0xf78] sm:$0xff]
        %v1973 = vld [vmem:[%s229 + $0xf80] sm:$0xff]
        %v1974 = vld [vmem:[%s229 + $0xf88] sm:$0xff]
        %v1975 = vld [vmem:[%s229 + $0xf90] sm:$0xff]
        %v1976 = vld [vmem:[%s229 + $0xf98] sm:$0xff]
        %v1977 = vld [vmem:[%s229 + $0xfa0] sm:$0xff]
        %v1978 = vld [vmem:[%s229 + $0xfa8] sm:$0xff]
        %v1979 = vld [vmem:[%s229 + $0xfb0] sm:$0xff]
        %v1980 = vld [vmem:[%s229 + $0xfb8] sm:$0xff]
        %v1981 = vld [vmem:[%s229 + $0xfc0] sm:$0xff]
        %v1982 = vld [vmem:[%s229 + $0xfc8] sm:$0xff]
        %v1983 = vld [vmem:[%s229 + $0xfd0] sm:$0xff]
        %v1984 = vld [vmem:[%s229 + $0xfd8] sm:$0xff]
        %v1985 = vld [vmem:[%s229 + $0xfe0] sm:$0xff]
        %v1986 = vld [vmem:[%s229 + $0xfe8] sm:$0xff]
        %v1987 = vld [vmem:[%s229 + $0xff0] sm:$0xff]
        %v1988 = vld [vmem:[%s229 + $0xff8] sm:$0xff]
        %v1989 = vld [vmem:[%s229 + $0x1000] sm:$0xff]
        %v1990 = vld [vmem:[%s229 + $0x1008] sm:$0xff]
        %v1991 = vld [vmem:[%s229 + $0x1010] sm:$0xff]
        %v1992 = vld [vmem:[%s229 + $0x1018] sm:$0xff]
        %v1993 = vld [vmem:[%s229 + $0x1020] sm:$0xff]
        %v1994 = vld [vmem:[%s229 + $0x1028] sm:$0xff]
        %v1995 = vld [vmem:[%s229 + $0x1030] sm:$0xff]
        %v1996 = vld [vmem:[%s229 + $0x1038] sm:$0xff]
        %v1997 = vld [vmem:[%s229 + $0x1040] sm:$0xff]
        %v1998 = vld [vmem:[%s229 + $0x1048] sm:$0xff]
        %v1999 = vld [vmem:[%s229 + $0x1050] sm:$0xff]
        %v2000 = vld [vmem:[%s229 + $0x1058] sm:$0xff]
        %v2001 = vld [vmem:[%s229 + $0x1060] sm:$0xff]
        %v2002 = vld [vmem:[%s229 + $0x1068] sm:$0xff]
        %v2003 = vld [vmem:[%s229 + $0x1070] sm:$0xff]
        %v2004 = vld [vmem:[%s229 + $0x1078] sm:$0xff]
        %v2005 = vld [vmem:[%s229 + $0x1080] sm:$0xff]
        %v2006 = vld [vmem:[%s229 + $0x1088] sm:$0xff]
        %v2007 = vld [vmem:[%s229 + $0x1090] sm:$0xff]
        %v2008 = vld [vmem:[%s229 + $0x1098] sm:$0xff]
        %v2009 = vld [vmem:[%s229 + $0x10a0] sm:$0xff]
        %v2010 = vld [vmem:[%s229 + $0x10a8] sm:$0xff]
        %v2011 = vld [vmem:[%s229 + $0x10b0] sm:$0xff]
        %v2012 = vld [vmem:[%s229 + $0x10b8] sm:$0xff]
        %v2013 = vld [vmem:[%s229 + $0x10c0] sm:$0xff]
        %v2014 = vld [vmem:[%s229 + $0x10c8] sm:$0xff]
        %v2015 = vld [vmem:[%s229 + $0x10d0] sm:$0xff]
        %v2016 = vld [vmem:[%s229 + $0x10d8] sm:$0xff]
        %v2017 = vld [vmem:[%s229 + $0x10e0] sm:$0xff]
        %v2018 = vld [vmem:[%s229 + $0x10e8] sm:$0xff]
        %v2019 = vld [vmem:[%s229 + $0x10f0] sm:$0xff]
        %v2020 = vld [vmem:[%s229 + $0x10f8] sm:$0xff]
        %v2021 = vld [vmem:[%s229 + $0x1100] sm:$0xff]
        %v2022 = vld [vmem:[%s229 + $0x1108] sm:$0xff]
        %v2023 = vld [vmem:[%s229 + $0x1110] sm:$0xff]
        %v2024 = vld [vmem:[%s229 + $0x1118] sm:$0xff]
        %v2025 = vld [vmem:[%s229 + $0x1120] sm:$0xff]
        %v2026 = vld [vmem:[%s229 + $0x1128] sm:$0xff]
        %v2027 = vld [vmem:[%s229 + $0x1130] sm:$0xff]
        %v2028 = vld [vmem:[%s229 + $0x1138] sm:$0xff]
        %v2029 = vld [vmem:[%s229 + $0x1140] sm:$0xff]
        %v2030 = vld [vmem:[%s229 + $0x1148] sm:$0xff]
        %v2031 = vld [vmem:[%s229 + $0x1150] sm:$0xff]
        %v2032 = vld [vmem:[%s229 + $0x1158] sm:$0xff]
        %v2033 = vld [vmem:[%s229 + $0x1160] sm:$0xff]
        %v2034 = vld [vmem:[%s229 + $0x1168] sm:$0xff]
        %v2035 = vld [vmem:[%s229 + $0x1170] sm:$0xff]
        %v2036 = vld [vmem:[%s229 + $0x1178] sm:$0xff]
        %v2037 = vld [vmem:[%s229 + $0x1180] sm:$0xff]
        %v2038 = vld [vmem:[%s229 + $0x1188] sm:$0xff]
        %v2039 = vld [vmem:[%s229 + $0x1190] sm:$0xff]
        %v2040 = vld [vmem:[%s229 + $0x1198] sm:$0xff]
        %v2041 = vld [vmem:[%s229 + $0x11a0] sm:$0xff]
        %v2042 = vld [vmem:[%s229 + $0x11a8] sm:$0xff]
        %v2043 = vld [vmem:[%s229 + $0x11b0] sm:$0xff]
        %v2044 = vld [vmem:[%s229 + $0x11b8] sm:$0xff]
        %v2045 = vld [vmem:[%s229 + $0x11c0] sm:$0xff]
        %v2046 = vld [vmem:[%s229 + $0x11c8] sm:$0xff]
        %v2047 = vld [vmem:[%s229 + $0x11d0] sm:$0xff]
        %v2048 = vld [vmem:[%s229 + $0x11d8] sm:$0xff]
        %v2049 = vld [vmem:[%s229 + $0x11e0] sm:$0xff]
        %v2050 = vld [vmem:[%s229 + $0x11e8] sm:$0xff]
        %v2051 = vld [vmem:[%s229 + $0x11f0] sm:$0xff]
        %v2052 = vld [vmem:[%s229 + $0x11f8] sm:$0xff]
        %v2053 = vld [vmem:[%s229 + $0x1200] sm:$0xff]
        %v2054 = vld [vmem:[%s229 + $0x1208] sm:$0xff]
        %v2055 = vld [vmem:[%s229 + $0x1210] sm:$0xff]
        %v2056 = vld [vmem:[%s229 + $0x1218] sm:$0xff]
        %v2057 = vld [vmem:[%s229 + $0x1220] sm:$0xff]
        %v2058 = vld [vmem:[%s229 + $0x1228] sm:$0xff]
        %v2059 = vld [vmem:[%s229 + $0x1230] sm:$0xff]
        %v2060 = vld [vmem:[%s229 + $0x1238] sm:$0xff]
        %v2061 = vld [vmem:[%s229 + $0x1240] sm:$0xff]
        %v2062 = vld [vmem:[%s229 + $0x1248] sm:$0xff]
        %v2063 = vld [vmem:[%s229 + $0x1250] sm:$0xff]
        %v2064 = vld [vmem:[%s229 + $0x1258] sm:$0xff]
        %v2065 = vld [vmem:[%s229 + $0x1260] sm:$0xff]
        %v2066 = vld [vmem:[%s229 + $0x1268] sm:$0xff]
        %v2067 = vld [vmem:[%s229 + $0x1270] sm:$0xff]
        %v2068 = vld [vmem:[%s229 + $0x1278] sm:$0xff]
        %v2069 = vld [vmem:[%s229 + $0x1280] sm:$0xff]
        %v2070 = vld [vmem:[%s229 + $0x1288] sm:$0xff]
        %v2071 = vld [vmem:[%s229 + $0x1290] sm:$0xff]
        %v2072 = vld [vmem:[%s229 + $0x1298] sm:$0xff]
        %v2073 = vld [vmem:[%s229 + $0x12a0] sm:$0xff]
        %v2074 = vld [vmem:[%s229 + $0x12a8] sm:$0xff]
        %v2075 = vld [vmem:[%s229 + $0x12b0] sm:$0xff]
        %v2076 = vld [vmem:[%s229 + $0x12b8] sm:$0xff]
        %v2077 = vld [vmem:[%s229 + $0x12c0] sm:$0xff]
        %v2078 = vld [vmem:[%s229 + $0x12c8] sm:$0xff]
        %v2079 = vld [vmem:[%s229 + $0x12d0] sm:$0xff]
        %v2080 = vld [vmem:[%s229 + $0x12d8] sm:$0xff]
        %v2081 = vld [vmem:[%s229 + $0x12e0] sm:$0xff]
        %v2082 = vld [vmem:[%s229 + $0x12e8] sm:$0xff]
        %v2083 = vld [vmem:[%s229 + $0x12f0] sm:$0xff]
        %v2084 = vld [vmem:[%s229 + $0x12f8] sm:$0xff]
        %v2085 = vld [vmem:[%s229 + $0x1300] sm:$0xff]
        %v2086 = vld [vmem:[%s229 + $0x1308] sm:$0xff]
        %v2087 = vld [vmem:[%s229 + $0x1310] sm:$0xff]
        %v2088 = vld [vmem:[%s229 + $0x1318] sm:$0xff]
        %v2089 = vld [vmem:[%s229 + $0x1320] sm:$0xff]
        %v2090 = vld [vmem:[%s229 + $0x1328] sm:$0xff]
        %v2091 = vld [vmem:[%s229 + $0x1330] sm:$0xff]
        %v2092 = vld [vmem:[%s229 + $0x1338] sm:$0xff]
        %v2093 = vld [vmem:[%s229 + $0x1340] sm:$0xff]
        %v2094 = vld [vmem:[%s229 + $0x1348] sm:$0xff]
        %v2095 = vld [vmem:[%s229 + $0x1350] sm:$0xff]
        %v2096 = vld [vmem:[%s229 + $0x1358] sm:$0xff]
        %v2097 = vld [vmem:[%s229 + $0x1360] sm:$0xff]
        %v2098 = vld [vmem:[%s229 + $0x1368] sm:$0xff]
        %v2099 = vld [vmem:[%s229 + $0x1370] sm:$0xff]
        %v2100 = vld [vmem:[%s229 + $0x1378] sm:$0xff]
        %v2101 = vld [vmem:[%s229 + $0x1380] sm:$0xff]
        %v2102 = vld [vmem:[%s229 + $0x1388] sm:$0xff]
        %v2103 = vld [vmem:[%s229 + $0x1390] sm:$0xff]
        %v2104 = vld [vmem:[%s229 + $0x1398] sm:$0xff]
        %v2105 = vld [vmem:[%s229 + $0x13a0] sm:$0xff]
        %v2106 = vld [vmem:[%s229 + $0x13a8] sm:$0xff]
        %v2107 = vld [vmem:[%s229 + $0x13b0] sm:$0xff]
        %v2108 = vld [vmem:[%s229 + $0x13b8] sm:$0xff]
        %v2109 = vld [vmem:[%s229 + $0x13c0] sm:$0xff]
        %v2110 = vld [vmem:[%s229 + $0x13c8] sm:$0xff]
        %v2111 = vld [vmem:[%s229 + $0x13d0] sm:$0xff]
        %v2112 = vld [vmem:[%s229 + $0x13d8] sm:$0xff]
        %v2113 = vld [vmem:[%s229 + $0x13e0] sm:$0xff]
        %v2114 = vld [vmem:[%s229 + $0x13e8] sm:$0xff]
        %v2115 = vld [vmem:[%s229 + $0x13f0] sm:$0xff]
        %v2116 = vld [vmem:[%s229 + $0x13f8] sm:$0xff]
        %v2117 = vld [vmem:[%s229 + $0x1400] sm:$0xff]
        %v2118 = vld [vmem:[%s229 + $0x1408] sm:$0xff]
        %v2119 = vld [vmem:[%s229 + $0x1410] sm:$0xff]
        %v2120 = vld [vmem:[%s229 + $0x1418] sm:$0xff]
        %v2121 = vld [vmem:[%s229 + $0x1420] sm:$0xff]
        %v2122 = vld [vmem:[%s229 + $0x1428] sm:$0xff]
        %v2123 = vld [vmem:[%s229 + $0x1430] sm:$0xff]
        %v2124 = vld [vmem:[%s229 + $0x1438] sm:$0xff]
        %v2125 = vld [vmem:[%s229 + $0x1440] sm:$0xff]
        %v2126 = vld [vmem:[%s229 + $0x1448] sm:$0xff]
        %v2127 = vld [vmem:[%s229 + $0x1450] sm:$0xff]
        %v2128 = vld [vmem:[%s229 + $0x1458] sm:$0xff]
        %v2129 = vld [vmem:[%s229 + $0x1460] sm:$0xff]
        %v2130 = vld [vmem:[%s229 + $0x1468] sm:$0xff]
        %v2131 = vld [vmem:[%s229 + $0x1470] sm:$0xff]
        %v2132 = vld [vmem:[%s229 + $0x1478] sm:$0xff]
        %v2133 = vld [vmem:[%s229 + $0x1480] sm:$0xff]
        %v2134 = vld [vmem:[%s229 + $0x1488] sm:$0xff]
        %v2135 = vld [vmem:[%s229 + $0x1490] sm:$0xff]
        %v2136 = vld [vmem:[%s229 + $0x1498] sm:$0xff]
        %v2137 = vld [vmem:[%s229 + $0x14a0] sm:$0xff]
        %v2138 = vld [vmem:[%s229 + $0x14a8] sm:$0xff]
        %v2139 = vld [vmem:[%s229 + $0x14b0] sm:$0xff]
        %v2140 = vld [vmem:[%s229 + $0x14b8] sm:$0xff]
        %v2141 = vld [vmem:[%s229 + $0x14c0] sm:$0xff]
        %v2142 = vld [vmem:[%s229 + $0x14c8] sm:$0xff]
        %v2143 = vld [vmem:[%s229 + $0x14d0] sm:$0xff]
        %v2144 = vld [vmem:[%s229 + $0x14d8] sm:$0xff]
        %v2145 = vld [vmem:[%s229 + $0x14e0] sm:$0xff]
        %v2146 = vld [vmem:[%s229 + $0x14e8] sm:$0xff]
        %v2147 = vld [vmem:[%s229 + $0x14f0] sm:$0xff]
        %v2148 = vld [vmem:[%s229 + $0x14f8] sm:$0xff]
        %v2149 = vld [vmem:[%s229 + $0x1500] sm:$0xff]
        %v2150 = vld [vmem:[%s229 + $0x1508] sm:$0xff]
        %v2151 = vld [vmem:[%s229 + $0x1510] sm:$0xff]
        %v2152 = vld [vmem:[%s229 + $0x1518] sm:$0xff]
        %v2153 = vld [vmem:[%s229 + $0x1520] sm:$0xff]
        %v2154 = vld [vmem:[%s229 + $0x1528] sm:$0xff]
        %v2155 = vld [vmem:[%s229 + $0x1530] sm:$0xff]
        %v2156 = vld [vmem:[%s229 + $0x1538] sm:$0xff]
        %v2157 = vld [vmem:[%s229 + $0x1540] sm:$0xff]
        %v2158 = vld [vmem:[%s229 + $0x1548] sm:$0xff]
        %v2159 = vld [vmem:[%s229 + $0x1550] sm:$0xff]
        %v2160 = vld [vmem:[%s229 + $0x1558] sm:$0xff]
        %v2161 = vld [vmem:[%s229 + $0x1560] sm:$0xff]
        %v2162 = vld [vmem:[%s229 + $0x1568] sm:$0xff]
        %v2163 = vld [vmem:[%s229 + $0x1570] sm:$0xff]
        %v2164 = vld [vmem:[%s229 + $0x1578] sm:$0xff]
        %v2165 = vld [vmem:[%s229 + $0x1580] sm:$0xff]
        %v2166 = vld [vmem:[%s229 + $0x1588] sm:$0xff]
        %v2167 = vld [vmem:[%s229 + $0x1590] sm:$0xff]
        %v2168 = vld [vmem:[%s229 + $0x1598] sm:$0xff]
        %v2169 = vld [vmem:[%s229 + $0x15a0] sm:$0xff]
        %v2170 = vld [vmem:[%s229 + $0x15a8] sm:$0xff]
        %v2171 = vld [vmem:[%s229 + $0x15b0] sm:$0xff]
        %v2172 = vld [vmem:[%s229 + $0x15b8] sm:$0xff]
        %v2173 = vld [vmem:[%s229 + $0x15c0] sm:$0xff]
        %v2174 = vld [vmem:[%s229 + $0x15c8] sm:$0xff]
        %v2175 = vld [vmem:[%s229 + $0x15d0] sm:$0xff]
        %v2176 = vld [vmem:[%s229 + $0x15d8] sm:$0xff]
        %v2177 = vld [vmem:[%s229 + $0x15e0] sm:$0xff]
        %v2178 = vld [vmem:[%s229 + $0x15e8] sm:$0xff]
        %v2179 = vld [vmem:[%s229 + $0x15f0] sm:$0xff]
        %v2180 = vld [vmem:[%s229 + $0x15f8] sm:$0xff]
        %v2885 = vunpack.c.l.b16 %v1477
        %v2886 = vunpack.c.h.b16 %v1477
        %v2887 = vunpack.c.l.b16 %v1478
        %v2888 = vunpack.c.h.b16 %v1478
        %v2889 = vunpack.c.l.b16 %v1479
        %v2890 = vunpack.c.h.b16 %v1479
        %v2891 = vunpack.c.l.b16 %v1480
        %v2892 = vunpack.c.h.b16 %v1480
        %v2893 = vunpack.c.l.b16 %v1481
        %v2894 = vunpack.c.h.b16 %v1481
        %v2895 = vunpack.c.l.b16 %v1482
        %v2896 = vunpack.c.h.b16 %v1482
        %v2897 = vunpack.c.l.b16 %v1483
        %v2898 = vunpack.c.h.b16 %v1483
        %v2899 = vunpack.c.l.b16 %v1484
        %v2900 = vunpack.c.h.b16 %v1484
        %v2901 = vunpack.c.l.b16 %v1485
        %v2902 = vunpack.c.h.b16 %v1485
        %v2903 = vunpack.c.l.b16 %v1486
        %v2904 = vunpack.c.h.b16 %v1486
        %v2905 = vunpack.c.l.b16 %v1487
        %v2906 = vunpack.c.h.b16 %v1487
        %v2907 = vunpack.c.l.b16 %v1488
        %v2908 = vunpack.c.h.b16 %v1488
        %v2909 = vunpack.c.l.b16 %v1489
        %v2910 = vunpack.c.h.b16 %v1489
        %v2911 = vunpack.c.l.b16 %v1490
        %v2912 = vunpack.c.h.b16 %v1490
        %v2913 = vunpack.c.l.b16 %v1491
        %v2914 = vunpack.c.h.b16 %v1491
        %v2915 = vunpack.c.l.b16 %v1492
        %v2916 = vunpack.c.h.b16 %v1492
        %v2917 = vunpack.c.l.b16 %v1493
        %v2918 = vunpack.c.h.b16 %v1493
        %v2919 = vunpack.c.l.b16 %v1494
        %v2920 = vunpack.c.h.b16 %v1494
        %v2921 = vunpack.c.l.b16 %v1495
        %v2922 = vunpack.c.h.b16 %v1495
        %v2923 = vunpack.c.l.b16 %v1496
        %v2924 = vunpack.c.h.b16 %v1496
        %v2925 = vunpack.c.l.b16 %v1497
        %v2926 = vunpack.c.h.b16 %v1497
        %v2927 = vunpack.c.l.b16 %v1498
        %v2928 = vunpack.c.h.b16 %v1498
        %v2929 = vunpack.c.l.b16 %v1499
        %v2930 = vunpack.c.h.b16 %v1499
        %v2931 = vunpack.c.l.b16 %v1500
        %v2932 = vunpack.c.h.b16 %v1500
        %v2933 = vunpack.c.l.b16 %v1501
        %v2934 = vunpack.c.h.b16 %v1501
        %v2935 = vunpack.c.l.b16 %v1502
        %v2936 = vunpack.c.h.b16 %v1502
        %v2937 = vunpack.c.l.b16 %v1503
        %v2938 = vunpack.c.h.b16 %v1503
        %v2939 = vunpack.c.l.b16 %v1504
        %v2940 = vunpack.c.h.b16 %v1504
        %v2941 = vunpack.c.l.b16 %v1505
        %v2942 = vunpack.c.h.b16 %v1505
        %v2943 = vunpack.c.l.b16 %v1506
        %v2944 = vunpack.c.h.b16 %v1506
        %v2945 = vunpack.c.l.b16 %v1507
        %v2946 = vunpack.c.h.b16 %v1507
        %v2947 = vunpack.c.l.b16 %v1508
        %v2948 = vunpack.c.h.b16 %v1508
        %v2949 = vunpack.c.l.b16 %v1509
        %v2950 = vunpack.c.h.b16 %v1509
        %v2951 = vunpack.c.l.b16 %v1510
        %v2952 = vunpack.c.h.b16 %v1510
        %v2953 = vunpack.c.l.b16 %v1511
        %v2954 = vunpack.c.h.b16 %v1511
        %v2955 = vunpack.c.l.b16 %v1512
        %v2956 = vunpack.c.h.b16 %v1512
        %v2957 = vunpack.c.l.b16 %v1513
        %v2958 = vunpack.c.h.b16 %v1513
        %v2959 = vunpack.c.l.b16 %v1514
        %v2960 = vunpack.c.h.b16 %v1514
        %v2961 = vunpack.c.l.b16 %v1515
        %v2962 = vunpack.c.h.b16 %v1515
        %v2963 = vunpack.c.l.b16 %v1516
        %v2964 = vunpack.c.h.b16 %v1516
        %v2965 = vunpack.c.l.b16 %v1517
        %v2966 = vunpack.c.h.b16 %v1517
        %v2967 = vunpack.c.l.b16 %v1518
        %v2968 = vunpack.c.h.b16 %v1518
        %v2969 = vunpack.c.l.b16 %v1519
        %v2970 = vunpack.c.h.b16 %v1519
        %v2971 = vunpack.c.l.b16 %v1520
        %v2972 = vunpack.c.h.b16 %v1520
        %v2973 = vunpack.c.l.b16 %v1521
        %v2974 = vunpack.c.h.b16 %v1521
        %v2975 = vunpack.c.l.b16 %v1522
        %v2976 = vunpack.c.h.b16 %v1522
        %v2977 = vunpack.c.l.b16 %v1523
        %v2978 = vunpack.c.h.b16 %v1523
        %v2979 = vunpack.c.l.b16 %v1524
        %v2980 = vunpack.c.h.b16 %v1524
        %v2981 = vunpack.c.l.b16 %v1525
        %v2982 = vunpack.c.h.b16 %v1525
        %v2983 = vunpack.c.l.b16 %v1526
        %v2984 = vunpack.c.h.b16 %v1526
        %v2985 = vunpack.c.l.b16 %v1527
        %v2986 = vunpack.c.h.b16 %v1527
        %v2987 = vunpack.c.l.b16 %v1528
        %v2988 = vunpack.c.h.b16 %v1528
        %v2989 = vunpack.c.l.b16 %v1529
        %v2990 = vunpack.c.h.b16 %v1529
        %v2991 = vunpack.c.l.b16 %v1530
        %v2992 = vunpack.c.h.b16 %v1530
        %v2993 = vunpack.c.l.b16 %v1531
        %v2994 = vunpack.c.h.b16 %v1531
        %v2995 = vunpack.c.l.b16 %v1532
        %v2996 = vunpack.c.h.b16 %v1532
        %v2997 = vunpack.c.l.b16 %v1533
        %v2998 = vunpack.c.h.b16 %v1533
        %v2999 = vunpack.c.l.b16 %v1534
        %v3000 = vunpack.c.h.b16 %v1534
        %v3001 = vunpack.c.l.b16 %v1535
        %v3002 = vunpack.c.h.b16 %v1535
        %v3003 = vunpack.c.l.b16 %v1536
        %v3004 = vunpack.c.h.b16 %v1536
        %v3005 = vunpack.c.l.b16 %v1537
        %v3006 = vunpack.c.h.b16 %v1537
        %v3007 = vunpack.c.l.b16 %v1538
        %v3008 = vunpack.c.h.b16 %v1538
        %v3009 = vunpack.c.l.b16 %v1539
        %v3010 = vunpack.c.h.b16 %v1539
        %v3011 = vunpack.c.l.b16 %v1540
        %v3012 = vunpack.c.h.b16 %v1540
        %v3013 = vunpack.c.l.b16 %v1541
        %v3014 = vunpack.c.h.b16 %v1541
        %v3015 = vunpack.c.l.b16 %v1542
        %v3016 = vunpack.c.h.b16 %v1542
        %v3017 = vunpack.c.l.b16 %v1543
        %v3018 = vunpack.c.h.b16 %v1543
        %v3019 = vunpack.c.l.b16 %v1544
        %v3020 = vunpack.c.h.b16 %v1544
        %v3021 = vunpack.c.l.b16 %v1545
        %v3022 = vunpack.c.h.b16 %v1545
        %v3023 = vunpack.c.l.b16 %v1546
        %v3024 = vunpack.c.h.b16 %v1546
        %v3025 = vunpack.c.l.b16 %v1547
        %v3026 = vunpack.c.h.b16 %v1547
        %v3027 = vunpack.c.l.b16 %v1548
        %v3028 = vunpack.c.h.b16 %v1548
        %v3029 = vunpack.c.l.b16 %v1549
        %v3030 = vunpack.c.h.b16 %v1549
        %v3031 = vunpack.c.l.b16 %v1550
        %v3032 = vunpack.c.h.b16 %v1550
        %v3033 = vunpack.c.l.b16 %v1551
        %v3034 = vunpack.c.h.b16 %v1551
        %v3035 = vunpack.c.l.b16 %v1552
        %v3036 = vunpack.c.h.b16 %v1552
        %v3037 = vunpack.c.l.b16 %v1553
        %v3038 = vunpack.c.h.b16 %v1553
        %v3039 = vunpack.c.l.b16 %v1554
        %v3040 = vunpack.c.h.b16 %v1554
        %v3041 = vunpack.c.l.b16 %v1555
        %v3042 = vunpack.c.h.b16 %v1555
        %v3043 = vunpack.c.l.b16 %v1556
        %v3044 = vunpack.c.h.b16 %v1556
        %v3045 = vunpack.c.l.b16 %v1557
        %v3046 = vunpack.c.h.b16 %v1557
        %v3047 = vunpack.c.l.b16 %v1558
        %v3048 = vunpack.c.h.b16 %v1558
        %v3049 = vunpack.c.l.b16 %v1559
        %v3050 = vunpack.c.h.b16 %v1559
        %v3051 = vunpack.c.l.b16 %v1560
        %v3052 = vunpack.c.h.b16 %v1560
        %v3053 = vunpack.c.l.b16 %v1561
        %v3054 = vunpack.c.h.b16 %v1561
        %v3055 = vunpack.c.l.b16 %v1562
        %v3056 = vunpack.c.h.b16 %v1562
        %v3057 = vunpack.c.l.b16 %v1563
        %v3058 = vunpack.c.h.b16 %v1563
        %v3059 = vunpack.c.l.b16 %v1564
        %v3060 = vunpack.c.h.b16 %v1564
        %v3061 = vunpack.c.l.b16 %v1565
        %v3062 = vunpack.c.h.b16 %v1565
        %v3063 = vunpack.c.l.b16 %v1566
        %v3064 = vunpack.c.h.b16 %v1566
        %v3065 = vunpack.c.l.b16 %v1567
        %v3066 = vunpack.c.h.b16 %v1567
        %v3067 = vunpack.c.l.b16 %v1568
        %v3068 = vunpack.c.h.b16 %v1568
        %v3069 = vunpack.c.l.b16 %v1569
        %v3070 = vunpack.c.h.b16 %v1569
        %v3071 = vunpack.c.l.b16 %v1570
        %v3072 = vunpack.c.h.b16 %v1570
        %v3073 = vunpack.c.l.b16 %v1571
        %v3074 = vunpack.c.h.b16 %v1571
        %v3075 = vunpack.c.l.b16 %v1572
        %v3076 = vunpack.c.h.b16 %v1572
        %v3077 = vunpack.c.l.b16 %v1573
        %v3078 = vunpack.c.h.b16 %v1573
        %v3079 = vunpack.c.l.b16 %v1574
        %v3080 = vunpack.c.h.b16 %v1574
        %v3081 = vunpack.c.l.b16 %v1575
        %v3082 = vunpack.c.h.b16 %v1575
        %v3083 = vunpack.c.l.b16 %v1576
        %v3084 = vunpack.c.h.b16 %v1576
        %v3085 = vunpack.c.l.b16 %v1577
        %v3086 = vunpack.c.h.b16 %v1577
        %v3087 = vunpack.c.l.b16 %v1578
        %v3088 = vunpack.c.h.b16 %v1578
        %v3089 = vunpack.c.l.b16 %v1579
        %v3090 = vunpack.c.h.b16 %v1579
        %v3091 = vunpack.c.l.b16 %v1580
        %v3092 = vunpack.c.h.b16 %v1580
        %v3093 = vunpack.c.l.b16 %v1581
        %v3094 = vunpack.c.h.b16 %v1581
        %v3095 = vunpack.c.l.b16 %v1582
        %v3096 = vunpack.c.h.b16 %v1582
        %v3097 = vunpack.c.l.b16 %v1583
        %v3098 = vunpack.c.h.b16 %v1583
        %v3099 = vunpack.c.l.b16 %v1584
        %v3100 = vunpack.c.h.b16 %v1584
        %v3101 = vunpack.c.l.b16 %v1585
        %v3102 = vunpack.c.h.b16 %v1585
        %v3103 = vunpack.c.l.b16 %v1586
        %v3104 = vunpack.c.h.b16 %v1586
        %v3105 = vunpack.c.l.b16 %v1587
        %v3106 = vunpack.c.h.b16 %v1587
        %v3107 = vunpack.c.l.b16 %v1588
        %v3108 = vunpack.c.h.b16 %v1588
        %v3109 = vunpack.c.l.b16 %v1589
        %v3110 = vunpack.c.h.b16 %v1589
        %v3111 = vunpack.c.l.b16 %v1590
        %v3112 = vunpack.c.h.b16 %v1590
        %v3113 = vunpack.c.l.b16 %v1591
        %v3114 = vunpack.c.h.b16 %v1591
        %v3115 = vunpack.c.l.b16 %v1592
        %v3116 = vunpack.c.h.b16 %v1592
        %v3117 = vunpack.c.l.b16 %v1593
        %v3118 = vunpack.c.h.b16 %v1593
        %v3119 = vunpack.c.l.b16 %v1594
        %v3120 = vunpack.c.h.b16 %v1594
        %v3121 = vunpack.c.l.b16 %v1595
        %v3122 = vunpack.c.h.b16 %v1595
        %v3123 = vunpack.c.l.b16 %v1596
        %v3124 = vunpack.c.h.b16 %v1596
        %v3125 = vunpack.c.l.b16 %v1597
        %v3126 = vunpack.c.h.b16 %v1597
        %v3127 = vunpack.c.l.b16 %v1598
        %v3128 = vunpack.c.h.b16 %v1598
        %v3129 = vunpack.c.l.b16 %v1599
        %v3130 = vunpack.c.h.b16 %v1599
        %v3131 = vunpack.c.l.b16 %v1600
        %v3132 = vunpack.c.h.b16 %v1600
        %v3133 = vunpack.c.l.b16 %v1601
        %v3134 = vunpack.c.h.b16 %v1601
        %v3135 = vunpack.c.l.b16 %v1602
        %v3136 = vunpack.c.h.b16 %v1602
        %v3137 = vunpack.c.l.b16 %v1603
        %v3138 = vunpack.c.h.b16 %v1603
        %v3139 = vunpack.c.l.b16 %v1604
        %v3140 = vunpack.c.h.b16 %v1604
        %v3141 = vunpack.c.l.b16 %v1605
        %v3142 = vunpack.c.h.b16 %v1605
        %v3143 = vunpack.c.l.b16 %v1606
        %v3144 = vunpack.c.h.b16 %v1606
        %v3145 = vunpack.c.l.b16 %v1607
        %v3146 = vunpack.c.h.b16 %v1607
        %v3147 = vunpack.c.l.b16 %v1608
        %v3148 = vunpack.c.h.b16 %v1608
        %v3149 = vunpack.c.l.b16 %v1609
        %v3150 = vunpack.c.h.b16 %v1609
        %v3151 = vunpack.c.l.b16 %v1610
        %v3152 = vunpack.c.h.b16 %v1610
        %v3153 = vunpack.c.l.b16 %v1611
        %v3154 = vunpack.c.h.b16 %v1611
        %v3155 = vunpack.c.l.b16 %v1612
        %v3156 = vunpack.c.h.b16 %v1612
        %v3157 = vunpack.c.l.b16 %v1613
        %v3158 = vunpack.c.h.b16 %v1613
        %v3159 = vunpack.c.l.b16 %v1614
        %v3160 = vunpack.c.h.b16 %v1614
        %v3161 = vunpack.c.l.b16 %v1615
        %v3162 = vunpack.c.h.b16 %v1615
        %v3163 = vunpack.c.l.b16 %v1616
        %v3164 = vunpack.c.h.b16 %v1616
        %v3165 = vunpack.c.l.b16 %v1617
        %v3166 = vunpack.c.h.b16 %v1617
        %v3167 = vunpack.c.l.b16 %v1618
        %v3168 = vunpack.c.h.b16 %v1618
        %v3169 = vunpack.c.l.b16 %v1619
        %v3170 = vunpack.c.h.b16 %v1619
        %v3171 = vunpack.c.l.b16 %v1620
        %v3172 = vunpack.c.h.b16 %v1620
        %v3173 = vunpack.c.l.b16 %v1621
        %v3174 = vunpack.c.h.b16 %v1621
        %v3175 = vunpack.c.l.b16 %v1622
        %v3176 = vunpack.c.h.b16 %v1622
        %v3177 = vunpack.c.l.b16 %v1623
        %v3178 = vunpack.c.h.b16 %v1623
        %v3179 = vunpack.c.l.b16 %v1624
        %v3180 = vunpack.c.h.b16 %v1624
        %v3181 = vunpack.c.l.b16 %v1625
        %v3182 = vunpack.c.h.b16 %v1625
        %v3183 = vunpack.c.l.b16 %v1626
        %v3184 = vunpack.c.h.b16 %v1626
        %v3185 = vunpack.c.l.b16 %v1627
        %v3186 = vunpack.c.h.b16 %v1627
        %v3187 = vunpack.c.l.b16 %v1628
        %v3188 = vunpack.c.h.b16 %v1628
        %v3189 = vunpack.c.l.b16 %v1629
        %v3190 = vunpack.c.h.b16 %v1629
        %v3191 = vunpack.c.l.b16 %v1630
        %v3192 = vunpack.c.h.b16 %v1630
        %v3193 = vunpack.c.l.b16 %v1631
        %v3194 = vunpack.c.h.b16 %v1631
        %v3195 = vunpack.c.l.b16 %v1632
        %v3196 = vunpack.c.h.b16 %v1632
        %v3197 = vunpack.c.l.b16 %v1633
        %v3198 = vunpack.c.h.b16 %v1633
        %v3199 = vunpack.c.l.b16 %v1634
        %v3200 = vunpack.c.h.b16 %v1634
        %v3201 = vunpack.c.l.b16 %v1635
        %v3202 = vunpack.c.h.b16 %v1635
        %v3203 = vunpack.c.l.b16 %v1636
        %v3204 = vunpack.c.h.b16 %v1636
        %v3205 = vunpack.c.l.b16 %v1637
        %v3206 = vunpack.c.h.b16 %v1637
        %v3207 = vunpack.c.l.b16 %v1638
        %v3208 = vunpack.c.h.b16 %v1638
        %v3209 = vunpack.c.l.b16 %v1639
        %v3210 = vunpack.c.h.b16 %v1639
        %v3211 = vunpack.c.l.b16 %v1640
        %v3212 = vunpack.c.h.b16 %v1640
        %v3213 = vunpack.c.l.b16 %v1641
        %v3214 = vunpack.c.h.b16 %v1641
        %v3215 = vunpack.c.l.b16 %v1642
        %v3216 = vunpack.c.h.b16 %v1642
        %v3217 = vunpack.c.l.b16 %v1643
        %v3218 = vunpack.c.h.b16 %v1643
        %v3219 = vunpack.c.l.b16 %v1644
        %v3220 = vunpack.c.h.b16 %v1644
        %v3221 = vunpack.c.l.b16 %v1645
        %v3222 = vunpack.c.h.b16 %v1645
        %v3223 = vunpack.c.l.b16 %v1646
        %v3224 = vunpack.c.h.b16 %v1646
        %v3225 = vunpack.c.l.b16 %v1647
        %v3226 = vunpack.c.h.b16 %v1647
        %v3227 = vunpack.c.l.b16 %v1648
        %v3228 = vunpack.c.h.b16 %v1648
        %v3229 = vunpack.c.l.b16 %v1649
        %v3230 = vunpack.c.h.b16 %v1649
        %v3231 = vunpack.c.l.b16 %v1650
        %v3232 = vunpack.c.h.b16 %v1650
        %v3233 = vunpack.c.l.b16 %v1651
        %v3234 = vunpack.c.h.b16 %v1651
        %v3235 = vunpack.c.l.b16 %v1652
        %v3236 = vunpack.c.h.b16 %v1652
        %v3237 = vunpack.c.l.b16 %v1653
        %v3238 = vunpack.c.h.b16 %v1653
        %v3239 = vunpack.c.l.b16 %v1654
        %v3240 = vunpack.c.h.b16 %v1654
        %v3241 = vunpack.c.l.b16 %v1655
        %v3242 = vunpack.c.h.b16 %v1655
        %v3243 = vunpack.c.l.b16 %v1656
        %v3244 = vunpack.c.h.b16 %v1656
        %v3245 = vunpack.c.l.b16 %v1657
        %v3246 = vunpack.c.h.b16 %v1657
        %v3247 = vunpack.c.l.b16 %v1658
        %v3248 = vunpack.c.h.b16 %v1658
        %v3249 = vunpack.c.l.b16 %v1659
        %v3250 = vunpack.c.h.b16 %v1659
        %v3251 = vunpack.c.l.b16 %v1660
        %v3252 = vunpack.c.h.b16 %v1660
        %v3253 = vunpack.c.l.b16 %v1661
        %v3254 = vunpack.c.h.b16 %v1661
        %v3255 = vunpack.c.l.b16 %v1662
        %v3256 = vunpack.c.h.b16 %v1662
        %v3257 = vunpack.c.l.b16 %v1663
        %v3258 = vunpack.c.h.b16 %v1663
        %v3259 = vunpack.c.l.b16 %v1664
        %v3260 = vunpack.c.h.b16 %v1664
        %v3261 = vunpack.c.l.b16 %v1665
        %v3262 = vunpack.c.h.b16 %v1665
        %v3263 = vunpack.c.l.b16 %v1666
        %v3264 = vunpack.c.h.b16 %v1666
        %v3265 = vunpack.c.l.b16 %v1667
        %v3266 = vunpack.c.h.b16 %v1667
        %v3267 = vunpack.c.l.b16 %v1668
        %v3268 = vunpack.c.h.b16 %v1668
        %v3269 = vunpack.c.l.b16 %v1669
        %v3270 = vunpack.c.h.b16 %v1669
        %v3271 = vunpack.c.l.b16 %v1670
        %v3272 = vunpack.c.h.b16 %v1670
        %v3273 = vunpack.c.l.b16 %v1671
        %v3274 = vunpack.c.h.b16 %v1671
        %v3275 = vunpack.c.l.b16 %v1672
        %v3276 = vunpack.c.h.b16 %v1672
        %v3277 = vunpack.c.l.b16 %v1673
        %v3278 = vunpack.c.h.b16 %v1673
        %v3279 = vunpack.c.l.b16 %v1674
        %v3280 = vunpack.c.h.b16 %v1674
        %v3281 = vunpack.c.l.b16 %v1675
        %v3282 = vunpack.c.h.b16 %v1675
        %v3283 = vunpack.c.l.b16 %v1676
        %v3284 = vunpack.c.h.b16 %v1676
        %v3285 = vunpack.c.l.b16 %v1677
        %v3286 = vunpack.c.h.b16 %v1677
        %v3287 = vunpack.c.l.b16 %v1678
        %v3288 = vunpack.c.h.b16 %v1678
        %v3289 = vunpack.c.l.b16 %v1679
        %v3290 = vunpack.c.h.b16 %v1679
        %v3291 = vunpack.c.l.b16 %v1680
        %v3292 = vunpack.c.h.b16 %v1680
        %v3293 = vunpack.c.l.b16 %v1681
        %v3294 = vunpack.c.h.b16 %v1681
        %v3295 = vunpack.c.l.b16 %v1682
        %v3296 = vunpack.c.h.b16 %v1682
        %v3297 = vunpack.c.l.b16 %v1683
        %v3298 = vunpack.c.h.b16 %v1683
        %v3299 = vunpack.c.l.b16 %v1684
        %v3300 = vunpack.c.h.b16 %v1684
        %v3301 = vunpack.c.l.b16 %v1685
        %v3302 = vunpack.c.h.b16 %v1685
        %v3303 = vunpack.c.l.b16 %v1686
        %v3304 = vunpack.c.h.b16 %v1686
        %v3305 = vunpack.c.l.b16 %v1687
        %v3306 = vunpack.c.h.b16 %v1687
        %v3307 = vunpack.c.l.b16 %v1688
        %v3308 = vunpack.c.h.b16 %v1688
        %v3309 = vunpack.c.l.b16 %v1689
        %v3310 = vunpack.c.h.b16 %v1689
        %v3311 = vunpack.c.l.b16 %v1690
        %v3312 = vunpack.c.h.b16 %v1690
        %v3313 = vunpack.c.l.b16 %v1691
        %v3314 = vunpack.c.h.b16 %v1691
        %v3315 = vunpack.c.l.b16 %v1692
        %v3316 = vunpack.c.h.b16 %v1692
        %v3317 = vunpack.c.l.b16 %v1693
        %v3318 = vunpack.c.h.b16 %v1693
        %v3319 = vunpack.c.l.b16 %v1694
        %v3320 = vunpack.c.h.b16 %v1694
        %v3321 = vunpack.c.l.b16 %v1695
        %v3322 = vunpack.c.h.b16 %v1695
        %v3323 = vunpack.c.l.b16 %v1696
        %v3324 = vunpack.c.h.b16 %v1696
        %v3325 = vunpack.c.l.b16 %v1697
        %v3326 = vunpack.c.h.b16 %v1697
        %v3327 = vunpack.c.l.b16 %v1698
        %v3328 = vunpack.c.h.b16 %v1698
        %v3329 = vunpack.c.l.b16 %v1699
        %v3330 = vunpack.c.h.b16 %v1699
        %v3331 = vunpack.c.l.b16 %v1700
        %v3332 = vunpack.c.h.b16 %v1700
        %v3333 = vunpack.c.l.b16 %v1701
        %v3334 = vunpack.c.h.b16 %v1701
        %v3335 = vunpack.c.l.b16 %v1702
        %v3336 = vunpack.c.h.b16 %v1702
        %v3337 = vunpack.c.l.b16 %v1703
        %v3338 = vunpack.c.h.b16 %v1703
        %v3339 = vunpack.c.l.b16 %v1704
        %v3340 = vunpack.c.h.b16 %v1704
        %v3341 = vunpack.c.l.b16 %v1705
        %v3342 = vunpack.c.h.b16 %v1705
        %v3343 = vunpack.c.l.b16 %v1706
        %v3344 = vunpack.c.h.b16 %v1706
        %v3345 = vunpack.c.l.b16 %v1707
        %v3346 = vunpack.c.h.b16 %v1707
        %v3347 = vunpack.c.l.b16 %v1708
        %v3348 = vunpack.c.h.b16 %v1708
        %v3349 = vunpack.c.l.b16 %v1709
        %v3350 = vunpack.c.h.b16 %v1709
        %v3351 = vunpack.c.l.b16 %v1710
        %v3352 = vunpack.c.h.b16 %v1710
        %v3353 = vunpack.c.l.b16 %v1711
        %v3354 = vunpack.c.h.b16 %v1711
        %v3355 = vunpack.c.l.b16 %v1712
        %v3356 = vunpack.c.h.b16 %v1712
        %v3357 = vunpack.c.l.b16 %v1713
        %v3358 = vunpack.c.h.b16 %v1713
        %v3359 = vunpack.c.l.b16 %v1714
        %v3360 = vunpack.c.h.b16 %v1714
        %v3361 = vunpack.c.l.b16 %v1715
        %v3362 = vunpack.c.h.b16 %v1715
        %v3363 = vunpack.c.l.b16 %v1716
        %v3364 = vunpack.c.h.b16 %v1716
        %v3365 = vunpack.c.l.b16 %v1717
        %v3366 = vunpack.c.h.b16 %v1717
        %v3367 = vunpack.c.l.b16 %v1718
        %v3368 = vunpack.c.h.b16 %v1718
        %v3369 = vunpack.c.l.b16 %v1719
        %v3370 = vunpack.c.h.b16 %v1719
        %v3371 = vunpack.c.l.b16 %v1720
        %v3372 = vunpack.c.h.b16 %v1720
        %v3373 = vunpack.c.l.b16 %v1721
        %v3374 = vunpack.c.h.b16 %v1721
        %v3375 = vunpack.c.l.b16 %v1722
        %v3376 = vunpack.c.h.b16 %v1722
        %v3377 = vunpack.c.l.b16 %v1723
        %v3378 = vunpack.c.h.b16 %v1723
        %v3379 = vunpack.c.l.b16 %v1724
        %v3380 = vunpack.c.h.b16 %v1724
        %v3381 = vunpack.c.l.b16 %v1725
        %v3382 = vunpack.c.h.b16 %v1725
        %v3383 = vunpack.c.l.b16 %v1726
        %v3384 = vunpack.c.h.b16 %v1726
        %v3385 = vunpack.c.l.b16 %v1727
        %v3386 = vunpack.c.h.b16 %v1727
        %v3387 = vunpack.c.l.b16 %v1728
        %v3388 = vunpack.c.h.b16 %v1728
        %v3389 = vunpack.c.l.b16 %v1729
        %v3390 = vunpack.c.h.b16 %v1729
        %v3391 = vunpack.c.l.b16 %v1730
        %v3392 = vunpack.c.h.b16 %v1730
        %v3393 = vunpack.c.l.b16 %v1731
        %v3394 = vunpack.c.h.b16 %v1731
        %v3395 = vunpack.c.l.b16 %v1732
        %v3396 = vunpack.c.h.b16 %v1732
        %v3397 = vunpack.c.l.b16 %v1733
        %v3398 = vunpack.c.h.b16 %v1733
        %v3399 = vunpack.c.l.b16 %v1734
        %v3400 = vunpack.c.h.b16 %v1734
        %v3401 = vunpack.c.l.b16 %v1735
        %v3402 = vunpack.c.h.b16 %v1735
        %v3403 = vunpack.c.l.b16 %v1736
        %v3404 = vunpack.c.h.b16 %v1736
        %v3405 = vunpack.c.l.b16 %v1737
        %v3406 = vunpack.c.h.b16 %v1737
        %v3407 = vunpack.c.l.b16 %v1738
        %v3408 = vunpack.c.h.b16 %v1738
        %v3409 = vunpack.c.l.b16 %v1739
        %v3410 = vunpack.c.h.b16 %v1739
        %v3411 = vunpack.c.l.b16 %v1740
        %v3412 = vunpack.c.h.b16 %v1740
        %v3413 = vunpack.c.l.b16 %v1741
        %v3414 = vunpack.c.h.b16 %v1741
        %v3415 = vunpack.c.l.b16 %v1742
        %v3416 = vunpack.c.h.b16 %v1742
        %v3417 = vunpack.c.l.b16 %v1743
        %v3418 = vunpack.c.h.b16 %v1743
        %v3419 = vunpack.c.l.b16 %v1744
        %v3420 = vunpack.c.h.b16 %v1744
        %v3421 = vunpack.c.l.b16 %v1745
        %v3422 = vunpack.c.h.b16 %v1745
        %v3423 = vunpack.c.l.b16 %v1746
        %v3424 = vunpack.c.h.b16 %v1746
        %v3425 = vunpack.c.l.b16 %v1747
        %v3426 = vunpack.c.h.b16 %v1747
        %v3427 = vunpack.c.l.b16 %v1748
        %v3428 = vunpack.c.h.b16 %v1748
        %v3429 = vunpack.c.l.b16 %v1749
        %v3430 = vunpack.c.h.b16 %v1749
        %v3431 = vunpack.c.l.b16 %v1750
        %v3432 = vunpack.c.h.b16 %v1750
        %v3433 = vunpack.c.l.b16 %v1751
        %v3434 = vunpack.c.h.b16 %v1751
        %v3435 = vunpack.c.l.b16 %v1752
        %v3436 = vunpack.c.h.b16 %v1752
        %v3437 = vunpack.c.l.b16 %v1753
        %v3438 = vunpack.c.h.b16 %v1753
        %v3439 = vunpack.c.l.b16 %v1754
        %v3440 = vunpack.c.h.b16 %v1754
        %v3441 = vunpack.c.l.b16 %v1755
        %v3442 = vunpack.c.h.b16 %v1755
        %v3443 = vunpack.c.l.b16 %v1756
        %v3444 = vunpack.c.h.b16 %v1756
        %v3445 = vunpack.c.l.b16 %v1757
        %v3446 = vunpack.c.h.b16 %v1757
        %v3447 = vunpack.c.l.b16 %v1758
        %v3448 = vunpack.c.h.b16 %v1758
        %v3449 = vunpack.c.l.b16 %v1759
        %v3450 = vunpack.c.h.b16 %v1759
        %v3451 = vunpack.c.l.b16 %v1760
        %v3452 = vunpack.c.h.b16 %v1760
        %v3453 = vunpack.c.l.b16 %v1761
        %v3454 = vunpack.c.h.b16 %v1761
        %v3455 = vunpack.c.l.b16 %v1762
        %v3456 = vunpack.c.h.b16 %v1762
        %v3457 = vunpack.c.l.b16 %v1763
        %v3458 = vunpack.c.h.b16 %v1763
        %v3459 = vunpack.c.l.b16 %v1764
        %v3460 = vunpack.c.h.b16 %v1764
        %v3461 = vunpack.c.l.b16 %v1765
        %v3462 = vunpack.c.h.b16 %v1765
        %v3463 = vunpack.c.l.b16 %v1766
        %v3464 = vunpack.c.h.b16 %v1766
        %v3465 = vunpack.c.l.b16 %v1767
        %v3466 = vunpack.c.h.b16 %v1767
        %v3467 = vunpack.c.l.b16 %v1768
        %v3468 = vunpack.c.h.b16 %v1768
        %v3469 = vunpack.c.l.b16 %v1769
        %v3470 = vunpack.c.h.b16 %v1769
        %v3471 = vunpack.c.l.b16 %v1770
        %v3472 = vunpack.c.h.b16 %v1770
        %v3473 = vunpack.c.l.b16 %v1771
        %v3474 = vunpack.c.h.b16 %v1771
        %v3475 = vunpack.c.l.b16 %v1772
        %v3476 = vunpack.c.h.b16 %v1772
        %v3477 = vunpack.c.l.b16 %v1773
        %v3478 = vunpack.c.h.b16 %v1773
        %v3479 = vunpack.c.l.b16 %v1774
        %v3480 = vunpack.c.h.b16 %v1774
        %v3481 = vunpack.c.l.b16 %v1775
        %v3482 = vunpack.c.h.b16 %v1775
        %v3483 = vunpack.c.l.b16 %v1776
        %v3484 = vunpack.c.h.b16 %v1776
        %v3485 = vunpack.c.l.b16 %v1777
        %v3486 = vunpack.c.h.b16 %v1777
        %v3487 = vunpack.c.l.b16 %v1778
        %v3488 = vunpack.c.h.b16 %v1778
        %v3489 = vunpack.c.l.b16 %v1779
        %v3490 = vunpack.c.h.b16 %v1779
        %v3491 = vunpack.c.l.b16 %v1780
        %v3492 = vunpack.c.h.b16 %v1780
        %v3493 = vunpack.c.l.b16 %v1781
        %v3494 = vunpack.c.h.b16 %v1781
        %v3495 = vunpack.c.l.b16 %v1782
        %v3496 = vunpack.c.h.b16 %v1782
        %v3497 = vunpack.c.l.b16 %v1783
        %v3498 = vunpack.c.h.b16 %v1783
        %v3499 = vunpack.c.l.b16 %v1784
        %v3500 = vunpack.c.h.b16 %v1784
        %v3501 = vunpack.c.l.b16 %v1785
        %v3502 = vunpack.c.h.b16 %v1785
        %v3503 = vunpack.c.l.b16 %v1786
        %v3504 = vunpack.c.h.b16 %v1786
        %v3505 = vunpack.c.l.b16 %v1787
        %v3506 = vunpack.c.h.b16 %v1787
        %v3507 = vunpack.c.l.b16 %v1788
        %v3508 = vunpack.c.h.b16 %v1788
        %v3509 = vunpack.c.l.b16 %v1789
        %v3510 = vunpack.c.h.b16 %v1789
        %v3511 = vunpack.c.l.b16 %v1790
        %v3512 = vunpack.c.h.b16 %v1790
        %v3513 = vunpack.c.l.b16 %v1791
        %v3514 = vunpack.c.h.b16 %v1791
        %v3515 = vunpack.c.l.b16 %v1792
        %v3516 = vunpack.c.h.b16 %v1792
        %v3517 = vunpack.c.l.b16 %v1793
        %v3518 = vunpack.c.h.b16 %v1793
        %v3519 = vunpack.c.l.b16 %v1794
        %v3520 = vunpack.c.h.b16 %v1794
        %v3521 = vunpack.c.l.b16 %v1795
        %v3522 = vunpack.c.h.b16 %v1795
        %v3523 = vunpack.c.l.b16 %v1796
        %v3524 = vunpack.c.h.b16 %v1796
        %v3525 = vunpack.c.l.b16 %v1797
        %v3526 = vunpack.c.h.b16 %v1797
        %v3527 = vunpack.c.l.b16 %v1798
        %v3528 = vunpack.c.h.b16 %v1798
        %v3529 = vunpack.c.l.b16 %v1799
        %v3530 = vunpack.c.h.b16 %v1799
        %v3531 = vunpack.c.l.b16 %v1800
        %v3532 = vunpack.c.h.b16 %v1800
        %v3533 = vunpack.c.l.b16 %v1801
        %v3534 = vunpack.c.h.b16 %v1801
        %v3535 = vunpack.c.l.b16 %v1802
        %v3536 = vunpack.c.h.b16 %v1802
        %v3537 = vunpack.c.l.b16 %v1803
        %v3538 = vunpack.c.h.b16 %v1803
        %v3539 = vunpack.c.l.b16 %v1804
        %v3540 = vunpack.c.h.b16 %v1804
        %v3541 = vunpack.c.l.b16 %v1805
        %v3542 = vunpack.c.h.b16 %v1805
        %v3543 = vunpack.c.l.b16 %v1806
        %v3544 = vunpack.c.h.b16 %v1806
        %v3545 = vunpack.c.l.b16 %v1807
        %v3546 = vunpack.c.h.b16 %v1807
        %v3547 = vunpack.c.l.b16 %v1808
        %v3548 = vunpack.c.h.b16 %v1808
        %v3549 = vunpack.c.l.b16 %v1809
        %v3550 = vunpack.c.h.b16 %v1809
        %v3551 = vunpack.c.l.b16 %v1810
        %v3552 = vunpack.c.h.b16 %v1810
        %v3553 = vunpack.c.l.b16 %v1811
        %v3554 = vunpack.c.h.b16 %v1811
        %v3555 = vunpack.c.l.b16 %v1812
        %v3556 = vunpack.c.h.b16 %v1812
        %v3557 = vunpack.c.l.b16 %v1813
        %v3558 = vunpack.c.h.b16 %v1813
        %v3559 = vunpack.c.l.b16 %v1814
        %v3560 = vunpack.c.h.b16 %v1814
        %v3561 = vunpack.c.l.b16 %v1815
        %v3562 = vunpack.c.h.b16 %v1815
        %v3563 = vunpack.c.l.b16 %v1816
        %v3564 = vunpack.c.h.b16 %v1816
        %v3565 = vunpack.c.l.b16 %v1817
        %v3566 = vunpack.c.h.b16 %v1817
        %v3567 = vunpack.c.l.b16 %v1818
        %v3568 = vunpack.c.h.b16 %v1818
        %v3569 = vunpack.c.l.b16 %v1819
        %v3570 = vunpack.c.h.b16 %v1819
        %v3571 = vunpack.c.l.b16 %v1820
        %v3572 = vunpack.c.h.b16 %v1820
        %v3573 = vunpack.c.l.b16 %v1821
        %v3574 = vunpack.c.h.b16 %v1821
        %v3575 = vunpack.c.l.b16 %v1822
        %v3576 = vunpack.c.h.b16 %v1822
        %v3577 = vunpack.c.l.b16 %v1823
        %v3578 = vunpack.c.h.b16 %v1823
        %v3579 = vunpack.c.l.b16 %v1824
        %v3580 = vunpack.c.h.b16 %v1824
        %v3581 = vunpack.c.l.b16 %v1825
        %v3582 = vunpack.c.h.b16 %v1825
        %v3583 = vunpack.c.l.b16 %v1826
        %v3584 = vunpack.c.h.b16 %v1826
        %v3585 = vunpack.c.l.b16 %v1827
        %v3586 = vunpack.c.h.b16 %v1827
        %v3587 = vunpack.c.l.b16 %v1828
        %v3588 = vunpack.c.h.b16 %v1828
        %v3589 = vunpack.c.l.b16 %v1829
        %v3590 = vunpack.c.h.b16 %v1829
        %v3591 = vunpack.c.l.b16 %v1830
        %v3592 = vunpack.c.h.b16 %v1830
        %v3593 = vunpack.c.l.b16 %v1831
        %v3594 = vunpack.c.h.b16 %v1831
        %v3595 = vunpack.c.l.b16 %v1832
        %v3596 = vunpack.c.h.b16 %v1832
        %v3597 = vunpack.c.l.b16 %v1833
        %v3598 = vunpack.c.h.b16 %v1833
        %v3599 = vunpack.c.l.b16 %v1834
        %v3600 = vunpack.c.h.b16 %v1834
        %v3601 = vunpack.c.l.b16 %v1835
        %v3602 = vunpack.c.h.b16 %v1835
        %v3603 = vunpack.c.l.b16 %v1836
        %v3604 = vunpack.c.h.b16 %v1836
        %v3605 = vunpack.c.l.b16 %v1837
        %v3606 = vunpack.c.h.b16 %v1837
        %v3607 = vunpack.c.l.b16 %v1838
        %v3608 = vunpack.c.h.b16 %v1838
        %v3609 = vunpack.c.l.b16 %v1839
        %v3610 = vunpack.c.h.b16 %v1839
        %v3611 = vunpack.c.l.b16 %v1840
        %v3612 = vunpack.c.h.b16 %v1840
        %v3613 = vunpack.c.l.b16 %v1841
        %v3614 = vunpack.c.h.b16 %v1841
        %v3615 = vunpack.c.l.b16 %v1842
        %v3616 = vunpack.c.h.b16 %v1842
        %v3617 = vunpack.c.l.b16 %v1843
        %v3618 = vunpack.c.h.b16 %v1843
        %v3619 = vunpack.c.l.b16 %v1844
        %v3620 = vunpack.c.h.b16 %v1844
        %v3621 = vunpack.c.l.b16 %v1845
        %v3622 = vunpack.c.h.b16 %v1845
        %v3623 = vunpack.c.l.b16 %v1846
        %v3624 = vunpack.c.h.b16 %v1846
        %v3625 = vunpack.c.l.b16 %v1847
        %v3626 = vunpack.c.h.b16 %v1847
        %v3627 = vunpack.c.l.b16 %v1848
        %v3628 = vunpack.c.h.b16 %v1848
        %v3629 = vunpack.c.l.b16 %v1849
        %v3630 = vunpack.c.h.b16 %v1849
        %v3631 = vunpack.c.l.b16 %v1850
        %v3632 = vunpack.c.h.b16 %v1850
        %v3633 = vunpack.c.l.b16 %v1851
        %v3634 = vunpack.c.h.b16 %v1851
        %v3635 = vunpack.c.l.b16 %v1852
        %v3636 = vunpack.c.h.b16 %v1852
        %v3637 = vunpack.c.l.b16 %v1853
        %v3638 = vunpack.c.h.b16 %v1853
        %v3639 = vunpack.c.l.b16 %v1854
        %v3640 = vunpack.c.h.b16 %v1854
        %v3641 = vunpack.c.l.b16 %v1855
        %v3642 = vunpack.c.h.b16 %v1855
        %v3643 = vunpack.c.l.b16 %v1856
        %v3644 = vunpack.c.h.b16 %v1856
        %v3645 = vunpack.c.l.b16 %v1857
        %v3646 = vunpack.c.h.b16 %v1857
        %v3647 = vunpack.c.l.b16 %v1858
        %v3648 = vunpack.c.h.b16 %v1858
        %v3649 = vunpack.c.l.b16 %v1859
        %v3650 = vunpack.c.h.b16 %v1859
        %v3651 = vunpack.c.l.b16 %v1860
        %v3652 = vunpack.c.h.b16 %v1860
        %v3653 = vunpack.c.l.b16 %v1861
        %v3654 = vunpack.c.h.b16 %v1861
        %v3655 = vunpack.c.l.b16 %v1862
        %v3656 = vunpack.c.h.b16 %v1862
        %v3657 = vunpack.c.l.b16 %v1863
        %v3658 = vunpack.c.h.b16 %v1863
        %v3659 = vunpack.c.l.b16 %v1864
        %v3660 = vunpack.c.h.b16 %v1864
        %v3661 = vunpack.c.l.b16 %v1865
        %v3662 = vunpack.c.h.b16 %v1865
        %v3663 = vunpack.c.l.b16 %v1866
        %v3664 = vunpack.c.h.b16 %v1866
        %v3665 = vunpack.c.l.b16 %v1867
        %v3666 = vunpack.c.h.b16 %v1867
        %v3667 = vunpack.c.l.b16 %v1868
        %v3668 = vunpack.c.h.b16 %v1868
        %v3669 = vunpack.c.l.b16 %v1869
        %v3670 = vunpack.c.h.b16 %v1869
        %v3671 = vunpack.c.l.b16 %v1870
        %v3672 = vunpack.c.h.b16 %v1870
        %v3673 = vunpack.c.l.b16 %v1871
        %v3674 = vunpack.c.h.b16 %v1871
        %v3675 = vunpack.c.l.b16 %v1872
        %v3676 = vunpack.c.h.b16 %v1872
        %v3677 = vunpack.c.l.b16 %v1873
        %v3678 = vunpack.c.h.b16 %v1873
        %v3679 = vunpack.c.l.b16 %v1874
        %v3680 = vunpack.c.h.b16 %v1874
        %v3681 = vunpack.c.l.b16 %v1875
        %v3682 = vunpack.c.h.b16 %v1875
        %v3683 = vunpack.c.l.b16 %v1876
        %v3684 = vunpack.c.h.b16 %v1876
        %v3685 = vunpack.c.l.b16 %v1877
        %v3686 = vunpack.c.h.b16 %v1877
        %v3687 = vunpack.c.l.b16 %v1878
        %v3688 = vunpack.c.h.b16 %v1878
        %v3689 = vunpack.c.l.b16 %v1879
        %v3690 = vunpack.c.h.b16 %v1879
        %v3691 = vunpack.c.l.b16 %v1880
        %v3692 = vunpack.c.h.b16 %v1880
        %v3693 = vunpack.c.l.b16 %v1881
        %v3694 = vunpack.c.h.b16 %v1881
        %v3695 = vunpack.c.l.b16 %v1882
        %v3696 = vunpack.c.h.b16 %v1882
        %v3697 = vunpack.c.l.b16 %v1883
        %v3698 = vunpack.c.h.b16 %v1883
        %v3699 = vunpack.c.l.b16 %v1884
        %v3700 = vunpack.c.h.b16 %v1884
        %v3701 = vunpack.c.l.b16 %v1885
        %v3702 = vunpack.c.h.b16 %v1885
        %v3703 = vunpack.c.l.b16 %v1886
        %v3704 = vunpack.c.h.b16 %v1886
        %v3705 = vunpack.c.l.b16 %v1887
        %v3706 = vunpack.c.h.b16 %v1887
        %v3707 = vunpack.c.l.b16 %v1888
        %v3708 = vunpack.c.h.b16 %v1888
        %v3709 = vunpack.c.l.b16 %v1889
        %v3710 = vunpack.c.h.b16 %v1889
        %v3711 = vunpack.c.l.b16 %v1890
        %v3712 = vunpack.c.h.b16 %v1890
        %v3713 = vunpack.c.l.b16 %v1891
        %v3714 = vunpack.c.h.b16 %v1891
        %v3715 = vunpack.c.l.b16 %v1892
        %v3716 = vunpack.c.h.b16 %v1892
        %v3717 = vunpack.c.l.b16 %v1893
        %v3718 = vunpack.c.h.b16 %v1893
        %v3719 = vunpack.c.l.b16 %v1894
        %v3720 = vunpack.c.h.b16 %v1894
        %v3721 = vunpack.c.l.b16 %v1895
        %v3722 = vunpack.c.h.b16 %v1895
        %v3723 = vunpack.c.l.b16 %v1896
        %v3724 = vunpack.c.h.b16 %v1896
        %v3725 = vunpack.c.l.b16 %v1897
        %v3726 = vunpack.c.h.b16 %v1897
        %v3727 = vunpack.c.l.b16 %v1898
        %v3728 = vunpack.c.h.b16 %v1898
        %v3729 = vunpack.c.l.b16 %v1899
        %v3730 = vunpack.c.h.b16 %v1899
        %v3731 = vunpack.c.l.b16 %v1900
        %v3732 = vunpack.c.h.b16 %v1900
        %v3733 = vunpack.c.l.b16 %v1901
        %v3734 = vunpack.c.h.b16 %v1901
        %v3735 = vunpack.c.l.b16 %v1902
        %v3736 = vunpack.c.h.b16 %v1902
        %v3737 = vunpack.c.l.b16 %v1903
        %v3738 = vunpack.c.h.b16 %v1903
        %v3739 = vunpack.c.l.b16 %v1904
        %v3740 = vunpack.c.h.b16 %v1904
        %v3741 = vunpack.c.l.b16 %v1905
        %v3742 = vunpack.c.h.b16 %v1905
        %v3743 = vunpack.c.l.b16 %v1906
        %v3744 = vunpack.c.h.b16 %v1906
        %v3745 = vunpack.c.l.b16 %v1907
        %v3746 = vunpack.c.h.b16 %v1907
        %v3747 = vunpack.c.l.b16 %v1908
        %v3748 = vunpack.c.h.b16 %v1908
        %v3749 = vunpack.c.l.b16 %v1909
        %v3750 = vunpack.c.h.b16 %v1909
        %v3751 = vunpack.c.l.b16 %v1910
        %v3752 = vunpack.c.h.b16 %v1910
        %v3753 = vunpack.c.l.b16 %v1911
        %v3754 = vunpack.c.h.b16 %v1911
        %v3755 = vunpack.c.l.b16 %v1912
        %v3756 = vunpack.c.h.b16 %v1912
        %v3757 = vunpack.c.l.b16 %v1913
        %v3758 = vunpack.c.h.b16 %v1913
        %v3759 = vunpack.c.l.b16 %v1914
        %v3760 = vunpack.c.h.b16 %v1914
        %v3761 = vunpack.c.l.b16 %v1915
        %v3762 = vunpack.c.h.b16 %v1915
        %v3763 = vunpack.c.l.b16 %v1916
        %v3764 = vunpack.c.h.b16 %v1916
        %v3765 = vunpack.c.l.b16 %v1917
        %v3766 = vunpack.c.h.b16 %v1917
        %v3767 = vunpack.c.l.b16 %v1918
        %v3768 = vunpack.c.h.b16 %v1918
        %v3769 = vunpack.c.l.b16 %v1919
        %v3770 = vunpack.c.h.b16 %v1919
        %v3771 = vunpack.c.l.b16 %v1920
        %v3772 = vunpack.c.h.b16 %v1920
        %v3773 = vunpack.c.l.b16 %v1921
        %v3774 = vunpack.c.h.b16 %v1921
        %v3775 = vunpack.c.l.b16 %v1922
        %v3776 = vunpack.c.h.b16 %v1922
        %v3777 = vunpack.c.l.b16 %v1923
        %v3778 = vunpack.c.h.b16 %v1923
        %v3779 = vunpack.c.l.b16 %v1924
        %v3780 = vunpack.c.h.b16 %v1924
        %v3781 = vunpack.c.l.b16 %v1925
        %v3782 = vunpack.c.h.b16 %v1925
        %v3783 = vunpack.c.l.b16 %v1926
        %v3784 = vunpack.c.h.b16 %v1926
        %v3785 = vunpack.c.l.b16 %v1927
        %v3786 = vunpack.c.h.b16 %v1927
        %v3787 = vunpack.c.l.b16 %v1928
        %v3788 = vunpack.c.h.b16 %v1928
        %v3789 = vunpack.c.l.b16 %v1929
        %v3790 = vunpack.c.h.b16 %v1929
        %v3791 = vunpack.c.l.b16 %v1930
        %v3792 = vunpack.c.h.b16 %v1930
        %v3793 = vunpack.c.l.b16 %v1931
        %v3794 = vunpack.c.h.b16 %v1931
        %v3795 = vunpack.c.l.b16 %v1932
        %v3796 = vunpack.c.h.b16 %v1932
        %v3797 = vunpack.c.l.b16 %v1933
        %v3798 = vunpack.c.h.b16 %v1933
        %v3799 = vunpack.c.l.b16 %v1934
        %v3800 = vunpack.c.h.b16 %v1934
        %v3801 = vunpack.c.l.b16 %v1935
        %v3802 = vunpack.c.h.b16 %v1935
        %v3803 = vunpack.c.l.b16 %v1936
        %v3804 = vunpack.c.h.b16 %v1936
        %v3805 = vunpack.c.l.b16 %v1937
        %v3806 = vunpack.c.h.b16 %v1937
        %v3807 = vunpack.c.l.b16 %v1938
        %v3808 = vunpack.c.h.b16 %v1938
        %v3809 = vunpack.c.l.b16 %v1939
        %v3810 = vunpack.c.h.b16 %v1939
        %v3811 = vunpack.c.l.b16 %v1940
        %v3812 = vunpack.c.h.b16 %v1940
        %v3813 = vunpack.c.l.b16 %v1941
        %v3814 = vunpack.c.h.b16 %v1941
        %v3815 = vunpack.c.l.b16 %v1942
        %v3816 = vunpack.c.h.b16 %v1942
        %v3817 = vunpack.c.l.b16 %v1943
        %v3818 = vunpack.c.h.b16 %v1943
        %v3819 = vunpack.c.l.b16 %v1944
        %v3820 = vunpack.c.h.b16 %v1944
        %v3821 = vunpack.c.l.b16 %v1945
        %v3822 = vunpack.c.h.b16 %v1945
        %v3823 = vunpack.c.l.b16 %v1946
        %v3824 = vunpack.c.h.b16 %v1946
        %v3825 = vunpack.c.l.b16 %v1947
        %v3826 = vunpack.c.h.b16 %v1947
        %v3827 = vunpack.c.l.b16 %v1948
        %v3828 = vunpack.c.h.b16 %v1948
        %v3829 = vunpack.c.l.b16 %v1949
        %v3830 = vunpack.c.h.b16 %v1949
        %v3831 = vunpack.c.l.b16 %v1950
        %v3832 = vunpack.c.h.b16 %v1950
        %v3833 = vunpack.c.l.b16 %v1951
        %v3834 = vunpack.c.h.b16 %v1951
        %v3835 = vunpack.c.l.b16 %v1952
        %v3836 = vunpack.c.h.b16 %v1952
        %v3837 = vunpack.c.l.b16 %v1953
        %v3838 = vunpack.c.h.b16 %v1953
        %v3839 = vunpack.c.l.b16 %v1954
        %v3840 = vunpack.c.h.b16 %v1954
        %v3841 = vunpack.c.l.b16 %v1955
        %v3842 = vunpack.c.h.b16 %v1955
        %v3843 = vunpack.c.l.b16 %v1956
        %v3844 = vunpack.c.h.b16 %v1956
        %v3845 = vunpack.c.l.b16 %v1957
        %v3846 = vunpack.c.h.b16 %v1957
        %v3847 = vunpack.c.l.b16 %v1958
        %v3848 = vunpack.c.h.b16 %v1958
        %v3849 = vunpack.c.l.b16 %v1959
        %v3850 = vunpack.c.h.b16 %v1959
        %v3851 = vunpack.c.l.b16 %v1960
        %v3852 = vunpack.c.h.b16 %v1960
        %v3853 = vunpack.c.l.b16 %v1961
        %v3854 = vunpack.c.h.b16 %v1961
        %v3855 = vunpack.c.l.b16 %v1962
        %v3856 = vunpack.c.h.b16 %v1962
        %v3857 = vunpack.c.l.b16 %v1963
        %v3858 = vunpack.c.h.b16 %v1963
        %v3859 = vunpack.c.l.b16 %v1964
        %v3860 = vunpack.c.h.b16 %v1964
        %v3861 = vunpack.c.l.b16 %v1965
        %v3862 = vunpack.c.h.b16 %v1965
        %v3863 = vunpack.c.l.b16 %v1966
        %v3864 = vunpack.c.h.b16 %v1966
        %v3865 = vunpack.c.l.b16 %v1967
        %v3866 = vunpack.c.h.b16 %v1967
        %v3867 = vunpack.c.l.b16 %v1968
        %v3868 = vunpack.c.h.b16 %v1968
        %v3869 = vunpack.c.l.b16 %v1969
        %v3870 = vunpack.c.h.b16 %v1969
        %v3871 = vunpack.c.l.b16 %v1970
        %v3872 = vunpack.c.h.b16 %v1970
        %v3873 = vunpack.c.l.b16 %v1971
        %v3874 = vunpack.c.h.b16 %v1971
        %v3875 = vunpack.c.l.b16 %v1972
        %v3876 = vunpack.c.h.b16 %v1972
        %v3877 = vunpack.c.l.b16 %v1973
        %v3878 = vunpack.c.h.b16 %v1973
        %v3879 = vunpack.c.l.b16 %v1974
        %v3880 = vunpack.c.h.b16 %v1974
        %v3881 = vunpack.c.l.b16 %v1975
        %v3882 = vunpack.c.h.b16 %v1975
        %v3883 = vunpack.c.l.b16 %v1976
        %v3884 = vunpack.c.h.b16 %v1976
        %v3885 = vunpack.c.l.b16 %v1977
        %v3886 = vunpack.c.h.b16 %v1977
        %v3887 = vunpack.c.l.b16 %v1978
        %v3888 = vunpack.c.h.b16 %v1978
        %v3889 = vunpack.c.l.b16 %v1979
        %v3890 = vunpack.c.h.b16 %v1979
        %v3891 = vunpack.c.l.b16 %v1980
        %v3892 = vunpack.c.h.b16 %v1980
        %v3893 = vunpack.c.l.b16 %v1981
        %v3894 = vunpack.c.h.b16 %v1981
        %v3895 = vunpack.c.l.b16 %v1982
        %v3896 = vunpack.c.h.b16 %v1982
        %v3897 = vunpack.c.l.b16 %v1983
        %v3898 = vunpack.c.h.b16 %v1983
        %v3899 = vunpack.c.l.b16 %v1984
        %v3900 = vunpack.c.h.b16 %v1984
        %v3901 = vunpack.c.l.b16 %v1985
        %v3902 = vunpack.c.h.b16 %v1985
        %v3903 = vunpack.c.l.b16 %v1986
        %v3904 = vunpack.c.h.b16 %v1986
        %v3905 = vunpack.c.l.b16 %v1987
        %v3906 = vunpack.c.h.b16 %v1987
        %v3907 = vunpack.c.l.b16 %v1988
        %v3908 = vunpack.c.h.b16 %v1988
        %v3909 = vunpack.c.l.b16 %v1989
        %v3910 = vunpack.c.h.b16 %v1989
        %v3911 = vunpack.c.l.b16 %v1990
        %v3912 = vunpack.c.h.b16 %v1990
        %v3913 = vunpack.c.l.b16 %v1991
        %v3914 = vunpack.c.h.b16 %v1991
        %v3915 = vunpack.c.l.b16 %v1992
        %v3916 = vunpack.c.h.b16 %v1992
        %v3917 = vunpack.c.l.b16 %v1993
        %v3918 = vunpack.c.h.b16 %v1993
        %v3919 = vunpack.c.l.b16 %v1994
        %v3920 = vunpack.c.h.b16 %v1994
        %v3921 = vunpack.c.l.b16 %v1995
        %v3922 = vunpack.c.h.b16 %v1995
        %v3923 = vunpack.c.l.b16 %v1996
        %v3924 = vunpack.c.h.b16 %v1996
        %v3925 = vunpack.c.l.b16 %v1997
        %v3926 = vunpack.c.h.b16 %v1997
        %v3927 = vunpack.c.l.b16 %v1998
        %v3928 = vunpack.c.h.b16 %v1998
        %v3929 = vunpack.c.l.b16 %v1999
        %v3930 = vunpack.c.h.b16 %v1999
        %v3931 = vunpack.c.l.b16 %v2000
        %v3932 = vunpack.c.h.b16 %v2000
        %v3933 = vunpack.c.l.b16 %v2001
        %v3934 = vunpack.c.h.b16 %v2001
        %v3935 = vunpack.c.l.b16 %v2002
        %v3936 = vunpack.c.h.b16 %v2002
        %v3937 = vunpack.c.l.b16 %v2003
        %v3938 = vunpack.c.h.b16 %v2003
        %v3939 = vunpack.c.l.b16 %v2004
        %v3940 = vunpack.c.h.b16 %v2004
        %v3941 = vunpack.c.l.b16 %v2005
        %v3942 = vunpack.c.h.b16 %v2005
        %v3943 = vunpack.c.l.b16 %v2006
        %v3944 = vunpack.c.h.b16 %v2006
        %v3945 = vunpack.c.l.b16 %v2007
        %v3946 = vunpack.c.h.b16 %v2007
        %v3947 = vunpack.c.l.b16 %v2008
        %v3948 = vunpack.c.h.b16 %v2008
        %v3949 = vunpack.c.l.b16 %v2009
        %v3950 = vunpack.c.h.b16 %v2009
        %v3951 = vunpack.c.l.b16 %v2010
        %v3952 = vunpack.c.h.b16 %v2010
        %v3953 = vunpack.c.l.b16 %v2011
        %v3954 = vunpack.c.h.b16 %v2011
        %v3955 = vunpack.c.l.b16 %v2012
        %v3956 = vunpack.c.h.b16 %v2012
        %v3957 = vunpack.c.l.b16 %v2013
        %v3958 = vunpack.c.h.b16 %v2013
        %v3959 = vunpack.c.l.b16 %v2014
        %v3960 = vunpack.c.h.b16 %v2014
        %v3961 = vunpack.c.l.b16 %v2015
        %v3962 = vunpack.c.h.b16 %v2015
        %v3963 = vunpack.c.l.b16 %v2016
        %v3964 = vunpack.c.h.b16 %v2016
        %v3965 = vunpack.c.l.b16 %v2017
        %v3966 = vunpack.c.h.b16 %v2017
        %v3967 = vunpack.c.l.b16 %v2018
        %v3968 = vunpack.c.h.b16 %v2018
        %v3969 = vunpack.c.l.b16 %v2019
        %v3970 = vunpack.c.h.b16 %v2019
        %v3971 = vunpack.c.l.b16 %v2020
        %v3972 = vunpack.c.h.b16 %v2020
        %v3973 = vunpack.c.l.b16 %v2021
        %v3974 = vunpack.c.h.b16 %v2021
        %v3975 = vunpack.c.l.b16 %v2022
        %v3976 = vunpack.c.h.b16 %v2022
        %v3977 = vunpack.c.l.b16 %v2023
        %v3978 = vunpack.c.h.b16 %v2023
        %v3979 = vunpack.c.l.b16 %v2024
        %v3980 = vunpack.c.h.b16 %v2024
        %v3981 = vunpack.c.l.b16 %v2025
        %v3982 = vunpack.c.h.b16 %v2025
        %v3983 = vunpack.c.l.b16 %v2026
        %v3984 = vunpack.c.h.b16 %v2026
        %v3985 = vunpack.c.l.b16 %v2027
        %v3986 = vunpack.c.h.b16 %v2027
        %v3987 = vunpack.c.l.b16 %v2028
        %v3988 = vunpack.c.h.b16 %v2028
        %v3989 = vunpack.c.l.b16 %v2029
        %v3990 = vunpack.c.h.b16 %v2029
        %v3991 = vunpack.c.l.b16 %v2030
        %v3992 = vunpack.c.h.b16 %v2030
        %v3993 = vunpack.c.l.b16 %v2031
        %v3994 = vunpack.c.h.b16 %v2031
        %v3995 = vunpack.c.l.b16 %v2032
        %v3996 = vunpack.c.h.b16 %v2032
        %v3997 = vunpack.c.l.b16 %v2033
        %v3998 = vunpack.c.h.b16 %v2033
        %v3999 = vunpack.c.l.b16 %v2034
        %v4000 = vunpack.c.h.b16 %v2034
        %v4001 = vunpack.c.l.b16 %v2035
        %v4002 = vunpack.c.h.b16 %v2035
        %v4003 = vunpack.c.l.b16 %v2036
        %v4004 = vunpack.c.h.b16 %v2036
        %v4005 = vunpack.c.l.b16 %v2037
        %v4006 = vunpack.c.h.b16 %v2037
        %v4007 = vunpack.c.l.b16 %v2038
        %v4008 = vunpack.c.h.b16 %v2038
        %v4009 = vunpack.c.l.b16 %v2039
        %v4010 = vunpack.c.h.b16 %v2039
        %v4011 = vunpack.c.l.b16 %v2040
        %v4012 = vunpack.c.h.b16 %v2040
        %v4013 = vunpack.c.l.b16 %v2041
        %v4014 = vunpack.c.h.b16 %v2041
        %v4015 = vunpack.c.l.b16 %v2042
        %v4016 = vunpack.c.h.b16 %v2042
        %v4017 = vunpack.c.l.b16 %v2043
        %v4018 = vunpack.c.h.b16 %v2043
        %v4019 = vunpack.c.l.b16 %v2044
        %v4020 = vunpack.c.h.b16 %v2044
        %v4021 = vunpack.c.l.b16 %v2045
        %v4022 = vunpack.c.h.b16 %v2045
        %v4023 = vunpack.c.l.b16 %v2046
        %v4024 = vunpack.c.h.b16 %v2046
        %v4025 = vunpack.c.l.b16 %v2047
        %v4026 = vunpack.c.h.b16 %v2047
        %v4027 = vunpack.c.l.b16 %v2048
        %v4028 = vunpack.c.h.b16 %v2048
        %v4029 = vunpack.c.l.b16 %v2049
        %v4030 = vunpack.c.h.b16 %v2049
        %v4031 = vunpack.c.l.b16 %v2050
        %v4032 = vunpack.c.h.b16 %v2050
        %v4033 = vunpack.c.l.b16 %v2051
        %v4034 = vunpack.c.h.b16 %v2051
        %v4035 = vunpack.c.l.b16 %v2052
        %v4036 = vunpack.c.h.b16 %v2052
        %v4037 = vunpack.c.l.b16 %v2053
        %v4038 = vunpack.c.h.b16 %v2053
        %v4039 = vunpack.c.l.b16 %v2054
        %v4040 = vunpack.c.h.b16 %v2054
        %v4041 = vunpack.c.l.b16 %v2055
        %v4042 = vunpack.c.h.b16 %v2055
        %v4043 = vunpack.c.l.b16 %v2056
        %v4044 = vunpack.c.h.b16 %v2056
        %v4045 = vunpack.c.l.b16 %v2057
        %v4046 = vunpack.c.h.b16 %v2057
        %v4047 = vunpack.c.l.b16 %v2058
        %v4048 = vunpack.c.h.b16 %v2058
        %v4049 = vunpack.c.l.b16 %v2059
        %v4050 = vunpack.c.h.b16 %v2059
        %v4051 = vunpack.c.l.b16 %v2060
        %v4052 = vunpack.c.h.b16 %v2060
        %v4053 = vunpack.c.l.b16 %v2061
        %v4054 = vunpack.c.h.b16 %v2061
        %v4055 = vunpack.c.l.b16 %v2062
        %v4056 = vunpack.c.h.b16 %v2062
        %v4057 = vunpack.c.l.b16 %v2063
        %v4058 = vunpack.c.h.b16 %v2063
        %v4059 = vunpack.c.l.b16 %v2064
        %v4060 = vunpack.c.h.b16 %v2064
        %v4061 = vunpack.c.l.b16 %v2065
        %v4062 = vunpack.c.h.b16 %v2065
        %v4063 = vunpack.c.l.b16 %v2066
        %v4064 = vunpack.c.h.b16 %v2066
        %v4065 = vunpack.c.l.b16 %v2067
        %v4066 = vunpack.c.h.b16 %v2067
        %v4067 = vunpack.c.l.b16 %v2068
        %v4068 = vunpack.c.h.b16 %v2068
        %v4069 = vunpack.c.l.b16 %v2069
        %v4070 = vunpack.c.h.b16 %v2069
        %v4071 = vunpack.c.l.b16 %v2070
        %v4072 = vunpack.c.h.b16 %v2070
        %v4073 = vunpack.c.l.b16 %v2071
        %v4074 = vunpack.c.h.b16 %v2071
        %v4075 = vunpack.c.l.b16 %v2072
        %v4076 = vunpack.c.h.b16 %v2072
        %v4077 = vunpack.c.l.b16 %v2073
        %v4078 = vunpack.c.h.b16 %v2073
        %v4079 = vunpack.c.l.b16 %v2074
        %v4080 = vunpack.c.h.b16 %v2074
        %v4081 = vunpack.c.l.b16 %v2075
        %v4082 = vunpack.c.h.b16 %v2075
        %v4083 = vunpack.c.l.b16 %v2076
        %v4084 = vunpack.c.h.b16 %v2076
        %v4085 = vunpack.c.l.b16 %v2077
        %v4086 = vunpack.c.h.b16 %v2077
        %v4087 = vunpack.c.l.b16 %v2078
        %v4088 = vunpack.c.h.b16 %v2078
        %v4089 = vunpack.c.l.b16 %v2079
        %v4090 = vunpack.c.h.b16 %v2079
        %v4091 = vunpack.c.l.b16 %v2080
        %v4092 = vunpack.c.h.b16 %v2080
        %v4093 = vunpack.c.l.b16 %v2081
        %v4094 = vunpack.c.h.b16 %v2081
        %v4095 = vunpack.c.l.b16 %v2082
        %v4096 = vunpack.c.h.b16 %v2082
        %v4097 = vunpack.c.l.b16 %v2083
        %v4098 = vunpack.c.h.b16 %v2083
        %v4099 = vunpack.c.l.b16 %v2084
        %v4100 = vunpack.c.h.b16 %v2084
        %v4101 = vunpack.c.l.b16 %v2085
        %v4102 = vunpack.c.h.b16 %v2085
        %v4103 = vunpack.c.l.b16 %v2086
        %v4104 = vunpack.c.h.b16 %v2086
        %v4105 = vunpack.c.l.b16 %v2087
        %v4106 = vunpack.c.h.b16 %v2087
        %v4107 = vunpack.c.l.b16 %v2088
        %v4108 = vunpack.c.h.b16 %v2088
        %v4109 = vunpack.c.l.b16 %v2089
        %v4110 = vunpack.c.h.b16 %v2089
        %v4111 = vunpack.c.l.b16 %v2090
        %v4112 = vunpack.c.h.b16 %v2090
        %v4113 = vunpack.c.l.b16 %v2091
        %v4114 = vunpack.c.h.b16 %v2091
        %v4115 = vunpack.c.l.b16 %v2092
        %v4116 = vunpack.c.h.b16 %v2092
        %v4117 = vunpack.c.l.b16 %v2093
        %v4118 = vunpack.c.h.b16 %v2093
        %v4119 = vunpack.c.l.b16 %v2094
        %v4120 = vunpack.c.h.b16 %v2094
        %v4121 = vunpack.c.l.b16 %v2095
        %v4122 = vunpack.c.h.b16 %v2095
        %v4123 = vunpack.c.l.b16 %v2096
        %v4124 = vunpack.c.h.b16 %v2096
        %v4125 = vunpack.c.l.b16 %v2097
        %v4126 = vunpack.c.h.b16 %v2097
        %v4127 = vunpack.c.l.b16 %v2098
        %v4128 = vunpack.c.h.b16 %v2098
        %v4129 = vunpack.c.l.b16 %v2099
        %v4130 = vunpack.c.h.b16 %v2099
        %v4131 = vunpack.c.l.b16 %v2100
        %v4132 = vunpack.c.h.b16 %v2100
        %v4133 = vunpack.c.l.b16 %v2101
        %v4134 = vunpack.c.h.b16 %v2101
        %v4135 = vunpack.c.l.b16 %v2102
        %v4136 = vunpack.c.h.b16 %v2102
        %v4137 = vunpack.c.l.b16 %v2103
        %v4138 = vunpack.c.h.b16 %v2103
        %v4139 = vunpack.c.l.b16 %v2104
        %v4140 = vunpack.c.h.b16 %v2104
        %v4141 = vunpack.c.l.b16 %v2105
        %v4142 = vunpack.c.h.b16 %v2105
        %v4143 = vunpack.c.l.b16 %v2106
        %v4144 = vunpack.c.h.b16 %v2106
        %v4145 = vunpack.c.l.b16 %v2107
        %v4146 = vunpack.c.h.b16 %v2107
        %v4147 = vunpack.c.l.b16 %v2108
        %v4148 = vunpack.c.h.b16 %v2108
        %v4149 = vunpack.c.l.b16 %v2109
        %v4150 = vunpack.c.h.b16 %v2109
        %v4151 = vunpack.c.l.b16 %v2110
        %v4152 = vunpack.c.h.b16 %v2110
        %v4153 = vunpack.c.l.b16 %v2111
        %v4154 = vunpack.c.h.b16 %v2111
        %v4155 = vunpack.c.l.b16 %v2112
        %v4156 = vunpack.c.h.b16 %v2112
        %v4157 = vunpack.c.l.b16 %v2113
        %v4158 = vunpack.c.h.b16 %v2113
        %v4159 = vunpack.c.l.b16 %v2114
        %v4160 = vunpack.c.h.b16 %v2114
        %v4161 = vunpack.c.l.b16 %v2115
        %v4162 = vunpack.c.h.b16 %v2115
        %v4163 = vunpack.c.l.b16 %v2116
        %v4164 = vunpack.c.h.b16 %v2116
        %v4165 = vunpack.c.l.b16 %v2117
        %v4166 = vunpack.c.h.b16 %v2117
        %v4167 = vunpack.c.l.b16 %v2118
        %v4168 = vunpack.c.h.b16 %v2118
        %v4169 = vunpack.c.l.b16 %v2119
        %v4170 = vunpack.c.h.b16 %v2119
        %v4171 = vunpack.c.l.b16 %v2120
        %v4172 = vunpack.c.h.b16 %v2120
        %v4173 = vunpack.c.l.b16 %v2121
        %v4174 = vunpack.c.h.b16 %v2121
        %v4175 = vunpack.c.l.b16 %v2122
        %v4176 = vunpack.c.h.b16 %v2122
        %v4177 = vunpack.c.l.b16 %v2123
        %v4178 = vunpack.c.h.b16 %v2123
        %v4179 = vunpack.c.l.b16 %v2124
        %v4180 = vunpack.c.h.b16 %v2124
        %v4181 = vunpack.c.l.b16 %v2125
        %v4182 = vunpack.c.h.b16 %v2125
        %v4183 = vunpack.c.l.b16 %v2126
        %v4184 = vunpack.c.h.b16 %v2126
        %v4185 = vunpack.c.l.b16 %v2127
        %v4186 = vunpack.c.h.b16 %v2127
        %v4187 = vunpack.c.l.b16 %v2128
        %v4188 = vunpack.c.h.b16 %v2128
        %v4189 = vunpack.c.l.b16 %v2129
        %v4190 = vunpack.c.h.b16 %v2129
        %v4191 = vunpack.c.l.b16 %v2130
        %v4192 = vunpack.c.h.b16 %v2130
        %v4193 = vunpack.c.l.b16 %v2131
        %v4194 = vunpack.c.h.b16 %v2131
        %v4195 = vunpack.c.l.b16 %v2132
        %v4196 = vunpack.c.h.b16 %v2132
        %v4197 = vunpack.c.l.b16 %v2133
        %v4198 = vunpack.c.h.b16 %v2133
        %v4199 = vunpack.c.l.b16 %v2134
        %v4200 = vunpack.c.h.b16 %v2134
        %v4201 = vunpack.c.l.b16 %v2135
        %v4202 = vunpack.c.h.b16 %v2135
        %v4203 = vunpack.c.l.b16 %v2136
        %v4204 = vunpack.c.h.b16 %v2136
        %v4205 = vunpack.c.l.b16 %v2137
        %v4206 = vunpack.c.h.b16 %v2137
        %v4207 = vunpack.c.l.b16 %v2138
        %v4208 = vunpack.c.h.b16 %v2138
        %v4209 = vunpack.c.l.b16 %v2139
        %v4210 = vunpack.c.h.b16 %v2139
        %v4211 = vunpack.c.l.b16 %v2140
        %v4212 = vunpack.c.h.b16 %v2140
        %v4213 = vunpack.c.l.b16 %v2141
        %v4214 = vunpack.c.h.b16 %v2141
        %v4215 = vunpack.c.l.b16 %v2142
        %v4216 = vunpack.c.h.b16 %v2142
        %v4217 = vunpack.c.l.b16 %v2143
        %v4218 = vunpack.c.h.b16 %v2143
        %v4219 = vunpack.c.l.b16 %v2144
        %v4220 = vunpack.c.h.b16 %v2144
        %v4221 = vunpack.c.l.b16 %v2145
        %v4222 = vunpack.c.h.b16 %v2145
        %v4223 = vunpack.c.l.b16 %v2146
        %v4224 = vunpack.c.h.b16 %v2146
        %v4225 = vunpack.c.l.b16 %v2147
        %v4226 = vunpack.c.h.b16 %v2147
        %v4227 = vunpack.c.l.b16 %v2148
        %v4228 = vunpack.c.h.b16 %v2148
        %v4229 = vunpack.c.l.b16 %v2149
        %v4230 = vunpack.c.h.b16 %v2149
        %v4231 = vunpack.c.l.b16 %v2150
        %v4232 = vunpack.c.h.b16 %v2150
        %v4233 = vunpack.c.l.b16 %v2151
        %v4234 = vunpack.c.h.b16 %v2151
        %v4235 = vunpack.c.l.b16 %v2152
        %v4236 = vunpack.c.h.b16 %v2152
        %v4237 = vunpack.c.l.b16 %v2153
        %v4238 = vunpack.c.h.b16 %v2153
        %v4239 = vunpack.c.l.b16 %v2154
        %v4240 = vunpack.c.h.b16 %v2154
        %v4241 = vunpack.c.l.b16 %v2155
        %v4242 = vunpack.c.h.b16 %v2155
        %v4243 = vunpack.c.l.b16 %v2156
        %v4244 = vunpack.c.h.b16 %v2156
        %v4245 = vunpack.c.l.b16 %v2157
        %v4246 = vunpack.c.h.b16 %v2157
        %v4247 = vunpack.c.l.b16 %v2158
        %v4248 = vunpack.c.h.b16 %v2158
        %v4249 = vunpack.c.l.b16 %v2159
        %v4250 = vunpack.c.h.b16 %v2159
        %v4251 = vunpack.c.l.b16 %v2160
        %v4252 = vunpack.c.h.b16 %v2160
        %v4253 = vunpack.c.l.b16 %v2161
        %v4254 = vunpack.c.h.b16 %v2161
        %v4255 = vunpack.c.l.b16 %v2162
        %v4256 = vunpack.c.h.b16 %v2162
        %v4257 = vunpack.c.l.b16 %v2163
        %v4258 = vunpack.c.h.b16 %v2163
        %v4259 = vunpack.c.l.b16 %v2164
        %v4260 = vunpack.c.h.b16 %v2164
        %v4261 = vunpack.c.l.b16 %v2165
        %v4262 = vunpack.c.h.b16 %v2165
        %v4263 = vunpack.c.l.b16 %v2166
        %v4264 = vunpack.c.h.b16 %v2166
        %v4265 = vunpack.c.l.b16 %v2167
        %v4266 = vunpack.c.h.b16 %v2167
        %v4267 = vunpack.c.l.b16 %v2168
        %v4268 = vunpack.c.h.b16 %v2168
        %v4269 = vunpack.c.l.b16 %v2169
        %v4270 = vunpack.c.h.b16 %v2169
        %v4271 = vunpack.c.l.b16 %v2170
        %v4272 = vunpack.c.h.b16 %v2170
        %v4273 = vunpack.c.l.b16 %v2171
        %v4274 = vunpack.c.h.b16 %v2171
        %v4275 = vunpack.c.l.b16 %v2172
        %v4276 = vunpack.c.h.b16 %v2172
        %v4277 = vunpack.c.l.b16 %v2173
        %v4278 = vunpack.c.h.b16 %v2173
        %v4279 = vunpack.c.l.b16 %v2174
        %v4280 = vunpack.c.h.b16 %v2174
        %v4281 = vunpack.c.l.b16 %v2175
        %v4282 = vunpack.c.h.b16 %v2175
        %v4283 = vunpack.c.l.b16 %v2176
        %v4284 = vunpack.c.h.b16 %v2176
        %v4285 = vunpack.c.l.b16 %v2177
        %v4286 = vunpack.c.h.b16 %v2177
        %v4287 = vunpack.c.l.b16 %v2178
        %v4288 = vunpack.c.h.b16 %v2178
        %v4289 = vunpack.c.l.b16 %v2179
        %v4290 = vunpack.c.h.b16 %v2179
        %v4291 = vunpack.c.l.b16 %v2180
        %v4292 = vunpack.c.h.b16 %v2180
        %v4293 = vpack.c.b16 %v3061, %v2885
        %v4294 = vpack.c.b16 %v3062, %v2886
        %v4295 = vpack.c.b16 %v3063, %v2887
        %v4296 = vpack.c.b16 %v3064, %v2888
        %v4297 = vpack.c.b16 %v3065, %v2889
        %v4298 = vpack.c.b16 %v3066, %v2890
        %v4299 = vpack.c.b16 %v3067, %v2891
        %v4300 = vpack.c.b16 %v3068, %v2892
        %v4301 = vpack.c.b16 %v3069, %v2893
        %v4302 = vpack.c.b16 %v3070, %v2894
        %v4303 = vpack.c.b16 %v3071, %v2895
        %v4304 = vpack.c.b16 %v3072, %v2896
        %v4305 = vpack.c.b16 %v3073, %v2897
        %v4306 = vpack.c.b16 %v3074, %v2898
        %v4307 = vpack.c.b16 %v3075, %v2899
        %v4308 = vpack.c.b16 %v3076, %v2900
        %v4309 = vpack.c.b16 %v3077, %v2901
        %v4310 = vpack.c.b16 %v3078, %v2902
        %v4311 = vpack.c.b16 %v3079, %v2903
        %v4312 = vpack.c.b16 %v3080, %v2904
        %v4313 = vpack.c.b16 %v3081, %v2905
        %v4314 = vpack.c.b16 %v3082, %v2906
        %v4315 = vpack.c.b16 %v3083, %v2907
        %v4316 = vpack.c.b16 %v3084, %v2908
        %v4317 = vpack.c.b16 %v3085, %v2909
        %v4318 = vpack.c.b16 %v3086, %v2910
        %v4319 = vpack.c.b16 %v3087, %v2911
        %v4320 = vpack.c.b16 %v3088, %v2912
        %v4321 = vpack.c.b16 %v3089, %v2913
        %v4322 = vpack.c.b16 %v3090, %v2914
        %v4323 = vpack.c.b16 %v3091, %v2915
        %v4324 = vpack.c.b16 %v3092, %v2916
        %v4325 = vpack.c.b16 %v3093, %v2917
        %v4326 = vpack.c.b16 %v3094, %v2918
        %v4327 = vpack.c.b16 %v3095, %v2919
        %v4328 = vpack.c.b16 %v3096, %v2920
        %v4329 = vpack.c.b16 %v3097, %v2921
        %v4330 = vpack.c.b16 %v3098, %v2922
        %v4331 = vpack.c.b16 %v3099, %v2923
        %v4332 = vpack.c.b16 %v3100, %v2924
        %v4333 = vpack.c.b16 %v3101, %v2925
        %v4334 = vpack.c.b16 %v3102, %v2926
        %v4335 = vpack.c.b16 %v3103, %v2927
        %v4336 = vpack.c.b16 %v3104, %v2928
        %v4337 = vpack.c.b16 %v3105, %v2929
        %v4338 = vpack.c.b16 %v3106, %v2930
        %v4339 = vpack.c.b16 %v3107, %v2931
        %v4340 = vpack.c.b16 %v3108, %v2932
        %v4341 = vpack.c.b16 %v3109, %v2933
        %v4342 = vpack.c.b16 %v3110, %v2934
        %v4343 = vpack.c.b16 %v3111, %v2935
        %v4344 = vpack.c.b16 %v3112, %v2936
        %v4345 = vpack.c.b16 %v3113, %v2937
        %v4346 = vpack.c.b16 %v3114, %v2938
        %v4347 = vpack.c.b16 %v3115, %v2939
        %v4348 = vpack.c.b16 %v3116, %v2940
        %v4349 = vpack.c.b16 %v3117, %v2941
        %v4350 = vpack.c.b16 %v3118, %v2942
        %v4351 = vpack.c.b16 %v3119, %v2943
        %v4352 = vpack.c.b16 %v3120, %v2944
        %v4353 = vpack.c.b16 %v3121, %v2945
        %v4354 = vpack.c.b16 %v3122, %v2946
        %v4355 = vpack.c.b16 %v3123, %v2947
        %v4356 = vpack.c.b16 %v3124, %v2948
        %v4357 = vpack.c.b16 %v3125, %v2949
        %v4358 = vpack.c.b16 %v3126, %v2950
        %v4359 = vpack.c.b16 %v3127, %v2951
        %v4360 = vpack.c.b16 %v3128, %v2952
        %v4361 = vpack.c.b16 %v3129, %v2953
        %v4362 = vpack.c.b16 %v3130, %v2954
        %v4363 = vpack.c.b16 %v3131, %v2955
        %v4364 = vpack.c.b16 %v3132, %v2956
        %v4365 = vpack.c.b16 %v3133, %v2957
        %v4366 = vpack.c.b16 %v3134, %v2958
        %v4367 = vpack.c.b16 %v3135, %v2959
        %v4368 = vpack.c.b16 %v3136, %v2960
        %v4369 = vpack.c.b16 %v3137, %v2961
        %v4370 = vpack.c.b16 %v3138, %v2962
        %v4371 = vpack.c.b16 %v3139, %v2963
        %v4372 = vpack.c.b16 %v3140, %v2964
        %v4373 = vpack.c.b16 %v3141, %v2965
        %v4374 = vpack.c.b16 %v3142, %v2966
        %v4375 = vpack.c.b16 %v3143, %v2967
        %v4376 = vpack.c.b16 %v3144, %v2968
        %v4377 = vpack.c.b16 %v3145, %v2969
        %v4378 = vpack.c.b16 %v3146, %v2970
        %v4379 = vpack.c.b16 %v3147, %v2971
        %v4380 = vpack.c.b16 %v3148, %v2972
        %v4381 = vpack.c.b16 %v3149, %v2973
        %v4382 = vpack.c.b16 %v3150, %v2974
        %v4383 = vpack.c.b16 %v3151, %v2975
        %v4384 = vpack.c.b16 %v3152, %v2976
        %v4385 = vpack.c.b16 %v3153, %v2977
        %v4386 = vpack.c.b16 %v3154, %v2978
        %v4387 = vpack.c.b16 %v3155, %v2979
        %v4388 = vpack.c.b16 %v3156, %v2980
        %v4389 = vpack.c.b16 %v3157, %v2981
        %v4390 = vpack.c.b16 %v3158, %v2982
        %v4391 = vpack.c.b16 %v3159, %v2983
        %v4392 = vpack.c.b16 %v3160, %v2984
        %v4393 = vpack.c.b16 %v3161, %v2985
        %v4394 = vpack.c.b16 %v3162, %v2986
        %v4395 = vpack.c.b16 %v3163, %v2987
        %v4396 = vpack.c.b16 %v3164, %v2988
        %v4397 = vpack.c.b16 %v3165, %v2989
        %v4398 = vpack.c.b16 %v3166, %v2990
        %v4399 = vpack.c.b16 %v3167, %v2991
        %v4400 = vpack.c.b16 %v3168, %v2992
        %v4401 = vpack.c.b16 %v3169, %v2993
        %v4402 = vpack.c.b16 %v3170, %v2994
        %v4403 = vpack.c.b16 %v3171, %v2995
        %v4404 = vpack.c.b16 %v3172, %v2996
        %v4405 = vpack.c.b16 %v3173, %v2997
        %v4406 = vpack.c.b16 %v3174, %v2998
        %v4407 = vpack.c.b16 %v3175, %v2999
        %v4408 = vpack.c.b16 %v3176, %v3000
        %v4409 = vpack.c.b16 %v3177, %v3001
        %v4410 = vpack.c.b16 %v3178, %v3002
        %v4411 = vpack.c.b16 %v3179, %v3003
        %v4412 = vpack.c.b16 %v3180, %v3004
        %v4413 = vpack.c.b16 %v3181, %v3005
        %v4414 = vpack.c.b16 %v3182, %v3006
        %v4415 = vpack.c.b16 %v3183, %v3007
        %v4416 = vpack.c.b16 %v3184, %v3008
        %v4417 = vpack.c.b16 %v3185, %v3009
        %v4418 = vpack.c.b16 %v3186, %v3010
        %v4419 = vpack.c.b16 %v3187, %v3011
        %v4420 = vpack.c.b16 %v3188, %v3012
        %v4421 = vpack.c.b16 %v3189, %v3013
        %v4422 = vpack.c.b16 %v3190, %v3014
        %v4423 = vpack.c.b16 %v3191, %v3015
        %v4424 = vpack.c.b16 %v3192, %v3016
        %v4425 = vpack.c.b16 %v3193, %v3017
        %v4426 = vpack.c.b16 %v3194, %v3018
        %v4427 = vpack.c.b16 %v3195, %v3019
        %v4428 = vpack.c.b16 %v3196, %v3020
        %v4429 = vpack.c.b16 %v3197, %v3021
        %v4430 = vpack.c.b16 %v3198, %v3022
        %v4431 = vpack.c.b16 %v3199, %v3023
        %v4432 = vpack.c.b16 %v3200, %v3024
        %v4433 = vpack.c.b16 %v3201, %v3025
        %v4434 = vpack.c.b16 %v3202, %v3026
        %v4435 = vpack.c.b16 %v3203, %v3027
        %v4436 = vpack.c.b16 %v3204, %v3028
        %v4437 = vpack.c.b16 %v3205, %v3029
        %v4438 = vpack.c.b16 %v3206, %v3030
        %v4439 = vpack.c.b16 %v3207, %v3031
        %v4440 = vpack.c.b16 %v3208, %v3032
        %v4441 = vpack.c.b16 %v3209, %v3033
        %v4442 = vpack.c.b16 %v3210, %v3034
        %v4443 = vpack.c.b16 %v3211, %v3035
        %v4444 = vpack.c.b16 %v3212, %v3036
        %v4445 = vpack.c.b16 %v3213, %v3037
        %v4446 = vpack.c.b16 %v3214, %v3038
        %v4447 = vpack.c.b16 %v3215, %v3039
        %v4448 = vpack.c.b16 %v3216, %v3040
        %v4449 = vpack.c.b16 %v3217, %v3041
        %v4450 = vpack.c.b16 %v3218, %v3042
        %v4451 = vpack.c.b16 %v3219, %v3043
        %v4452 = vpack.c.b16 %v3220, %v3044
        %v4453 = vpack.c.b16 %v3221, %v3045
        %v4454 = vpack.c.b16 %v3222, %v3046
        %v4455 = vpack.c.b16 %v3223, %v3047
        %v4456 = vpack.c.b16 %v3224, %v3048
        %v4457 = vpack.c.b16 %v3225, %v3049
        %v4458 = vpack.c.b16 %v3226, %v3050
        %v4459 = vpack.c.b16 %v3227, %v3051
        %v4460 = vpack.c.b16 %v3228, %v3052
        %v4461 = vpack.c.b16 %v3229, %v3053
        %v4462 = vpack.c.b16 %v3230, %v3054
        %v4463 = vpack.c.b16 %v3231, %v3055
        %v4464 = vpack.c.b16 %v3232, %v3056
        %v4465 = vpack.c.b16 %v3233, %v3057
        %v4466 = vpack.c.b16 %v3234, %v3058
        %v4467 = vpack.c.b16 %v3235, %v3059
        %v4468 = vpack.c.b16 %v3236, %v3060
        %v4469 = vpack.c.b16 %v3413, %v3237
        %v4470 = vpack.c.b16 %v3414, %v3238
        %v4471 = vpack.c.b16 %v3415, %v3239
        %v4472 = vpack.c.b16 %v3416, %v3240
        %v4473 = vpack.c.b16 %v3417, %v3241
        %v4474 = vpack.c.b16 %v3418, %v3242
        %v4475 = vpack.c.b16 %v3419, %v3243
        %v4476 = vpack.c.b16 %v3420, %v3244
        %v4477 = vpack.c.b16 %v3421, %v3245
        %v4478 = vpack.c.b16 %v3422, %v3246
        %v4479 = vpack.c.b16 %v3423, %v3247
        %v4480 = vpack.c.b16 %v3424, %v3248
        %v4481 = vpack.c.b16 %v3425, %v3249
        %v4482 = vpack.c.b16 %v3426, %v3250
        %v4483 = vpack.c.b16 %v3427, %v3251
        %v4484 = vpack.c.b16 %v3428, %v3252
        %v4485 = vpack.c.b16 %v3429, %v3253
        %v4486 = vpack.c.b16 %v3430, %v3254
        %v4487 = vpack.c.b16 %v3431, %v3255
        %v4488 = vpack.c.b16 %v3432, %v3256
        %v4489 = vpack.c.b16 %v3433, %v3257
        %v4490 = vpack.c.b16 %v3434, %v3258
        %v4491 = vpack.c.b16 %v3435, %v3259
        %v4492 = vpack.c.b16 %v3436, %v3260
        %v4493 = vpack.c.b16 %v3437, %v3261
        %v4494 = vpack.c.b16 %v3438, %v3262
        %v4495 = vpack.c.b16 %v3439, %v3263
        %v4496 = vpack.c.b16 %v3440, %v3264
        %v4497 = vpack.c.b16 %v3441, %v3265
        %v4498 = vpack.c.b16 %v3442, %v3266
        %v4499 = vpack.c.b16 %v3443, %v3267
        %v4500 = vpack.c.b16 %v3444, %v3268
        %v4501 = vpack.c.b16 %v3445, %v3269
        %v4502 = vpack.c.b16 %v3446, %v3270
        %v4503 = vpack.c.b16 %v3447, %v3271
        %v4504 = vpack.c.b16 %v3448, %v3272
        %v4505 = vpack.c.b16 %v3449, %v3273
        %v4506 = vpack.c.b16 %v3450, %v3274
        %v4507 = vpack.c.b16 %v3451, %v3275
        %v4508 = vpack.c.b16 %v3452, %v3276
        %v4509 = vpack.c.b16 %v3453, %v3277
        %v4510 = vpack.c.b16 %v3454, %v3278
        %v4511 = vpack.c.b16 %v3455, %v3279
        %v4512 = vpack.c.b16 %v3456, %v3280
        %v4513 = vpack.c.b16 %v3457, %v3281
        %v4514 = vpack.c.b16 %v3458, %v3282
        %v4515 = vpack.c.b16 %v3459, %v3283
        %v4516 = vpack.c.b16 %v3460, %v3284
        %v4517 = vpack.c.b16 %v3461, %v3285
        %v4518 = vpack.c.b16 %v3462, %v3286
        %v4519 = vpack.c.b16 %v3463, %v3287
        %v4520 = vpack.c.b16 %v3464, %v3288
        %v4521 = vpack.c.b16 %v3465, %v3289
        %v4522 = vpack.c.b16 %v3466, %v3290
        %v4523 = vpack.c.b16 %v3467, %v3291
        %v4524 = vpack.c.b16 %v3468, %v3292
        %v4525 = vpack.c.b16 %v3469, %v3293
        %v4526 = vpack.c.b16 %v3470, %v3294
        %v4527 = vpack.c.b16 %v3471, %v3295
        %v4528 = vpack.c.b16 %v3472, %v3296
        %v4529 = vpack.c.b16 %v3473, %v3297
        %v4530 = vpack.c.b16 %v3474, %v3298
        %v4531 = vpack.c.b16 %v3475, %v3299
        %v4532 = vpack.c.b16 %v3476, %v3300
        %v4533 = vpack.c.b16 %v3477, %v3301
        %v4534 = vpack.c.b16 %v3478, %v3302
        %v4535 = vpack.c.b16 %v3479, %v3303
        %v4536 = vpack.c.b16 %v3480, %v3304
        %v4537 = vpack.c.b16 %v3481, %v3305
        %v4538 = vpack.c.b16 %v3482, %v3306
        %v4539 = vpack.c.b16 %v3483, %v3307
        %v4540 = vpack.c.b16 %v3484, %v3308
        %v4541 = vpack.c.b16 %v3485, %v3309
        %v4542 = vpack.c.b16 %v3486, %v3310
        %v4543 = vpack.c.b16 %v3487, %v3311
        %v4544 = vpack.c.b16 %v3488, %v3312
        %v4545 = vpack.c.b16 %v3489, %v3313
        %v4546 = vpack.c.b16 %v3490, %v3314
        %v4547 = vpack.c.b16 %v3491, %v3315
        %v4548 = vpack.c.b16 %v3492, %v3316
        %v4549 = vpack.c.b16 %v3493, %v3317
        %v4550 = vpack.c.b16 %v3494, %v3318
        %v4551 = vpack.c.b16 %v3495, %v3319
        %v4552 = vpack.c.b16 %v3496, %v3320
        %v4553 = vpack.c.b16 %v3497, %v3321
        %v4554 = vpack.c.b16 %v3498, %v3322
        %v4555 = vpack.c.b16 %v3499, %v3323
        %v4556 = vpack.c.b16 %v3500, %v3324
        %v4557 = vpack.c.b16 %v3501, %v3325
        %v4558 = vpack.c.b16 %v3502, %v3326
        %v4559 = vpack.c.b16 %v3503, %v3327
        %v4560 = vpack.c.b16 %v3504, %v3328
        %v4561 = vpack.c.b16 %v3505, %v3329
        %v4562 = vpack.c.b16 %v3506, %v3330
        %v4563 = vpack.c.b16 %v3507, %v3331
        %v4564 = vpack.c.b16 %v3508, %v3332
        %v4565 = vpack.c.b16 %v3509, %v3333
        %v4566 = vpack.c.b16 %v3510, %v3334
        %v4567 = vpack.c.b16 %v3511, %v3335
        %v4568 = vpack.c.b16 %v3512, %v3336
        %v4569 = vpack.c.b16 %v3513, %v3337
        %v4570 = vpack.c.b16 %v3514, %v3338
        %v4571 = vpack.c.b16 %v3515, %v3339
        %v4572 = vpack.c.b16 %v3516, %v3340
        %v4573 = vpack.c.b16 %v3517, %v3341
        %v4574 = vpack.c.b16 %v3518, %v3342
        %v4575 = vpack.c.b16 %v3519, %v3343
        %v4576 = vpack.c.b16 %v3520, %v3344
        %v4577 = vpack.c.b16 %v3521, %v3345
        %v4578 = vpack.c.b16 %v3522, %v3346
        %v4579 = vpack.c.b16 %v3523, %v3347
        %v4580 = vpack.c.b16 %v3524, %v3348
        %v4581 = vpack.c.b16 %v3525, %v3349
        %v4582 = vpack.c.b16 %v3526, %v3350
        %v4583 = vpack.c.b16 %v3527, %v3351
        %v4584 = vpack.c.b16 %v3528, %v3352
        %v4585 = vpack.c.b16 %v3529, %v3353
        %v4586 = vpack.c.b16 %v3530, %v3354
        %v4587 = vpack.c.b16 %v3531, %v3355
        %v4588 = vpack.c.b16 %v3532, %v3356
        %v4589 = vpack.c.b16 %v3533, %v3357
        %v4590 = vpack.c.b16 %v3534, %v3358
        %v4591 = vpack.c.b16 %v3535, %v3359
        %v4592 = vpack.c.b16 %v3536, %v3360
        %v4593 = vpack.c.b16 %v3537, %v3361
        %v4594 = vpack.c.b16 %v3538, %v3362
        %v4595 = vpack.c.b16 %v3539, %v3363
        %v4596 = vpack.c.b16 %v3540, %v3364
        %v4597 = vpack.c.b16 %v3541, %v3365
        %v4598 = vpack.c.b16 %v3542, %v3366
        %v4599 = vpack.c.b16 %v3543, %v3367
        %v4600 = vpack.c.b16 %v3544, %v3368
        %v4601 = vpack.c.b16 %v3545, %v3369
        %v4602 = vpack.c.b16 %v3546, %v3370
        %v4603 = vpack.c.b16 %v3547, %v3371
        %v4604 = vpack.c.b16 %v3548, %v3372
        %v4605 = vpack.c.b16 %v3549, %v3373
        %v4606 = vpack.c.b16 %v3550, %v3374
        %v4607 = vpack.c.b16 %v3551, %v3375
        %v4608 = vpack.c.b16 %v3552, %v3376
        %v4609 = vpack.c.b16 %v3553, %v3377
        %v4610 = vpack.c.b16 %v3554, %v3378
        %v4611 = vpack.c.b16 %v3555, %v3379
        %v4612 = vpack.c.b16 %v3556, %v3380
        %v4613 = vpack.c.b16 %v3557, %v3381
        %v4614 = vpack.c.b16 %v3558, %v3382
        %v4615 = vpack.c.b16 %v3559, %v3383
        %v4616 = vpack.c.b16 %v3560, %v3384
        %v4617 = vpack.c.b16 %v3561, %v3385
        %v4618 = vpack.c.b16 %v3562, %v3386
        %v4619 = vpack.c.b16 %v3563, %v3387
        %v4620 = vpack.c.b16 %v3564, %v3388
        %v4621 = vpack.c.b16 %v3565, %v3389
        %v4622 = vpack.c.b16 %v3566, %v3390
        %v4623 = vpack.c.b16 %v3567, %v3391
        %v4624 = vpack.c.b16 %v3568, %v3392
        %v4625 = vpack.c.b16 %v3569, %v3393
        %v4626 = vpack.c.b16 %v3570, %v3394
        %v4627 = vpack.c.b16 %v3571, %v3395
        %v4628 = vpack.c.b16 %v3572, %v3396
        %v4629 = vpack.c.b16 %v3573, %v3397
        %v4630 = vpack.c.b16 %v3574, %v3398
        %v4631 = vpack.c.b16 %v3575, %v3399
        %v4632 = vpack.c.b16 %v3576, %v3400
        %v4633 = vpack.c.b16 %v3577, %v3401
        %v4634 = vpack.c.b16 %v3578, %v3402
        %v4635 = vpack.c.b16 %v3579, %v3403
        %v4636 = vpack.c.b16 %v3580, %v3404
        %v4637 = vpack.c.b16 %v3581, %v3405
        %v4638 = vpack.c.b16 %v3582, %v3406
        %v4639 = vpack.c.b16 %v3583, %v3407
        %v4640 = vpack.c.b16 %v3584, %v3408
        %v4641 = vpack.c.b16 %v3585, %v3409
        %v4642 = vpack.c.b16 %v3586, %v3410
        %v4643 = vpack.c.b16 %v3587, %v3411
        %v4644 = vpack.c.b16 %v3588, %v3412
        %v4645 = vpack.c.b16 %v3765, %v3589
        %v4646 = vpack.c.b16 %v3766, %v3590
        %v4647 = vpack.c.b16 %v3767, %v3591
        %v4648 = vpack.c.b16 %v3768, %v3592
        %v4649 = vpack.c.b16 %v3769, %v3593
        %v4650 = vpack.c.b16 %v3770, %v3594
        %v4651 = vpack.c.b16 %v3771, %v3595
        %v4652 = vpack.c.b16 %v3772, %v3596
        %v4653 = vpack.c.b16 %v3773, %v3597
        %v4654 = vpack.c.b16 %v3774, %v3598
        %v4655 = vpack.c.b16 %v3775, %v3599
        %v4656 = vpack.c.b16 %v3776, %v3600
        %v4657 = vpack.c.b16 %v3777, %v3601
        %v4658 = vpack.c.b16 %v3778, %v3602
        %v4659 = vpack.c.b16 %v3779, %v3603
        %v4660 = vpack.c.b16 %v3780, %v3604
        %v4661 = vpack.c.b16 %v3781, %v3605
        %v4662 = vpack.c.b16 %v3782, %v3606
        %v4663 = vpack.c.b16 %v3783, %v3607
        %v4664 = vpack.c.b16 %v3784, %v3608
        %v4665 = vpack.c.b16 %v3785, %v3609
        %v4666 = vpack.c.b16 %v3786, %v3610
        %v4667 = vpack.c.b16 %v3787, %v3611
        %v4668 = vpack.c.b16 %v3788, %v3612
        %v4669 = vpack.c.b16 %v3789, %v3613
        %v4670 = vpack.c.b16 %v3790, %v3614
        %v4671 = vpack.c.b16 %v3791, %v3615
        %v4672 = vpack.c.b16 %v3792, %v3616
        %v4673 = vpack.c.b16 %v3793, %v3617
        %v4674 = vpack.c.b16 %v3794, %v3618
        %v4675 = vpack.c.b16 %v3795, %v3619
        %v4676 = vpack.c.b16 %v3796, %v3620
        %v4677 = vpack.c.b16 %v3797, %v3621
        %v4678 = vpack.c.b16 %v3798, %v3622
        %v4679 = vpack.c.b16 %v3799, %v3623
        %v4680 = vpack.c.b16 %v3800, %v3624
        %v4681 = vpack.c.b16 %v3801, %v3625
        %v4682 = vpack.c.b16 %v3802, %v3626
        %v4683 = vpack.c.b16 %v3803, %v3627
        %v4684 = vpack.c.b16 %v3804, %v3628
        %v4685 = vpack.c.b16 %v3805, %v3629
        %v4686 = vpack.c.b16 %v3806, %v3630
        %v4687 = vpack.c.b16 %v3807, %v3631
        %v4688 = vpack.c.b16 %v3808, %v3632
        %v4689 = vpack.c.b16 %v3809, %v3633
        %v4690 = vpack.c.b16 %v3810, %v3634
        %v4691 = vpack.c.b16 %v3811, %v3635
        %v4692 = vpack.c.b16 %v3812, %v3636
        %v4693 = vpack.c.b16 %v3813, %v3637
        %v4694 = vpack.c.b16 %v3814, %v3638
        %v4695 = vpack.c.b16 %v3815, %v3639
        %v4696 = vpack.c.b16 %v3816, %v3640
        %v4697 = vpack.c.b16 %v3817, %v3641
        %v4698 = vpack.c.b16 %v3818, %v3642
        %v4699 = vpack.c.b16 %v3819, %v3643
        %v4700 = vpack.c.b16 %v3820, %v3644
        %v4701 = vpack.c.b16 %v3821, %v3645
        %v4702 = vpack.c.b16 %v3822, %v3646
        %v4703 = vpack.c.b16 %v3823, %v3647
        %v4704 = vpack.c.b16 %v3824, %v3648
        %v4705 = vpack.c.b16 %v3825, %v3649
        %v4706 = vpack.c.b16 %v3826, %v3650
        %v4707 = vpack.c.b16 %v3827, %v3651
        %v4708 = vpack.c.b16 %v3828, %v3652
        %v4709 = vpack.c.b16 %v3829, %v3653
        %v4710 = vpack.c.b16 %v3830, %v3654
        %v4711 = vpack.c.b16 %v3831, %v3655
        %v4712 = vpack.c.b16 %v3832, %v3656
        %v4713 = vpack.c.b16 %v3833, %v3657
        %v4714 = vpack.c.b16 %v3834, %v3658
        %v4715 = vpack.c.b16 %v3835, %v3659
        %v4716 = vpack.c.b16 %v3836, %v3660
        %v4717 = vpack.c.b16 %v3837, %v3661
        %v4718 = vpack.c.b16 %v3838, %v3662
        %v4719 = vpack.c.b16 %v3839, %v3663
        %v4720 = vpack.c.b16 %v3840, %v3664
        %v4721 = vpack.c.b16 %v3841, %v3665
        %v4722 = vpack.c.b16 %v3842, %v3666
        %v4723 = vpack.c.b16 %v3843, %v3667
        %v4724 = vpack.c.b16 %v3844, %v3668
        %v4725 = vpack.c.b16 %v3845, %v3669
        %v4726 = vpack.c.b16 %v3846, %v3670
        %v4727 = vpack.c.b16 %v3847, %v3671
        %v4728 = vpack.c.b16 %v3848, %v3672
        %v4729 = vpack.c.b16 %v3849, %v3673
        %v4730 = vpack.c.b16 %v3850, %v3674
        %v4731 = vpack.c.b16 %v3851, %v3675
        %v4732 = vpack.c.b16 %v3852, %v3676
        %v4733 = vpack.c.b16 %v3853, %v3677
        %v4734 = vpack.c.b16 %v3854, %v3678
        %v4735 = vpack.c.b16 %v3855, %v3679
        %v4736 = vpack.c.b16 %v3856, %v3680
        %v4737 = vpack.c.b16 %v3857, %v3681
        %v4738 = vpack.c.b16 %v3858, %v3682
        %v4739 = vpack.c.b16 %v3859, %v3683
        %v4740 = vpack.c.b16 %v3860, %v3684
        %v4741 = vpack.c.b16 %v3861, %v3685
        %v4742 = vpack.c.b16 %v3862, %v3686
        %v4743 = vpack.c.b16 %v3863, %v3687
        %v4744 = vpack.c.b16 %v3864, %v3688
        %v4745 = vpack.c.b16 %v3865, %v3689
        %v4746 = vpack.c.b16 %v3866, %v3690
        %v4747 = vpack.c.b16 %v3867, %v3691
        %v4748 = vpack.c.b16 %v3868, %v3692
        %v4749 = vpack.c.b16 %v3869, %v3693
        %v4750 = vpack.c.b16 %v3870, %v3694
        %v4751 = vpack.c.b16 %v3871, %v3695
        %v4752 = vpack.c.b16 %v3872, %v3696
        %v4753 = vpack.c.b16 %v3873, %v3697
        %v4754 = vpack.c.b16 %v3874, %v3698
        %v4755 = vpack.c.b16 %v3875, %v3699
        %v4756 = vpack.c.b16 %v3876, %v3700
        %v4757 = vpack.c.b16 %v3877, %v3701
        %v4758 = vpack.c.b16 %v3878, %v3702
        %v4759 = vpack.c.b16 %v3879, %v3703
        %v4760 = vpack.c.b16 %v3880, %v3704
        %v4761 = vpack.c.b16 %v3881, %v3705
        %v4762 = vpack.c.b16 %v3882, %v3706
        %v4763 = vpack.c.b16 %v3883, %v3707
        %v4764 = vpack.c.b16 %v3884, %v3708
        %v4765 = vpack.c.b16 %v3885, %v3709
        %v4766 = vpack.c.b16 %v3886, %v3710
        %v4767 = vpack.c.b16 %v3887, %v3711
        %v4768 = vpack.c.b16 %v3888, %v3712
        %v4769 = vpack.c.b16 %v3889, %v3713
        %v4770 = vpack.c.b16 %v3890, %v3714
        %v4771 = vpack.c.b16 %v3891, %v3715
        %v4772 = vpack.c.b16 %v3892, %v3716
        %v4773 = vpack.c.b16 %v3893, %v3717
        %v4774 = vpack.c.b16 %v3894, %v3718
        %v4775 = vpack.c.b16 %v3895, %v3719
        %v4776 = vpack.c.b16 %v3896, %v3720
        %v4777 = vpack.c.b16 %v3897, %v3721
        %v4778 = vpack.c.b16 %v3898, %v3722
        %v4779 = vpack.c.b16 %v3899, %v3723
        %v4780 = vpack.c.b16 %v3900, %v3724
        %v4781 = vpack.c.b16 %v3901, %v3725
        %v4782 = vpack.c.b16 %v3902, %v3726
        %v4783 = vpack.c.b16 %v3903, %v3727
        %v4784 = vpack.c.b16 %v3904, %v3728
        %v4785 = vpack.c.b16 %v3905, %v3729
        %v4786 = vpack.c.b16 %v3906, %v3730
        %v4787 = vpack.c.b16 %v3907, %v3731
        %v4788 = vpack.c.b16 %v3908, %v3732
        %v4789 = vpack.c.b16 %v3909, %v3733
        %v4790 = vpack.c.b16 %v3910, %v3734
        %v4791 = vpack.c.b16 %v3911, %v3735
        %v4792 = vpack.c.b16 %v3912, %v3736
        %v4793 = vpack.c.b16 %v3913, %v3737
        %v4794 = vpack.c.b16 %v3914, %v3738
        %v4795 = vpack.c.b16 %v3915, %v3739
        %v4796 = vpack.c.b16 %v3916, %v3740
        %v4797 = vpack.c.b16 %v3917, %v3741
        %v4798 = vpack.c.b16 %v3918, %v3742
        %v4799 = vpack.c.b16 %v3919, %v3743
        %v4800 = vpack.c.b16 %v3920, %v3744
        %v4801 = vpack.c.b16 %v3921, %v3745
        %v4802 = vpack.c.b16 %v3922, %v3746
        %v4803 = vpack.c.b16 %v3923, %v3747
        %v4804 = vpack.c.b16 %v3924, %v3748
        %v4805 = vpack.c.b16 %v3925, %v3749
        %v4806 = vpack.c.b16 %v3926, %v3750
        %v4807 = vpack.c.b16 %v3927, %v3751
        %v4808 = vpack.c.b16 %v3928, %v3752
        %v4809 = vpack.c.b16 %v3929, %v3753
        %v4810 = vpack.c.b16 %v3930, %v3754
        %v4811 = vpack.c.b16 %v3931, %v3755
        %v4812 = vpack.c.b16 %v3932, %v3756
        %v4813 = vpack.c.b16 %v3933, %v3757
        %v4814 = vpack.c.b16 %v3934, %v3758
        %v4815 = vpack.c.b16 %v3935, %v3759
        %v4816 = vpack.c.b16 %v3936, %v3760
        %v4817 = vpack.c.b16 %v3937, %v3761
        %v4818 = vpack.c.b16 %v3938, %v3762
        %v4819 = vpack.c.b16 %v3939, %v3763
        %v4820 = vpack.c.b16 %v3940, %v3764
        %v4821 = vpack.c.b16 %v4117, %v3941
        %v4822 = vpack.c.b16 %v4118, %v3942
        %v4823 = vpack.c.b16 %v4119, %v3943
        %v4824 = vpack.c.b16 %v4120, %v3944
        %v4825 = vpack.c.b16 %v4121, %v3945
        %v4826 = vpack.c.b16 %v4122, %v3946
        %v4827 = vpack.c.b16 %v4123, %v3947
        %v4828 = vpack.c.b16 %v4124, %v3948
        %v4829 = vpack.c.b16 %v4125, %v3949
        %v4830 = vpack.c.b16 %v4126, %v3950
        %v4831 = vpack.c.b16 %v4127, %v3951
        %v4832 = vpack.c.b16 %v4128, %v3952
        %v4833 = vpack.c.b16 %v4129, %v3953
        %v4834 = vpack.c.b16 %v4130, %v3954
        %v4835 = vpack.c.b16 %v4131, %v3955
        %v4836 = vpack.c.b16 %v4132, %v3956
        %v4837 = vpack.c.b16 %v4133, %v3957
        %v4838 = vpack.c.b16 %v4134, %v3958
        %v4839 = vpack.c.b16 %v4135, %v3959
        %v4840 = vpack.c.b16 %v4136, %v3960
        %v4841 = vpack.c.b16 %v4137, %v3961
        %v4842 = vpack.c.b16 %v4138, %v3962
        %v4843 = vpack.c.b16 %v4139, %v3963
        %v4844 = vpack.c.b16 %v4140, %v3964
        %v4845 = vpack.c.b16 %v4141, %v3965
        %v4846 = vpack.c.b16 %v4142, %v3966
        %v4847 = vpack.c.b16 %v4143, %v3967
        %v4848 = vpack.c.b16 %v4144, %v3968
        %v4849 = vpack.c.b16 %v4145, %v3969
        %v4850 = vpack.c.b16 %v4146, %v3970
        %v4851 = vpack.c.b16 %v4147, %v3971
        %v4852 = vpack.c.b16 %v4148, %v3972
        %v4853 = vpack.c.b16 %v4149, %v3973
        %v4854 = vpack.c.b16 %v4150, %v3974
        %v4855 = vpack.c.b16 %v4151, %v3975
        %v4856 = vpack.c.b16 %v4152, %v3976
        %v4857 = vpack.c.b16 %v4153, %v3977
        %v4858 = vpack.c.b16 %v4154, %v3978
        %v4859 = vpack.c.b16 %v4155, %v3979
        %v4860 = vpack.c.b16 %v4156, %v3980
        %v4861 = vpack.c.b16 %v4157, %v3981
        %v4862 = vpack.c.b16 %v4158, %v3982
        %v4863 = vpack.c.b16 %v4159, %v3983
        %v4864 = vpack.c.b16 %v4160, %v3984
        %v4865 = vpack.c.b16 %v4161, %v3985
        %v4866 = vpack.c.b16 %v4162, %v3986
        %v4867 = vpack.c.b16 %v4163, %v3987
        %v4868 = vpack.c.b16 %v4164, %v3988
        %v4869 = vpack.c.b16 %v4165, %v3989
        %v4870 = vpack.c.b16 %v4166, %v3990
        %v4871 = vpack.c.b16 %v4167, %v3991
        %v4872 = vpack.c.b16 %v4168, %v3992
        %v4873 = vpack.c.b16 %v4169, %v3993
        %v4874 = vpack.c.b16 %v4170, %v3994
        %v4875 = vpack.c.b16 %v4171, %v3995
        %v4876 = vpack.c.b16 %v4172, %v3996
        %v4877 = vpack.c.b16 %v4173, %v3997
        %v4878 = vpack.c.b16 %v4174, %v3998
        %v4879 = vpack.c.b16 %v4175, %v3999
        %v4880 = vpack.c.b16 %v4176, %v4000
        %v4881 = vpack.c.b16 %v4177, %v4001
        %v4882 = vpack.c.b16 %v4178, %v4002
        %v4883 = vpack.c.b16 %v4179, %v4003
        %v4884 = vpack.c.b16 %v4180, %v4004
        %v4885 = vpack.c.b16 %v4181, %v4005
        %v4886 = vpack.c.b16 %v4182, %v4006
        %v4887 = vpack.c.b16 %v4183, %v4007
        %v4888 = vpack.c.b16 %v4184, %v4008
        %v4889 = vpack.c.b16 %v4185, %v4009
        %v4890 = vpack.c.b16 %v4186, %v4010
        %v4891 = vpack.c.b16 %v4187, %v4011
        %v4892 = vpack.c.b16 %v4188, %v4012
        %v4893 = vpack.c.b16 %v4189, %v4013
        %v4894 = vpack.c.b16 %v4190, %v4014
        %v4895 = vpack.c.b16 %v4191, %v4015
        %v4896 = vpack.c.b16 %v4192, %v4016
        %v4897 = vpack.c.b16 %v4193, %v4017
        %v4898 = vpack.c.b16 %v4194, %v4018
        %v4899 = vpack.c.b16 %v4195, %v4019
        %v4900 = vpack.c.b16 %v4196, %v4020
        %v4901 = vpack.c.b16 %v4197, %v4021
        %v4902 = vpack.c.b16 %v4198, %v4022
        %v4903 = vpack.c.b16 %v4199, %v4023
        %v4904 = vpack.c.b16 %v4200, %v4024
        %v4905 = vpack.c.b16 %v4201, %v4025
        %v4906 = vpack.c.b16 %v4202, %v4026
        %v4907 = vpack.c.b16 %v4203, %v4027
        %v4908 = vpack.c.b16 %v4204, %v4028
        %v4909 = vpack.c.b16 %v4205, %v4029
        %v4910 = vpack.c.b16 %v4206, %v4030
        %v4911 = vpack.c.b16 %v4207, %v4031
        %v4912 = vpack.c.b16 %v4208, %v4032
        %v4913 = vpack.c.b16 %v4209, %v4033
        %v4914 = vpack.c.b16 %v4210, %v4034
        %v4915 = vpack.c.b16 %v4211, %v4035
        %v4916 = vpack.c.b16 %v4212, %v4036
        %v4917 = vpack.c.b16 %v4213, %v4037
        %v4918 = vpack.c.b16 %v4214, %v4038
        %v4919 = vpack.c.b16 %v4215, %v4039
        %v4920 = vpack.c.b16 %v4216, %v4040
        %v4921 = vpack.c.b16 %v4217, %v4041
        %v4922 = vpack.c.b16 %v4218, %v4042
        %v4923 = vpack.c.b16 %v4219, %v4043
        %v4924 = vpack.c.b16 %v4220, %v4044
        %v4925 = vpack.c.b16 %v4221, %v4045
        %v4926 = vpack.c.b16 %v4222, %v4046
        %v4927 = vpack.c.b16 %v4223, %v4047
        %v4928 = vpack.c.b16 %v4224, %v4048
        %v4929 = vpack.c.b16 %v4225, %v4049
        %v4930 = vpack.c.b16 %v4226, %v4050
        %v4931 = vpack.c.b16 %v4227, %v4051
        %v4932 = vpack.c.b16 %v4228, %v4052
        %v4933 = vpack.c.b16 %v4229, %v4053
        %v4934 = vpack.c.b16 %v4230, %v4054
        %v4935 = vpack.c.b16 %v4231, %v4055
        %v4936 = vpack.c.b16 %v4232, %v4056
        %v4937 = vpack.c.b16 %v4233, %v4057
        %v4938 = vpack.c.b16 %v4234, %v4058
        %v4939 = vpack.c.b16 %v4235, %v4059
        %v4940 = vpack.c.b16 %v4236, %v4060
        %v4941 = vpack.c.b16 %v4237, %v4061
        %v4942 = vpack.c.b16 %v4238, %v4062
        %v4943 = vpack.c.b16 %v4239, %v4063
        %v4944 = vpack.c.b16 %v4240, %v4064
        %v4945 = vpack.c.b16 %v4241, %v4065
        %v4946 = vpack.c.b16 %v4242, %v4066
        %v4947 = vpack.c.b16 %v4243, %v4067
        %v4948 = vpack.c.b16 %v4244, %v4068
        %v4949 = vpack.c.b16 %v4245, %v4069
        %v4950 = vpack.c.b16 %v4246, %v4070
        %v4951 = vpack.c.b16 %v4247, %v4071
        %v4952 = vpack.c.b16 %v4248, %v4072
        %v4953 = vpack.c.b16 %v4249, %v4073
        %v4954 = vpack.c.b16 %v4250, %v4074
        %v4955 = vpack.c.b16 %v4251, %v4075
        %v4956 = vpack.c.b16 %v4252, %v4076
        %v4957 = vpack.c.b16 %v4253, %v4077
        %v4958 = vpack.c.b16 %v4254, %v4078
        %v4959 = vpack.c.b16 %v4255, %v4079
        %v4960 = vpack.c.b16 %v4256, %v4080
        %v4961 = vpack.c.b16 %v4257, %v4081
        %v4962 = vpack.c.b16 %v4258, %v4082
        %v4963 = vpack.c.b16 %v4259, %v4083
        %v4964 = vpack.c.b16 %v4260, %v4084
        %v4965 = vpack.c.b16 %v4261, %v4085
        %v4966 = vpack.c.b16 %v4262, %v4086
        %v4967 = vpack.c.b16 %v4263, %v4087
        %v4968 = vpack.c.b16 %v4264, %v4088
        %v4969 = vpack.c.b16 %v4265, %v4089
        %v4970 = vpack.c.b16 %v4266, %v4090
        %v4971 = vpack.c.b16 %v4267, %v4091
        %v4972 = vpack.c.b16 %v4268, %v4092
        %v4973 = vpack.c.b16 %v4269, %v4093
        %v4974 = vpack.c.b16 %v4270, %v4094
        %v4975 = vpack.c.b16 %v4271, %v4095
        %v4976 = vpack.c.b16 %v4272, %v4096
        %v4977 = vpack.c.b16 %v4273, %v4097
        %v4978 = vpack.c.b16 %v4274, %v4098
        %v4979 = vpack.c.b16 %v4275, %v4099
        %v4980 = vpack.c.b16 %v4276, %v4100
        %v4981 = vpack.c.b16 %v4277, %v4101
        %v4982 = vpack.c.b16 %v4278, %v4102
        %v4983 = vpack.c.b16 %v4279, %v4103
        %v4984 = vpack.c.b16 %v4280, %v4104
        %v4985 = vpack.c.b16 %v4281, %v4105
        %v4986 = vpack.c.b16 %v4282, %v4106
        %v4987 = vpack.c.b16 %v4283, %v4107
        %v4988 = vpack.c.b16 %v4284, %v4108
        %v4989 = vpack.c.b16 %v4285, %v4109
        %v4990 = vpack.c.b16 %v4286, %v4110
        %v4991 = vpack.c.b16 %v4287, %v4111
        %v4992 = vpack.c.b16 %v4288, %v4112
        %v4993 = vpack.c.b16 %v4289, %v4113
        %v4994 = vpack.c.b16 %v4290, %v4114
        %v4995 = vpack.c.b16 %v4291, %v4115
        %v4996 = vpack.c.b16 %v4292, %v4116
        %5701 = vmatprep.subr.bf16.mxu0 0
        %5702 = vmatpush1.bf16.xpose.msra.mxu0 0
        %5703 = vmatprep.subr.bf16.mxu0 0
        %5704 = vmatpush1.bf16.xpose.msra.mxu0 0
        %5705 = vmatprep.subr.bf16.mxu0 0
        %5706 = vmatpush1.bf16.xpose.msra.mxu0 0
        %5707 = vmatprep.subr.bf16.mxu0 0
        %5708 = vmatpush1.bf16.xpose.msra.mxu0 0
        %5709 = vmatprep.subr.bf16.mxu0 0
        %5710 = vmatpush1.bf16.xpose.msra.mxu0 0
        %5711 = vmatprep.subr.bf16.mxu0 0
        %5712 = vmatpush1.bf16.xpose.msra.mxu0 0
        %5713 = vmatprep.subr.bf16.mxu0 0
        %5714 = vmatpush1.bf16.xpose.msra.mxu0 0
        %5715 = vmatprep.subr.bf16.mxu0 %v1294
        %5716 = vmatpush1.bf16.xpose.msra.mxu0 %v1293
        %5717 = vmatprep.subr.bf16.mxu0 0
        %5718 = vmatpush2.bf16.xpose.msra.mxu0 0
        %5719 = vmatprep.subr.bf16.mxu0 0
        %5720 = vmatpush2.bf16.xpose.msra.mxu0 0
        %5721 = vmatprep.subr.bf16.mxu0 0
        %5722 = vmatpush2.bf16.xpose.msra.mxu0 0
        %5723 = vmatprep.subr.bf16.mxu0 0
        %5724 = vmatpush2.bf16.xpose.msra.mxu0 0
        %5725 = vmatprep.subr.bf16.mxu0 0
        %5726 = vmatpush2.bf16.xpose.msra.mxu0 0
        %5727 = vmatprep.subr.bf16.mxu0 0
        %5728 = vmatpush2.bf16.xpose.msra.mxu0 0
        %5729 = vmatprep.subr.bf16.mxu0 0
        %5730 = vmatpush2.bf16.xpose.msra.mxu0 0
        %5731 = vmatprep.subr.bf16.mxu0 0
        %5732 = vmatpush2.bf16.xpose.msra.mxu0 0
        %5733 = vmatprep.mubr.bf16.mxu0 %v4294
        %5734 = vmatmul.mubr.bf16.gmra.mxu0 %v4293
        %v5735 = vpop.f32.mrf.mxu0
        %v5736 = vadd.f32 0.0, %v5735
        %v5737 = vpop.f32.mrf.mxu0
        %v5738 = vpop.f32.mrf.mxu0
        %v5739 = vadd.f32 0.0, %v5738
        %v5740 = vpop.f32.mrf.mxu0
        %5741 = vmatprep.mubr.bf16.mxu0 %v4470
        %5742 = vmatmul.mubr.bf16.gmra.mxu0 %v4469
        %v5743 = vpop.f32.mrf.mxu0
        %v5744 = vadd.f32 0.0, %v5743
        %v5745 = vpop.f32.mrf.mxu0
        %v5746 = vpop.f32.mrf.mxu0
        %v5747 = vadd.f32 0.0, %v5746
        %v5748 = vpop.f32.mrf.mxu0
        %5749 = vmatprep.mubr.bf16.mxu0 %v4646
        %5750 = vmatmul.mubr.bf16.gmra.mxu0 %v4645
        %v5751 = vpop.f32.mrf.mxu0
        %v5752 = vadd.f32 0.0, %v5751
        %v5753 = vpop.f32.mrf.mxu0
        %v5754 = vpop.f32.mrf.mxu0
        %v5755 = vadd.f32 0.0, %v5754
        %v5756 = vpop.f32.mrf.mxu0
        %5757 = vmatprep.mubr.bf16.mxu0 %v4822
        %5758 = vmatmul.mubr.bf16.gmra.mxu0 %v4821
        %v5759 = vpop.f32.mrf.mxu0
        %v5760 = vadd.f32 0.0, %v5759
        %v5761 = vpop.f32.mrf.mxu0
        %v5762 = vpop.f32.mrf.mxu0
        %v5763 = vadd.f32 0.0, %v5762
        %v5764 = vpop.f32.mrf.mxu0
        %5765 = vdwg.mxu0
        %5766 = vmatprep.subr.bf16.mxu0 0
        %5767 = vmatpush1.bf16.xpose.msra.mxu0 0
        %5768 = vmatprep.subr.bf16.mxu0 0
        %5769 = vmatpush1.bf16.xpose.msra.mxu0 0
        %5770 = vmatprep.subr.bf16.mxu0 0
        %5771 = vmatpush1.bf16.xpose.msra.mxu0 0
        %5772 = vmatprep.subr.bf16.mxu0 0
        %5773 = vmatpush1.bf16.xpose.msra.mxu0 0
        %5774 = vmatprep.subr.bf16.mxu0 0
        %5775 = vmatpush1.bf16.xpose.msra.mxu0 0
        %5776 = vmatprep.subr.bf16.mxu0 0
        %5777 = vmatpush1.bf16.xpose.msra.mxu0 0
        %5778 = vmatprep.subr.bf16.mxu0 0
        %5779 = vmatpush1.bf16.xpose.msra.mxu0 0
        %5780 = vmatprep.subr.bf16.mxu0 %v1296
        %5781 = vmatpush1.bf16.xpose.msra.mxu0 %v1295
        %5782 = vmatprep.subr.bf16.mxu0 0
        %5783 = vmatpush2.bf16.xpose.msra.mxu0 0
        %5784 = vmatprep.subr.bf16.mxu0 0
        %5785 = vmatpush2.bf16.xpose.msra.mxu0 0
        %5786 = vmatprep.subr.bf16.mxu0 0
        %5787 = vmatpush2.bf16.xpose.msra.mxu0 0
        %5788 = vmatprep.subr.bf16.mxu0 0
        %5789 = vmatpush2.bf16.xpose.msra.mxu0 0
        %5790 = vmatprep.subr.bf16.mxu0 0
        %5791 = vmatpush2.bf16.xpose.msra.mxu0 0
        %5792 = vmatprep.subr.bf16.mxu0 0
        %5793 = vmatpush2.bf16.xpose.msra.mxu0 0
        %5794 = vmatprep.subr.bf16.mxu0 0
        %5795 = vmatpush2.bf16.xpose.msra.mxu0 0
        %5796 = vmatprep.subr.bf16.mxu0 0
        %5797 = vmatpush2.bf16.xpose.msra.mxu0 0
        %5798 = vmatprep.mubr.bf16.mxu0 %v4296
        %5799 = vmatmul.mubr.bf16.gmra.mxu0 %v4295
        %v5800 = vpop.f32.mrf.mxu0
        %v5801 = vadd.f32 %v5736, %v5800
        %v5802 = vpop.f32.mrf.mxu0
        %v5803 = vpop.f32.mrf.mxu0
        %v5804 = vadd.f32 %v5739, %v5803
        %v5805 = vpop.f32.mrf.mxu0
        %5806 = vmatprep.mubr.bf16.mxu0 %v4472
        %5807 = vmatmul.mubr.bf16.gmra.mxu0 %v4471
        %v5808 = vpop.f32.mrf.mxu0
        %v5809 = vadd.f32 %v5744, %v5808
        %v5810 = vpop.f32.mrf.mxu0
        %v5811 = vpop.f32.mrf.mxu0
        %v5812 = vadd.f32 %v5747, %v5811
        %v5813 = vpop.f32.mrf.mxu0
        %5814 = vmatprep.mubr.bf16.mxu0 %v4648
        %5815 = vmatmul.mubr.bf16.gmra.mxu0 %v4647
        %v5816 = vpop.f32.mrf.mxu0
        %v5817 = vadd.f32 %v5752, %v5816
        %v5818 = vpop.f32.mrf.mxu0
        %v5819 = vpop.f32.mrf.mxu0
        %v5820 = vadd.f32 %v5755, %v5819
        %v5821 = vpop.f32.mrf.mxu0
        %5822 = vmatprep.mubr.bf16.mxu0 %v4824
        %5823 = vmatmul.mubr.bf16.gmra.mxu0 %v4823
        %v5824 = vpop.f32.mrf.mxu0
        %v5825 = vadd.f32 %v5760, %v5824
        %v5826 = vpop.f32.mrf.mxu0
        %v5827 = vpop.f32.mrf.mxu0
        %v5828 = vadd.f32 %v5763, %v5827
        %v5829 = vpop.f32.mrf.mxu0
        %5830 = vdwg.mxu0
        %5831 = vmatprep.subr.bf16.mxu0 0
        %5832 = vmatpush1.bf16.xpose.msra.mxu0 0
        %5833 = vmatprep.subr.bf16.mxu0 0
        %5834 = vmatpush1.bf16.xpose.msra.mxu0 0
        %5835 = vmatprep.subr.bf16.mxu0 0
        %5836 = vmatpush1.bf16.xpose.msra.mxu0 0
        %5837 = vmatprep.subr.bf16.mxu0 0
        %5838 = vmatpush1.bf16.xpose.msra.mxu0 0
        %5839 = vmatprep.subr.bf16.mxu0 0
        %5840 = vmatpush1.bf16.xpose.msra.mxu0 0
        %5841 = vmatprep.subr.bf16.mxu0 0
        %5842 = vmatpush1.bf16.xpose.msra.mxu0 0
        %5843 = vmatprep.subr.bf16.mxu0 0
        %5844 = vmatpush1.bf16.xpose.msra.mxu0 0
        %5845 = vmatprep.subr.bf16.mxu0 %v1298
        %5846 = vmatpush1.bf16.xpose.msra.mxu0 %v1297
        %5847 = vmatprep.subr.bf16.mxu0 0
        %5848 = vmatpush2.bf16.xpose.msra.mxu0 0
        %5849 = vmatprep.subr.bf16.mxu0 0
        %5850 = vmatpush2.bf16.xpose.msra.mxu0 0
        %5851 = vmatprep.subr.bf16.mxu0 0
        %5852 = vmatpush2.bf16.xpose.msra.mxu0 0
        %5853 = vmatprep.subr.bf16.mxu0 0
        %5854 = vmatpush2.bf16.xpose.msra.mxu0 0
        %5855 = vmatprep.subr.bf16.mxu0 0
        %5856 = vmatpush2.bf16.xpose.msra.mxu0 0
        %5857 = vmatprep.subr.bf16.mxu0 0
        %5858 = vmatpush2.bf16.xpose.msra.mxu0 0
        %5859 = vmatprep.subr.bf16.mxu0 0
        %5860 = vmatpush2.bf16.xpose.msra.mxu0 0
        %5861 = vmatprep.subr.bf16.mxu0 0
        %5862 = vmatpush2.bf16.xpose.msra.mxu0 0
        %5863 = vmatprep.mubr.bf16.mxu0 %v4298
        %5864 = vmatmul.mubr.bf16.gmra.mxu0 %v4297
        %v5865 = vpop.f32.mrf.mxu0
        %v5866 = vadd.f32 %v5801, %v5865
        %v5867 = vpop.f32.mrf.mxu0
        %v5868 = vpop.f32.mrf.mxu0
        %v5869 = vadd.f32 %v5804, %v5868
        %v5870 = vpop.f32.mrf.mxu0
        %5871 = vmatprep.mubr.bf16.mxu0 %v4474
        %5872 = vmatmul.mubr.bf16.gmra.mxu0 %v4473
        %v5873 = vpop.f32.mrf.mxu0
        %v5874 = vadd.f32 %v5809, %v5873
        %v5875 = vpop.f32.mrf.mxu0
        %v5876 = vpop.f32.mrf.mxu0
        %v5877 = vadd.f32 %v5812, %v5876
        %v5878 = vpop.f32.mrf.mxu0
        %5879 = vmatprep.mubr.bf16.mxu0 %v4650
        %5880 = vmatmul.mubr.bf16.gmra.mxu0 %v4649
        %v5881 = vpop.f32.mrf.mxu0
        %v5882 = vadd.f32 %v5817, %v5881
        %v5883 = vpop.f32.mrf.mxu0
        %v5884 = vpop.f32.mrf.mxu0
        %v5885 = vadd.f32 %v5820, %v5884
        %v5886 = vpop.f32.mrf.mxu0
        %5887 = vmatprep.mubr.bf16.mxu0 %v4826
        %5888 = vmatmul.mubr.bf16.gmra.mxu0 %v4825
        %v5889 = vpop.f32.mrf.mxu0
        %v5890 = vadd.f32 %v5825, %v5889
        %v5891 = vpop.f32.mrf.mxu0
        %v5892 = vpop.f32.mrf.mxu0
        %v5893 = vadd.f32 %v5828, %v5892
        %v5894 = vpop.f32.mrf.mxu0
        %5895 = vdwg.mxu0
        %5896 = vmatprep.subr.bf16.mxu0 0
        %5897 = vmatpush1.bf16.xpose.msra.mxu0 0
        %5898 = vmatprep.subr.bf16.mxu0 0
        %5899 = vmatpush1.bf16.xpose.msra.mxu0 0
        %5900 = vmatprep.subr.bf16.mxu0 0
        %5901 = vmatpush1.bf16.xpose.msra.mxu0 0
        %5902 = vmatprep.subr.bf16.mxu0 0
        %5903 = vmatpush1.bf16.xpose.msra.mxu0 0
        %5904 = vmatprep.subr.bf16.mxu0 0
        %5905 = vmatpush1.bf16.xpose.msra.mxu0 0
        %5906 = vmatprep.subr.bf16.mxu0 0
        %5907 = vmatpush1.bf16.xpose.msra.mxu0 0
        %5908 = vmatprep.subr.bf16.mxu0 0
        %5909 = vmatpush1.bf16.xpose.msra.mxu0 0
        %5910 = vmatprep.subr.bf16.mxu0 %v1300
        %5911 = vmatpush1.bf16.xpose.msra.mxu0 %v1299
        %5912 = vmatprep.subr.bf16.mxu0 0
        %5913 = vmatpush2.bf16.xpose.msra.mxu0 0
        %5914 = vmatprep.subr.bf16.mxu0 0
        %5915 = vmatpush2.bf16.xpose.msra.mxu0 0
        %5916 = vmatprep.subr.bf16.mxu0 0
        %5917 = vmatpush2.bf16.xpose.msra.mxu0 0
        %5918 = vmatprep.subr.bf16.mxu0 0
        %5919 = vmatpush2.bf16.xpose.msra.mxu0 0
        %5920 = vmatprep.subr.bf16.mxu0 0
        %5921 = vmatpush2.bf16.xpose.msra.mxu0 0
        %5922 = vmatprep.subr.bf16.mxu0 0
        %5923 = vmatpush2.bf16.xpose.msra.mxu0 0
        %5924 = vmatprep.subr.bf16.mxu0 0
        %5925 = vmatpush2.bf16.xpose.msra.mxu0 0
        %5926 = vmatprep.subr.bf16.mxu0 0
        %5927 = vmatpush2.bf16.xpose.msra.mxu0 0
        %5928 = vmatprep.mubr.bf16.mxu0 %v4300
        %5929 = vmatmul.mubr.bf16.gmra.mxu0 %v4299
        %v5930 = vpop.f32.mrf.mxu0
        %v5931 = vadd.f32 %v5866, %v5930
        %v5932 = vpop.f32.mrf.mxu0
        %v5933 = vpop.f32.mrf.mxu0
        %v5934 = vadd.f32 %v5869, %v5933
        %v5935 = vpop.f32.mrf.mxu0
        %5936 = vmatprep.mubr.bf16.mxu0 %v4476
        %5937 = vmatmul.mubr.bf16.gmra.mxu0 %v4475
        %v5938 = vpop.f32.mrf.mxu0
        %v5939 = vadd.f32 %v5874, %v5938
        %v5940 = vpop.f32.mrf.mxu0
        %v5941 = vpop.f32.mrf.mxu0
        %v5942 = vadd.f32 %v5877, %v5941
        %v5943 = vpop.f32.mrf.mxu0
        %5944 = vmatprep.mubr.bf16.mxu0 %v4652
        %5945 = vmatmul.mubr.bf16.gmra.mxu0 %v4651
        %v5946 = vpop.f32.mrf.mxu0
        %v5947 = vadd.f32 %v5882, %v5946
        %v5948 = vpop.f32.mrf.mxu0
        %v5949 = vpop.f32.mrf.mxu0
        %v5950 = vadd.f32 %v5885, %v5949
        %v5951 = vpop.f32.mrf.mxu0
        %5952 = vmatprep.mubr.bf16.mxu0 %v4828
        %5953 = vmatmul.mubr.bf16.gmra.mxu0 %v4827
        %v5954 = vpop.f32.mrf.mxu0
        %v5955 = vadd.f32 %v5890, %v5954
        %v5956 = vpop.f32.mrf.mxu0
        %v5957 = vpop.f32.mrf.mxu0
        %v5958 = vadd.f32 %v5893, %v5957
        %v5959 = vpop.f32.mrf.mxu0
        %5960 = vdwg.mxu0
        %5961 = vmatprep.subr.bf16.mxu0 0
        %5962 = vmatpush1.bf16.xpose.msra.mxu0 0
        %5963 = vmatprep.subr.bf16.mxu0 0
        %5964 = vmatpush1.bf16.xpose.msra.mxu0 0
        %5965 = vmatprep.subr.bf16.mxu0 0
        %5966 = vmatpush1.bf16.xpose.msra.mxu0 0
        %5967 = vmatprep.subr.bf16.mxu0 0
        %5968 = vmatpush1.bf16.xpose.msra.mxu0 0
        %5969 = vmatprep.subr.bf16.mxu0 0
        %5970 = vmatpush1.bf16.xpose.msra.mxu0 0
        %5971 = vmatprep.subr.bf16.mxu0 0
        %5972 = vmatpush1.bf16.xpose.msra.mxu0 0
        %5973 = vmatprep.subr.bf16.mxu0 0
        %5974 = vmatpush1.bf16.xpose.msra.mxu0 0
        %5975 = vmatprep.subr.bf16.mxu0 %v1302
        %5976 = vmatpush1.bf16.xpose.msra.mxu0 %v1301
        %5977 = vmatprep.subr.bf16.mxu0 0
        %5978 = vmatpush2.bf16.xpose.msra.mxu0 0
        %5979 = vmatprep.subr.bf16.mxu0 0
        %5980 = vmatpush2.bf16.xpose.msra.mxu0 0
        %5981 = vmatprep.subr.bf16.mxu0 0
        %5982 = vmatpush2.bf16.xpose.msra.mxu0 0
        %5983 = vmatprep.subr.bf16.mxu0 0
        %5984 = vmatpush2.bf16.xpose.msra.mxu0 0
        %5985 = vmatprep.subr.bf16.mxu0 0
        %5986 = vmatpush2.bf16.xpose.msra.mxu0 0
        %5987 = vmatprep.subr.bf16.mxu0 0
        %5988 = vmatpush2.bf16.xpose.msra.mxu0 0
        %5989 = vmatprep.subr.bf16.mxu0 0
        %5990 = vmatpush2.bf16.xpose.msra.mxu0 0
        %5991 = vmatprep.subr.bf16.mxu0 0
        %5992 = vmatpush2.bf16.xpose.msra.mxu0 0
        %5993 = vmatprep.mubr.bf16.mxu0 %v4302
        %5994 = vmatmul.mubr.bf16.gmra.mxu0 %v4301
        %v5995 = vpop.f32.mrf.mxu0
        %v5996 = vadd.f32 %v5931, %v5995
        %v5997 = vpop.f32.mrf.mxu0
        %v5998 = vpop.f32.mrf.mxu0
        %v5999 = vadd.f32 %v5934, %v5998
        %v6000 = vpop.f32.mrf.mxu0
        %6001 = vmatprep.mubr.bf16.mxu0 %v4478
        %6002 = vmatmul.mubr.bf16.gmra.mxu0 %v4477
        %v6003 = vpop.f32.mrf.mxu0
        %v6004 = vadd.f32 %v5939, %v6003
        %v6005 = vpop.f32.mrf.mxu0
        %v6006 = vpop.f32.mrf.mxu0
        %v6007 = vadd.f32 %v5942, %v6006
        %v6008 = vpop.f32.mrf.mxu0
        %6009 = vmatprep.mubr.bf16.mxu0 %v4654
        %6010 = vmatmul.mubr.bf16.gmra.mxu0 %v4653
        %v6011 = vpop.f32.mrf.mxu0
        %v6012 = vadd.f32 %v5947, %v6011
        %v6013 = vpop.f32.mrf.mxu0
        %v6014 = vpop.f32.mrf.mxu0
        %v6015 = vadd.f32 %v5950, %v6014
        %v6016 = vpop.f32.mrf.mxu0
        %6017 = vmatprep.mubr.bf16.mxu0 %v4830
        %6018 = vmatmul.mubr.bf16.gmra.mxu0 %v4829
        %v6019 = vpop.f32.mrf.mxu0
        %v6020 = vadd.f32 %v5955, %v6019
        %v6021 = vpop.f32.mrf.mxu0
        %v6022 = vpop.f32.mrf.mxu0
        %v6023 = vadd.f32 %v5958, %v6022
        %v6024 = vpop.f32.mrf.mxu0
        %6025 = vdwg.mxu0
        %6026 = vmatprep.subr.bf16.mxu0 0
        %6027 = vmatpush1.bf16.xpose.msra.mxu0 0
        %6028 = vmatprep.subr.bf16.mxu0 0
        %6029 = vmatpush1.bf16.xpose.msra.mxu0 0
        %6030 = vmatprep.subr.bf16.mxu0 0
        %6031 = vmatpush1.bf16.xpose.msra.mxu0 0
        %6032 = vmatprep.subr.bf16.mxu0 0
        %6033 = vmatpush1.bf16.xpose.msra.mxu0 0
        %6034 = vmatprep.subr.bf16.mxu0 0
        %6035 = vmatpush1.bf16.xpose.msra.mxu0 0
        %6036 = vmatprep.subr.bf16.mxu0 0
        %6037 = vmatpush1.bf16.xpose.msra.mxu0 0
        %6038 = vmatprep.subr.bf16.mxu0 0
        %6039 = vmatpush1.bf16.xpose.msra.mxu0 0
        %6040 = vmatprep.subr.bf16.mxu0 %v1304
        %6041 = vmatpush1.bf16.xpose.msra.mxu0 %v1303
        %6042 = vmatprep.subr.bf16.mxu0 0
        %6043 = vmatpush2.bf16.xpose.msra.mxu0 0
        %6044 = vmatprep.subr.bf16.mxu0 0
        %6045 = vmatpush2.bf16.xpose.msra.mxu0 0
        %6046 = vmatprep.subr.bf16.mxu0 0
        %6047 = vmatpush2.bf16.xpose.msra.mxu0 0
        %6048 = vmatprep.subr.bf16.mxu0 0
        %6049 = vmatpush2.bf16.xpose.msra.mxu0 0
        %6050 = vmatprep.subr.bf16.mxu0 0
        %6051 = vmatpush2.bf16.xpose.msra.mxu0 0
        %6052 = vmatprep.subr.bf16.mxu0 0
        %6053 = vmatpush2.bf16.xpose.msra.mxu0 0
        %6054 = vmatprep.subr.bf16.mxu0 0
        %6055 = vmatpush2.bf16.xpose.msra.mxu0 0
        %6056 = vmatprep.subr.bf16.mxu0 0
        %6057 = vmatpush2.bf16.xpose.msra.mxu0 0
        %6058 = vmatprep.mubr.bf16.mxu0 %v4304
        %6059 = vmatmul.mubr.bf16.gmra.mxu0 %v4303
        %v6060 = vpop.f32.mrf.mxu0
        %v6061 = vadd.f32 %v5996, %v6060
        %v6062 = vpop.f32.mrf.mxu0
        %v6063 = vpop.f32.mrf.mxu0
        %v6064 = vadd.f32 %v5999, %v6063
        %v6065 = vpop.f32.mrf.mxu0
        %6066 = vmatprep.mubr.bf16.mxu0 %v4480
        %6067 = vmatmul.mubr.bf16.gmra.mxu0 %v4479
        %v6068 = vpop.f32.mrf.mxu0
        %v6069 = vadd.f32 %v6004, %v6068
        %v6070 = vpop.f32.mrf.mxu0
        %v6071 = vpop.f32.mrf.mxu0
        %v6072 = vadd.f32 %v6007, %v6071
        %v6073 = vpop.f32.mrf.mxu0
        %6074 = vmatprep.mubr.bf16.mxu0 %v4656
        %6075 = vmatmul.mubr.bf16.gmra.mxu0 %v4655
        %v6076 = vpop.f32.mrf.mxu0
        %v6077 = vadd.f32 %v6012, %v6076
        %v6078 = vpop.f32.mrf.mxu0
        %v6079 = vpop.f32.mrf.mxu0
        %v6080 = vadd.f32 %v6015, %v6079
        %v6081 = vpop.f32.mrf.mxu0
        %6082 = vmatprep.mubr.bf16.mxu0 %v4832
        %6083 = vmatmul.mubr.bf16.gmra.mxu0 %v4831
        %v6084 = vpop.f32.mrf.mxu0
        %v6085 = vadd.f32 %v6020, %v6084
        %v6086 = vpop.f32.mrf.mxu0
        %v6087 = vpop.f32.mrf.mxu0
        %v6088 = vadd.f32 %v6023, %v6087
        %v6089 = vpop.f32.mrf.mxu0
        %6090 = vdwg.mxu0
        %6091 = vmatprep.subr.bf16.mxu0 0
        %6092 = vmatpush1.bf16.xpose.msra.mxu0 0
        %6093 = vmatprep.subr.bf16.mxu0 0
        %6094 = vmatpush1.bf16.xpose.msra.mxu0 0
        %6095 = vmatprep.subr.bf16.mxu0 0
        %6096 = vmatpush1.bf16.xpose.msra.mxu0 0
        %6097 = vmatprep.subr.bf16.mxu0 0
        %6098 = vmatpush1.bf16.xpose.msra.mxu0 0
        %6099 = vmatprep.subr.bf16.mxu0 0
        %6100 = vmatpush1.bf16.xpose.msra.mxu0 0
        %6101 = vmatprep.subr.bf16.mxu0 0
        %6102 = vmatpush1.bf16.xpose.msra.mxu0 0
        %6103 = vmatprep.subr.bf16.mxu0 0
        %6104 = vmatpush1.bf16.xpose.msra.mxu0 0
        %6105 = vmatprep.subr.bf16.mxu0 %v1306
        %6106 = vmatpush1.bf16.xpose.msra.mxu0 %v1305
        %6107 = vmatprep.subr.bf16.mxu0 0
        %6108 = vmatpush2.bf16.xpose.msra.mxu0 0
        %6109 = vmatprep.subr.bf16.mxu0 0
        %6110 = vmatpush2.bf16.xpose.msra.mxu0 0
        %6111 = vmatprep.subr.bf16.mxu0 0
        %6112 = vmatpush2.bf16.xpose.msra.mxu0 0
        %6113 = vmatprep.subr.bf16.mxu0 0
        %6114 = vmatpush2.bf16.xpose.msra.mxu0 0
        %6115 = vmatprep.subr.bf16.mxu0 0
        %6116 = vmatpush2.bf16.xpose.msra.mxu0 0
        %6117 = vmatprep.subr.bf16.mxu0 0
        %6118 = vmatpush2.bf16.xpose.msra.mxu0 0
        %6119 = vmatprep.subr.bf16.mxu0 0
        %6120 = vmatpush2.bf16.xpose.msra.mxu0 0
        %6121 = vmatprep.subr.bf16.mxu0 0
        %6122 = vmatpush2.bf16.xpose.msra.mxu0 0
        %6123 = vmatprep.mubr.bf16.mxu0 %v4306
        %6124 = vmatmul.mubr.bf16.gmra.mxu0 %v4305
        %v6125 = vpop.f32.mrf.mxu0
        %v6126 = vadd.f32 %v6061, %v6125
        %v6127 = vpop.f32.mrf.mxu0
        %v6128 = vpop.f32.mrf.mxu0
        %v6129 = vadd.f32 %v6064, %v6128
        %v6130 = vpop.f32.mrf.mxu0
        %6131 = vmatprep.mubr.bf16.mxu0 %v4482
        %6132 = vmatmul.mubr.bf16.gmra.mxu0 %v4481
        %v6133 = vpop.f32.mrf.mxu0
        %v6134 = vadd.f32 %v6069, %v6133
        %v6135 = vpop.f32.mrf.mxu0
        %v6136 = vpop.f32.mrf.mxu0
        %v6137 = vadd.f32 %v6072, %v6136
        %v6138 = vpop.f32.mrf.mxu0
        %6139 = vmatprep.mubr.bf16.mxu0 %v4658
        %6140 = vmatmul.mubr.bf16.gmra.mxu0 %v4657
        %v6141 = vpop.f32.mrf.mxu0
        %v6142 = vadd.f32 %v6077, %v6141
        %v6143 = vpop.f32.mrf.mxu0
        %v6144 = vpop.f32.mrf.mxu0
        %v6145 = vadd.f32 %v6080, %v6144
        %v6146 = vpop.f32.mrf.mxu0
        %6147 = vmatprep.mubr.bf16.mxu0 %v4834
        %6148 = vmatmul.mubr.bf16.gmra.mxu0 %v4833
        %v6149 = vpop.f32.mrf.mxu0
        %v6150 = vadd.f32 %v6085, %v6149
        %v6151 = vpop.f32.mrf.mxu0
        %v6152 = vpop.f32.mrf.mxu0
        %v6153 = vadd.f32 %v6088, %v6152
        %v6154 = vpop.f32.mrf.mxu0
        %6155 = vdwg.mxu0
        %6156 = vmatprep.subr.bf16.mxu0 0
        %6157 = vmatpush1.bf16.xpose.msra.mxu0 0
        %6158 = vmatprep.subr.bf16.mxu0 0
        %6159 = vmatpush1.bf16.xpose.msra.mxu0 0
        %6160 = vmatprep.subr.bf16.mxu0 0
        %6161 = vmatpush1.bf16.xpose.msra.mxu0 0
        %6162 = vmatprep.subr.bf16.mxu0 0
        %6163 = vmatpush1.bf16.xpose.msra.mxu0 0
        %6164 = vmatprep.subr.bf16.mxu0 0
        %6165 = vmatpush1.bf16.xpose.msra.mxu0 0
        %6166 = vmatprep.subr.bf16.mxu0 0
        %6167 = vmatpush1.bf16.xpose.msra.mxu0 0
        %6168 = vmatprep.subr.bf16.mxu0 0
        %6169 = vmatpush1.bf16.xpose.msra.mxu0 0
        %6170 = vmatprep.subr.bf16.mxu0 %v1308
        %6171 = vmatpush1.bf16.xpose.msra.mxu0 %v1307
        %6172 = vmatprep.subr.bf16.mxu0 0
        %6173 = vmatpush2.bf16.xpose.msra.mxu0 0
        %6174 = vmatprep.subr.bf16.mxu0 0
        %6175 = vmatpush2.bf16.xpose.msra.mxu0 0
        %6176 = vmatprep.subr.bf16.mxu0 0
        %6177 = vmatpush2.bf16.xpose.msra.mxu0 0
        %6178 = vmatprep.subr.bf16.mxu0 0
        %6179 = vmatpush2.bf16.xpose.msra.mxu0 0
        %6180 = vmatprep.subr.bf16.mxu0 0
        %6181 = vmatpush2.bf16.xpose.msra.mxu0 0
        %6182 = vmatprep.subr.bf16.mxu0 0
        %6183 = vmatpush2.bf16.xpose.msra.mxu0 0
        %6184 = vmatprep.subr.bf16.mxu0 0
        %6185 = vmatpush2.bf16.xpose.msra.mxu0 0
        %6186 = vmatprep.subr.bf16.mxu0 0
        %6187 = vmatpush2.bf16.xpose.msra.mxu0 0
        %6188 = vmatprep.mubr.bf16.mxu0 %v4308
        %6189 = vmatmul.mubr.bf16.gmra.mxu0 %v4307
        %v6190 = vpop.f32.mrf.mxu0
        %v6191 = vadd.f32 %v6126, %v6190
        %v6192 = vpop.f32.mrf.mxu0
        %v6193 = vpop.f32.mrf.mxu0
        %v6194 = vadd.f32 %v6129, %v6193
        %v6195 = vpop.f32.mrf.mxu0
        %6196 = vmatprep.mubr.bf16.mxu0 %v4484
        %6197 = vmatmul.mubr.bf16.gmra.mxu0 %v4483
        %v6198 = vpop.f32.mrf.mxu0
        %v6199 = vadd.f32 %v6134, %v6198
        %v6200 = vpop.f32.mrf.mxu0
        %v6201 = vpop.f32.mrf.mxu0
        %v6202 = vadd.f32 %v6137, %v6201
        %v6203 = vpop.f32.mrf.mxu0
        %6204 = vmatprep.mubr.bf16.mxu0 %v4660
        %6205 = vmatmul.mubr.bf16.gmra.mxu0 %v4659
        %v6206 = vpop.f32.mrf.mxu0
        %v6207 = vadd.f32 %v6142, %v6206
        %v6208 = vpop.f32.mrf.mxu0
        %v6209 = vpop.f32.mrf.mxu0
        %v6210 = vadd.f32 %v6145, %v6209
        %v6211 = vpop.f32.mrf.mxu0
        %6212 = vmatprep.mubr.bf16.mxu0 %v4836
        %6213 = vmatmul.mubr.bf16.gmra.mxu0 %v4835
        %v6214 = vpop.f32.mrf.mxu0
        %v6215 = vadd.f32 %v6150, %v6214
        %v6216 = vpop.f32.mrf.mxu0
        %v6217 = vpop.f32.mrf.mxu0
        %v6218 = vadd.f32 %v6153, %v6217
        %v6219 = vpop.f32.mrf.mxu0
        %6220 = vdwg.mxu0
        %6221 = vmatprep.subr.bf16.mxu0 0
        %6222 = vmatpush1.bf16.xpose.msra.mxu0 0
        %6223 = vmatprep.subr.bf16.mxu0 0
        %6224 = vmatpush1.bf16.xpose.msra.mxu0 0
        %6225 = vmatprep.subr.bf16.mxu0 0
        %6226 = vmatpush1.bf16.xpose.msra.mxu0 0
        %6227 = vmatprep.subr.bf16.mxu0 0
        %6228 = vmatpush1.bf16.xpose.msra.mxu0 0
        %6229 = vmatprep.subr.bf16.mxu0 0
        %6230 = vmatpush1.bf16.xpose.msra.mxu0 0
        %6231 = vmatprep.subr.bf16.mxu0 0
        %6232 = vmatpush1.bf16.xpose.msra.mxu0 0
        %6233 = vmatprep.subr.bf16.mxu0 0
        %6234 = vmatpush1.bf16.xpose.msra.mxu0 0
        %6235 = vmatprep.subr.bf16.mxu0 %v1310
        %6236 = vmatpush1.bf16.xpose.msra.mxu0 %v1309
        %6237 = vmatprep.subr.bf16.mxu0 0
        %6238 = vmatpush2.bf16.xpose.msra.mxu0 0
        %6239 = vmatprep.subr.bf16.mxu0 0
        %6240 = vmatpush2.bf16.xpose.msra.mxu0 0
        %6241 = vmatprep.subr.bf16.mxu0 0
        %6242 = vmatpush2.bf16.xpose.msra.mxu0 0
        %6243 = vmatprep.subr.bf16.mxu0 0
        %6244 = vmatpush2.bf16.xpose.msra.mxu0 0
        %6245 = vmatprep.subr.bf16.mxu0 0
        %6246 = vmatpush2.bf16.xpose.msra.mxu0 0
        %6247 = vmatprep.subr.bf16.mxu0 0
        %6248 = vmatpush2.bf16.xpose.msra.mxu0 0
        %6249 = vmatprep.subr.bf16.mxu0 0
        %6250 = vmatpush2.bf16.xpose.msra.mxu0 0
        %6251 = vmatprep.subr.bf16.mxu0 0
        %6252 = vmatpush2.bf16.xpose.msra.mxu0 0
        %6253 = vmatprep.mubr.bf16.mxu0 %v4310
        %6254 = vmatmul.mubr.bf16.gmra.mxu0 %v4309
        %v6255 = vpop.f32.mrf.mxu0
        %v6256 = vadd.f32 %v6191, %v6255
        %v6257 = vpop.f32.mrf.mxu0
        %v6258 = vpop.f32.mrf.mxu0
        %v6259 = vadd.f32 %v6194, %v6258
        %v6260 = vpop.f32.mrf.mxu0
        %6261 = vmatprep.mubr.bf16.mxu0 %v4486
        %6262 = vmatmul.mubr.bf16.gmra.mxu0 %v4485
        %v6263 = vpop.f32.mrf.mxu0
        %v6264 = vadd.f32 %v6199, %v6263
        %v6265 = vpop.f32.mrf.mxu0
        %v6266 = vpop.f32.mrf.mxu0
        %v6267 = vadd.f32 %v6202, %v6266
        %v6268 = vpop.f32.mrf.mxu0
        %6269 = vmatprep.mubr.bf16.mxu0 %v4662
        %6270 = vmatmul.mubr.bf16.gmra.mxu0 %v4661
        %v6271 = vpop.f32.mrf.mxu0
        %v6272 = vadd.f32 %v6207, %v6271
        %v6273 = vpop.f32.mrf.mxu0
        %v6274 = vpop.f32.mrf.mxu0
        %v6275 = vadd.f32 %v6210, %v6274
        %v6276 = vpop.f32.mrf.mxu0
        %6277 = vmatprep.mubr.bf16.mxu0 %v4838
        %6278 = vmatmul.mubr.bf16.gmra.mxu0 %v4837
        %v6279 = vpop.f32.mrf.mxu0
        %v6280 = vadd.f32 %v6215, %v6279
        %v6281 = vpop.f32.mrf.mxu0
        %v6282 = vpop.f32.mrf.mxu0
        %v6283 = vadd.f32 %v6218, %v6282
        %v6284 = vpop.f32.mrf.mxu0
        %6285 = vdwg.mxu0
        %6286 = vmatprep.subr.bf16.mxu0 0
        %6287 = vmatpush1.bf16.xpose.msra.mxu0 0
        %6288 = vmatprep.subr.bf16.mxu0 0
        %6289 = vmatpush1.bf16.xpose.msra.mxu0 0
        %6290 = vmatprep.subr.bf16.mxu0 0
        %6291 = vmatpush1.bf16.xpose.msra.mxu0 0
        %6292 = vmatprep.subr.bf16.mxu0 0
        %6293 = vmatpush1.bf16.xpose.msra.mxu0 0
        %6294 = vmatprep.subr.bf16.mxu0 0
        %6295 = vmatpush1.bf16.xpose.msra.mxu0 0
        %6296 = vmatprep.subr.bf16.mxu0 0
        %6297 = vmatpush1.bf16.xpose.msra.mxu0 0
        %6298 = vmatprep.subr.bf16.mxu0 0
        %6299 = vmatpush1.bf16.xpose.msra.mxu0 0
        %6300 = vmatprep.subr.bf16.mxu0 %v1312
        %6301 = vmatpush1.bf16.xpose.msra.mxu0 %v1311
        %6302 = vmatprep.subr.bf16.mxu0 0
        %6303 = vmatpush2.bf16.xpose.msra.mxu0 0
        %6304 = vmatprep.subr.bf16.mxu0 0
        %6305 = vmatpush2.bf16.xpose.msra.mxu0 0
        %6306 = vmatprep.subr.bf16.mxu0 0
        %6307 = vmatpush2.bf16.xpose.msra.mxu0 0
        %6308 = vmatprep.subr.bf16.mxu0 0
        %6309 = vmatpush2.bf16.xpose.msra.mxu0 0
        %6310 = vmatprep.subr.bf16.mxu0 0
        %6311 = vmatpush2.bf16.xpose.msra.mxu0 0
        %6312 = vmatprep.subr.bf16.mxu0 0
        %6313 = vmatpush2.bf16.xpose.msra.mxu0 0
        %6314 = vmatprep.subr.bf16.mxu0 0
        %6315 = vmatpush2.bf16.xpose.msra.mxu0 0
        %6316 = vmatprep.subr.bf16.mxu0 0
        %6317 = vmatpush2.bf16.xpose.msra.mxu0 0
        %6318 = vmatprep.mubr.bf16.mxu0 %v4312
        %6319 = vmatmul.mubr.bf16.gmra.mxu0 %v4311
        %v6320 = vpop.f32.mrf.mxu0
        %v6321 = vadd.f32 %v6256, %v6320
        %v6322 = vpop.f32.mrf.mxu0
        %v6323 = vpop.f32.mrf.mxu0
        %v6324 = vadd.f32 %v6259, %v6323
        %v6325 = vpop.f32.mrf.mxu0
        %6326 = vmatprep.mubr.bf16.mxu0 %v4488
        %6327 = vmatmul.mubr.bf16.gmra.mxu0 %v4487
        %v6328 = vpop.f32.mrf.mxu0
        %v6329 = vadd.f32 %v6264, %v6328
        %v6330 = vpop.f32.mrf.mxu0
        %v6331 = vpop.f32.mrf.mxu0
        %v6332 = vadd.f32 %v6267, %v6331
        %v6333 = vpop.f32.mrf.mxu0
        %6334 = vmatprep.mubr.bf16.mxu0 %v4664
        %6335 = vmatmul.mubr.bf16.gmra.mxu0 %v4663
        %v6336 = vpop.f32.mrf.mxu0
        %v6337 = vadd.f32 %v6272, %v6336
        %v6338 = vpop.f32.mrf.mxu0
        %v6339 = vpop.f32.mrf.mxu0
        %v6340 = vadd.f32 %v6275, %v6339
        %v6341 = vpop.f32.mrf.mxu0
        %6342 = vmatprep.mubr.bf16.mxu0 %v4840
        %6343 = vmatmul.mubr.bf16.gmra.mxu0 %v4839
        %v6344 = vpop.f32.mrf.mxu0
        %v6345 = vadd.f32 %v6280, %v6344
        %v6346 = vpop.f32.mrf.mxu0
        %v6347 = vpop.f32.mrf.mxu0
        %v6348 = vadd.f32 %v6283, %v6347
        %v6349 = vpop.f32.mrf.mxu0
        %6350 = vdwg.mxu0
        %6351 = vmatprep.subr.bf16.mxu0 0
        %6352 = vmatpush1.bf16.xpose.msra.mxu0 0
        %6353 = vmatprep.subr.bf16.mxu0 0
        %6354 = vmatpush1.bf16.xpose.msra.mxu0 0
        %6355 = vmatprep.subr.bf16.mxu0 0
        %6356 = vmatpush1.bf16.xpose.msra.mxu0 0
        %6357 = vmatprep.subr.bf16.mxu0 0
        %6358 = vmatpush1.bf16.xpose.msra.mxu0 0
        %6359 = vmatprep.subr.bf16.mxu0 0
        %6360 = vmatpush1.bf16.xpose.msra.mxu0 0
        %6361 = vmatprep.subr.bf16.mxu0 0
        %6362 = vmatpush1.bf16.xpose.msra.mxu0 0
        %6363 = vmatprep.subr.bf16.mxu0 0
        %6364 = vmatpush1.bf16.xpose.msra.mxu0 0
        %6365 = vmatprep.subr.bf16.mxu0 %v1314
        %6366 = vmatpush1.bf16.xpose.msra.mxu0 %v1313
        %6367 = vmatprep.subr.bf16.mxu0 0
        %6368 = vmatpush2.bf16.xpose.msra.mxu0 0
        %6369 = vmatprep.subr.bf16.mxu0 0
        %6370 = vmatpush2.bf16.xpose.msra.mxu0 0
        %6371 = vmatprep.subr.bf16.mxu0 0
        %6372 = vmatpush2.bf16.xpose.msra.mxu0 0
        %6373 = vmatprep.subr.bf16.mxu0 0
        %6374 = vmatpush2.bf16.xpose.msra.mxu0 0
        %6375 = vmatprep.subr.bf16.mxu0 0
        %6376 = vmatpush2.bf16.xpose.msra.mxu0 0
        %6377 = vmatprep.subr.bf16.mxu0 0
        %6378 = vmatpush2.bf16.xpose.msra.mxu0 0
        %6379 = vmatprep.subr.bf16.mxu0 0
        %6380 = vmatpush2.bf16.xpose.msra.mxu0 0
        %6381 = vmatprep.subr.bf16.mxu0 0
        %6382 = vmatpush2.bf16.xpose.msra.mxu0 0
        %6383 = vmatprep.mubr.bf16.mxu0 %v4314
        %6384 = vmatmul.mubr.bf16.gmra.mxu0 %v4313
        %v6385 = vpop.f32.mrf.mxu0
        %v6386 = vadd.f32 %v6321, %v6385
        %v6387 = vpop.f32.mrf.mxu0
        %v6388 = vpop.f32.mrf.mxu0
        %v6389 = vadd.f32 %v6324, %v6388
        %v6390 = vpop.f32.mrf.mxu0
        %6391 = vmatprep.mubr.bf16.mxu0 %v4490
        %6392 = vmatmul.mubr.bf16.gmra.mxu0 %v4489
        %v6393 = vpop.f32.mrf.mxu0
        %v6394 = vadd.f32 %v6329, %v6393
        %v6395 = vpop.f32.mrf.mxu0
        %v6396 = vpop.f32.mrf.mxu0
        %v6397 = vadd.f32 %v6332, %v6396
        %v6398 = vpop.f32.mrf.mxu0
        %6399 = vmatprep.mubr.bf16.mxu0 %v4666
        %6400 = vmatmul.mubr.bf16.gmra.mxu0 %v4665
        %v6401 = vpop.f32.mrf.mxu0
        %v6402 = vadd.f32 %v6337, %v6401
        %v6403 = vpop.f32.mrf.mxu0
        %v6404 = vpop.f32.mrf.mxu0
        %v6405 = vadd.f32 %v6340, %v6404
        %v6406 = vpop.f32.mrf.mxu0
        %6407 = vmatprep.mubr.bf16.mxu0 %v4842
        %6408 = vmatmul.mubr.bf16.gmra.mxu0 %v4841
        %v6409 = vpop.f32.mrf.mxu0
        %v6410 = vadd.f32 %v6345, %v6409
        %v6411 = vpop.f32.mrf.mxu0
        %v6412 = vpop.f32.mrf.mxu0
        %v6413 = vadd.f32 %v6348, %v6412
        %v6414 = vpop.f32.mrf.mxu0
        %6415 = vdwg.mxu0
        %6416 = vmatprep.subr.bf16.mxu0 0
        %6417 = vmatpush1.bf16.xpose.msra.mxu0 0
        %6418 = vmatprep.subr.bf16.mxu0 0
        %6419 = vmatpush1.bf16.xpose.msra.mxu0 0
        %6420 = vmatprep.subr.bf16.mxu0 0
        %6421 = vmatpush1.bf16.xpose.msra.mxu0 0
        %6422 = vmatprep.subr.bf16.mxu0 0
        %6423 = vmatpush1.bf16.xpose.msra.mxu0 0
        %6424 = vmatprep.subr.bf16.mxu0 0
        %6425 = vmatpush1.bf16.xpose.msra.mxu0 0
        %6426 = vmatprep.subr.bf16.mxu0 0
        %6427 = vmatpush1.bf16.xpose.msra.mxu0 0
        %6428 = vmatprep.subr.bf16.mxu0 0
        %6429 = vmatpush1.bf16.xpose.msra.mxu0 0
        %6430 = vmatprep.subr.bf16.mxu0 %v1316
        %6431 = vmatpush1.bf16.xpose.msra.mxu0 %v1315
        %6432 = vmatprep.subr.bf16.mxu0 0
        %6433 = vmatpush2.bf16.xpose.msra.mxu0 0
        %6434 = vmatprep.subr.bf16.mxu0 0
        %6435 = vmatpush2.bf16.xpose.msra.mxu0 0
        %6436 = vmatprep.subr.bf16.mxu0 0
        %6437 = vmatpush2.bf16.xpose.msra.mxu0 0
        %6438 = vmatprep.subr.bf16.mxu0 0
        %6439 = vmatpush2.bf16.xpose.msra.mxu0 0
        %6440 = vmatprep.subr.bf16.mxu0 0
        %6441 = vmatpush2.bf16.xpose.msra.mxu0 0
        %6442 = vmatprep.subr.bf16.mxu0 0
        %6443 = vmatpush2.bf16.xpose.msra.mxu0 0
        %6444 = vmatprep.subr.bf16.mxu0 0
        %6445 = vmatpush2.bf16.xpose.msra.mxu0 0
        %6446 = vmatprep.subr.bf16.mxu0 0
        %6447 = vmatpush2.bf16.xpose.msra.mxu0 0
        %6448 = vmatprep.mubr.bf16.mxu0 %v4316
        %6449 = vmatmul.mubr.bf16.gmra.mxu0 %v4315
        %v6450 = vpop.f32.mrf.mxu0
        %v6451 = vadd.f32 %v6386, %v6450
        %v6452 = vpop.f32.mrf.mxu0
        %v6453 = vpop.f32.mrf.mxu0
        %v6454 = vadd.f32 %v6389, %v6453
        %v6455 = vpop.f32.mrf.mxu0
        %6456 = vmatprep.mubr.bf16.mxu0 %v4492
        %6457 = vmatmul.mubr.bf16.gmra.mxu0 %v4491
        %v6458 = vpop.f32.mrf.mxu0
        %v6459 = vadd.f32 %v6394, %v6458
        %v6460 = vpop.f32.mrf.mxu0
        %v6461 = vpop.f32.mrf.mxu0
        %v6462 = vadd.f32 %v6397, %v6461
        %v6463 = vpop.f32.mrf.mxu0
        %6464 = vmatprep.mubr.bf16.mxu0 %v4668
        %6465 = vmatmul.mubr.bf16.gmra.mxu0 %v4667
        %v6466 = vpop.f32.mrf.mxu0
        %v6467 = vadd.f32 %v6402, %v6466
        %v6468 = vpop.f32.mrf.mxu0
        %v6469 = vpop.f32.mrf.mxu0
        %v6470 = vadd.f32 %v6405, %v6469
        %v6471 = vpop.f32.mrf.mxu0
        %6472 = vmatprep.mubr.bf16.mxu0 %v4844
        %6473 = vmatmul.mubr.bf16.gmra.mxu0 %v4843
        %v6474 = vpop.f32.mrf.mxu0
        %v6475 = vadd.f32 %v6410, %v6474
        %v6476 = vpop.f32.mrf.mxu0
        %v6477 = vpop.f32.mrf.mxu0
        %v6478 = vadd.f32 %v6413, %v6477
        %v6479 = vpop.f32.mrf.mxu0
        %6480 = vdwg.mxu0
        %6481 = vmatprep.subr.bf16.mxu0 0
        %6482 = vmatpush1.bf16.xpose.msra.mxu0 0
        %6483 = vmatprep.subr.bf16.mxu0 0
        %6484 = vmatpush1.bf16.xpose.msra.mxu0 0
        %6485 = vmatprep.subr.bf16.mxu0 0
        %6486 = vmatpush1.bf16.xpose.msra.mxu0 0
        %6487 = vmatprep.subr.bf16.mxu0 0
        %6488 = vmatpush1.bf16.xpose.msra.mxu0 0
        %6489 = vmatprep.subr.bf16.mxu0 0
        %6490 = vmatpush1.bf16.xpose.msra.mxu0 0
        %6491 = vmatprep.subr.bf16.mxu0 0
        %6492 = vmatpush1.bf16.xpose.msra.mxu0 0
        %6493 = vmatprep.subr.bf16.mxu0 0
        %6494 = vmatpush1.bf16.xpose.msra.mxu0 0
        %6495 = vmatprep.subr.bf16.mxu0 %v1318
        %6496 = vmatpush1.bf16.xpose.msra.mxu0 %v1317
        %6497 = vmatprep.subr.bf16.mxu0 0
        %6498 = vmatpush2.bf16.xpose.msra.mxu0 0
        %6499 = vmatprep.subr.bf16.mxu0 0
        %6500 = vmatpush2.bf16.xpose.msra.mxu0 0
        %6501 = vmatprep.subr.bf16.mxu0 0
        %6502 = vmatpush2.bf16.xpose.msra.mxu0 0
        %6503 = vmatprep.subr.bf16.mxu0 0
        %6504 = vmatpush2.bf16.xpose.msra.mxu0 0
        %6505 = vmatprep.subr.bf16.mxu0 0
        %6506 = vmatpush2.bf16.xpose.msra.mxu0 0
        %6507 = vmatprep.subr.bf16.mxu0 0
        %6508 = vmatpush2.bf16.xpose.msra.mxu0 0
        %6509 = vmatprep.subr.bf16.mxu0 0
        %6510 = vmatpush2.bf16.xpose.msra.mxu0 0
        %6511 = vmatprep.subr.bf16.mxu0 0
        %6512 = vmatpush2.bf16.xpose.msra.mxu0 0
        %6513 = vmatprep.mubr.bf16.mxu0 %v4318
        %6514 = vmatmul.mubr.bf16.gmra.mxu0 %v4317
        %v6515 = vpop.f32.mrf.mxu0
        %v6516 = vadd.f32 %v6451, %v6515
        %v6517 = vpop.f32.mrf.mxu0
        %v6518 = vpop.f32.mrf.mxu0
        %v6519 = vadd.f32 %v6454, %v6518
        %v6520 = vpop.f32.mrf.mxu0
        %6521 = vmatprep.mubr.bf16.mxu0 %v4494
        %6522 = vmatmul.mubr.bf16.gmra.mxu0 %v4493
        %v6523 = vpop.f32.mrf.mxu0
        %v6524 = vadd.f32 %v6459, %v6523
        %v6525 = vpop.f32.mrf.mxu0
        %v6526 = vpop.f32.mrf.mxu0
        %v6527 = vadd.f32 %v6462, %v6526
        %v6528 = vpop.f32.mrf.mxu0
        %6529 = vmatprep.mubr.bf16.mxu0 %v4670
        %6530 = vmatmul.mubr.bf16.gmra.mxu0 %v4669
        %v6531 = vpop.f32.mrf.mxu0
        %v6532 = vadd.f32 %v6467, %v6531
        %v6533 = vpop.f32.mrf.mxu0
        %v6534 = vpop.f32.mrf.mxu0
        %v6535 = vadd.f32 %v6470, %v6534
        %v6536 = vpop.f32.mrf.mxu0
        %6537 = vmatprep.mubr.bf16.mxu0 %v4846
        %6538 = vmatmul.mubr.bf16.gmra.mxu0 %v4845
        %v6539 = vpop.f32.mrf.mxu0
        %v6540 = vadd.f32 %v6475, %v6539
        %v6541 = vpop.f32.mrf.mxu0
        %v6542 = vpop.f32.mrf.mxu0
        %v6543 = vadd.f32 %v6478, %v6542
        %v6544 = vpop.f32.mrf.mxu0
        %6545 = vdwg.mxu0
        %6546 = vmatprep.subr.bf16.mxu0 0
        %6547 = vmatpush1.bf16.xpose.msra.mxu0 0
        %6548 = vmatprep.subr.bf16.mxu0 0
        %6549 = vmatpush1.bf16.xpose.msra.mxu0 0
        %6550 = vmatprep.subr.bf16.mxu0 0
        %6551 = vmatpush1.bf16.xpose.msra.mxu0 0
        %6552 = vmatprep.subr.bf16.mxu0 0
        %6553 = vmatpush1.bf16.xpose.msra.mxu0 0
        %6554 = vmatprep.subr.bf16.mxu0 0
        %6555 = vmatpush1.bf16.xpose.msra.mxu0 0
        %6556 = vmatprep.subr.bf16.mxu0 0
        %6557 = vmatpush1.bf16.xpose.msra.mxu0 0
        %6558 = vmatprep.subr.bf16.mxu0 0
        %6559 = vmatpush1.bf16.xpose.msra.mxu0 0
        %6560 = vmatprep.subr.bf16.mxu0 %v1320
        %6561 = vmatpush1.bf16.xpose.msra.mxu0 %v1319
        %6562 = vmatprep.subr.bf16.mxu0 0
        %6563 = vmatpush2.bf16.xpose.msra.mxu0 0
        %6564 = vmatprep.subr.bf16.mxu0 0
        %6565 = vmatpush2.bf16.xpose.msra.mxu0 0
        %6566 = vmatprep.subr.bf16.mxu0 0
        %6567 = vmatpush2.bf16.xpose.msra.mxu0 0
        %6568 = vmatprep.subr.bf16.mxu0 0
        %6569 = vmatpush2.bf16.xpose.msra.mxu0 0
        %6570 = vmatprep.subr.bf16.mxu0 0
        %6571 = vmatpush2.bf16.xpose.msra.mxu0 0
        %6572 = vmatprep.subr.bf16.mxu0 0
        %6573 = vmatpush2.bf16.xpose.msra.mxu0 0
        %6574 = vmatprep.subr.bf16.mxu0 0
        %6575 = vmatpush2.bf16.xpose.msra.mxu0 0
        %6576 = vmatprep.subr.bf16.mxu0 0
        %6577 = vmatpush2.bf16.xpose.msra.mxu0 0
        %6578 = vmatprep.mubr.bf16.mxu0 %v4320
        %6579 = vmatmul.mubr.bf16.gmra.mxu0 %v4319
        %v6580 = vpop.f32.mrf.mxu0
        %v6581 = vadd.f32 %v6516, %v6580
        %v6582 = vpop.f32.mrf.mxu0
        %v6583 = vpop.f32.mrf.mxu0
        %v6584 = vadd.f32 %v6519, %v6583
        %v6585 = vpop.f32.mrf.mxu0
        %6586 = vmatprep.mubr.bf16.mxu0 %v4496
        %6587 = vmatmul.mubr.bf16.gmra.mxu0 %v4495
        %v6588 = vpop.f32.mrf.mxu0
        %v6589 = vadd.f32 %v6524, %v6588
        %v6590 = vpop.f32.mrf.mxu0
        %v6591 = vpop.f32.mrf.mxu0
        %v6592 = vadd.f32 %v6527, %v6591
        %v6593 = vpop.f32.mrf.mxu0
        %6594 = vmatprep.mubr.bf16.mxu0 %v4672
        %6595 = vmatmul.mubr.bf16.gmra.mxu0 %v4671
        %v6596 = vpop.f32.mrf.mxu0
        %v6597 = vadd.f32 %v6532, %v6596
        %v6598 = vpop.f32.mrf.mxu0
        %v6599 = vpop.f32.mrf.mxu0
        %v6600 = vadd.f32 %v6535, %v6599
        %v6601 = vpop.f32.mrf.mxu0
        %6602 = vmatprep.mubr.bf16.mxu0 %v4848
        %6603 = vmatmul.mubr.bf16.gmra.mxu0 %v4847
        %v6604 = vpop.f32.mrf.mxu0
        %v6605 = vadd.f32 %v6540, %v6604
        %v6606 = vpop.f32.mrf.mxu0
        %v6607 = vpop.f32.mrf.mxu0
        %v6608 = vadd.f32 %v6543, %v6607
        %v6609 = vpop.f32.mrf.mxu0
        %6610 = vdwg.mxu0
        %6611 = vmatprep.subr.bf16.mxu0 0
        %6612 = vmatpush1.bf16.xpose.msra.mxu0 0
        %6613 = vmatprep.subr.bf16.mxu0 0
        %6614 = vmatpush1.bf16.xpose.msra.mxu0 0
        %6615 = vmatprep.subr.bf16.mxu0 0
        %6616 = vmatpush1.bf16.xpose.msra.mxu0 0
        %6617 = vmatprep.subr.bf16.mxu0 0
        %6618 = vmatpush1.bf16.xpose.msra.mxu0 0
        %6619 = vmatprep.subr.bf16.mxu0 0
        %6620 = vmatpush1.bf16.xpose.msra.mxu0 0
        %6621 = vmatprep.subr.bf16.mxu0 0
        %6622 = vmatpush1.bf16.xpose.msra.mxu0 0
        %6623 = vmatprep.subr.bf16.mxu0 0
        %6624 = vmatpush1.bf16.xpose.msra.mxu0 0
        %6625 = vmatprep.subr.bf16.mxu0 %v1322
        %6626 = vmatpush1.bf16.xpose.msra.mxu0 %v1321
        %6627 = vmatprep.subr.bf16.mxu0 0
        %6628 = vmatpush2.bf16.xpose.msra.mxu0 0
        %6629 = vmatprep.subr.bf16.mxu0 0
        %6630 = vmatpush2.bf16.xpose.msra.mxu0 0
        %6631 = vmatprep.subr.bf16.mxu0 0
        %6632 = vmatpush2.bf16.xpose.msra.mxu0 0
        %6633 = vmatprep.subr.bf16.mxu0 0
        %6634 = vmatpush2.bf16.xpose.msra.mxu0 0
        %6635 = vmatprep.subr.bf16.mxu0 0
        %6636 = vmatpush2.bf16.xpose.msra.mxu0 0
        %6637 = vmatprep.subr.bf16.mxu0 0
        %6638 = vmatpush2.bf16.xpose.msra.mxu0 0
        %6639 = vmatprep.subr.bf16.mxu0 0
        %6640 = vmatpush2.bf16.xpose.msra.mxu0 0
        %6641 = vmatprep.subr.bf16.mxu0 0
        %6642 = vmatpush2.bf16.xpose.msra.mxu0 0
        %6643 = vmatprep.mubr.bf16.mxu0 %v4322
        %6644 = vmatmul.mubr.bf16.gmra.mxu0 %v4321
        %v6645 = vpop.f32.mrf.mxu0
        %v6646 = vadd.f32 %v6581, %v6645
        %v6647 = vpop.f32.mrf.mxu0
        %v6648 = vpop.f32.mrf.mxu0
        %v6649 = vadd.f32 %v6584, %v6648
        %v6650 = vpop.f32.mrf.mxu0
        %6651 = vmatprep.mubr.bf16.mxu0 %v4498
        %6652 = vmatmul.mubr.bf16.gmra.mxu0 %v4497
        %v6653 = vpop.f32.mrf.mxu0
        %v6654 = vadd.f32 %v6589, %v6653
        %v6655 = vpop.f32.mrf.mxu0
        %v6656 = vpop.f32.mrf.mxu0
        %v6657 = vadd.f32 %v6592, %v6656
        %v6658 = vpop.f32.mrf.mxu0
        %6659 = vmatprep.mubr.bf16.mxu0 %v4674
        %6660 = vmatmul.mubr.bf16.gmra.mxu0 %v4673
        %v6661 = vpop.f32.mrf.mxu0
        %v6662 = vadd.f32 %v6597, %v6661
        %v6663 = vpop.f32.mrf.mxu0
        %v6664 = vpop.f32.mrf.mxu0
        %v6665 = vadd.f32 %v6600, %v6664
        %v6666 = vpop.f32.mrf.mxu0
        %6667 = vmatprep.mubr.bf16.mxu0 %v4850
        %6668 = vmatmul.mubr.bf16.gmra.mxu0 %v4849
        %v6669 = vpop.f32.mrf.mxu0
        %v6670 = vadd.f32 %v6605, %v6669
        %v6671 = vpop.f32.mrf.mxu0
        %v6672 = vpop.f32.mrf.mxu0
        %v6673 = vadd.f32 %v6608, %v6672
        %v6674 = vpop.f32.mrf.mxu0
        %6675 = vdwg.mxu0
        %6676 = vmatprep.subr.bf16.mxu0 0
        %6677 = vmatpush1.bf16.xpose.msra.mxu0 0
        %6678 = vmatprep.subr.bf16.mxu0 0
        %6679 = vmatpush1.bf16.xpose.msra.mxu0 0
        %6680 = vmatprep.subr.bf16.mxu0 0
        %6681 = vmatpush1.bf16.xpose.msra.mxu0 0
        %6682 = vmatprep.subr.bf16.mxu0 0
        %6683 = vmatpush1.bf16.xpose.msra.mxu0 0
        %6684 = vmatprep.subr.bf16.mxu0 0
        %6685 = vmatpush1.bf16.xpose.msra.mxu0 0
        %6686 = vmatprep.subr.bf16.mxu0 0
        %6687 = vmatpush1.bf16.xpose.msra.mxu0 0
        %6688 = vmatprep.subr.bf16.mxu0 0
        %6689 = vmatpush1.bf16.xpose.msra.mxu0 0
        %6690 = vmatprep.subr.bf16.mxu0 %v1324
        %6691 = vmatpush1.bf16.xpose.msra.mxu0 %v1323
        %6692 = vmatprep.subr.bf16.mxu0 0
        %6693 = vmatpush2.bf16.xpose.msra.mxu0 0
        %6694 = vmatprep.subr.bf16.mxu0 0
        %6695 = vmatpush2.bf16.xpose.msra.mxu0 0
        %6696 = vmatprep.subr.bf16.mxu0 0
        %6697 = vmatpush2.bf16.xpose.msra.mxu0 0
        %6698 = vmatprep.subr.bf16.mxu0 0
        %6699 = vmatpush2.bf16.xpose.msra.mxu0 0
        %6700 = vmatprep.subr.bf16.mxu0 0
        %6701 = vmatpush2.bf16.xpose.msra.mxu0 0
        %6702 = vmatprep.subr.bf16.mxu0 0
        %6703 = vmatpush2.bf16.xpose.msra.mxu0 0
        %6704 = vmatprep.subr.bf16.mxu0 0
        %6705 = vmatpush2.bf16.xpose.msra.mxu0 0
        %6706 = vmatprep.subr.bf16.mxu0 0
        %6707 = vmatpush2.bf16.xpose.msra.mxu0 0
        %6708 = vmatprep.mubr.bf16.mxu0 %v4324
        %6709 = vmatmul.mubr.bf16.gmra.mxu0 %v4323
        %v6710 = vpop.f32.mrf.mxu0
        %v6711 = vadd.f32 %v6646, %v6710
        %v6712 = vpop.f32.mrf.mxu0
        %v6713 = vpop.f32.mrf.mxu0
        %v6714 = vadd.f32 %v6649, %v6713
        %v6715 = vpop.f32.mrf.mxu0
        %6716 = vmatprep.mubr.bf16.mxu0 %v4500
        %6717 = vmatmul.mubr.bf16.gmra.mxu0 %v4499
        %v6718 = vpop.f32.mrf.mxu0
        %v6719 = vadd.f32 %v6654, %v6718
        %v6720 = vpop.f32.mrf.mxu0
        %v6721 = vpop.f32.mrf.mxu0
        %v6722 = vadd.f32 %v6657, %v6721
        %v6723 = vpop.f32.mrf.mxu0
        %6724 = vmatprep.mubr.bf16.mxu0 %v4676
        %6725 = vmatmul.mubr.bf16.gmra.mxu0 %v4675
        %v6726 = vpop.f32.mrf.mxu0
        %v6727 = vadd.f32 %v6662, %v6726
        %v6728 = vpop.f32.mrf.mxu0
        %v6729 = vpop.f32.mrf.mxu0
        %v6730 = vadd.f32 %v6665, %v6729
        %v6731 = vpop.f32.mrf.mxu0
        %6732 = vmatprep.mubr.bf16.mxu0 %v4852
        %6733 = vmatmul.mubr.bf16.gmra.mxu0 %v4851
        %v6734 = vpop.f32.mrf.mxu0
        %v6735 = vadd.f32 %v6670, %v6734
        %v6736 = vpop.f32.mrf.mxu0
        %v6737 = vpop.f32.mrf.mxu0
        %v6738 = vadd.f32 %v6673, %v6737
        %v6739 = vpop.f32.mrf.mxu0
        %6740 = vdwg.mxu0
        %6741 = vmatprep.subr.bf16.mxu0 0
        %6742 = vmatpush1.bf16.xpose.msra.mxu0 0
        %6743 = vmatprep.subr.bf16.mxu0 0
        %6744 = vmatpush1.bf16.xpose.msra.mxu0 0
        %6745 = vmatprep.subr.bf16.mxu0 0
        %6746 = vmatpush1.bf16.xpose.msra.mxu0 0
        %6747 = vmatprep.subr.bf16.mxu0 0
        %6748 = vmatpush1.bf16.xpose.msra.mxu0 0
        %6749 = vmatprep.subr.bf16.mxu0 0
        %6750 = vmatpush1.bf16.xpose.msra.mxu0 0
        %6751 = vmatprep.subr.bf16.mxu0 0
        %6752 = vmatpush1.bf16.xpose.msra.mxu0 0
        %6753 = vmatprep.subr.bf16.mxu0 0
        %6754 = vmatpush1.bf16.xpose.msra.mxu0 0
        %6755 = vmatprep.subr.bf16.mxu0 %v1326
        %6756 = vmatpush1.bf16.xpose.msra.mxu0 %v1325
        %6757 = vmatprep.subr.bf16.mxu0 0
        %6758 = vmatpush2.bf16.xpose.msra.mxu0 0
        %6759 = vmatprep.subr.bf16.mxu0 0
        %6760 = vmatpush2.bf16.xpose.msra.mxu0 0
        %6761 = vmatprep.subr.bf16.mxu0 0
        %6762 = vmatpush2.bf16.xpose.msra.mxu0 0
        %6763 = vmatprep.subr.bf16.mxu0 0
        %6764 = vmatpush2.bf16.xpose.msra.mxu0 0
        %6765 = vmatprep.subr.bf16.mxu0 0
        %6766 = vmatpush2.bf16.xpose.msra.mxu0 0
        %6767 = vmatprep.subr.bf16.mxu0 0
        %6768 = vmatpush2.bf16.xpose.msra.mxu0 0
        %6769 = vmatprep.subr.bf16.mxu0 0
        %6770 = vmatpush2.bf16.xpose.msra.mxu0 0
        %6771 = vmatprep.subr.bf16.mxu0 0
        %6772 = vmatpush2.bf16.xpose.msra.mxu0 0
        %6773 = vmatprep.mubr.bf16.mxu0 %v4326
        %6774 = vmatmul.mubr.bf16.gmra.mxu0 %v4325
        %v6775 = vpop.f32.mrf.mxu0
        %v6776 = vadd.f32 %v6711, %v6775
        %v6777 = vpop.f32.mrf.mxu0
        %v6778 = vpop.f32.mrf.mxu0
        %v6779 = vadd.f32 %v6714, %v6778
        %v6780 = vpop.f32.mrf.mxu0
        %6781 = vmatprep.mubr.bf16.mxu0 %v4502
        %6782 = vmatmul.mubr.bf16.gmra.mxu0 %v4501
        %v6783 = vpop.f32.mrf.mxu0
        %v6784 = vadd.f32 %v6719, %v6783
        %v6785 = vpop.f32.mrf.mxu0
        %v6786 = vpop.f32.mrf.mxu0
        %v6787 = vadd.f32 %v6722, %v6786
        %v6788 = vpop.f32.mrf.mxu0
        %6789 = vmatprep.mubr.bf16.mxu0 %v4678
        %6790 = vmatmul.mubr.bf16.gmra.mxu0 %v4677
        %v6791 = vpop.f32.mrf.mxu0
        %v6792 = vadd.f32 %v6727, %v6791
        %v6793 = vpop.f32.mrf.mxu0
        %v6794 = vpop.f32.mrf.mxu0
        %v6795 = vadd.f32 %v6730, %v6794
        %v6796 = vpop.f32.mrf.mxu0
        %6797 = vmatprep.mubr.bf16.mxu0 %v4854
        %6798 = vmatmul.mubr.bf16.gmra.mxu0 %v4853
        %v6799 = vpop.f32.mrf.mxu0
        %v6800 = vadd.f32 %v6735, %v6799
        %v6801 = vpop.f32.mrf.mxu0
        %v6802 = vpop.f32.mrf.mxu0
        %v6803 = vadd.f32 %v6738, %v6802
        %v6804 = vpop.f32.mrf.mxu0
        %6805 = vdwg.mxu0
        %6806 = vmatprep.subr.bf16.mxu0 0
        %6807 = vmatpush1.bf16.xpose.msra.mxu0 0
        %6808 = vmatprep.subr.bf16.mxu0 0
        %6809 = vmatpush1.bf16.xpose.msra.mxu0 0
        %6810 = vmatprep.subr.bf16.mxu0 0
        %6811 = vmatpush1.bf16.xpose.msra.mxu0 0
        %6812 = vmatprep.subr.bf16.mxu0 0
        %6813 = vmatpush1.bf16.xpose.msra.mxu0 0
        %6814 = vmatprep.subr.bf16.mxu0 0
        %6815 = vmatpush1.bf16.xpose.msra.mxu0 0
        %6816 = vmatprep.subr.bf16.mxu0 0
        %6817 = vmatpush1.bf16.xpose.msra.mxu0 0
        %6818 = vmatprep.subr.bf16.mxu0 0
        %6819 = vmatpush1.bf16.xpose.msra.mxu0 0
        %6820 = vmatprep.subr.bf16.mxu0 %v1328
        %6821 = vmatpush1.bf16.xpose.msra.mxu0 %v1327
        %6822 = vmatprep.subr.bf16.mxu0 0
        %6823 = vmatpush2.bf16.xpose.msra.mxu0 0
        %6824 = vmatprep.subr.bf16.mxu0 0
        %6825 = vmatpush2.bf16.xpose.msra.mxu0 0
        %6826 = vmatprep.subr.bf16.mxu0 0
        %6827 = vmatpush2.bf16.xpose.msra.mxu0 0
        %6828 = vmatprep.subr.bf16.mxu0 0
        %6829 = vmatpush2.bf16.xpose.msra.mxu0 0
        %6830 = vmatprep.subr.bf16.mxu0 0
        %6831 = vmatpush2.bf16.xpose.msra.mxu0 0
        %6832 = vmatprep.subr.bf16.mxu0 0
        %6833 = vmatpush2.bf16.xpose.msra.mxu0 0
        %6834 = vmatprep.subr.bf16.mxu0 0
        %6835 = vmatpush2.bf16.xpose.msra.mxu0 0
        %6836 = vmatprep.subr.bf16.mxu0 0
        %6837 = vmatpush2.bf16.xpose.msra.mxu0 0
        %6838 = vmatprep.mubr.bf16.mxu0 %v4328
        %6839 = vmatmul.mubr.bf16.gmra.mxu0 %v4327
        %v6840 = vpop.f32.mrf.mxu0
        %v6841 = vadd.f32 %v6776, %v6840
        %v6842 = vpop.f32.mrf.mxu0
        %v6843 = vpop.f32.mrf.mxu0
        %v6844 = vadd.f32 %v6779, %v6843
        %v6845 = vpop.f32.mrf.mxu0
        %6846 = vmatprep.mubr.bf16.mxu0 %v4504
        %6847 = vmatmul.mubr.bf16.gmra.mxu0 %v4503
        %v6848 = vpop.f32.mrf.mxu0
        %v6849 = vadd.f32 %v6784, %v6848
        %v6850 = vpop.f32.mrf.mxu0
        %v6851 = vpop.f32.mrf.mxu0
        %v6852 = vadd.f32 %v6787, %v6851
        %v6853 = vpop.f32.mrf.mxu0
        %6854 = vmatprep.mubr.bf16.mxu0 %v4680
        %6855 = vmatmul.mubr.bf16.gmra.mxu0 %v4679
        %v6856 = vpop.f32.mrf.mxu0
        %v6857 = vadd.f32 %v6792, %v6856
        %v6858 = vpop.f32.mrf.mxu0
        %v6859 = vpop.f32.mrf.mxu0
        %v6860 = vadd.f32 %v6795, %v6859
        %v6861 = vpop.f32.mrf.mxu0
        %6862 = vmatprep.mubr.bf16.mxu0 %v4856
        %6863 = vmatmul.mubr.bf16.gmra.mxu0 %v4855
        %v6864 = vpop.f32.mrf.mxu0
        %v6865 = vadd.f32 %v6800, %v6864
        %v6866 = vpop.f32.mrf.mxu0
        %v6867 = vpop.f32.mrf.mxu0
        %v6868 = vadd.f32 %v6803, %v6867
        %v6869 = vpop.f32.mrf.mxu0
        %6870 = vdwg.mxu0
        %6871 = vmatprep.subr.bf16.mxu0 0
        %6872 = vmatpush1.bf16.xpose.msra.mxu0 0
        %6873 = vmatprep.subr.bf16.mxu0 0
        %6874 = vmatpush1.bf16.xpose.msra.mxu0 0
        %6875 = vmatprep.subr.bf16.mxu0 0
        %6876 = vmatpush1.bf16.xpose.msra.mxu0 0
        %6877 = vmatprep.subr.bf16.mxu0 0
        %6878 = vmatpush1.bf16.xpose.msra.mxu0 0
        %6879 = vmatprep.subr.bf16.mxu0 0
        %6880 = vmatpush1.bf16.xpose.msra.mxu0 0
        %6881 = vmatprep.subr.bf16.mxu0 0
        %6882 = vmatpush1.bf16.xpose.msra.mxu0 0
        %6883 = vmatprep.subr.bf16.mxu0 0
        %6884 = vmatpush1.bf16.xpose.msra.mxu0 0
        %6885 = vmatprep.subr.bf16.mxu0 %v1330
        %6886 = vmatpush1.bf16.xpose.msra.mxu0 %v1329
        %6887 = vmatprep.subr.bf16.mxu0 0
        %6888 = vmatpush2.bf16.xpose.msra.mxu0 0
        %6889 = vmatprep.subr.bf16.mxu0 0
        %6890 = vmatpush2.bf16.xpose.msra.mxu0 0
        %6891 = vmatprep.subr.bf16.mxu0 0
        %6892 = vmatpush2.bf16.xpose.msra.mxu0 0
        %6893 = vmatprep.subr.bf16.mxu0 0
        %6894 = vmatpush2.bf16.xpose.msra.mxu0 0
        %6895 = vmatprep.subr.bf16.mxu0 0
        %6896 = vmatpush2.bf16.xpose.msra.mxu0 0
        %6897 = vmatprep.subr.bf16.mxu0 0
        %6898 = vmatpush2.bf16.xpose.msra.mxu0 0
        %6899 = vmatprep.subr.bf16.mxu0 0
        %6900 = vmatpush2.bf16.xpose.msra.mxu0 0
        %6901 = vmatprep.subr.bf16.mxu0 0
        %6902 = vmatpush2.bf16.xpose.msra.mxu0 0
        %6903 = vmatprep.mubr.bf16.mxu0 %v4330
        %6904 = vmatmul.mubr.bf16.gmra.mxu0 %v4329
        %v6905 = vpop.f32.mrf.mxu0
        %v6906 = vadd.f32 %v6841, %v6905
        %v6907 = vpop.f32.mrf.mxu0
        %v6908 = vpop.f32.mrf.mxu0
        %v6909 = vadd.f32 %v6844, %v6908
        %v6910 = vpop.f32.mrf.mxu0
        %6911 = vmatprep.mubr.bf16.mxu0 %v4506
        %6912 = vmatmul.mubr.bf16.gmra.mxu0 %v4505
        %v6913 = vpop.f32.mrf.mxu0
        %v6914 = vadd.f32 %v6849, %v6913
        %v6915 = vpop.f32.mrf.mxu0
        %v6916 = vpop.f32.mrf.mxu0
        %v6917 = vadd.f32 %v6852, %v6916
        %v6918 = vpop.f32.mrf.mxu0
        %6919 = vmatprep.mubr.bf16.mxu0 %v4682
        %6920 = vmatmul.mubr.bf16.gmra.mxu0 %v4681
        %v6921 = vpop.f32.mrf.mxu0
        %v6922 = vadd.f32 %v6857, %v6921
        %v6923 = vpop.f32.mrf.mxu0
        %v6924 = vpop.f32.mrf.mxu0
        %v6925 = vadd.f32 %v6860, %v6924
        %v6926 = vpop.f32.mrf.mxu0
        %6927 = vmatprep.mubr.bf16.mxu0 %v4858
        %6928 = vmatmul.mubr.bf16.gmra.mxu0 %v4857
        %v6929 = vpop.f32.mrf.mxu0
        %v6930 = vadd.f32 %v6865, %v6929
        %v6931 = vpop.f32.mrf.mxu0
        %v6932 = vpop.f32.mrf.mxu0
        %v6933 = vadd.f32 %v6868, %v6932
        %v6934 = vpop.f32.mrf.mxu0
        %6935 = vdwg.mxu0
        %6936 = vmatprep.subr.bf16.mxu0 0
        %6937 = vmatpush1.bf16.xpose.msra.mxu0 0
        %6938 = vmatprep.subr.bf16.mxu0 0
        %6939 = vmatpush1.bf16.xpose.msra.mxu0 0
        %6940 = vmatprep.subr.bf16.mxu0 0
        %6941 = vmatpush1.bf16.xpose.msra.mxu0 0
        %6942 = vmatprep.subr.bf16.mxu0 0
        %6943 = vmatpush1.bf16.xpose.msra.mxu0 0
        %6944 = vmatprep.subr.bf16.mxu0 0
        %6945 = vmatpush1.bf16.xpose.msra.mxu0 0
        %6946 = vmatprep.subr.bf16.mxu0 0
        %6947 = vmatpush1.bf16.xpose.msra.mxu0 0
        %6948 = vmatprep.subr.bf16.mxu0 0
        %6949 = vmatpush1.bf16.xpose.msra.mxu0 0
        %6950 = vmatprep.subr.bf16.mxu0 %v1332
        %6951 = vmatpush1.bf16.xpose.msra.mxu0 %v1331
        %6952 = vmatprep.subr.bf16.mxu0 0
        %6953 = vmatpush2.bf16.xpose.msra.mxu0 0
        %6954 = vmatprep.subr.bf16.mxu0 0
        %6955 = vmatpush2.bf16.xpose.msra.mxu0 0
        %6956 = vmatprep.subr.bf16.mxu0 0
        %6957 = vmatpush2.bf16.xpose.msra.mxu0 0
        %6958 = vmatprep.subr.bf16.mxu0 0
        %6959 = vmatpush2.bf16.xpose.msra.mxu0 0
        %6960 = vmatprep.subr.bf16.mxu0 0
        %6961 = vmatpush2.bf16.xpose.msra.mxu0 0
        %6962 = vmatprep.subr.bf16.mxu0 0
        %6963 = vmatpush2.bf16.xpose.msra.mxu0 0
        %6964 = vmatprep.subr.bf16.mxu0 0
        %6965 = vmatpush2.bf16.xpose.msra.mxu0 0
        %6966 = vmatprep.subr.bf16.mxu0 0
        %6967 = vmatpush2.bf16.xpose.msra.mxu0 0
        %6968 = vmatprep.mubr.bf16.mxu0 %v4332
        %6969 = vmatmul.mubr.bf16.gmra.mxu0 %v4331
        %v6970 = vpop.f32.mrf.mxu0
        %v6971 = vadd.f32 %v6906, %v6970
        %v6972 = vpop.f32.mrf.mxu0
        %v6973 = vpop.f32.mrf.mxu0
        %v6974 = vadd.f32 %v6909, %v6973
        %v6975 = vpop.f32.mrf.mxu0
        %6976 = vmatprep.mubr.bf16.mxu0 %v4508
        %6977 = vmatmul.mubr.bf16.gmra.mxu0 %v4507
        %v6978 = vpop.f32.mrf.mxu0
        %v6979 = vadd.f32 %v6914, %v6978
        %v6980 = vpop.f32.mrf.mxu0
        %v6981 = vpop.f32.mrf.mxu0
        %v6982 = vadd.f32 %v6917, %v6981
        %v6983 = vpop.f32.mrf.mxu0
        %6984 = vmatprep.mubr.bf16.mxu0 %v4684
        %6985 = vmatmul.mubr.bf16.gmra.mxu0 %v4683
        %v6986 = vpop.f32.mrf.mxu0
        %v6987 = vadd.f32 %v6922, %v6986
        %v6988 = vpop.f32.mrf.mxu0
        %v6989 = vpop.f32.mrf.mxu0
        %v6990 = vadd.f32 %v6925, %v6989
        %v6991 = vpop.f32.mrf.mxu0
        %6992 = vmatprep.mubr.bf16.mxu0 %v4860
        %6993 = vmatmul.mubr.bf16.gmra.mxu0 %v4859
        %v6994 = vpop.f32.mrf.mxu0
        %v6995 = vadd.f32 %v6930, %v6994
        %v6996 = vpop.f32.mrf.mxu0
        %v6997 = vpop.f32.mrf.mxu0
        %v6998 = vadd.f32 %v6933, %v6997
        %v6999 = vpop.f32.mrf.mxu0
        %7000 = vdwg.mxu0
        %7001 = vmatprep.subr.bf16.mxu0 0
        %7002 = vmatpush1.bf16.xpose.msra.mxu0 0
        %7003 = vmatprep.subr.bf16.mxu0 0
        %7004 = vmatpush1.bf16.xpose.msra.mxu0 0
        %7005 = vmatprep.subr.bf16.mxu0 0
        %7006 = vmatpush1.bf16.xpose.msra.mxu0 0
        %7007 = vmatprep.subr.bf16.mxu0 0
        %7008 = vmatpush1.bf16.xpose.msra.mxu0 0
        %7009 = vmatprep.subr.bf16.mxu0 0
        %7010 = vmatpush1.bf16.xpose.msra.mxu0 0
        %7011 = vmatprep.subr.bf16.mxu0 0
        %7012 = vmatpush1.bf16.xpose.msra.mxu0 0
        %7013 = vmatprep.subr.bf16.mxu0 0
        %7014 = vmatpush1.bf16.xpose.msra.mxu0 0
        %7015 = vmatprep.subr.bf16.mxu0 %v1334
        %7016 = vmatpush1.bf16.xpose.msra.mxu0 %v1333
        %7017 = vmatprep.subr.bf16.mxu0 0
        %7018 = vmatpush2.bf16.xpose.msra.mxu0 0
        %7019 = vmatprep.subr.bf16.mxu0 0
        %7020 = vmatpush2.bf16.xpose.msra.mxu0 0
        %7021 = vmatprep.subr.bf16.mxu0 0
        %7022 = vmatpush2.bf16.xpose.msra.mxu0 0
        %7023 = vmatprep.subr.bf16.mxu0 0
        %7024 = vmatpush2.bf16.xpose.msra.mxu0 0
        %7025 = vmatprep.subr.bf16.mxu0 0
        %7026 = vmatpush2.bf16.xpose.msra.mxu0 0
        %7027 = vmatprep.subr.bf16.mxu0 0
        %7028 = vmatpush2.bf16.xpose.msra.mxu0 0
        %7029 = vmatprep.subr.bf16.mxu0 0
        %7030 = vmatpush2.bf16.xpose.msra.mxu0 0
        %7031 = vmatprep.subr.bf16.mxu0 0
        %7032 = vmatpush2.bf16.xpose.msra.mxu0 0
        %7033 = vmatprep.mubr.bf16.mxu0 %v4334
        %7034 = vmatmul.mubr.bf16.gmra.mxu0 %v4333
        %v7035 = vpop.f32.mrf.mxu0
        %v7036 = vadd.f32 %v6971, %v7035
        %v7037 = vpop.f32.mrf.mxu0
        %v7038 = vpop.f32.mrf.mxu0
        %v7039 = vadd.f32 %v6974, %v7038
        %v7040 = vpop.f32.mrf.mxu0
        %7041 = vmatprep.mubr.bf16.mxu0 %v4510
        %7042 = vmatmul.mubr.bf16.gmra.mxu0 %v4509
        %v7043 = vpop.f32.mrf.mxu0
        %v7044 = vadd.f32 %v6979, %v7043
        %v7045 = vpop.f32.mrf.mxu0
        %v7046 = vpop.f32.mrf.mxu0
        %v7047 = vadd.f32 %v6982, %v7046
        %v7048 = vpop.f32.mrf.mxu0
        %7049 = vmatprep.mubr.bf16.mxu0 %v4686
        %7050 = vmatmul.mubr.bf16.gmra.mxu0 %v4685
        %v7051 = vpop.f32.mrf.mxu0
        %v7052 = vadd.f32 %v6987, %v7051
        %v7053 = vpop.f32.mrf.mxu0
        %v7054 = vpop.f32.mrf.mxu0
        %v7055 = vadd.f32 %v6990, %v7054
        %v7056 = vpop.f32.mrf.mxu0
        %7057 = vmatprep.mubr.bf16.mxu0 %v4862
        %7058 = vmatmul.mubr.bf16.gmra.mxu0 %v4861
        %v7059 = vpop.f32.mrf.mxu0
        %v7060 = vadd.f32 %v6995, %v7059
        %v7061 = vpop.f32.mrf.mxu0
        %v7062 = vpop.f32.mrf.mxu0
        %v7063 = vadd.f32 %v6998, %v7062
        %v7064 = vpop.f32.mrf.mxu0
        %7065 = vdwg.mxu0
        %7066 = vmatprep.subr.bf16.mxu0 0
        %7067 = vmatpush1.bf16.xpose.msra.mxu0 0
        %7068 = vmatprep.subr.bf16.mxu0 0
        %7069 = vmatpush1.bf16.xpose.msra.mxu0 0
        %7070 = vmatprep.subr.bf16.mxu0 0
        %7071 = vmatpush1.bf16.xpose.msra.mxu0 0
        %7072 = vmatprep.subr.bf16.mxu0 0
        %7073 = vmatpush1.bf16.xpose.msra.mxu0 0
        %7074 = vmatprep.subr.bf16.mxu0 0
        %7075 = vmatpush1.bf16.xpose.msra.mxu0 0
        %7076 = vmatprep.subr.bf16.mxu0 0
        %7077 = vmatpush1.bf16.xpose.msra.mxu0 0
        %7078 = vmatprep.subr.bf16.mxu0 0
        %7079 = vmatpush1.bf16.xpose.msra.mxu0 0
        %7080 = vmatprep.subr.bf16.mxu0 %v1336
        %7081 = vmatpush1.bf16.xpose.msra.mxu0 %v1335
        %7082 = vmatprep.subr.bf16.mxu0 0
        %7083 = vmatpush2.bf16.xpose.msra.mxu0 0
        %7084 = vmatprep.subr.bf16.mxu0 0
        %7085 = vmatpush2.bf16.xpose.msra.mxu0 0
        %7086 = vmatprep.subr.bf16.mxu0 0
        %7087 = vmatpush2.bf16.xpose.msra.mxu0 0
        %7088 = vmatprep.subr.bf16.mxu0 0
        %7089 = vmatpush2.bf16.xpose.msra.mxu0 0
        %7090 = vmatprep.subr.bf16.mxu0 0
        %7091 = vmatpush2.bf16.xpose.msra.mxu0 0
        %7092 = vmatprep.subr.bf16.mxu0 0
        %7093 = vmatpush2.bf16.xpose.msra.mxu0 0
        %7094 = vmatprep.subr.bf16.mxu0 0
        %7095 = vmatpush2.bf16.xpose.msra.mxu0 0
        %7096 = vmatprep.subr.bf16.mxu0 0
        %7097 = vmatpush2.bf16.xpose.msra.mxu0 0
        %7098 = vmatprep.mubr.bf16.mxu0 %v4336
        %7099 = vmatmul.mubr.bf16.gmra.mxu0 %v4335
        %v7100 = vpop.f32.mrf.mxu0
        %v7101 = vadd.f32 %v7036, %v7100
        %v7102 = vpop.f32.mrf.mxu0
        %v7103 = vpop.f32.mrf.mxu0
        %v7104 = vadd.f32 %v7039, %v7103
        %v7105 = vpop.f32.mrf.mxu0
        %7106 = vmatprep.mubr.bf16.mxu0 %v4512
        %7107 = vmatmul.mubr.bf16.gmra.mxu0 %v4511
        %v7108 = vpop.f32.mrf.mxu0
        %v7109 = vadd.f32 %v7044, %v7108
        %v7110 = vpop.f32.mrf.mxu0
        %v7111 = vpop.f32.mrf.mxu0
        %v7112 = vadd.f32 %v7047, %v7111
        %v7113 = vpop.f32.mrf.mxu0
        %7114 = vmatprep.mubr.bf16.mxu0 %v4688
        %7115 = vmatmul.mubr.bf16.gmra.mxu0 %v4687
        %v7116 = vpop.f32.mrf.mxu0
        %v7117 = vadd.f32 %v7052, %v7116
        %v7118 = vpop.f32.mrf.mxu0
        %v7119 = vpop.f32.mrf.mxu0
        %v7120 = vadd.f32 %v7055, %v7119
        %v7121 = vpop.f32.mrf.mxu0
        %7122 = vmatprep.mubr.bf16.mxu0 %v4864
        %7123 = vmatmul.mubr.bf16.gmra.mxu0 %v4863
        %v7124 = vpop.f32.mrf.mxu0
        %v7125 = vadd.f32 %v7060, %v7124
        %v7126 = vpop.f32.mrf.mxu0
        %v7127 = vpop.f32.mrf.mxu0
        %v7128 = vadd.f32 %v7063, %v7127
        %v7129 = vpop.f32.mrf.mxu0
        %7130 = vdwg.mxu0
        %7131 = vmatprep.subr.bf16.mxu0 0
        %7132 = vmatpush1.bf16.xpose.msra.mxu0 0
        %7133 = vmatprep.subr.bf16.mxu0 0
        %7134 = vmatpush1.bf16.xpose.msra.mxu0 0
        %7135 = vmatprep.subr.bf16.mxu0 0
        %7136 = vmatpush1.bf16.xpose.msra.mxu0 0
        %7137 = vmatprep.subr.bf16.mxu0 0
        %7138 = vmatpush1.bf16.xpose.msra.mxu0 0
        %7139 = vmatprep.subr.bf16.mxu0 0
        %7140 = vmatpush1.bf16.xpose.msra.mxu0 0
        %7141 = vmatprep.subr.bf16.mxu0 0
        %7142 = vmatpush1.bf16.xpose.msra.mxu0 0
        %7143 = vmatprep.subr.bf16.mxu0 0
        %7144 = vmatpush1.bf16.xpose.msra.mxu0 0
        %7145 = vmatprep.subr.bf16.mxu0 %v1338
        %7146 = vmatpush1.bf16.xpose.msra.mxu0 %v1337
        %7147 = vmatprep.subr.bf16.mxu0 0
        %7148 = vmatpush2.bf16.xpose.msra.mxu0 0
        %7149 = vmatprep.subr.bf16.mxu0 0
        %7150 = vmatpush2.bf16.xpose.msra.mxu0 0
        %7151 = vmatprep.subr.bf16.mxu0 0
        %7152 = vmatpush2.bf16.xpose.msra.mxu0 0
        %7153 = vmatprep.subr.bf16.mxu0 0
        %7154 = vmatpush2.bf16.xpose.msra.mxu0 0
        %7155 = vmatprep.subr.bf16.mxu0 0
        %7156 = vmatpush2.bf16.xpose.msra.mxu0 0
        %7157 = vmatprep.subr.bf16.mxu0 0
        %7158 = vmatpush2.bf16.xpose.msra.mxu0 0
        %7159 = vmatprep.subr.bf16.mxu0 0
        %7160 = vmatpush2.bf16.xpose.msra.mxu0 0
        %7161 = vmatprep.subr.bf16.mxu0 0
        %7162 = vmatpush2.bf16.xpose.msra.mxu0 0
        %7163 = vmatprep.mubr.bf16.mxu0 %v4338
        %7164 = vmatmul.mubr.bf16.gmra.mxu0 %v4337
        %v7165 = vpop.f32.mrf.mxu0
        %v7166 = vadd.f32 %v7101, %v7165
        %v7167 = vpop.f32.mrf.mxu0
        %v7168 = vpop.f32.mrf.mxu0
        %v7169 = vadd.f32 %v7104, %v7168
        %v7170 = vpop.f32.mrf.mxu0
        %7171 = vmatprep.mubr.bf16.mxu0 %v4514
        %7172 = vmatmul.mubr.bf16.gmra.mxu0 %v4513
        %v7173 = vpop.f32.mrf.mxu0
        %v7174 = vadd.f32 %v7109, %v7173
        %v7175 = vpop.f32.mrf.mxu0
        %v7176 = vpop.f32.mrf.mxu0
        %v7177 = vadd.f32 %v7112, %v7176
        %v7178 = vpop.f32.mrf.mxu0
        %7179 = vmatprep.mubr.bf16.mxu0 %v4690
        %7180 = vmatmul.mubr.bf16.gmra.mxu0 %v4689
        %v7181 = vpop.f32.mrf.mxu0
        %v7182 = vadd.f32 %v7117, %v7181
        %v7183 = vpop.f32.mrf.mxu0
        %v7184 = vpop.f32.mrf.mxu0
        %v7185 = vadd.f32 %v7120, %v7184
        %v7186 = vpop.f32.mrf.mxu0
        %7187 = vmatprep.mubr.bf16.mxu0 %v4866
        %7188 = vmatmul.mubr.bf16.gmra.mxu0 %v4865
        %v7189 = vpop.f32.mrf.mxu0
        %v7190 = vadd.f32 %v7125, %v7189
        %v7191 = vpop.f32.mrf.mxu0
        %v7192 = vpop.f32.mrf.mxu0
        %v7193 = vadd.f32 %v7128, %v7192
        %v7194 = vpop.f32.mrf.mxu0
        %7195 = vdwg.mxu0
        %7196 = vmatprep.subr.bf16.mxu0 0
        %7197 = vmatpush1.bf16.xpose.msra.mxu0 0
        %7198 = vmatprep.subr.bf16.mxu0 0
        %7199 = vmatpush1.bf16.xpose.msra.mxu0 0
        %7200 = vmatprep.subr.bf16.mxu0 0
        %7201 = vmatpush1.bf16.xpose.msra.mxu0 0
        %7202 = vmatprep.subr.bf16.mxu0 0
        %7203 = vmatpush1.bf16.xpose.msra.mxu0 0
        %7204 = vmatprep.subr.bf16.mxu0 0
        %7205 = vmatpush1.bf16.xpose.msra.mxu0 0
        %7206 = vmatprep.subr.bf16.mxu0 0
        %7207 = vmatpush1.bf16.xpose.msra.mxu0 0
        %7208 = vmatprep.subr.bf16.mxu0 0
        %7209 = vmatpush1.bf16.xpose.msra.mxu0 0
        %7210 = vmatprep.subr.bf16.mxu0 %v1340
        %7211 = vmatpush1.bf16.xpose.msra.mxu0 %v1339
        %7212 = vmatprep.subr.bf16.mxu0 0
        %7213 = vmatpush2.bf16.xpose.msra.mxu0 0
        %7214 = vmatprep.subr.bf16.mxu0 0
        %7215 = vmatpush2.bf16.xpose.msra.mxu0 0
        %7216 = vmatprep.subr.bf16.mxu0 0
        %7217 = vmatpush2.bf16.xpose.msra.mxu0 0
        %7218 = vmatprep.subr.bf16.mxu0 0
        %7219 = vmatpush2.bf16.xpose.msra.mxu0 0
        %7220 = vmatprep.subr.bf16.mxu0 0
        %7221 = vmatpush2.bf16.xpose.msra.mxu0 0
        %7222 = vmatprep.subr.bf16.mxu0 0
        %7223 = vmatpush2.bf16.xpose.msra.mxu0 0
        %7224 = vmatprep.subr.bf16.mxu0 0
        %7225 = vmatpush2.bf16.xpose.msra.mxu0 0
        %7226 = vmatprep.subr.bf16.mxu0 0
        %7227 = vmatpush2.bf16.xpose.msra.mxu0 0
        %7228 = vmatprep.mubr.bf16.mxu0 %v4340
        %7229 = vmatmul.mubr.bf16.gmra.mxu0 %v4339
        %v7230 = vpop.f32.mrf.mxu0
        %v7231 = vadd.f32 %v7166, %v7230
        %v7232 = vpop.f32.mrf.mxu0
        %v7233 = vpop.f32.mrf.mxu0
        %v7234 = vadd.f32 %v7169, %v7233
        %v7235 = vpop.f32.mrf.mxu0
        %7236 = vmatprep.mubr.bf16.mxu0 %v4516
        %7237 = vmatmul.mubr.bf16.gmra.mxu0 %v4515
        %v7238 = vpop.f32.mrf.mxu0
        %v7239 = vadd.f32 %v7174, %v7238
        %v7240 = vpop.f32.mrf.mxu0
        %v7241 = vpop.f32.mrf.mxu0
        %v7242 = vadd.f32 %v7177, %v7241
        %v7243 = vpop.f32.mrf.mxu0
        %7244 = vmatprep.mubr.bf16.mxu0 %v4692
        %7245 = vmatmul.mubr.bf16.gmra.mxu0 %v4691
        %v7246 = vpop.f32.mrf.mxu0
        %v7247 = vadd.f32 %v7182, %v7246
        %v7248 = vpop.f32.mrf.mxu0
        %v7249 = vpop.f32.mrf.mxu0
        %v7250 = vadd.f32 %v7185, %v7249
        %v7251 = vpop.f32.mrf.mxu0
        %7252 = vmatprep.mubr.bf16.mxu0 %v4868
        %7253 = vmatmul.mubr.bf16.gmra.mxu0 %v4867
        %v7254 = vpop.f32.mrf.mxu0
        %v7255 = vadd.f32 %v7190, %v7254
        %v7256 = vpop.f32.mrf.mxu0
        %v7257 = vpop.f32.mrf.mxu0
        %v7258 = vadd.f32 %v7193, %v7257
        %v7259 = vpop.f32.mrf.mxu0
        %7260 = vdwg.mxu0
        %7261 = vmatprep.subr.bf16.mxu0 0
        %7262 = vmatpush1.bf16.xpose.msra.mxu0 0
        %7263 = vmatprep.subr.bf16.mxu0 0
        %7264 = vmatpush1.bf16.xpose.msra.mxu0 0
        %7265 = vmatprep.subr.bf16.mxu0 0
        %7266 = vmatpush1.bf16.xpose.msra.mxu0 0
        %7267 = vmatprep.subr.bf16.mxu0 0
        %7268 = vmatpush1.bf16.xpose.msra.mxu0 0
        %7269 = vmatprep.subr.bf16.mxu0 0
        %7270 = vmatpush1.bf16.xpose.msra.mxu0 0
        %7271 = vmatprep.subr.bf16.mxu0 0
        %7272 = vmatpush1.bf16.xpose.msra.mxu0 0
        %7273 = vmatprep.subr.bf16.mxu0 0
        %7274 = vmatpush1.bf16.xpose.msra.mxu0 0
        %7275 = vmatprep.subr.bf16.mxu0 %v1342
        %7276 = vmatpush1.bf16.xpose.msra.mxu0 %v1341
        %7277 = vmatprep.subr.bf16.mxu0 0
        %7278 = vmatpush2.bf16.xpose.msra.mxu0 0
        %7279 = vmatprep.subr.bf16.mxu0 0
        %7280 = vmatpush2.bf16.xpose.msra.mxu0 0
        %7281 = vmatprep.subr.bf16.mxu0 0
        %7282 = vmatpush2.bf16.xpose.msra.mxu0 0
        %7283 = vmatprep.subr.bf16.mxu0 0
        %7284 = vmatpush2.bf16.xpose.msra.mxu0 0
        %7285 = vmatprep.subr.bf16.mxu0 0
        %7286 = vmatpush2.bf16.xpose.msra.mxu0 0
        %7287 = vmatprep.subr.bf16.mxu0 0
        %7288 = vmatpush2.bf16.xpose.msra.mxu0 0
        %7289 = vmatprep.subr.bf16.mxu0 0
        %7290 = vmatpush2.bf16.xpose.msra.mxu0 0
        %7291 = vmatprep.subr.bf16.mxu0 0
        %7292 = vmatpush2.bf16.xpose.msra.mxu0 0
        %7293 = vmatprep.mubr.bf16.mxu0 %v4342
        %7294 = vmatmul.mubr.bf16.gmra.mxu0 %v4341
        %v7295 = vpop.f32.mrf.mxu0
        %v7296 = vadd.f32 %v7231, %v7295
        %v7297 = vpop.f32.mrf.mxu0
        %v7298 = vpop.f32.mrf.mxu0
        %v7299 = vadd.f32 %v7234, %v7298
        %v7300 = vpop.f32.mrf.mxu0
        %7301 = vmatprep.mubr.bf16.mxu0 %v4518
        %7302 = vmatmul.mubr.bf16.gmra.mxu0 %v4517
        %v7303 = vpop.f32.mrf.mxu0
        %v7304 = vadd.f32 %v7239, %v7303
        %v7305 = vpop.f32.mrf.mxu0
        %v7306 = vpop.f32.mrf.mxu0
        %v7307 = vadd.f32 %v7242, %v7306
        %v7308 = vpop.f32.mrf.mxu0
        %7309 = vmatprep.mubr.bf16.mxu0 %v4694
        %7310 = vmatmul.mubr.bf16.gmra.mxu0 %v4693
        %v7311 = vpop.f32.mrf.mxu0
        %v7312 = vadd.f32 %v7247, %v7311
        %v7313 = vpop.f32.mrf.mxu0
        %v7314 = vpop.f32.mrf.mxu0
        %v7315 = vadd.f32 %v7250, %v7314
        %v7316 = vpop.f32.mrf.mxu0
        %7317 = vmatprep.mubr.bf16.mxu0 %v4870
        %7318 = vmatmul.mubr.bf16.gmra.mxu0 %v4869
        %v7319 = vpop.f32.mrf.mxu0
        %v7320 = vadd.f32 %v7255, %v7319
        %v7321 = vpop.f32.mrf.mxu0
        %v7322 = vpop.f32.mrf.mxu0
        %v7323 = vadd.f32 %v7258, %v7322
        %v7324 = vpop.f32.mrf.mxu0
        %7325 = vdwg.mxu0
        %7326 = vmatprep.subr.bf16.mxu0 0
        %7327 = vmatpush1.bf16.xpose.msra.mxu0 0
        %7328 = vmatprep.subr.bf16.mxu0 0
        %7329 = vmatpush1.bf16.xpose.msra.mxu0 0
        %7330 = vmatprep.subr.bf16.mxu0 0
        %7331 = vmatpush1.bf16.xpose.msra.mxu0 0
        %7332 = vmatprep.subr.bf16.mxu0 0
        %7333 = vmatpush1.bf16.xpose.msra.mxu0 0
        %7334 = vmatprep.subr.bf16.mxu0 0
        %7335 = vmatpush1.bf16.xpose.msra.mxu0 0
        %7336 = vmatprep.subr.bf16.mxu0 0
        %7337 = vmatpush1.bf16.xpose.msra.mxu0 0
        %7338 = vmatprep.subr.bf16.mxu0 0
        %7339 = vmatpush1.bf16.xpose.msra.mxu0 0
        %7340 = vmatprep.subr.bf16.mxu0 %v1344
        %7341 = vmatpush1.bf16.xpose.msra.mxu0 %v1343
        %7342 = vmatprep.subr.bf16.mxu0 0
        %7343 = vmatpush2.bf16.xpose.msra.mxu0 0
        %7344 = vmatprep.subr.bf16.mxu0 0
        %7345 = vmatpush2.bf16.xpose.msra.mxu0 0
        %7346 = vmatprep.subr.bf16.mxu0 0
        %7347 = vmatpush2.bf16.xpose.msra.mxu0 0
        %7348 = vmatprep.subr.bf16.mxu0 0
        %7349 = vmatpush2.bf16.xpose.msra.mxu0 0
        %7350 = vmatprep.subr.bf16.mxu0 0
        %7351 = vmatpush2.bf16.xpose.msra.mxu0 0
        %7352 = vmatprep.subr.bf16.mxu0 0
        %7353 = vmatpush2.bf16.xpose.msra.mxu0 0
        %7354 = vmatprep.subr.bf16.mxu0 0
        %7355 = vmatpush2.bf16.xpose.msra.mxu0 0
        %7356 = vmatprep.subr.bf16.mxu0 0
        %7357 = vmatpush2.bf16.xpose.msra.mxu0 0
        %7358 = vmatprep.mubr.bf16.mxu0 %v4344
        %7359 = vmatmul.mubr.bf16.gmra.mxu0 %v4343
        %v7360 = vpop.f32.mrf.mxu0
        %v7361 = vadd.f32 %v7296, %v7360
        %v7362 = vpop.f32.mrf.mxu0
        %v7363 = vpop.f32.mrf.mxu0
        %v7364 = vadd.f32 %v7299, %v7363
        %v7365 = vpop.f32.mrf.mxu0
        %7366 = vmatprep.mubr.bf16.mxu0 %v4520
        %7367 = vmatmul.mubr.bf16.gmra.mxu0 %v4519
        %v7368 = vpop.f32.mrf.mxu0
        %v7369 = vadd.f32 %v7304, %v7368
        %v7370 = vpop.f32.mrf.mxu0
        %v7371 = vpop.f32.mrf.mxu0
        %v7372 = vadd.f32 %v7307, %v7371
        %v7373 = vpop.f32.mrf.mxu0
        %7374 = vmatprep.mubr.bf16.mxu0 %v4696
        %7375 = vmatmul.mubr.bf16.gmra.mxu0 %v4695
        %v7376 = vpop.f32.mrf.mxu0
        %v7377 = vadd.f32 %v7312, %v7376
        %v7378 = vpop.f32.mrf.mxu0
        %v7379 = vpop.f32.mrf.mxu0
        %v7380 = vadd.f32 %v7315, %v7379
        %v7381 = vpop.f32.mrf.mxu0
        %7382 = vmatprep.mubr.bf16.mxu0 %v4872
        %7383 = vmatmul.mubr.bf16.gmra.mxu0 %v4871
        %v7384 = vpop.f32.mrf.mxu0
        %v7385 = vadd.f32 %v7320, %v7384
        %v7386 = vpop.f32.mrf.mxu0
        %v7387 = vpop.f32.mrf.mxu0
        %v7388 = vadd.f32 %v7323, %v7387
        %v7389 = vpop.f32.mrf.mxu0
        %7390 = vdwg.mxu0
        %7391 = vmatprep.subr.bf16.mxu0 0
        %7392 = vmatpush1.bf16.xpose.msra.mxu0 0
        %7393 = vmatprep.subr.bf16.mxu0 0
        %7394 = vmatpush1.bf16.xpose.msra.mxu0 0
        %7395 = vmatprep.subr.bf16.mxu0 0
        %7396 = vmatpush1.bf16.xpose.msra.mxu0 0
        %7397 = vmatprep.subr.bf16.mxu0 0
        %7398 = vmatpush1.bf16.xpose.msra.mxu0 0
        %7399 = vmatprep.subr.bf16.mxu0 0
        %7400 = vmatpush1.bf16.xpose.msra.mxu0 0
        %7401 = vmatprep.subr.bf16.mxu0 0
        %7402 = vmatpush1.bf16.xpose.msra.mxu0 0
        %7403 = vmatprep.subr.bf16.mxu0 0
        %7404 = vmatpush1.bf16.xpose.msra.mxu0 0
        %7405 = vmatprep.subr.bf16.mxu0 %v1346
        %7406 = vmatpush1.bf16.xpose.msra.mxu0 %v1345
        %7407 = vmatprep.subr.bf16.mxu0 0
        %7408 = vmatpush2.bf16.xpose.msra.mxu0 0
        %7409 = vmatprep.subr.bf16.mxu0 0
        %7410 = vmatpush2.bf16.xpose.msra.mxu0 0
        %7411 = vmatprep.subr.bf16.mxu0 0
        %7412 = vmatpush2.bf16.xpose.msra.mxu0 0
        %7413 = vmatprep.subr.bf16.mxu0 0
        %7414 = vmatpush2.bf16.xpose.msra.mxu0 0
        %7415 = vmatprep.subr.bf16.mxu0 0
        %7416 = vmatpush2.bf16.xpose.msra.mxu0 0
        %7417 = vmatprep.subr.bf16.mxu0 0
        %7418 = vmatpush2.bf16.xpose.msra.mxu0 0
        %7419 = vmatprep.subr.bf16.mxu0 0
        %7420 = vmatpush2.bf16.xpose.msra.mxu0 0
        %7421 = vmatprep.subr.bf16.mxu0 0
        %7422 = vmatpush2.bf16.xpose.msra.mxu0 0
        %7423 = vmatprep.mubr.bf16.mxu0 %v4346
        %7424 = vmatmul.mubr.bf16.gmra.mxu0 %v4345
        %v7425 = vpop.f32.mrf.mxu0
        %v7426 = vadd.f32 %v7361, %v7425
        %v7427 = vpop.f32.mrf.mxu0
        %v7428 = vpop.f32.mrf.mxu0
        %v7429 = vadd.f32 %v7364, %v7428
        %v7430 = vpop.f32.mrf.mxu0
        %7431 = vmatprep.mubr.bf16.mxu0 %v4522
        %7432 = vmatmul.mubr.bf16.gmra.mxu0 %v4521
        %v7433 = vpop.f32.mrf.mxu0
        %v7434 = vadd.f32 %v7369, %v7433
        %v7435 = vpop.f32.mrf.mxu0
        %v7436 = vpop.f32.mrf.mxu0
        %v7437 = vadd.f32 %v7372, %v7436
        %v7438 = vpop.f32.mrf.mxu0
        %7439 = vmatprep.mubr.bf16.mxu0 %v4698
        %7440 = vmatmul.mubr.bf16.gmra.mxu0 %v4697
        %v7441 = vpop.f32.mrf.mxu0
        %v7442 = vadd.f32 %v7377, %v7441
        %v7443 = vpop.f32.mrf.mxu0
        %v7444 = vpop.f32.mrf.mxu0
        %v7445 = vadd.f32 %v7380, %v7444
        %v7446 = vpop.f32.mrf.mxu0
        %7447 = vmatprep.mubr.bf16.mxu0 %v4874
        %7448 = vmatmul.mubr.bf16.gmra.mxu0 %v4873
        %v7449 = vpop.f32.mrf.mxu0
        %v7450 = vadd.f32 %v7385, %v7449
        %v7451 = vpop.f32.mrf.mxu0
        %v7452 = vpop.f32.mrf.mxu0
        %v7453 = vadd.f32 %v7388, %v7452
        %v7454 = vpop.f32.mrf.mxu0
        %7455 = vdwg.mxu0
        %7456 = vmatprep.subr.bf16.mxu0 0
        %7457 = vmatpush1.bf16.xpose.msra.mxu0 0
        %7458 = vmatprep.subr.bf16.mxu0 0
        %7459 = vmatpush1.bf16.xpose.msra.mxu0 0
        %7460 = vmatprep.subr.bf16.mxu0 0
        %7461 = vmatpush1.bf16.xpose.msra.mxu0 0
        %7462 = vmatprep.subr.bf16.mxu0 0
        %7463 = vmatpush1.bf16.xpose.msra.mxu0 0
        %7464 = vmatprep.subr.bf16.mxu0 0
        %7465 = vmatpush1.bf16.xpose.msra.mxu0 0
        %7466 = vmatprep.subr.bf16.mxu0 0
        %7467 = vmatpush1.bf16.xpose.msra.mxu0 0
        %7468 = vmatprep.subr.bf16.mxu0 0
        %7469 = vmatpush1.bf16.xpose.msra.mxu0 0
        %7470 = vmatprep.subr.bf16.mxu0 %v1348
        %7471 = vmatpush1.bf16.xpose.msra.mxu0 %v1347
        %7472 = vmatprep.subr.bf16.mxu0 0
        %7473 = vmatpush2.bf16.xpose.msra.mxu0 0
        %7474 = vmatprep.subr.bf16.mxu0 0
        %7475 = vmatpush2.bf16.xpose.msra.mxu0 0
        %7476 = vmatprep.subr.bf16.mxu0 0
        %7477 = vmatpush2.bf16.xpose.msra.mxu0 0
        %7478 = vmatprep.subr.bf16.mxu0 0
        %7479 = vmatpush2.bf16.xpose.msra.mxu0 0
        %7480 = vmatprep.subr.bf16.mxu0 0
        %7481 = vmatpush2.bf16.xpose.msra.mxu0 0
        %7482 = vmatprep.subr.bf16.mxu0 0
        %7483 = vmatpush2.bf16.xpose.msra.mxu0 0
        %7484 = vmatprep.subr.bf16.mxu0 0
        %7485 = vmatpush2.bf16.xpose.msra.mxu0 0
        %7486 = vmatprep.subr.bf16.mxu0 0
        %7487 = vmatpush2.bf16.xpose.msra.mxu0 0
        %7488 = vmatprep.mubr.bf16.mxu0 %v4348
        %7489 = vmatmul.mubr.bf16.gmra.mxu0 %v4347
        %v7490 = vpop.f32.mrf.mxu0
        %v7491 = vadd.f32 %v7426, %v7490
        %v7492 = vpop.f32.mrf.mxu0
        %v7493 = vpop.f32.mrf.mxu0
        %v7494 = vadd.f32 %v7429, %v7493
        %v7495 = vpop.f32.mrf.mxu0
        %7496 = vmatprep.mubr.bf16.mxu0 %v4524
        %7497 = vmatmul.mubr.bf16.gmra.mxu0 %v4523
        %v7498 = vpop.f32.mrf.mxu0
        %v7499 = vadd.f32 %v7434, %v7498
        %v7500 = vpop.f32.mrf.mxu0
        %v7501 = vpop.f32.mrf.mxu0
        %v7502 = vadd.f32 %v7437, %v7501
        %v7503 = vpop.f32.mrf.mxu0
        %7504 = vmatprep.mubr.bf16.mxu0 %v4700
        %7505 = vmatmul.mubr.bf16.gmra.mxu0 %v4699
        %v7506 = vpop.f32.mrf.mxu0
        %v7507 = vadd.f32 %v7442, %v7506
        %v7508 = vpop.f32.mrf.mxu0
        %v7509 = vpop.f32.mrf.mxu0
        %v7510 = vadd.f32 %v7445, %v7509
        %v7511 = vpop.f32.mrf.mxu0
        %7512 = vmatprep.mubr.bf16.mxu0 %v4876
        %7513 = vmatmul.mubr.bf16.gmra.mxu0 %v4875
        %v7514 = vpop.f32.mrf.mxu0
        %v7515 = vadd.f32 %v7450, %v7514
        %v7516 = vpop.f32.mrf.mxu0
        %v7517 = vpop.f32.mrf.mxu0
        %v7518 = vadd.f32 %v7453, %v7517
        %v7519 = vpop.f32.mrf.mxu0
        %7520 = vdwg.mxu0
        %7521 = vmatprep.subr.bf16.mxu0 0
        %7522 = vmatpush1.bf16.xpose.msra.mxu0 0
        %7523 = vmatprep.subr.bf16.mxu0 0
        %7524 = vmatpush1.bf16.xpose.msra.mxu0 0
        %7525 = vmatprep.subr.bf16.mxu0 0
        %7526 = vmatpush1.bf16.xpose.msra.mxu0 0
        %7527 = vmatprep.subr.bf16.mxu0 0
        %7528 = vmatpush1.bf16.xpose.msra.mxu0 0
        %7529 = vmatprep.subr.bf16.mxu0 0
        %7530 = vmatpush1.bf16.xpose.msra.mxu0 0
        %7531 = vmatprep.subr.bf16.mxu0 0
        %7532 = vmatpush1.bf16.xpose.msra.mxu0 0
        %7533 = vmatprep.subr.bf16.mxu0 0
        %7534 = vmatpush1.bf16.xpose.msra.mxu0 0
        %7535 = vmatprep.subr.bf16.mxu0 %v1350
        %7536 = vmatpush1.bf16.xpose.msra.mxu0 %v1349
        %7537 = vmatprep.subr.bf16.mxu0 0
        %7538 = vmatpush2.bf16.xpose.msra.mxu0 0
        %7539 = vmatprep.subr.bf16.mxu0 0
        %7540 = vmatpush2.bf16.xpose.msra.mxu0 0
        %7541 = vmatprep.subr.bf16.mxu0 0
        %7542 = vmatpush2.bf16.xpose.msra.mxu0 0
        %7543 = vmatprep.subr.bf16.mxu0 0
        %7544 = vmatpush2.bf16.xpose.msra.mxu0 0
        %7545 = vmatprep.subr.bf16.mxu0 0
        %7546 = vmatpush2.bf16.xpose.msra.mxu0 0
        %7547 = vmatprep.subr.bf16.mxu0 0
        %7548 = vmatpush2.bf16.xpose.msra.mxu0 0
        %7549 = vmatprep.subr.bf16.mxu0 0
        %7550 = vmatpush2.bf16.xpose.msra.mxu0 0
        %7551 = vmatprep.subr.bf16.mxu0 0
        %7552 = vmatpush2.bf16.xpose.msra.mxu0 0
        %7553 = vmatprep.mubr.bf16.mxu0 %v4350
        %7554 = vmatmul.mubr.bf16.gmra.mxu0 %v4349
        %v7555 = vpop.f32.mrf.mxu0
        %v7556 = vadd.f32 %v7491, %v7555
        %v7557 = vpop.f32.mrf.mxu0
        %v7558 = vpop.f32.mrf.mxu0
        %v7559 = vadd.f32 %v7494, %v7558
        %v7560 = vpop.f32.mrf.mxu0
        %7561 = vmatprep.mubr.bf16.mxu0 %v4526
        %7562 = vmatmul.mubr.bf16.gmra.mxu0 %v4525
        %v7563 = vpop.f32.mrf.mxu0
        %v7564 = vadd.f32 %v7499, %v7563
        %v7565 = vpop.f32.mrf.mxu0
        %v7566 = vpop.f32.mrf.mxu0
        %v7567 = vadd.f32 %v7502, %v7566
        %v7568 = vpop.f32.mrf.mxu0
        %7569 = vmatprep.mubr.bf16.mxu0 %v4702
        %7570 = vmatmul.mubr.bf16.gmra.mxu0 %v4701
        %v7571 = vpop.f32.mrf.mxu0
        %v7572 = vadd.f32 %v7507, %v7571
        %v7573 = vpop.f32.mrf.mxu0
        %v7574 = vpop.f32.mrf.mxu0
        %v7575 = vadd.f32 %v7510, %v7574
        %v7576 = vpop.f32.mrf.mxu0
        %7577 = vmatprep.mubr.bf16.mxu0 %v4878
        %7578 = vmatmul.mubr.bf16.gmra.mxu0 %v4877
        %v7579 = vpop.f32.mrf.mxu0
        %v7580 = vadd.f32 %v7515, %v7579
        %v7581 = vpop.f32.mrf.mxu0
        %v7582 = vpop.f32.mrf.mxu0
        %v7583 = vadd.f32 %v7518, %v7582
        %v7584 = vpop.f32.mrf.mxu0
        %7585 = vdwg.mxu0
        %7586 = vmatprep.subr.bf16.mxu0 0
        %7587 = vmatpush1.bf16.xpose.msra.mxu0 0
        %7588 = vmatprep.subr.bf16.mxu0 0
        %7589 = vmatpush1.bf16.xpose.msra.mxu0 0
        %7590 = vmatprep.subr.bf16.mxu0 0
        %7591 = vmatpush1.bf16.xpose.msra.mxu0 0
        %7592 = vmatprep.subr.bf16.mxu0 0
        %7593 = vmatpush1.bf16.xpose.msra.mxu0 0
        %7594 = vmatprep.subr.bf16.mxu0 0
        %7595 = vmatpush1.bf16.xpose.msra.mxu0 0
        %7596 = vmatprep.subr.bf16.mxu0 0
        %7597 = vmatpush1.bf16.xpose.msra.mxu0 0
        %7598 = vmatprep.subr.bf16.mxu0 0
        %7599 = vmatpush1.bf16.xpose.msra.mxu0 0
        %7600 = vmatprep.subr.bf16.mxu0 %v1352
        %7601 = vmatpush1.bf16.xpose.msra.mxu0 %v1351
        %7602 = vmatprep.subr.bf16.mxu0 0
        %7603 = vmatpush2.bf16.xpose.msra.mxu0 0
        %7604 = vmatprep.subr.bf16.mxu0 0
        %7605 = vmatpush2.bf16.xpose.msra.mxu0 0
        %7606 = vmatprep.subr.bf16.mxu0 0
        %7607 = vmatpush2.bf16.xpose.msra.mxu0 0
        %7608 = vmatprep.subr.bf16.mxu0 0
        %7609 = vmatpush2.bf16.xpose.msra.mxu0 0
        %7610 = vmatprep.subr.bf16.mxu0 0
        %7611 = vmatpush2.bf16.xpose.msra.mxu0 0
        %7612 = vmatprep.subr.bf16.mxu0 0
        %7613 = vmatpush2.bf16.xpose.msra.mxu0 0
        %7614 = vmatprep.subr.bf16.mxu0 0
        %7615 = vmatpush2.bf16.xpose.msra.mxu0 0
        %7616 = vmatprep.subr.bf16.mxu0 0
        %7617 = vmatpush2.bf16.xpose.msra.mxu0 0
        %7618 = vmatprep.mubr.bf16.mxu0 %v4352
        %7619 = vmatmul.mubr.bf16.gmra.mxu0 %v4351
        %v7620 = vpop.f32.mrf.mxu0
        %v7621 = vadd.f32 %v7556, %v7620
        %v7622 = vpop.f32.mrf.mxu0
        %v7623 = vpop.f32.mrf.mxu0
        %v7624 = vadd.f32 %v7559, %v7623
        %v7625 = vpop.f32.mrf.mxu0
        %7626 = vmatprep.mubr.bf16.mxu0 %v4528
        %7627 = vmatmul.mubr.bf16.gmra.mxu0 %v4527
        %v7628 = vpop.f32.mrf.mxu0
        %v7629 = vadd.f32 %v7564, %v7628
        %v7630 = vpop.f32.mrf.mxu0
        %v7631 = vpop.f32.mrf.mxu0
        %v7632 = vadd.f32 %v7567, %v7631
        %v7633 = vpop.f32.mrf.mxu0
        %7634 = vmatprep.mubr.bf16.mxu0 %v4704
        %7635 = vmatmul.mubr.bf16.gmra.mxu0 %v4703
        %v7636 = vpop.f32.mrf.mxu0
        %v7637 = vadd.f32 %v7572, %v7636
        %v7638 = vpop.f32.mrf.mxu0
        %v7639 = vpop.f32.mrf.mxu0
        %v7640 = vadd.f32 %v7575, %v7639
        %v7641 = vpop.f32.mrf.mxu0
        %7642 = vmatprep.mubr.bf16.mxu0 %v4880
        %7643 = vmatmul.mubr.bf16.gmra.mxu0 %v4879
        %v7644 = vpop.f32.mrf.mxu0
        %v7645 = vadd.f32 %v7580, %v7644
        %v7646 = vpop.f32.mrf.mxu0
        %v7647 = vpop.f32.mrf.mxu0
        %v7648 = vadd.f32 %v7583, %v7647
        %v7649 = vpop.f32.mrf.mxu0
        %7650 = vdwg.mxu0
        %7651 = vmatprep.subr.bf16.mxu0 0
        %7652 = vmatpush1.bf16.xpose.msra.mxu0 0
        %7653 = vmatprep.subr.bf16.mxu0 0
        %7654 = vmatpush1.bf16.xpose.msra.mxu0 0
        %7655 = vmatprep.subr.bf16.mxu0 0
        %7656 = vmatpush1.bf16.xpose.msra.mxu0 0
        %7657 = vmatprep.subr.bf16.mxu0 0
        %7658 = vmatpush1.bf16.xpose.msra.mxu0 0
        %7659 = vmatprep.subr.bf16.mxu0 0
        %7660 = vmatpush1.bf16.xpose.msra.mxu0 0
        %7661 = vmatprep.subr.bf16.mxu0 0
        %7662 = vmatpush1.bf16.xpose.msra.mxu0 0
        %7663 = vmatprep.subr.bf16.mxu0 0
        %7664 = vmatpush1.bf16.xpose.msra.mxu0 0
        %7665 = vmatprep.subr.bf16.mxu0 %v1354
        %7666 = vmatpush1.bf16.xpose.msra.mxu0 %v1353
        %7667 = vmatprep.subr.bf16.mxu0 0
        %7668 = vmatpush2.bf16.xpose.msra.mxu0 0
        %7669 = vmatprep.subr.bf16.mxu0 0
        %7670 = vmatpush2.bf16.xpose.msra.mxu0 0
        %7671 = vmatprep.subr.bf16.mxu0 0
        %7672 = vmatpush2.bf16.xpose.msra.mxu0 0
        %7673 = vmatprep.subr.bf16.mxu0 0
        %7674 = vmatpush2.bf16.xpose.msra.mxu0 0
        %7675 = vmatprep.subr.bf16.mxu0 0
        %7676 = vmatpush2.bf16.xpose.msra.mxu0 0
        %7677 = vmatprep.subr.bf16.mxu0 0
        %7678 = vmatpush2.bf16.xpose.msra.mxu0 0
        %7679 = vmatprep.subr.bf16.mxu0 0
        %7680 = vmatpush2.bf16.xpose.msra.mxu0 0
        %7681 = vmatprep.subr.bf16.mxu0 0
        %7682 = vmatpush2.bf16.xpose.msra.mxu0 0
        %7683 = vmatprep.mubr.bf16.mxu0 %v4354
        %7684 = vmatmul.mubr.bf16.gmra.mxu0 %v4353
        %v7685 = vpop.f32.mrf.mxu0
        %v7686 = vadd.f32 %v7621, %v7685
        %v7687 = vpop.f32.mrf.mxu0
        %v7688 = vpop.f32.mrf.mxu0
        %v7689 = vadd.f32 %v7624, %v7688
        %v7690 = vpop.f32.mrf.mxu0
        %7691 = vmatprep.mubr.bf16.mxu0 %v4530
        %7692 = vmatmul.mubr.bf16.gmra.mxu0 %v4529
        %v7693 = vpop.f32.mrf.mxu0
        %v7694 = vadd.f32 %v7629, %v7693
        %v7695 = vpop.f32.mrf.mxu0
        %v7696 = vpop.f32.mrf.mxu0
        %v7697 = vadd.f32 %v7632, %v7696
        %v7698 = vpop.f32.mrf.mxu0
        %7699 = vmatprep.mubr.bf16.mxu0 %v4706
        %7700 = vmatmul.mubr.bf16.gmra.mxu0 %v4705
        %v7701 = vpop.f32.mrf.mxu0
        %v7702 = vadd.f32 %v7637, %v7701
        %v7703 = vpop.f32.mrf.mxu0
        %v7704 = vpop.f32.mrf.mxu0
        %v7705 = vadd.f32 %v7640, %v7704
        %v7706 = vpop.f32.mrf.mxu0
        %7707 = vmatprep.mubr.bf16.mxu0 %v4882
        %7708 = vmatmul.mubr.bf16.gmra.mxu0 %v4881
        %v7709 = vpop.f32.mrf.mxu0
        %v7710 = vadd.f32 %v7645, %v7709
        %v7711 = vpop.f32.mrf.mxu0
        %v7712 = vpop.f32.mrf.mxu0
        %v7713 = vadd.f32 %v7648, %v7712
        %v7714 = vpop.f32.mrf.mxu0
        %7715 = vdwg.mxu0
        %7716 = vmatprep.subr.bf16.mxu0 0
        %7717 = vmatpush1.bf16.xpose.msra.mxu0 0
        %7718 = vmatprep.subr.bf16.mxu0 0
        %7719 = vmatpush1.bf16.xpose.msra.mxu0 0
        %7720 = vmatprep.subr.bf16.mxu0 0
        %7721 = vmatpush1.bf16.xpose.msra.mxu0 0
        %7722 = vmatprep.subr.bf16.mxu0 0
        %7723 = vmatpush1.bf16.xpose.msra.mxu0 0
        %7724 = vmatprep.subr.bf16.mxu0 0
        %7725 = vmatpush1.bf16.xpose.msra.mxu0 0
        %7726 = vmatprep.subr.bf16.mxu0 0
        %7727 = vmatpush1.bf16.xpose.msra.mxu0 0
        %7728 = vmatprep.subr.bf16.mxu0 0
        %7729 = vmatpush1.bf16.xpose.msra.mxu0 0
        %7730 = vmatprep.subr.bf16.mxu0 %v1356
        %7731 = vmatpush1.bf16.xpose.msra.mxu0 %v1355
        %7732 = vmatprep.subr.bf16.mxu0 0
        %7733 = vmatpush2.bf16.xpose.msra.mxu0 0
        %7734 = vmatprep.subr.bf16.mxu0 0
        %7735 = vmatpush2.bf16.xpose.msra.mxu0 0
        %7736 = vmatprep.subr.bf16.mxu0 0
        %7737 = vmatpush2.bf16.xpose.msra.mxu0 0
        %7738 = vmatprep.subr.bf16.mxu0 0
        %7739 = vmatpush2.bf16.xpose.msra.mxu0 0
        %7740 = vmatprep.subr.bf16.mxu0 0
        %7741 = vmatpush2.bf16.xpose.msra.mxu0 0
        %7742 = vmatprep.subr.bf16.mxu0 0
        %7743 = vmatpush2.bf16.xpose.msra.mxu0 0
        %7744 = vmatprep.subr.bf16.mxu0 0
        %7745 = vmatpush2.bf16.xpose.msra.mxu0 0
        %7746 = vmatprep.subr.bf16.mxu0 0
        %7747 = vmatpush2.bf16.xpose.msra.mxu0 0
        %7748 = vmatprep.mubr.bf16.mxu0 %v4356
        %7749 = vmatmul.mubr.bf16.gmra.mxu0 %v4355
        %v7750 = vpop.f32.mrf.mxu0
        %v7751 = vadd.f32 %v7686, %v7750
        %v7752 = vpop.f32.mrf.mxu0
        %v7753 = vpop.f32.mrf.mxu0
        %v7754 = vadd.f32 %v7689, %v7753
        %v7755 = vpop.f32.mrf.mxu0
        %7756 = vmatprep.mubr.bf16.mxu0 %v4532
        %7757 = vmatmul.mubr.bf16.gmra.mxu0 %v4531
        %v7758 = vpop.f32.mrf.mxu0
        %v7759 = vadd.f32 %v7694, %v7758
        %v7760 = vpop.f32.mrf.mxu0
        %v7761 = vpop.f32.mrf.mxu0
        %v7762 = vadd.f32 %v7697, %v7761
        %v7763 = vpop.f32.mrf.mxu0
        %7764 = vmatprep.mubr.bf16.mxu0 %v4708
        %7765 = vmatmul.mubr.bf16.gmra.mxu0 %v4707
        %v7766 = vpop.f32.mrf.mxu0
        %v7767 = vadd.f32 %v7702, %v7766
        %v7768 = vpop.f32.mrf.mxu0
        %v7769 = vpop.f32.mrf.mxu0
        %v7770 = vadd.f32 %v7705, %v7769
        %v7771 = vpop.f32.mrf.mxu0
        %7772 = vmatprep.mubr.bf16.mxu0 %v4884
        %7773 = vmatmul.mubr.bf16.gmra.mxu0 %v4883
        %v7774 = vpop.f32.mrf.mxu0
        %v7775 = vadd.f32 %v7710, %v7774
        %v7776 = vpop.f32.mrf.mxu0
        %v7777 = vpop.f32.mrf.mxu0
        %v7778 = vadd.f32 %v7713, %v7777
        %v7779 = vpop.f32.mrf.mxu0
        %7780 = vdwg.mxu0
        %7781 = vmatprep.subr.bf16.mxu0 0
        %7782 = vmatpush1.bf16.xpose.msra.mxu0 0
        %7783 = vmatprep.subr.bf16.mxu0 0
        %7784 = vmatpush1.bf16.xpose.msra.mxu0 0
        %7785 = vmatprep.subr.bf16.mxu0 0
        %7786 = vmatpush1.bf16.xpose.msra.mxu0 0
        %7787 = vmatprep.subr.bf16.mxu0 0
        %7788 = vmatpush1.bf16.xpose.msra.mxu0 0
        %7789 = vmatprep.subr.bf16.mxu0 0
        %7790 = vmatpush1.bf16.xpose.msra.mxu0 0
        %7791 = vmatprep.subr.bf16.mxu0 0
        %7792 = vmatpush1.bf16.xpose.msra.mxu0 0
        %7793 = vmatprep.subr.bf16.mxu0 0
        %7794 = vmatpush1.bf16.xpose.msra.mxu0 0
        %7795 = vmatprep.subr.bf16.mxu0 %v1358
        %7796 = vmatpush1.bf16.xpose.msra.mxu0 %v1357
        %7797 = vmatprep.subr.bf16.mxu0 0
        %7798 = vmatpush2.bf16.xpose.msra.mxu0 0
        %7799 = vmatprep.subr.bf16.mxu0 0
        %7800 = vmatpush2.bf16.xpose.msra.mxu0 0
        %7801 = vmatprep.subr.bf16.mxu0 0
        %7802 = vmatpush2.bf16.xpose.msra.mxu0 0
        %7803 = vmatprep.subr.bf16.mxu0 0
        %7804 = vmatpush2.bf16.xpose.msra.mxu0 0
        %7805 = vmatprep.subr.bf16.mxu0 0
        %7806 = vmatpush2.bf16.xpose.msra.mxu0 0
        %7807 = vmatprep.subr.bf16.mxu0 0
        %7808 = vmatpush2.bf16.xpose.msra.mxu0 0
        %7809 = vmatprep.subr.bf16.mxu0 0
        %7810 = vmatpush2.bf16.xpose.msra.mxu0 0
        %7811 = vmatprep.subr.bf16.mxu0 0
        %7812 = vmatpush2.bf16.xpose.msra.mxu0 0
        %7813 = vmatprep.mubr.bf16.mxu0 %v4358
        %7814 = vmatmul.mubr.bf16.gmra.mxu0 %v4357
        %v7815 = vpop.f32.mrf.mxu0
        %v7816 = vadd.f32 %v7751, %v7815
        %v7817 = vpop.f32.mrf.mxu0
        %v7818 = vpop.f32.mrf.mxu0
        %v7819 = vadd.f32 %v7754, %v7818
        %v7820 = vpop.f32.mrf.mxu0
        %7821 = vmatprep.mubr.bf16.mxu0 %v4534
        %7822 = vmatmul.mubr.bf16.gmra.mxu0 %v4533
        %v7823 = vpop.f32.mrf.mxu0
        %v7824 = vadd.f32 %v7759, %v7823
        %v7825 = vpop.f32.mrf.mxu0
        %v7826 = vpop.f32.mrf.mxu0
        %v7827 = vadd.f32 %v7762, %v7826
        %v7828 = vpop.f32.mrf.mxu0
        %7829 = vmatprep.mubr.bf16.mxu0 %v4710
        %7830 = vmatmul.mubr.bf16.gmra.mxu0 %v4709
        %v7831 = vpop.f32.mrf.mxu0
        %v7832 = vadd.f32 %v7767, %v7831
        %v7833 = vpop.f32.mrf.mxu0
        %v7834 = vpop.f32.mrf.mxu0
        %v7835 = vadd.f32 %v7770, %v7834
        %v7836 = vpop.f32.mrf.mxu0
        %7837 = vmatprep.mubr.bf16.mxu0 %v4886
        %7838 = vmatmul.mubr.bf16.gmra.mxu0 %v4885
        %v7839 = vpop.f32.mrf.mxu0
        %v7840 = vadd.f32 %v7775, %v7839
        %v7841 = vpop.f32.mrf.mxu0
        %v7842 = vpop.f32.mrf.mxu0
        %v7843 = vadd.f32 %v7778, %v7842
        %v7844 = vpop.f32.mrf.mxu0
        %7845 = vdwg.mxu0
        %7846 = vmatprep.subr.bf16.mxu0 0
        %7847 = vmatpush1.bf16.xpose.msra.mxu0 0
        %7848 = vmatprep.subr.bf16.mxu0 0
        %7849 = vmatpush1.bf16.xpose.msra.mxu0 0
        %7850 = vmatprep.subr.bf16.mxu0 0
        %7851 = vmatpush1.bf16.xpose.msra.mxu0 0
        %7852 = vmatprep.subr.bf16.mxu0 0
        %7853 = vmatpush1.bf16.xpose.msra.mxu0 0
        %7854 = vmatprep.subr.bf16.mxu0 0
        %7855 = vmatpush1.bf16.xpose.msra.mxu0 0
        %7856 = vmatprep.subr.bf16.mxu0 0
        %7857 = vmatpush1.bf16.xpose.msra.mxu0 0
        %7858 = vmatprep.subr.bf16.mxu0 0
        %7859 = vmatpush1.bf16.xpose.msra.mxu0 0
        %7860 = vmatprep.subr.bf16.mxu0 %v1360
        %7861 = vmatpush1.bf16.xpose.msra.mxu0 %v1359
        %7862 = vmatprep.subr.bf16.mxu0 0
        %7863 = vmatpush2.bf16.xpose.msra.mxu0 0
        %7864 = vmatprep.subr.bf16.mxu0 0
        %7865 = vmatpush2.bf16.xpose.msra.mxu0 0
        %7866 = vmatprep.subr.bf16.mxu0 0
        %7867 = vmatpush2.bf16.xpose.msra.mxu0 0
        %7868 = vmatprep.subr.bf16.mxu0 0
        %7869 = vmatpush2.bf16.xpose.msra.mxu0 0
        %7870 = vmatprep.subr.bf16.mxu0 0
        %7871 = vmatpush2.bf16.xpose.msra.mxu0 0
        %7872 = vmatprep.subr.bf16.mxu0 0
        %7873 = vmatpush2.bf16.xpose.msra.mxu0 0
        %7874 = vmatprep.subr.bf16.mxu0 0
        %7875 = vmatpush2.bf16.xpose.msra.mxu0 0
        %7876 = vmatprep.subr.bf16.mxu0 0
        %7877 = vmatpush2.bf16.xpose.msra.mxu0 0
        %7878 = vmatprep.mubr.bf16.mxu0 %v4360
        %7879 = vmatmul.mubr.bf16.gmra.mxu0 %v4359
        %v7880 = vpop.f32.mrf.mxu0
        %v7881 = vadd.f32 %v7816, %v7880
        %v7882 = vpop.f32.mrf.mxu0
        %v7883 = vpop.f32.mrf.mxu0
        %v7884 = vadd.f32 %v7819, %v7883
        %v7885 = vpop.f32.mrf.mxu0
        %7886 = vmatprep.mubr.bf16.mxu0 %v4536
        %7887 = vmatmul.mubr.bf16.gmra.mxu0 %v4535
        %v7888 = vpop.f32.mrf.mxu0
        %v7889 = vadd.f32 %v7824, %v7888
        %v7890 = vpop.f32.mrf.mxu0
        %v7891 = vpop.f32.mrf.mxu0
        %v7892 = vadd.f32 %v7827, %v7891
        %v7893 = vpop.f32.mrf.mxu0
        %7894 = vmatprep.mubr.bf16.mxu0 %v4712
        %7895 = vmatmul.mubr.bf16.gmra.mxu0 %v4711
        %v7896 = vpop.f32.mrf.mxu0
        %v7897 = vadd.f32 %v7832, %v7896
        %v7898 = vpop.f32.mrf.mxu0
        %v7899 = vpop.f32.mrf.mxu0
        %v7900 = vadd.f32 %v7835, %v7899
        %v7901 = vpop.f32.mrf.mxu0
        %7902 = vmatprep.mubr.bf16.mxu0 %v4888
        %7903 = vmatmul.mubr.bf16.gmra.mxu0 %v4887
        %v7904 = vpop.f32.mrf.mxu0
        %v7905 = vadd.f32 %v7840, %v7904
        %v7906 = vpop.f32.mrf.mxu0
        %v7907 = vpop.f32.mrf.mxu0
        %v7908 = vadd.f32 %v7843, %v7907
        %v7909 = vpop.f32.mrf.mxu0
        %7910 = vdwg.mxu0
        %7911 = vmatprep.subr.bf16.mxu0 0
        %7912 = vmatpush1.bf16.xpose.msra.mxu0 0
        %7913 = vmatprep.subr.bf16.mxu0 0
        %7914 = vmatpush1.bf16.xpose.msra.mxu0 0
        %7915 = vmatprep.subr.bf16.mxu0 0
        %7916 = vmatpush1.bf16.xpose.msra.mxu0 0
        %7917 = vmatprep.subr.bf16.mxu0 0
        %7918 = vmatpush1.bf16.xpose.msra.mxu0 0
        %7919 = vmatprep.subr.bf16.mxu0 0
        %7920 = vmatpush1.bf16.xpose.msra.mxu0 0
        %7921 = vmatprep.subr.bf16.mxu0 0
        %7922 = vmatpush1.bf16.xpose.msra.mxu0 0
        %7923 = vmatprep.subr.bf16.mxu0 0
        %7924 = vmatpush1.bf16.xpose.msra.mxu0 0
        %7925 = vmatprep.subr.bf16.mxu0 %v1362
        %7926 = vmatpush1.bf16.xpose.msra.mxu0 %v1361
        %7927 = vmatprep.subr.bf16.mxu0 0
        %7928 = vmatpush2.bf16.xpose.msra.mxu0 0
        %7929 = vmatprep.subr.bf16.mxu0 0
        %7930 = vmatpush2.bf16.xpose.msra.mxu0 0
        %7931 = vmatprep.subr.bf16.mxu0 0
        %7932 = vmatpush2.bf16.xpose.msra.mxu0 0
        %7933 = vmatprep.subr.bf16.mxu0 0
        %7934 = vmatpush2.bf16.xpose.msra.mxu0 0
        %7935 = vmatprep.subr.bf16.mxu0 0
        %7936 = vmatpush2.bf16.xpose.msra.mxu0 0
        %7937 = vmatprep.subr.bf16.mxu0 0
        %7938 = vmatpush2.bf16.xpose.msra.mxu0 0
        %7939 = vmatprep.subr.bf16.mxu0 0
        %7940 = vmatpush2.bf16.xpose.msra.mxu0 0
        %7941 = vmatprep.subr.bf16.mxu0 0
        %7942 = vmatpush2.bf16.xpose.msra.mxu0 0
        %7943 = vmatprep.mubr.bf16.mxu0 %v4362
        %7944 = vmatmul.mubr.bf16.gmra.mxu0 %v4361
        %v7945 = vpop.f32.mrf.mxu0
        %v7946 = vadd.f32 %v7881, %v7945
        %v7947 = vpop.f32.mrf.mxu0
        %v7948 = vpop.f32.mrf.mxu0
        %v7949 = vadd.f32 %v7884, %v7948
        %v7950 = vpop.f32.mrf.mxu0
        %7951 = vmatprep.mubr.bf16.mxu0 %v4538
        %7952 = vmatmul.mubr.bf16.gmra.mxu0 %v4537
        %v7953 = vpop.f32.mrf.mxu0
        %v7954 = vadd.f32 %v7889, %v7953
        %v7955 = vpop.f32.mrf.mxu0
        %v7956 = vpop.f32.mrf.mxu0
        %v7957 = vadd.f32 %v7892, %v7956
        %v7958 = vpop.f32.mrf.mxu0
        %7959 = vmatprep.mubr.bf16.mxu0 %v4714
        %7960 = vmatmul.mubr.bf16.gmra.mxu0 %v4713
        %v7961 = vpop.f32.mrf.mxu0
        %v7962 = vadd.f32 %v7897, %v7961
        %v7963 = vpop.f32.mrf.mxu0
        %v7964 = vpop.f32.mrf.mxu0
        %v7965 = vadd.f32 %v7900, %v7964
        %v7966 = vpop.f32.mrf.mxu0
        %7967 = vmatprep.mubr.bf16.mxu0 %v4890
        %7968 = vmatmul.mubr.bf16.gmra.mxu0 %v4889
        %v7969 = vpop.f32.mrf.mxu0
        %v7970 = vadd.f32 %v7905, %v7969
        %v7971 = vpop.f32.mrf.mxu0
        %v7972 = vpop.f32.mrf.mxu0
        %v7973 = vadd.f32 %v7908, %v7972
        %v7974 = vpop.f32.mrf.mxu0
        %7975 = vdwg.mxu0
        %7976 = vmatprep.subr.bf16.mxu0 0
        %7977 = vmatpush1.bf16.xpose.msra.mxu0 0
        %7978 = vmatprep.subr.bf16.mxu0 0
        %7979 = vmatpush1.bf16.xpose.msra.mxu0 0
        %7980 = vmatprep.subr.bf16.mxu0 0
        %7981 = vmatpush1.bf16.xpose.msra.mxu0 0
        %7982 = vmatprep.subr.bf16.mxu0 0
        %7983 = vmatpush1.bf16.xpose.msra.mxu0 0
        %7984 = vmatprep.subr.bf16.mxu0 0
        %7985 = vmatpush1.bf16.xpose.msra.mxu0 0
        %7986 = vmatprep.subr.bf16.mxu0 0
        %7987 = vmatpush1.bf16.xpose.msra.mxu0 0
        %7988 = vmatprep.subr.bf16.mxu0 0
        %7989 = vmatpush1.bf16.xpose.msra.mxu0 0
        %7990 = vmatprep.subr.bf16.mxu0 %v1364
        %7991 = vmatpush1.bf16.xpose.msra.mxu0 %v1363
        %7992 = vmatprep.subr.bf16.mxu0 0
        %7993 = vmatpush2.bf16.xpose.msra.mxu0 0
        %7994 = vmatprep.subr.bf16.mxu0 0
        %7995 = vmatpush2.bf16.xpose.msra.mxu0 0
        %7996 = vmatprep.subr.bf16.mxu0 0
        %7997 = vmatpush2.bf16.xpose.msra.mxu0 0
        %7998 = vmatprep.subr.bf16.mxu0 0
        %7999 = vmatpush2.bf16.xpose.msra.mxu0 0
        %8000 = vmatprep.subr.bf16.mxu0 0
        %8001 = vmatpush2.bf16.xpose.msra.mxu0 0
        %8002 = vmatprep.subr.bf16.mxu0 0
        %8003 = vmatpush2.bf16.xpose.msra.mxu0 0
        %8004 = vmatprep.subr.bf16.mxu0 0
        %8005 = vmatpush2.bf16.xpose.msra.mxu0 0
        %8006 = vmatprep.subr.bf16.mxu0 0
        %8007 = vmatpush2.bf16.xpose.msra.mxu0 0
        %8008 = vmatprep.mubr.bf16.mxu0 %v4364
        %8009 = vmatmul.mubr.bf16.gmra.mxu0 %v4363
        %v8010 = vpop.f32.mrf.mxu0
        %v8011 = vadd.f32 %v7946, %v8010
        %v8012 = vpop.f32.mrf.mxu0
        %v8013 = vpop.f32.mrf.mxu0
        %v8014 = vadd.f32 %v7949, %v8013
        %v8015 = vpop.f32.mrf.mxu0
        %8016 = vmatprep.mubr.bf16.mxu0 %v4540
        %8017 = vmatmul.mubr.bf16.gmra.mxu0 %v4539
        %v8018 = vpop.f32.mrf.mxu0
        %v8019 = vadd.f32 %v7954, %v8018
        %v8020 = vpop.f32.mrf.mxu0
        %v8021 = vpop.f32.mrf.mxu0
        %v8022 = vadd.f32 %v7957, %v8021
        %v8023 = vpop.f32.mrf.mxu0
        %8024 = vmatprep.mubr.bf16.mxu0 %v4716
        %8025 = vmatmul.mubr.bf16.gmra.mxu0 %v4715
        %v8026 = vpop.f32.mrf.mxu0
        %v8027 = vadd.f32 %v7962, %v8026
        %v8028 = vpop.f32.mrf.mxu0
        %v8029 = vpop.f32.mrf.mxu0
        %v8030 = vadd.f32 %v7965, %v8029
        %v8031 = vpop.f32.mrf.mxu0
        %8032 = vmatprep.mubr.bf16.mxu0 %v4892
        %8033 = vmatmul.mubr.bf16.gmra.mxu0 %v4891
        %v8034 = vpop.f32.mrf.mxu0
        %v8035 = vadd.f32 %v7970, %v8034
        %v8036 = vpop.f32.mrf.mxu0
        %v8037 = vpop.f32.mrf.mxu0
        %v8038 = vadd.f32 %v7973, %v8037
        %v8039 = vpop.f32.mrf.mxu0
        %8040 = vdwg.mxu0
        %8041 = vmatprep.subr.bf16.mxu0 0
        %8042 = vmatpush1.bf16.xpose.msra.mxu0 0
        %8043 = vmatprep.subr.bf16.mxu0 0
        %8044 = vmatpush1.bf16.xpose.msra.mxu0 0
        %8045 = vmatprep.subr.bf16.mxu0 0
        %8046 = vmatpush1.bf16.xpose.msra.mxu0 0
        %8047 = vmatprep.subr.bf16.mxu0 0
        %8048 = vmatpush1.bf16.xpose.msra.mxu0 0
        %8049 = vmatprep.subr.bf16.mxu0 0
        %8050 = vmatpush1.bf16.xpose.msra.mxu0 0
        %8051 = vmatprep.subr.bf16.mxu0 0
        %8052 = vmatpush1.bf16.xpose.msra.mxu0 0
        %8053 = vmatprep.subr.bf16.mxu0 0
        %8054 = vmatpush1.bf16.xpose.msra.mxu0 0
        %8055 = vmatprep.subr.bf16.mxu0 %v1366
        %8056 = vmatpush1.bf16.xpose.msra.mxu0 %v1365
        %8057 = vmatprep.subr.bf16.mxu0 0
        %8058 = vmatpush2.bf16.xpose.msra.mxu0 0
        %8059 = vmatprep.subr.bf16.mxu0 0
        %8060 = vmatpush2.bf16.xpose.msra.mxu0 0
        %8061 = vmatprep.subr.bf16.mxu0 0
        %8062 = vmatpush2.bf16.xpose.msra.mxu0 0
        %8063 = vmatprep.subr.bf16.mxu0 0
        %8064 = vmatpush2.bf16.xpose.msra.mxu0 0
        %8065 = vmatprep.subr.bf16.mxu0 0
        %8066 = vmatpush2.bf16.xpose.msra.mxu0 0
        %8067 = vmatprep.subr.bf16.mxu0 0
        %8068 = vmatpush2.bf16.xpose.msra.mxu0 0
        %8069 = vmatprep.subr.bf16.mxu0 0
        %8070 = vmatpush2.bf16.xpose.msra.mxu0 0
        %8071 = vmatprep.subr.bf16.mxu0 0
        %8072 = vmatpush2.bf16.xpose.msra.mxu0 0
        %8073 = vmatprep.mubr.bf16.mxu0 %v4366
        %8074 = vmatmul.mubr.bf16.gmra.mxu0 %v4365
        %v8075 = vpop.f32.mrf.mxu0
        %v8076 = vadd.f32 %v8011, %v8075
        %v8077 = vpop.f32.mrf.mxu0
        %v8078 = vpop.f32.mrf.mxu0
        %v8079 = vadd.f32 %v8014, %v8078
        %v8080 = vpop.f32.mrf.mxu0
        %8081 = vmatprep.mubr.bf16.mxu0 %v4542
        %8082 = vmatmul.mubr.bf16.gmra.mxu0 %v4541
        %v8083 = vpop.f32.mrf.mxu0
        %v8084 = vadd.f32 %v8019, %v8083
        %v8085 = vpop.f32.mrf.mxu0
        %v8086 = vpop.f32.mrf.mxu0
        %v8087 = vadd.f32 %v8022, %v8086
        %v8088 = vpop.f32.mrf.mxu0
        %8089 = vmatprep.mubr.bf16.mxu0 %v4718
        %8090 = vmatmul.mubr.bf16.gmra.mxu0 %v4717
        %v8091 = vpop.f32.mrf.mxu0
        %v8092 = vadd.f32 %v8027, %v8091
        %v8093 = vpop.f32.mrf.mxu0
        %v8094 = vpop.f32.mrf.mxu0
        %v8095 = vadd.f32 %v8030, %v8094
        %v8096 = vpop.f32.mrf.mxu0
        %8097 = vmatprep.mubr.bf16.mxu0 %v4894
        %8098 = vmatmul.mubr.bf16.gmra.mxu0 %v4893
        %v8099 = vpop.f32.mrf.mxu0
        %v8100 = vadd.f32 %v8035, %v8099
        %v8101 = vpop.f32.mrf.mxu0
        %v8102 = vpop.f32.mrf.mxu0
        %v8103 = vadd.f32 %v8038, %v8102
        %v8104 = vpop.f32.mrf.mxu0
        %8105 = vdwg.mxu0
        %8106 = vmatprep.subr.bf16.mxu0 0
        %8107 = vmatpush1.bf16.xpose.msra.mxu0 0
        %8108 = vmatprep.subr.bf16.mxu0 0
        %8109 = vmatpush1.bf16.xpose.msra.mxu0 0
        %8110 = vmatprep.subr.bf16.mxu0 0
        %8111 = vmatpush1.bf16.xpose.msra.mxu0 0
        %8112 = vmatprep.subr.bf16.mxu0 0
        %8113 = vmatpush1.bf16.xpose.msra.mxu0 0
        %8114 = vmatprep.subr.bf16.mxu0 0
        %8115 = vmatpush1.bf16.xpose.msra.mxu0 0
        %8116 = vmatprep.subr.bf16.mxu0 0
        %8117 = vmatpush1.bf16.xpose.msra.mxu0 0
        %8118 = vmatprep.subr.bf16.mxu0 0
        %8119 = vmatpush1.bf16.xpose.msra.mxu0 0
        %8120 = vmatprep.subr.bf16.mxu0 %v1368
        %8121 = vmatpush1.bf16.xpose.msra.mxu0 %v1367
        %8122 = vmatprep.subr.bf16.mxu0 0
        %8123 = vmatpush2.bf16.xpose.msra.mxu0 0
        %8124 = vmatprep.subr.bf16.mxu0 0
        %8125 = vmatpush2.bf16.xpose.msra.mxu0 0
        %8126 = vmatprep.subr.bf16.mxu0 0
        %8127 = vmatpush2.bf16.xpose.msra.mxu0 0
        %8128 = vmatprep.subr.bf16.mxu0 0
        %8129 = vmatpush2.bf16.xpose.msra.mxu0 0
        %8130 = vmatprep.subr.bf16.mxu0 0
        %8131 = vmatpush2.bf16.xpose.msra.mxu0 0
        %8132 = vmatprep.subr.bf16.mxu0 0
        %8133 = vmatpush2.bf16.xpose.msra.mxu0 0
        %8134 = vmatprep.subr.bf16.mxu0 0
        %8135 = vmatpush2.bf16.xpose.msra.mxu0 0
        %8136 = vmatprep.subr.bf16.mxu0 0
        %8137 = vmatpush2.bf16.xpose.msra.mxu0 0
        %8138 = vmatprep.mubr.bf16.mxu0 %v4368
        %8139 = vmatmul.mubr.bf16.gmra.mxu0 %v4367
        %v8140 = vpop.f32.mrf.mxu0
        %v8141 = vadd.f32 %v8076, %v8140
        %v8142 = vpop.f32.mrf.mxu0
        %v8143 = vpop.f32.mrf.mxu0
        %v8144 = vadd.f32 %v8079, %v8143
        %v8145 = vpop.f32.mrf.mxu0
        %8146 = vmatprep.mubr.bf16.mxu0 %v4544
        %8147 = vmatmul.mubr.bf16.gmra.mxu0 %v4543
        %v8148 = vpop.f32.mrf.mxu0
        %v8149 = vadd.f32 %v8084, %v8148
        %v8150 = vpop.f32.mrf.mxu0
        %v8151 = vpop.f32.mrf.mxu0
        %v8152 = vadd.f32 %v8087, %v8151
        %v8153 = vpop.f32.mrf.mxu0
        %8154 = vmatprep.mubr.bf16.mxu0 %v4720
        %8155 = vmatmul.mubr.bf16.gmra.mxu0 %v4719
        %v8156 = vpop.f32.mrf.mxu0
        %v8157 = vadd.f32 %v8092, %v8156
        %v8158 = vpop.f32.mrf.mxu0
        %v8159 = vpop.f32.mrf.mxu0
        %v8160 = vadd.f32 %v8095, %v8159
        %v8161 = vpop.f32.mrf.mxu0
        %8162 = vmatprep.mubr.bf16.mxu0 %v4896
        %8163 = vmatmul.mubr.bf16.gmra.mxu0 %v4895
        %v8164 = vpop.f32.mrf.mxu0
        %v8165 = vadd.f32 %v8100, %v8164
        %v8166 = vpop.f32.mrf.mxu0
        %v8167 = vpop.f32.mrf.mxu0
        %v8168 = vadd.f32 %v8103, %v8167
        %v8169 = vpop.f32.mrf.mxu0
        %8170 = vdwg.mxu0
        %8171 = vmatprep.subr.bf16.mxu0 0
        %8172 = vmatpush1.bf16.xpose.msra.mxu0 0
        %8173 = vmatprep.subr.bf16.mxu0 0
        %8174 = vmatpush1.bf16.xpose.msra.mxu0 0
        %8175 = vmatprep.subr.bf16.mxu0 0
        %8176 = vmatpush1.bf16.xpose.msra.mxu0 0
        %8177 = vmatprep.subr.bf16.mxu0 0
        %8178 = vmatpush1.bf16.xpose.msra.mxu0 0
        %8179 = vmatprep.subr.bf16.mxu0 0
        %8180 = vmatpush1.bf16.xpose.msra.mxu0 0
        %8181 = vmatprep.subr.bf16.mxu0 0
        %8182 = vmatpush1.bf16.xpose.msra.mxu0 0
        %8183 = vmatprep.subr.bf16.mxu0 0
        %8184 = vmatpush1.bf16.xpose.msra.mxu0 0
        %8185 = vmatprep.subr.bf16.mxu0 %v1370
        %8186 = vmatpush1.bf16.xpose.msra.mxu0 %v1369
        %8187 = vmatprep.subr.bf16.mxu0 0
        %8188 = vmatpush2.bf16.xpose.msra.mxu0 0
        %8189 = vmatprep.subr.bf16.mxu0 0
        %8190 = vmatpush2.bf16.xpose.msra.mxu0 0
        %8191 = vmatprep.subr.bf16.mxu0 0
        %8192 = vmatpush2.bf16.xpose.msra.mxu0 0
        %8193 = vmatprep.subr.bf16.mxu0 0
        %8194 = vmatpush2.bf16.xpose.msra.mxu0 0
        %8195 = vmatprep.subr.bf16.mxu0 0
        %8196 = vmatpush2.bf16.xpose.msra.mxu0 0
        %8197 = vmatprep.subr.bf16.mxu0 0
        %8198 = vmatpush2.bf16.xpose.msra.mxu0 0
        %8199 = vmatprep.subr.bf16.mxu0 0
        %8200 = vmatpush2.bf16.xpose.msra.mxu0 0
        %8201 = vmatprep.subr.bf16.mxu0 0
        %8202 = vmatpush2.bf16.xpose.msra.mxu0 0
        %8203 = vmatprep.mubr.bf16.mxu0 %v4370
        %8204 = vmatmul.mubr.bf16.gmra.mxu0 %v4369
        %v8205 = vpop.f32.mrf.mxu0
        %v8206 = vadd.f32 %v8141, %v8205
        %v8207 = vpop.f32.mrf.mxu0
        %v8208 = vpop.f32.mrf.mxu0
        %v8209 = vadd.f32 %v8144, %v8208
        %v8210 = vpop.f32.mrf.mxu0
        %8211 = vmatprep.mubr.bf16.mxu0 %v4546
        %8212 = vmatmul.mubr.bf16.gmra.mxu0 %v4545
        %v8213 = vpop.f32.mrf.mxu0
        %v8214 = vadd.f32 %v8149, %v8213
        %v8215 = vpop.f32.mrf.mxu0
        %v8216 = vpop.f32.mrf.mxu0
        %v8217 = vadd.f32 %v8152, %v8216
        %v8218 = vpop.f32.mrf.mxu0
        %8219 = vmatprep.mubr.bf16.mxu0 %v4722
        %8220 = vmatmul.mubr.bf16.gmra.mxu0 %v4721
        %v8221 = vpop.f32.mrf.mxu0
        %v8222 = vadd.f32 %v8157, %v8221
        %v8223 = vpop.f32.mrf.mxu0
        %v8224 = vpop.f32.mrf.mxu0
        %v8225 = vadd.f32 %v8160, %v8224
        %v8226 = vpop.f32.mrf.mxu0
        %8227 = vmatprep.mubr.bf16.mxu0 %v4898
        %8228 = vmatmul.mubr.bf16.gmra.mxu0 %v4897
        %v8229 = vpop.f32.mrf.mxu0
        %v8230 = vadd.f32 %v8165, %v8229
        %v8231 = vpop.f32.mrf.mxu0
        %v8232 = vpop.f32.mrf.mxu0
        %v8233 = vadd.f32 %v8168, %v8232
        %v8234 = vpop.f32.mrf.mxu0
        %8235 = vdwg.mxu0
        %8236 = vmatprep.subr.bf16.mxu0 0
        %8237 = vmatpush1.bf16.xpose.msra.mxu0 0
        %8238 = vmatprep.subr.bf16.mxu0 0
        %8239 = vmatpush1.bf16.xpose.msra.mxu0 0
        %8240 = vmatprep.subr.bf16.mxu0 0
        %8241 = vmatpush1.bf16.xpose.msra.mxu0 0
        %8242 = vmatprep.subr.bf16.mxu0 0
        %8243 = vmatpush1.bf16.xpose.msra.mxu0 0
        %8244 = vmatprep.subr.bf16.mxu0 0
        %8245 = vmatpush1.bf16.xpose.msra.mxu0 0
        %8246 = vmatprep.subr.bf16.mxu0 0
        %8247 = vmatpush1.bf16.xpose.msra.mxu0 0
        %8248 = vmatprep.subr.bf16.mxu0 0
        %8249 = vmatpush1.bf16.xpose.msra.mxu0 0
        %8250 = vmatprep.subr.bf16.mxu0 %v1372
        %8251 = vmatpush1.bf16.xpose.msra.mxu0 %v1371
        %8252 = vmatprep.subr.bf16.mxu0 0
        %8253 = vmatpush2.bf16.xpose.msra.mxu0 0
        %8254 = vmatprep.subr.bf16.mxu0 0
        %8255 = vmatpush2.bf16.xpose.msra.mxu0 0
        %8256 = vmatprep.subr.bf16.mxu0 0
        %8257 = vmatpush2.bf16.xpose.msra.mxu0 0
        %8258 = vmatprep.subr.bf16.mxu0 0
        %8259 = vmatpush2.bf16.xpose.msra.mxu0 0
        %8260 = vmatprep.subr.bf16.mxu0 0
        %8261 = vmatpush2.bf16.xpose.msra.mxu0 0
        %8262 = vmatprep.subr.bf16.mxu0 0
        %8263 = vmatpush2.bf16.xpose.msra.mxu0 0
        %8264 = vmatprep.subr.bf16.mxu0 0
        %8265 = vmatpush2.bf16.xpose.msra.mxu0 0
        %8266 = vmatprep.subr.bf16.mxu0 0
        %8267 = vmatpush2.bf16.xpose.msra.mxu0 0
        %8268 = vmatprep.mubr.bf16.mxu0 %v4372
        %8269 = vmatmul.mubr.bf16.gmra.mxu0 %v4371
        %v8270 = vpop.f32.mrf.mxu0
        %v8271 = vadd.f32 %v8206, %v8270
        %v8272 = vpop.f32.mrf.mxu0
        %v8273 = vpop.f32.mrf.mxu0
        %v8274 = vadd.f32 %v8209, %v8273
        %v8275 = vpop.f32.mrf.mxu0
        %8276 = vmatprep.mubr.bf16.mxu0 %v4548
        %8277 = vmatmul.mubr.bf16.gmra.mxu0 %v4547
        %v8278 = vpop.f32.mrf.mxu0
        %v8279 = vadd.f32 %v8214, %v8278
        %v8280 = vpop.f32.mrf.mxu0
        %v8281 = vpop.f32.mrf.mxu0
        %v8282 = vadd.f32 %v8217, %v8281
        %v8283 = vpop.f32.mrf.mxu0
        %8284 = vmatprep.mubr.bf16.mxu0 %v4724
        %8285 = vmatmul.mubr.bf16.gmra.mxu0 %v4723
        %v8286 = vpop.f32.mrf.mxu0
        %v8287 = vadd.f32 %v8222, %v8286
        %v8288 = vpop.f32.mrf.mxu0
        %v8289 = vpop.f32.mrf.mxu0
        %v8290 = vadd.f32 %v8225, %v8289
        %v8291 = vpop.f32.mrf.mxu0
        %8292 = vmatprep.mubr.bf16.mxu0 %v4900
        %8293 = vmatmul.mubr.bf16.gmra.mxu0 %v4899
        %v8294 = vpop.f32.mrf.mxu0
        %v8295 = vadd.f32 %v8230, %v8294
        %v8296 = vpop.f32.mrf.mxu0
        %v8297 = vpop.f32.mrf.mxu0
        %v8298 = vadd.f32 %v8233, %v8297
        %v8299 = vpop.f32.mrf.mxu0
        %8300 = vdwg.mxu0
        %8301 = vmatprep.subr.bf16.mxu0 0
        %8302 = vmatpush1.bf16.xpose.msra.mxu0 0
        %8303 = vmatprep.subr.bf16.mxu0 0
        %8304 = vmatpush1.bf16.xpose.msra.mxu0 0
        %8305 = vmatprep.subr.bf16.mxu0 0
        %8306 = vmatpush1.bf16.xpose.msra.mxu0 0
        %8307 = vmatprep.subr.bf16.mxu0 0
        %8308 = vmatpush1.bf16.xpose.msra.mxu0 0
        %8309 = vmatprep.subr.bf16.mxu0 0
        %8310 = vmatpush1.bf16.xpose.msra.mxu0 0
        %8311 = vmatprep.subr.bf16.mxu0 0
        %8312 = vmatpush1.bf16.xpose.msra.mxu0 0
        %8313 = vmatprep.subr.bf16.mxu0 0
        %8314 = vmatpush1.bf16.xpose.msra.mxu0 0
        %8315 = vmatprep.subr.bf16.mxu0 %v1374
        %8316 = vmatpush1.bf16.xpose.msra.mxu0 %v1373
        %8317 = vmatprep.subr.bf16.mxu0 0
        %8318 = vmatpush2.bf16.xpose.msra.mxu0 0
        %8319 = vmatprep.subr.bf16.mxu0 0
        %8320 = vmatpush2.bf16.xpose.msra.mxu0 0
        %8321 = vmatprep.subr.bf16.mxu0 0
        %8322 = vmatpush2.bf16.xpose.msra.mxu0 0
        %8323 = vmatprep.subr.bf16.mxu0 0
        %8324 = vmatpush2.bf16.xpose.msra.mxu0 0
        %8325 = vmatprep.subr.bf16.mxu0 0
        %8326 = vmatpush2.bf16.xpose.msra.mxu0 0
        %8327 = vmatprep.subr.bf16.mxu0 0
        %8328 = vmatpush2.bf16.xpose.msra.mxu0 0
        %8329 = vmatprep.subr.bf16.mxu0 0
        %8330 = vmatpush2.bf16.xpose.msra.mxu0 0
        %8331 = vmatprep.subr.bf16.mxu0 0
        %8332 = vmatpush2.bf16.xpose.msra.mxu0 0
        %8333 = vmatprep.mubr.bf16.mxu0 %v4374
        %8334 = vmatmul.mubr.bf16.gmra.mxu0 %v4373
        %v8335 = vpop.f32.mrf.mxu0
        %v8336 = vadd.f32 %v8271, %v8335
        %v8337 = vpop.f32.mrf.mxu0
        %v8338 = vpop.f32.mrf.mxu0
        %v8339 = vadd.f32 %v8274, %v8338
        %v8340 = vpop.f32.mrf.mxu0
        %8341 = vmatprep.mubr.bf16.mxu0 %v4550
        %8342 = vmatmul.mubr.bf16.gmra.mxu0 %v4549
        %v8343 = vpop.f32.mrf.mxu0
        %v8344 = vadd.f32 %v8279, %v8343
        %v8345 = vpop.f32.mrf.mxu0
        %v8346 = vpop.f32.mrf.mxu0
        %v8347 = vadd.f32 %v8282, %v8346
        %v8348 = vpop.f32.mrf.mxu0
        %8349 = vmatprep.mubr.bf16.mxu0 %v4726
        %8350 = vmatmul.mubr.bf16.gmra.mxu0 %v4725
        %v8351 = vpop.f32.mrf.mxu0
        %v8352 = vadd.f32 %v8287, %v8351
        %v8353 = vpop.f32.mrf.mxu0
        %v8354 = vpop.f32.mrf.mxu0
        %v8355 = vadd.f32 %v8290, %v8354
        %v8356 = vpop.f32.mrf.mxu0
        %8357 = vmatprep.mubr.bf16.mxu0 %v4902
        %8358 = vmatmul.mubr.bf16.gmra.mxu0 %v4901
        %v8359 = vpop.f32.mrf.mxu0
        %v8360 = vadd.f32 %v8295, %v8359
        %v8361 = vpop.f32.mrf.mxu0
        %v8362 = vpop.f32.mrf.mxu0
        %v8363 = vadd.f32 %v8298, %v8362
        %v8364 = vpop.f32.mrf.mxu0
        %8365 = vdwg.mxu0
        %8366 = vmatprep.subr.bf16.mxu0 0
        %8367 = vmatpush1.bf16.xpose.msra.mxu0 0
        %8368 = vmatprep.subr.bf16.mxu0 0
        %8369 = vmatpush1.bf16.xpose.msra.mxu0 0
        %8370 = vmatprep.subr.bf16.mxu0 0
        %8371 = vmatpush1.bf16.xpose.msra.mxu0 0
        %8372 = vmatprep.subr.bf16.mxu0 0
        %8373 = vmatpush1.bf16.xpose.msra.mxu0 0
        %8374 = vmatprep.subr.bf16.mxu0 0
        %8375 = vmatpush1.bf16.xpose.msra.mxu0 0
        %8376 = vmatprep.subr.bf16.mxu0 0
        %8377 = vmatpush1.bf16.xpose.msra.mxu0 0
        %8378 = vmatprep.subr.bf16.mxu0 0
        %8379 = vmatpush1.bf16.xpose.msra.mxu0 0
        %8380 = vmatprep.subr.bf16.mxu0 %v1376
        %8381 = vmatpush1.bf16.xpose.msra.mxu0 %v1375
        %8382 = vmatprep.subr.bf16.mxu0 0
        %8383 = vmatpush2.bf16.xpose.msra.mxu0 0
        %8384 = vmatprep.subr.bf16.mxu0 0
        %8385 = vmatpush2.bf16.xpose.msra.mxu0 0
        %8386 = vmatprep.subr.bf16.mxu0 0
        %8387 = vmatpush2.bf16.xpose.msra.mxu0 0
        %8388 = vmatprep.subr.bf16.mxu0 0
        %8389 = vmatpush2.bf16.xpose.msra.mxu0 0
        %8390 = vmatprep.subr.bf16.mxu0 0
        %8391 = vmatpush2.bf16.xpose.msra.mxu0 0
        %8392 = vmatprep.subr.bf16.mxu0 0
        %8393 = vmatpush2.bf16.xpose.msra.mxu0 0
        %8394 = vmatprep.subr.bf16.mxu0 0
        %8395 = vmatpush2.bf16.xpose.msra.mxu0 0
        %8396 = vmatprep.subr.bf16.mxu0 0
        %8397 = vmatpush2.bf16.xpose.msra.mxu0 0
        %8398 = vmatprep.mubr.bf16.mxu0 %v4376
        %8399 = vmatmul.mubr.bf16.gmra.mxu0 %v4375
        %v8400 = vpop.f32.mrf.mxu0
        %v8401 = vadd.f32 %v8336, %v8400
        %v8402 = vpop.f32.mrf.mxu0
        %v8403 = vpop.f32.mrf.mxu0
        %v8404 = vadd.f32 %v8339, %v8403
        %v8405 = vpop.f32.mrf.mxu0
        %8406 = vmatprep.mubr.bf16.mxu0 %v4552
        %8407 = vmatmul.mubr.bf16.gmra.mxu0 %v4551
        %v8408 = vpop.f32.mrf.mxu0
        %v8409 = vadd.f32 %v8344, %v8408
        %v8410 = vpop.f32.mrf.mxu0
        %v8411 = vpop.f32.mrf.mxu0
        %v8412 = vadd.f32 %v8347, %v8411
        %v8413 = vpop.f32.mrf.mxu0
        %8414 = vmatprep.mubr.bf16.mxu0 %v4728
        %8415 = vmatmul.mubr.bf16.gmra.mxu0 %v4727
        %v8416 = vpop.f32.mrf.mxu0
        %v8417 = vadd.f32 %v8352, %v8416
        %v8418 = vpop.f32.mrf.mxu0
        %v8419 = vpop.f32.mrf.mxu0
        %v8420 = vadd.f32 %v8355, %v8419
        %v8421 = vpop.f32.mrf.mxu0
        %8422 = vmatprep.mubr.bf16.mxu0 %v4904
        %8423 = vmatmul.mubr.bf16.gmra.mxu0 %v4903
        %v8424 = vpop.f32.mrf.mxu0
        %v8425 = vadd.f32 %v8360, %v8424
        %v8426 = vpop.f32.mrf.mxu0
        %v8427 = vpop.f32.mrf.mxu0
        %v8428 = vadd.f32 %v8363, %v8427
        %v8429 = vpop.f32.mrf.mxu0
        %8430 = vdwg.mxu0
        %8431 = vmatprep.subr.bf16.mxu0 0
        %8432 = vmatpush1.bf16.xpose.msra.mxu0 0
        %8433 = vmatprep.subr.bf16.mxu0 0
        %8434 = vmatpush1.bf16.xpose.msra.mxu0 0
        %8435 = vmatprep.subr.bf16.mxu0 0
        %8436 = vmatpush1.bf16.xpose.msra.mxu0 0
        %8437 = vmatprep.subr.bf16.mxu0 0
        %8438 = vmatpush1.bf16.xpose.msra.mxu0 0
        %8439 = vmatprep.subr.bf16.mxu0 0
        %8440 = vmatpush1.bf16.xpose.msra.mxu0 0
        %8441 = vmatprep.subr.bf16.mxu0 0
        %8442 = vmatpush1.bf16.xpose.msra.mxu0 0
        %8443 = vmatprep.subr.bf16.mxu0 0
        %8444 = vmatpush1.bf16.xpose.msra.mxu0 0
        %8445 = vmatprep.subr.bf16.mxu0 %v1378
        %8446 = vmatpush1.bf16.xpose.msra.mxu0 %v1377
        %8447 = vmatprep.subr.bf16.mxu0 0
        %8448 = vmatpush2.bf16.xpose.msra.mxu0 0
        %8449 = vmatprep.subr.bf16.mxu0 0
        %8450 = vmatpush2.bf16.xpose.msra.mxu0 0
        %8451 = vmatprep.subr.bf16.mxu0 0
        %8452 = vmatpush2.bf16.xpose.msra.mxu0 0
        %8453 = vmatprep.subr.bf16.mxu0 0
        %8454 = vmatpush2.bf16.xpose.msra.mxu0 0
        %8455 = vmatprep.subr.bf16.mxu0 0
        %8456 = vmatpush2.bf16.xpose.msra.mxu0 0
        %8457 = vmatprep.subr.bf16.mxu0 0
        %8458 = vmatpush2.bf16.xpose.msra.mxu0 0
        %8459 = vmatprep.subr.bf16.mxu0 0
        %8460 = vmatpush2.bf16.xpose.msra.mxu0 0
        %8461 = vmatprep.subr.bf16.mxu0 0
        %8462 = vmatpush2.bf16.xpose.msra.mxu0 0
        %8463 = vmatprep.mubr.bf16.mxu0 %v4378
        %8464 = vmatmul.mubr.bf16.gmra.mxu0 %v4377
        %v8465 = vpop.f32.mrf.mxu0
        %v8466 = vadd.f32 %v8401, %v8465
        %v8467 = vpop.f32.mrf.mxu0
        %v8468 = vpop.f32.mrf.mxu0
        %v8469 = vadd.f32 %v8404, %v8468
        %v8470 = vpop.f32.mrf.mxu0
        %8471 = vmatprep.mubr.bf16.mxu0 %v4554
        %8472 = vmatmul.mubr.bf16.gmra.mxu0 %v4553
        %v8473 = vpop.f32.mrf.mxu0
        %v8474 = vadd.f32 %v8409, %v8473
        %v8475 = vpop.f32.mrf.mxu0
        %v8476 = vpop.f32.mrf.mxu0
        %v8477 = vadd.f32 %v8412, %v8476
        %v8478 = vpop.f32.mrf.mxu0
        %8479 = vmatprep.mubr.bf16.mxu0 %v4730
        %8480 = vmatmul.mubr.bf16.gmra.mxu0 %v4729
        %v8481 = vpop.f32.mrf.mxu0
        %v8482 = vadd.f32 %v8417, %v8481
        %v8483 = vpop.f32.mrf.mxu0
        %v8484 = vpop.f32.mrf.mxu0
        %v8485 = vadd.f32 %v8420, %v8484
        %v8486 = vpop.f32.mrf.mxu0
        %8487 = vmatprep.mubr.bf16.mxu0 %v4906
        %8488 = vmatmul.mubr.bf16.gmra.mxu0 %v4905
        %v8489 = vpop.f32.mrf.mxu0
        %v8490 = vadd.f32 %v8425, %v8489
        %v8491 = vpop.f32.mrf.mxu0
        %v8492 = vpop.f32.mrf.mxu0
        %v8493 = vadd.f32 %v8428, %v8492
        %v8494 = vpop.f32.mrf.mxu0
        %8495 = vdwg.mxu0
        %8496 = vmatprep.subr.bf16.mxu0 0
        %8497 = vmatpush1.bf16.xpose.msra.mxu0 0
        %8498 = vmatprep.subr.bf16.mxu0 0
        %8499 = vmatpush1.bf16.xpose.msra.mxu0 0
        %8500 = vmatprep.subr.bf16.mxu0 0
        %8501 = vmatpush1.bf16.xpose.msra.mxu0 0
        %8502 = vmatprep.subr.bf16.mxu0 0
        %8503 = vmatpush1.bf16.xpose.msra.mxu0 0
        %8504 = vmatprep.subr.bf16.mxu0 0
        %8505 = vmatpush1.bf16.xpose.msra.mxu0 0
        %8506 = vmatprep.subr.bf16.mxu0 0
        %8507 = vmatpush1.bf16.xpose.msra.mxu0 0
        %8508 = vmatprep.subr.bf16.mxu0 0
        %8509 = vmatpush1.bf16.xpose.msra.mxu0 0
        %8510 = vmatprep.subr.bf16.mxu0 %v1380
        %8511 = vmatpush1.bf16.xpose.msra.mxu0 %v1379
        %8512 = vmatprep.subr.bf16.mxu0 0
        %8513 = vmatpush2.bf16.xpose.msra.mxu0 0
        %8514 = vmatprep.subr.bf16.mxu0 0
        %8515 = vmatpush2.bf16.xpose.msra.mxu0 0
        %8516 = vmatprep.subr.bf16.mxu0 0
        %8517 = vmatpush2.bf16.xpose.msra.mxu0 0
        %8518 = vmatprep.subr.bf16.mxu0 0
        %8519 = vmatpush2.bf16.xpose.msra.mxu0 0
        %8520 = vmatprep.subr.bf16.mxu0 0
        %8521 = vmatpush2.bf16.xpose.msra.mxu0 0
        %8522 = vmatprep.subr.bf16.mxu0 0
        %8523 = vmatpush2.bf16.xpose.msra.mxu0 0
        %8524 = vmatprep.subr.bf16.mxu0 0
        %8525 = vmatpush2.bf16.xpose.msra.mxu0 0
        %8526 = vmatprep.subr.bf16.mxu0 0
        %8527 = vmatpush2.bf16.xpose.msra.mxu0 0
        %8528 = vmatprep.mubr.bf16.mxu0 %v4380
        %8529 = vmatmul.mubr.bf16.gmra.mxu0 %v4379
        %v8530 = vpop.f32.mrf.mxu0
        %v8531 = vadd.f32 %v8466, %v8530
        %v8532 = vpop.f32.mrf.mxu0
        %v8533 = vpop.f32.mrf.mxu0
        %v8534 = vadd.f32 %v8469, %v8533
        %v8535 = vpop.f32.mrf.mxu0
        %8536 = vmatprep.mubr.bf16.mxu0 %v4556
        %8537 = vmatmul.mubr.bf16.gmra.mxu0 %v4555
        %v8538 = vpop.f32.mrf.mxu0
        %v8539 = vadd.f32 %v8474, %v8538
        %v8540 = vpop.f32.mrf.mxu0
        %v8541 = vpop.f32.mrf.mxu0
        %v8542 = vadd.f32 %v8477, %v8541
        %v8543 = vpop.f32.mrf.mxu0
        %8544 = vmatprep.mubr.bf16.mxu0 %v4732
        %8545 = vmatmul.mubr.bf16.gmra.mxu0 %v4731
        %v8546 = vpop.f32.mrf.mxu0
        %v8547 = vadd.f32 %v8482, %v8546
        %v8548 = vpop.f32.mrf.mxu0
        %v8549 = vpop.f32.mrf.mxu0
        %v8550 = vadd.f32 %v8485, %v8549
        %v8551 = vpop.f32.mrf.mxu0
        %8552 = vmatprep.mubr.bf16.mxu0 %v4908
        %8553 = vmatmul.mubr.bf16.gmra.mxu0 %v4907
        %v8554 = vpop.f32.mrf.mxu0
        %v8555 = vadd.f32 %v8490, %v8554
        %v8556 = vpop.f32.mrf.mxu0
        %v8557 = vpop.f32.mrf.mxu0
        %v8558 = vadd.f32 %v8493, %v8557
        %v8559 = vpop.f32.mrf.mxu0
        %8560 = vdwg.mxu0
        %8561 = vmatprep.subr.bf16.mxu0 0
        %8562 = vmatpush1.bf16.xpose.msra.mxu0 0
        %8563 = vmatprep.subr.bf16.mxu0 0
        %8564 = vmatpush1.bf16.xpose.msra.mxu0 0
        %8565 = vmatprep.subr.bf16.mxu0 0
        %8566 = vmatpush1.bf16.xpose.msra.mxu0 0
        %8567 = vmatprep.subr.bf16.mxu0 0
        %8568 = vmatpush1.bf16.xpose.msra.mxu0 0
        %8569 = vmatprep.subr.bf16.mxu0 0
        %8570 = vmatpush1.bf16.xpose.msra.mxu0 0
        %8571 = vmatprep.subr.bf16.mxu0 0
        %8572 = vmatpush1.bf16.xpose.msra.mxu0 0
        %8573 = vmatprep.subr.bf16.mxu0 0
        %8574 = vmatpush1.bf16.xpose.msra.mxu0 0
        %8575 = vmatprep.subr.bf16.mxu0 %v1382
        %8576 = vmatpush1.bf16.xpose.msra.mxu0 %v1381
        %8577 = vmatprep.subr.bf16.mxu0 0
        %8578 = vmatpush2.bf16.xpose.msra.mxu0 0
        %8579 = vmatprep.subr.bf16.mxu0 0
        %8580 = vmatpush2.bf16.xpose.msra.mxu0 0
        %8581 = vmatprep.subr.bf16.mxu0 0
        %8582 = vmatpush2.bf16.xpose.msra.mxu0 0
        %8583 = vmatprep.subr.bf16.mxu0 0
        %8584 = vmatpush2.bf16.xpose.msra.mxu0 0
        %8585 = vmatprep.subr.bf16.mxu0 0
        %8586 = vmatpush2.bf16.xpose.msra.mxu0 0
        %8587 = vmatprep.subr.bf16.mxu0 0
        %8588 = vmatpush2.bf16.xpose.msra.mxu0 0
        %8589 = vmatprep.subr.bf16.mxu0 0
        %8590 = vmatpush2.bf16.xpose.msra.mxu0 0
        %8591 = vmatprep.subr.bf16.mxu0 0
        %8592 = vmatpush2.bf16.xpose.msra.mxu0 0
        %8593 = vmatprep.mubr.bf16.mxu0 %v4382
        %8594 = vmatmul.mubr.bf16.gmra.mxu0 %v4381
        %v8595 = vpop.f32.mrf.mxu0
        %v8596 = vadd.f32 %v8531, %v8595
        %v8597 = vpop.f32.mrf.mxu0
        %v8598 = vpop.f32.mrf.mxu0
        %v8599 = vadd.f32 %v8534, %v8598
        %v8600 = vpop.f32.mrf.mxu0
        %8601 = vmatprep.mubr.bf16.mxu0 %v4558
        %8602 = vmatmul.mubr.bf16.gmra.mxu0 %v4557
        %v8603 = vpop.f32.mrf.mxu0
        %v8604 = vadd.f32 %v8539, %v8603
        %v8605 = vpop.f32.mrf.mxu0
        %v8606 = vpop.f32.mrf.mxu0
        %v8607 = vadd.f32 %v8542, %v8606
        %v8608 = vpop.f32.mrf.mxu0
        %8609 = vmatprep.mubr.bf16.mxu0 %v4734
        %8610 = vmatmul.mubr.bf16.gmra.mxu0 %v4733
        %v8611 = vpop.f32.mrf.mxu0
        %v8612 = vadd.f32 %v8547, %v8611
        %v8613 = vpop.f32.mrf.mxu0
        %v8614 = vpop.f32.mrf.mxu0
        %v8615 = vadd.f32 %v8550, %v8614
        %v8616 = vpop.f32.mrf.mxu0
        %8617 = vmatprep.mubr.bf16.mxu0 %v4910
        %8618 = vmatmul.mubr.bf16.gmra.mxu0 %v4909
        %v8619 = vpop.f32.mrf.mxu0
        %v8620 = vadd.f32 %v8555, %v8619
        %v8621 = vpop.f32.mrf.mxu0
        %v8622 = vpop.f32.mrf.mxu0
        %v8623 = vadd.f32 %v8558, %v8622
        %v8624 = vpop.f32.mrf.mxu0
        %8625 = vdwg.mxu0
        %8626 = vmatprep.subr.bf16.mxu0 0
        %8627 = vmatpush1.bf16.xpose.msra.mxu0 0
        %8628 = vmatprep.subr.bf16.mxu0 0
        %8629 = vmatpush1.bf16.xpose.msra.mxu0 0
        %8630 = vmatprep.subr.bf16.mxu0 0
        %8631 = vmatpush1.bf16.xpose.msra.mxu0 0
        %8632 = vmatprep.subr.bf16.mxu0 0
        %8633 = vmatpush1.bf16.xpose.msra.mxu0 0
        %8634 = vmatprep.subr.bf16.mxu0 0
        %8635 = vmatpush1.bf16.xpose.msra.mxu0 0
        %8636 = vmatprep.subr.bf16.mxu0 0
        %8637 = vmatpush1.bf16.xpose.msra.mxu0 0
        %8638 = vmatprep.subr.bf16.mxu0 0
        %8639 = vmatpush1.bf16.xpose.msra.mxu0 0
        %8640 = vmatprep.subr.bf16.mxu0 %v1384
        %8641 = vmatpush1.bf16.xpose.msra.mxu0 %v1383
        %8642 = vmatprep.subr.bf16.mxu0 0
        %8643 = vmatpush2.bf16.xpose.msra.mxu0 0
        %8644 = vmatprep.subr.bf16.mxu0 0
        %8645 = vmatpush2.bf16.xpose.msra.mxu0 0
        %8646 = vmatprep.subr.bf16.mxu0 0
        %8647 = vmatpush2.bf16.xpose.msra.mxu0 0
        %8648 = vmatprep.subr.bf16.mxu0 0
        %8649 = vmatpush2.bf16.xpose.msra.mxu0 0
        %8650 = vmatprep.subr.bf16.mxu0 0
        %8651 = vmatpush2.bf16.xpose.msra.mxu0 0
        %8652 = vmatprep.subr.bf16.mxu0 0
        %8653 = vmatpush2.bf16.xpose.msra.mxu0 0
        %8654 = vmatprep.subr.bf16.mxu0 0
        %8655 = vmatpush2.bf16.xpose.msra.mxu0 0
        %8656 = vmatprep.subr.bf16.mxu0 0
        %8657 = vmatpush2.bf16.xpose.msra.mxu0 0
        %8658 = vmatprep.mubr.bf16.mxu0 %v4384
        %8659 = vmatmul.mubr.bf16.gmra.mxu0 %v4383
        %v8660 = vpop.f32.mrf.mxu0
        %v8661 = vadd.f32 %v8596, %v8660
        %v8662 = vpop.f32.mrf.mxu0
        %v8663 = vpop.f32.mrf.mxu0
        %v8664 = vadd.f32 %v8599, %v8663
        %v8665 = vpop.f32.mrf.mxu0
        %8666 = vmatprep.mubr.bf16.mxu0 %v4560
        %8667 = vmatmul.mubr.bf16.gmra.mxu0 %v4559
        %v8668 = vpop.f32.mrf.mxu0
        %v8669 = vadd.f32 %v8604, %v8668
        %v8670 = vpop.f32.mrf.mxu0
        %v8671 = vpop.f32.mrf.mxu0
        %v8672 = vadd.f32 %v8607, %v8671
        %v8673 = vpop.f32.mrf.mxu0
        %8674 = vmatprep.mubr.bf16.mxu0 %v4736
        %8675 = vmatmul.mubr.bf16.gmra.mxu0 %v4735
        %v8676 = vpop.f32.mrf.mxu0
        %v8677 = vadd.f32 %v8612, %v8676
        %v8678 = vpop.f32.mrf.mxu0
        %v8679 = vpop.f32.mrf.mxu0
        %v8680 = vadd.f32 %v8615, %v8679
        %v8681 = vpop.f32.mrf.mxu0
        %8682 = vmatprep.mubr.bf16.mxu0 %v4912
        %8683 = vmatmul.mubr.bf16.gmra.mxu0 %v4911
        %v8684 = vpop.f32.mrf.mxu0
        %v8685 = vadd.f32 %v8620, %v8684
        %v8686 = vpop.f32.mrf.mxu0
        %v8687 = vpop.f32.mrf.mxu0
        %v8688 = vadd.f32 %v8623, %v8687
        %v8689 = vpop.f32.mrf.mxu0
        %8690 = vdwg.mxu0
        %8691 = vmatprep.subr.bf16.mxu0 0
        %8692 = vmatpush1.bf16.xpose.msra.mxu0 0
        %8693 = vmatprep.subr.bf16.mxu0 0
        %8694 = vmatpush1.bf16.xpose.msra.mxu0 0
        %8695 = vmatprep.subr.bf16.mxu0 0
        %8696 = vmatpush1.bf16.xpose.msra.mxu0 0
        %8697 = vmatprep.subr.bf16.mxu0 0
        %8698 = vmatpush1.bf16.xpose.msra.mxu0 0
        %8699 = vmatprep.subr.bf16.mxu0 0
        %8700 = vmatpush1.bf16.xpose.msra.mxu0 0
        %8701 = vmatprep.subr.bf16.mxu0 0
        %8702 = vmatpush1.bf16.xpose.msra.mxu0 0
        %8703 = vmatprep.subr.bf16.mxu0 0
        %8704 = vmatpush1.bf16.xpose.msra.mxu0 0
        %8705 = vmatprep.subr.bf16.mxu0 %v1386
        %8706 = vmatpush1.bf16.xpose.msra.mxu0 %v1385
        %8707 = vmatprep.subr.bf16.mxu0 0
        %8708 = vmatpush2.bf16.xpose.msra.mxu0 0
        %8709 = vmatprep.subr.bf16.mxu0 0
        %8710 = vmatpush2.bf16.xpose.msra.mxu0 0
        %8711 = vmatprep.subr.bf16.mxu0 0
        %8712 = vmatpush2.bf16.xpose.msra.mxu0 0
        %8713 = vmatprep.subr.bf16.mxu0 0
        %8714 = vmatpush2.bf16.xpose.msra.mxu0 0
        %8715 = vmatprep.subr.bf16.mxu0 0
        %8716 = vmatpush2.bf16.xpose.msra.mxu0 0
        %8717 = vmatprep.subr.bf16.mxu0 0
        %8718 = vmatpush2.bf16.xpose.msra.mxu0 0
        %8719 = vmatprep.subr.bf16.mxu0 0
        %8720 = vmatpush2.bf16.xpose.msra.mxu0 0
        %8721 = vmatprep.subr.bf16.mxu0 0
        %8722 = vmatpush2.bf16.xpose.msra.mxu0 0
        %8723 = vmatprep.mubr.bf16.mxu0 %v4386
        %8724 = vmatmul.mubr.bf16.gmra.mxu0 %v4385
        %v8725 = vpop.f32.mrf.mxu0
        %v8726 = vadd.f32 %v8661, %v8725
        %v8727 = vpop.f32.mrf.mxu0
        %v8728 = vpop.f32.mrf.mxu0
        %v8729 = vadd.f32 %v8664, %v8728
        %v8730 = vpop.f32.mrf.mxu0
        %8731 = vmatprep.mubr.bf16.mxu0 %v4562
        %8732 = vmatmul.mubr.bf16.gmra.mxu0 %v4561
        %v8733 = vpop.f32.mrf.mxu0
        %v8734 = vadd.f32 %v8669, %v8733
        %v8735 = vpop.f32.mrf.mxu0
        %v8736 = vpop.f32.mrf.mxu0
        %v8737 = vadd.f32 %v8672, %v8736
        %v8738 = vpop.f32.mrf.mxu0
        %8739 = vmatprep.mubr.bf16.mxu0 %v4738
        %8740 = vmatmul.mubr.bf16.gmra.mxu0 %v4737
        %v8741 = vpop.f32.mrf.mxu0
        %v8742 = vadd.f32 %v8677, %v8741
        %v8743 = vpop.f32.mrf.mxu0
        %v8744 = vpop.f32.mrf.mxu0
        %v8745 = vadd.f32 %v8680, %v8744
        %v8746 = vpop.f32.mrf.mxu0
        %8747 = vmatprep.mubr.bf16.mxu0 %v4914
        %8748 = vmatmul.mubr.bf16.gmra.mxu0 %v4913
        %v8749 = vpop.f32.mrf.mxu0
        %v8750 = vadd.f32 %v8685, %v8749
        %v8751 = vpop.f32.mrf.mxu0
        %v8752 = vpop.f32.mrf.mxu0
        %v8753 = vadd.f32 %v8688, %v8752
        %v8754 = vpop.f32.mrf.mxu0
        %8755 = vdwg.mxu0
        %8756 = vmatprep.subr.bf16.mxu0 0
        %8757 = vmatpush1.bf16.xpose.msra.mxu0 0
        %8758 = vmatprep.subr.bf16.mxu0 0
        %8759 = vmatpush1.bf16.xpose.msra.mxu0 0
        %8760 = vmatprep.subr.bf16.mxu0 0
        %8761 = vmatpush1.bf16.xpose.msra.mxu0 0
        %8762 = vmatprep.subr.bf16.mxu0 0
        %8763 = vmatpush1.bf16.xpose.msra.mxu0 0
        %8764 = vmatprep.subr.bf16.mxu0 0
        %8765 = vmatpush1.bf16.xpose.msra.mxu0 0
        %8766 = vmatprep.subr.bf16.mxu0 0
        %8767 = vmatpush1.bf16.xpose.msra.mxu0 0
        %8768 = vmatprep.subr.bf16.mxu0 0
        %8769 = vmatpush1.bf16.xpose.msra.mxu0 0
        %8770 = vmatprep.subr.bf16.mxu0 %v1388
        %8771 = vmatpush1.bf16.xpose.msra.mxu0 %v1387
        %8772 = vmatprep.subr.bf16.mxu0 0
        %8773 = vmatpush2.bf16.xpose.msra.mxu0 0
        %8774 = vmatprep.subr.bf16.mxu0 0
        %8775 = vmatpush2.bf16.xpose.msra.mxu0 0
        %8776 = vmatprep.subr.bf16.mxu0 0
        %8777 = vmatpush2.bf16.xpose.msra.mxu0 0
        %8778 = vmatprep.subr.bf16.mxu0 0
        %8779 = vmatpush2.bf16.xpose.msra.mxu0 0
        %8780 = vmatprep.subr.bf16.mxu0 0
        %8781 = vmatpush2.bf16.xpose.msra.mxu0 0
        %8782 = vmatprep.subr.bf16.mxu0 0
        %8783 = vmatpush2.bf16.xpose.msra.mxu0 0
        %8784 = vmatprep.subr.bf16.mxu0 0
        %8785 = vmatpush2.bf16.xpose.msra.mxu0 0
        %8786 = vmatprep.subr.bf16.mxu0 0
        %8787 = vmatpush2.bf16.xpose.msra.mxu0 0
        %8788 = vmatprep.mubr.bf16.mxu0 %v4388
        %8789 = vmatmul.mubr.bf16.gmra.mxu0 %v4387
        %v8790 = vpop.f32.mrf.mxu0
        %v8791 = vadd.f32 %v8726, %v8790
        %v8792 = vpop.f32.mrf.mxu0
        %v8793 = vpop.f32.mrf.mxu0
        %v8794 = vadd.f32 %v8729, %v8793
        %v8795 = vpop.f32.mrf.mxu0
        %8796 = vmatprep.mubr.bf16.mxu0 %v4564
        %8797 = vmatmul.mubr.bf16.gmra.mxu0 %v4563
        %v8798 = vpop.f32.mrf.mxu0
        %v8799 = vadd.f32 %v8734, %v8798
        %v8800 = vpop.f32.mrf.mxu0
        %v8801 = vpop.f32.mrf.mxu0
        %v8802 = vadd.f32 %v8737, %v8801
        %v8803 = vpop.f32.mrf.mxu0
        %8804 = vmatprep.mubr.bf16.mxu0 %v4740
        %8805 = vmatmul.mubr.bf16.gmra.mxu0 %v4739
        %v8806 = vpop.f32.mrf.mxu0
        %v8807 = vadd.f32 %v8742, %v8806
        %v8808 = vpop.f32.mrf.mxu0
        %v8809 = vpop.f32.mrf.mxu0
        %v8810 = vadd.f32 %v8745, %v8809
        %v8811 = vpop.f32.mrf.mxu0
        %8812 = vmatprep.mubr.bf16.mxu0 %v4916
        %8813 = vmatmul.mubr.bf16.gmra.mxu0 %v4915
        %v8814 = vpop.f32.mrf.mxu0
        %v8815 = vadd.f32 %v8750, %v8814
        %v8816 = vpop.f32.mrf.mxu0
        %v8817 = vpop.f32.mrf.mxu0
        %v8818 = vadd.f32 %v8753, %v8817
        %v8819 = vpop.f32.mrf.mxu0
        %8820 = vdwg.mxu0
        %8821 = vmatprep.subr.bf16.mxu0 0
        %8822 = vmatpush1.bf16.xpose.msra.mxu0 0
        %8823 = vmatprep.subr.bf16.mxu0 0
        %8824 = vmatpush1.bf16.xpose.msra.mxu0 0
        %8825 = vmatprep.subr.bf16.mxu0 0
        %8826 = vmatpush1.bf16.xpose.msra.mxu0 0
        %8827 = vmatprep.subr.bf16.mxu0 0
        %8828 = vmatpush1.bf16.xpose.msra.mxu0 0
        %8829 = vmatprep.subr.bf16.mxu0 0
        %8830 = vmatpush1.bf16.xpose.msra.mxu0 0
        %8831 = vmatprep.subr.bf16.mxu0 0
        %8832 = vmatpush1.bf16.xpose.msra.mxu0 0
        %8833 = vmatprep.subr.bf16.mxu0 0
        %8834 = vmatpush1.bf16.xpose.msra.mxu0 0
        %8835 = vmatprep.subr.bf16.mxu0 %v1390
        %8836 = vmatpush1.bf16.xpose.msra.mxu0 %v1389
        %8837 = vmatprep.subr.bf16.mxu0 0
        %8838 = vmatpush2.bf16.xpose.msra.mxu0 0
        %8839 = vmatprep.subr.bf16.mxu0 0
        %8840 = vmatpush2.bf16.xpose.msra.mxu0 0
        %8841 = vmatprep.subr.bf16.mxu0 0
        %8842 = vmatpush2.bf16.xpose.msra.mxu0 0
        %8843 = vmatprep.subr.bf16.mxu0 0
        %8844 = vmatpush2.bf16.xpose.msra.mxu0 0
        %8845 = vmatprep.subr.bf16.mxu0 0
        %8846 = vmatpush2.bf16.xpose.msra.mxu0 0
        %8847 = vmatprep.subr.bf16.mxu0 0
        %8848 = vmatpush2.bf16.xpose.msra.mxu0 0
        %8849 = vmatprep.subr.bf16.mxu0 0
        %8850 = vmatpush2.bf16.xpose.msra.mxu0 0
        %8851 = vmatprep.subr.bf16.mxu0 0
        %8852 = vmatpush2.bf16.xpose.msra.mxu0 0
        %8853 = vmatprep.mubr.bf16.mxu0 %v4390
        %8854 = vmatmul.mubr.bf16.gmra.mxu0 %v4389
        %v8855 = vpop.f32.mrf.mxu0
        %v8856 = vadd.f32 %v8791, %v8855
        %v8857 = vpop.f32.mrf.mxu0
        %v8858 = vpop.f32.mrf.mxu0
        %v8859 = vadd.f32 %v8794, %v8858
        %v8860 = vpop.f32.mrf.mxu0
        %8861 = vmatprep.mubr.bf16.mxu0 %v4566
        %8862 = vmatmul.mubr.bf16.gmra.mxu0 %v4565
        %v8863 = vpop.f32.mrf.mxu0
        %v8864 = vadd.f32 %v8799, %v8863
        %v8865 = vpop.f32.mrf.mxu0
        %v8866 = vpop.f32.mrf.mxu0
        %v8867 = vadd.f32 %v8802, %v8866
        %v8868 = vpop.f32.mrf.mxu0
        %8869 = vmatprep.mubr.bf16.mxu0 %v4742
        %8870 = vmatmul.mubr.bf16.gmra.mxu0 %v4741
        %v8871 = vpop.f32.mrf.mxu0
        %v8872 = vadd.f32 %v8807, %v8871
        %v8873 = vpop.f32.mrf.mxu0
        %v8874 = vpop.f32.mrf.mxu0
        %v8875 = vadd.f32 %v8810, %v8874
        %v8876 = vpop.f32.mrf.mxu0
        %8877 = vmatprep.mubr.bf16.mxu0 %v4918
        %8878 = vmatmul.mubr.bf16.gmra.mxu0 %v4917
        %v8879 = vpop.f32.mrf.mxu0
        %v8880 = vadd.f32 %v8815, %v8879
        %v8881 = vpop.f32.mrf.mxu0
        %v8882 = vpop.f32.mrf.mxu0
        %v8883 = vadd.f32 %v8818, %v8882
        %v8884 = vpop.f32.mrf.mxu0
        %8885 = vdwg.mxu0
        %8886 = vmatprep.subr.bf16.mxu0 0
        %8887 = vmatpush1.bf16.xpose.msra.mxu0 0
        %8888 = vmatprep.subr.bf16.mxu0 0
        %8889 = vmatpush1.bf16.xpose.msra.mxu0 0
        %8890 = vmatprep.subr.bf16.mxu0 0
        %8891 = vmatpush1.bf16.xpose.msra.mxu0 0
        %8892 = vmatprep.subr.bf16.mxu0 0
        %8893 = vmatpush1.bf16.xpose.msra.mxu0 0
        %8894 = vmatprep.subr.bf16.mxu0 0
        %8895 = vmatpush1.bf16.xpose.msra.mxu0 0
        %8896 = vmatprep.subr.bf16.mxu0 0
        %8897 = vmatpush1.bf16.xpose.msra.mxu0 0
        %8898 = vmatprep.subr.bf16.mxu0 0
        %8899 = vmatpush1.bf16.xpose.msra.mxu0 0
        %8900 = vmatprep.subr.bf16.mxu0 %v1392
        %8901 = vmatpush1.bf16.xpose.msra.mxu0 %v1391
        %8902 = vmatprep.subr.bf16.mxu0 0
        %8903 = vmatpush2.bf16.xpose.msra.mxu0 0
        %8904 = vmatprep.subr.bf16.mxu0 0
        %8905 = vmatpush2.bf16.xpose.msra.mxu0 0
        %8906 = vmatprep.subr.bf16.mxu0 0
        %8907 = vmatpush2.bf16.xpose.msra.mxu0 0
        %8908 = vmatprep.subr.bf16.mxu0 0
        %8909 = vmatpush2.bf16.xpose.msra.mxu0 0
        %8910 = vmatprep.subr.bf16.mxu0 0
        %8911 = vmatpush2.bf16.xpose.msra.mxu0 0
        %8912 = vmatprep.subr.bf16.mxu0 0
        %8913 = vmatpush2.bf16.xpose.msra.mxu0 0
        %8914 = vmatprep.subr.bf16.mxu0 0
        %8915 = vmatpush2.bf16.xpose.msra.mxu0 0
        %8916 = vmatprep.subr.bf16.mxu0 0
        %8917 = vmatpush2.bf16.xpose.msra.mxu0 0
        %8918 = vmatprep.mubr.bf16.mxu0 %v4392
        %8919 = vmatmul.mubr.bf16.gmra.mxu0 %v4391
        %v8920 = vpop.f32.mrf.mxu0
        %v8921 = vadd.f32 %v8856, %v8920
        %v8922 = vpop.f32.mrf.mxu0
        %v8923 = vpop.f32.mrf.mxu0
        %v8924 = vadd.f32 %v8859, %v8923
        %v8925 = vpop.f32.mrf.mxu0
        %8926 = vmatprep.mubr.bf16.mxu0 %v4568
        %8927 = vmatmul.mubr.bf16.gmra.mxu0 %v4567
        %v8928 = vpop.f32.mrf.mxu0
        %v8929 = vadd.f32 %v8864, %v8928
        %v8930 = vpop.f32.mrf.mxu0
        %v8931 = vpop.f32.mrf.mxu0
        %v8932 = vadd.f32 %v8867, %v8931
        %v8933 = vpop.f32.mrf.mxu0
        %8934 = vmatprep.mubr.bf16.mxu0 %v4744
        %8935 = vmatmul.mubr.bf16.gmra.mxu0 %v4743
        %v8936 = vpop.f32.mrf.mxu0
        %v8937 = vadd.f32 %v8872, %v8936
        %v8938 = vpop.f32.mrf.mxu0
        %v8939 = vpop.f32.mrf.mxu0
        %v8940 = vadd.f32 %v8875, %v8939
        %v8941 = vpop.f32.mrf.mxu0
        %8942 = vmatprep.mubr.bf16.mxu0 %v4920
        %8943 = vmatmul.mubr.bf16.gmra.mxu0 %v4919
        %v8944 = vpop.f32.mrf.mxu0
        %v8945 = vadd.f32 %v8880, %v8944
        %v8946 = vpop.f32.mrf.mxu0
        %v8947 = vpop.f32.mrf.mxu0
        %v8948 = vadd.f32 %v8883, %v8947
        %v8949 = vpop.f32.mrf.mxu0
        %8950 = vdwg.mxu0
        %8951 = vmatprep.subr.bf16.mxu0 0
        %8952 = vmatpush1.bf16.xpose.msra.mxu0 0
        %8953 = vmatprep.subr.bf16.mxu0 0
        %8954 = vmatpush1.bf16.xpose.msra.mxu0 0
        %8955 = vmatprep.subr.bf16.mxu0 0
        %8956 = vmatpush1.bf16.xpose.msra.mxu0 0
        %8957 = vmatprep.subr.bf16.mxu0 0
        %8958 = vmatpush1.bf16.xpose.msra.mxu0 0
        %8959 = vmatprep.subr.bf16.mxu0 0
        %8960 = vmatpush1.bf16.xpose.msra.mxu0 0
        %8961 = vmatprep.subr.bf16.mxu0 0
        %8962 = vmatpush1.bf16.xpose.msra.mxu0 0
        %8963 = vmatprep.subr.bf16.mxu0 0
        %8964 = vmatpush1.bf16.xpose.msra.mxu0 0
        %8965 = vmatprep.subr.bf16.mxu0 %v1394
        %8966 = vmatpush1.bf16.xpose.msra.mxu0 %v1393
        %8967 = vmatprep.subr.bf16.mxu0 0
        %8968 = vmatpush2.bf16.xpose.msra.mxu0 0
        %8969 = vmatprep.subr.bf16.mxu0 0
        %8970 = vmatpush2.bf16.xpose.msra.mxu0 0
        %8971 = vmatprep.subr.bf16.mxu0 0
        %8972 = vmatpush2.bf16.xpose.msra.mxu0 0
        %8973 = vmatprep.subr.bf16.mxu0 0
        %8974 = vmatpush2.bf16.xpose.msra.mxu0 0
        %8975 = vmatprep.subr.bf16.mxu0 0
        %8976 = vmatpush2.bf16.xpose.msra.mxu0 0
        %8977 = vmatprep.subr.bf16.mxu0 0
        %8978 = vmatpush2.bf16.xpose.msra.mxu0 0
        %8979 = vmatprep.subr.bf16.mxu0 0
        %8980 = vmatpush2.bf16.xpose.msra.mxu0 0
        %8981 = vmatprep.subr.bf16.mxu0 0
        %8982 = vmatpush2.bf16.xpose.msra.mxu0 0
        %8983 = vmatprep.mubr.bf16.mxu0 %v4394
        %8984 = vmatmul.mubr.bf16.gmra.mxu0 %v4393
        %v8985 = vpop.f32.mrf.mxu0
        %v8986 = vadd.f32 %v8921, %v8985
        %v8987 = vpop.f32.mrf.mxu0
        %v8988 = vpop.f32.mrf.mxu0
        %v8989 = vadd.f32 %v8924, %v8988
        %v8990 = vpop.f32.mrf.mxu0
        %8991 = vmatprep.mubr.bf16.mxu0 %v4570
        %8992 = vmatmul.mubr.bf16.gmra.mxu0 %v4569
        %v8993 = vpop.f32.mrf.mxu0
        %v8994 = vadd.f32 %v8929, %v8993
        %v8995 = vpop.f32.mrf.mxu0
        %v8996 = vpop.f32.mrf.mxu0
        %v8997 = vadd.f32 %v8932, %v8996
        %v8998 = vpop.f32.mrf.mxu0
        %8999 = vmatprep.mubr.bf16.mxu0 %v4746
        %9000 = vmatmul.mubr.bf16.gmra.mxu0 %v4745
        %v9001 = vpop.f32.mrf.mxu0
        %v9002 = vadd.f32 %v8937, %v9001
        %v9003 = vpop.f32.mrf.mxu0
        %v9004 = vpop.f32.mrf.mxu0
        %v9005 = vadd.f32 %v8940, %v9004
        %v9006 = vpop.f32.mrf.mxu0
        %9007 = vmatprep.mubr.bf16.mxu0 %v4922
        %9008 = vmatmul.mubr.bf16.gmra.mxu0 %v4921
        %v9009 = vpop.f32.mrf.mxu0
        %v9010 = vadd.f32 %v8945, %v9009
        %v9011 = vpop.f32.mrf.mxu0
        %v9012 = vpop.f32.mrf.mxu0
        %v9013 = vadd.f32 %v8948, %v9012
        %v9014 = vpop.f32.mrf.mxu0
        %9015 = vdwg.mxu0
        %9016 = vmatprep.subr.bf16.mxu0 0
        %9017 = vmatpush1.bf16.xpose.msra.mxu0 0
        %9018 = vmatprep.subr.bf16.mxu0 0
        %9019 = vmatpush1.bf16.xpose.msra.mxu0 0
        %9020 = vmatprep.subr.bf16.mxu0 0
        %9021 = vmatpush1.bf16.xpose.msra.mxu0 0
        %9022 = vmatprep.subr.bf16.mxu0 0
        %9023 = vmatpush1.bf16.xpose.msra.mxu0 0
        %9024 = vmatprep.subr.bf16.mxu0 0
        %9025 = vmatpush1.bf16.xpose.msra.mxu0 0
        %9026 = vmatprep.subr.bf16.mxu0 0
        %9027 = vmatpush1.bf16.xpose.msra.mxu0 0
        %9028 = vmatprep.subr.bf16.mxu0 0
        %9029 = vmatpush1.bf16.xpose.msra.mxu0 0
        %9030 = vmatprep.subr.bf16.mxu0 %v1396
        %9031 = vmatpush1.bf16.xpose.msra.mxu0 %v1395
        %9032 = vmatprep.subr.bf16.mxu0 0
        %9033 = vmatpush2.bf16.xpose.msra.mxu0 0
        %9034 = vmatprep.subr.bf16.mxu0 0
        %9035 = vmatpush2.bf16.xpose.msra.mxu0 0
        %9036 = vmatprep.subr.bf16.mxu0 0
        %9037 = vmatpush2.bf16.xpose.msra.mxu0 0
        %9038 = vmatprep.subr.bf16.mxu0 0
        %9039 = vmatpush2.bf16.xpose.msra.mxu0 0
        %9040 = vmatprep.subr.bf16.mxu0 0
        %9041 = vmatpush2.bf16.xpose.msra.mxu0 0
        %9042 = vmatprep.subr.bf16.mxu0 0
        %9043 = vmatpush2.bf16.xpose.msra.mxu0 0
        %9044 = vmatprep.subr.bf16.mxu0 0
        %9045 = vmatpush2.bf16.xpose.msra.mxu0 0
        %9046 = vmatprep.subr.bf16.mxu0 0
        %9047 = vmatpush2.bf16.xpose.msra.mxu0 0
        %9048 = vmatprep.mubr.bf16.mxu0 %v4396
        %9049 = vmatmul.mubr.bf16.gmra.mxu0 %v4395
        %v9050 = vpop.f32.mrf.mxu0
        %v9051 = vadd.f32 %v8986, %v9050
        %v9052 = vpop.f32.mrf.mxu0
        %v9053 = vpop.f32.mrf.mxu0
        %v9054 = vadd.f32 %v8989, %v9053
        %v9055 = vpop.f32.mrf.mxu0
        %9056 = vmatprep.mubr.bf16.mxu0 %v4572
        %9057 = vmatmul.mubr.bf16.gmra.mxu0 %v4571
        %v9058 = vpop.f32.mrf.mxu0
        %v9059 = vadd.f32 %v8994, %v9058
        %v9060 = vpop.f32.mrf.mxu0
        %v9061 = vpop.f32.mrf.mxu0
        %v9062 = vadd.f32 %v8997, %v9061
        %v9063 = vpop.f32.mrf.mxu0
        %9064 = vmatprep.mubr.bf16.mxu0 %v4748
        %9065 = vmatmul.mubr.bf16.gmra.mxu0 %v4747
        %v9066 = vpop.f32.mrf.mxu0
        %v9067 = vadd.f32 %v9002, %v9066
        %v9068 = vpop.f32.mrf.mxu0
        %v9069 = vpop.f32.mrf.mxu0
        %v9070 = vadd.f32 %v9005, %v9069
        %v9071 = vpop.f32.mrf.mxu0
        %9072 = vmatprep.mubr.bf16.mxu0 %v4924
        %9073 = vmatmul.mubr.bf16.gmra.mxu0 %v4923
        %v9074 = vpop.f32.mrf.mxu0
        %v9075 = vadd.f32 %v9010, %v9074
        %v9076 = vpop.f32.mrf.mxu0
        %v9077 = vpop.f32.mrf.mxu0
        %v9078 = vadd.f32 %v9013, %v9077
        %v9079 = vpop.f32.mrf.mxu0
        %9080 = vdwg.mxu0
        %9081 = vmatprep.subr.bf16.mxu0 0
        %9082 = vmatpush1.bf16.xpose.msra.mxu0 0
        %9083 = vmatprep.subr.bf16.mxu0 0
        %9084 = vmatpush1.bf16.xpose.msra.mxu0 0
        %9085 = vmatprep.subr.bf16.mxu0 0
        %9086 = vmatpush1.bf16.xpose.msra.mxu0 0
        %9087 = vmatprep.subr.bf16.mxu0 0
        %9088 = vmatpush1.bf16.xpose.msra.mxu0 0
        %9089 = vmatprep.subr.bf16.mxu0 0
        %9090 = vmatpush1.bf16.xpose.msra.mxu0 0
        %9091 = vmatprep.subr.bf16.mxu0 0
        %9092 = vmatpush1.bf16.xpose.msra.mxu0 0
        %9093 = vmatprep.subr.bf16.mxu0 0
        %9094 = vmatpush1.bf16.xpose.msra.mxu0 0
        %9095 = vmatprep.subr.bf16.mxu0 %v1398
        %9096 = vmatpush1.bf16.xpose.msra.mxu0 %v1397
        %9097 = vmatprep.subr.bf16.mxu0 0
        %9098 = vmatpush2.bf16.xpose.msra.mxu0 0
        %9099 = vmatprep.subr.bf16.mxu0 0
        %9100 = vmatpush2.bf16.xpose.msra.mxu0 0
        %9101 = vmatprep.subr.bf16.mxu0 0
        %9102 = vmatpush2.bf16.xpose.msra.mxu0 0
        %9103 = vmatprep.subr.bf16.mxu0 0
        %9104 = vmatpush2.bf16.xpose.msra.mxu0 0
        %9105 = vmatprep.subr.bf16.mxu0 0
        %9106 = vmatpush2.bf16.xpose.msra.mxu0 0
        %9107 = vmatprep.subr.bf16.mxu0 0
        %9108 = vmatpush2.bf16.xpose.msra.mxu0 0
        %9109 = vmatprep.subr.bf16.mxu0 0
        %9110 = vmatpush2.bf16.xpose.msra.mxu0 0
        %9111 = vmatprep.subr.bf16.mxu0 0
        %9112 = vmatpush2.bf16.xpose.msra.mxu0 0
        %9113 = vmatprep.mubr.bf16.mxu0 %v4398
        %9114 = vmatmul.mubr.bf16.gmra.mxu0 %v4397
        %v9115 = vpop.f32.mrf.mxu0
        %v9116 = vadd.f32 %v9051, %v9115
        %v9117 = vpop.f32.mrf.mxu0
        %v9118 = vpop.f32.mrf.mxu0
        %v9119 = vadd.f32 %v9054, %v9118
        %v9120 = vpop.f32.mrf.mxu0
        %9121 = vmatprep.mubr.bf16.mxu0 %v4574
        %9122 = vmatmul.mubr.bf16.gmra.mxu0 %v4573
        %v9123 = vpop.f32.mrf.mxu0
        %v9124 = vadd.f32 %v9059, %v9123
        %v9125 = vpop.f32.mrf.mxu0
        %v9126 = vpop.f32.mrf.mxu0
        %v9127 = vadd.f32 %v9062, %v9126
        %v9128 = vpop.f32.mrf.mxu0
        %9129 = vmatprep.mubr.bf16.mxu0 %v4750
        %9130 = vmatmul.mubr.bf16.gmra.mxu0 %v4749
        %v9131 = vpop.f32.mrf.mxu0
        %v9132 = vadd.f32 %v9067, %v9131
        %v9133 = vpop.f32.mrf.mxu0
        %v9134 = vpop.f32.mrf.mxu0
        %v9135 = vadd.f32 %v9070, %v9134
        %v9136 = vpop.f32.mrf.mxu0
        %9137 = vmatprep.mubr.bf16.mxu0 %v4926
        %9138 = vmatmul.mubr.bf16.gmra.mxu0 %v4925
        %v9139 = vpop.f32.mrf.mxu0
        %v9140 = vadd.f32 %v9075, %v9139
        %v9141 = vpop.f32.mrf.mxu0
        %v9142 = vpop.f32.mrf.mxu0
        %v9143 = vadd.f32 %v9078, %v9142
        %v9144 = vpop.f32.mrf.mxu0
        %9145 = vdwg.mxu0
        %9146 = vmatprep.subr.bf16.mxu0 0
        %9147 = vmatpush1.bf16.xpose.msra.mxu0 0
        %9148 = vmatprep.subr.bf16.mxu0 0
        %9149 = vmatpush1.bf16.xpose.msra.mxu0 0
        %9150 = vmatprep.subr.bf16.mxu0 0
        %9151 = vmatpush1.bf16.xpose.msra.mxu0 0
        %9152 = vmatprep.subr.bf16.mxu0 0
        %9153 = vmatpush1.bf16.xpose.msra.mxu0 0
        %9154 = vmatprep.subr.bf16.mxu0 0
        %9155 = vmatpush1.bf16.xpose.msra.mxu0 0
        %9156 = vmatprep.subr.bf16.mxu0 0
        %9157 = vmatpush1.bf16.xpose.msra.mxu0 0
        %9158 = vmatprep.subr.bf16.mxu0 0
        %9159 = vmatpush1.bf16.xpose.msra.mxu0 0
        %9160 = vmatprep.subr.bf16.mxu0 %v1400
        %9161 = vmatpush1.bf16.xpose.msra.mxu0 %v1399
        %9162 = vmatprep.subr.bf16.mxu0 0
        %9163 = vmatpush2.bf16.xpose.msra.mxu0 0
        %9164 = vmatprep.subr.bf16.mxu0 0
        %9165 = vmatpush2.bf16.xpose.msra.mxu0 0
        %9166 = vmatprep.subr.bf16.mxu0 0
        %9167 = vmatpush2.bf16.xpose.msra.mxu0 0
        %9168 = vmatprep.subr.bf16.mxu0 0
        %9169 = vmatpush2.bf16.xpose.msra.mxu0 0
        %9170 = vmatprep.subr.bf16.mxu0 0
        %9171 = vmatpush2.bf16.xpose.msra.mxu0 0
        %9172 = vmatprep.subr.bf16.mxu0 0
        %9173 = vmatpush2.bf16.xpose.msra.mxu0 0
        %9174 = vmatprep.subr.bf16.mxu0 0
        %9175 = vmatpush2.bf16.xpose.msra.mxu0 0
        %9176 = vmatprep.subr.bf16.mxu0 0
        %9177 = vmatpush2.bf16.xpose.msra.mxu0 0
        %9178 = vmatprep.mubr.bf16.mxu0 %v4400
        %9179 = vmatmul.mubr.bf16.gmra.mxu0 %v4399
        %v9180 = vpop.f32.mrf.mxu0
        %v9181 = vadd.f32 %v9116, %v9180
        %v9182 = vpop.f32.mrf.mxu0
        %v9183 = vpop.f32.mrf.mxu0
        %v9184 = vadd.f32 %v9119, %v9183
        %v9185 = vpop.f32.mrf.mxu0
        %9186 = vmatprep.mubr.bf16.mxu0 %v4576
        %9187 = vmatmul.mubr.bf16.gmra.mxu0 %v4575
        %v9188 = vpop.f32.mrf.mxu0
        %v9189 = vadd.f32 %v9124, %v9188
        %v9190 = vpop.f32.mrf.mxu0
        %v9191 = vpop.f32.mrf.mxu0
        %v9192 = vadd.f32 %v9127, %v9191
        %v9193 = vpop.f32.mrf.mxu0
        %9194 = vmatprep.mubr.bf16.mxu0 %v4752
        %9195 = vmatmul.mubr.bf16.gmra.mxu0 %v4751
        %v9196 = vpop.f32.mrf.mxu0
        %v9197 = vadd.f32 %v9132, %v9196
        %v9198 = vpop.f32.mrf.mxu0
        %v9199 = vpop.f32.mrf.mxu0
        %v9200 = vadd.f32 %v9135, %v9199
        %v9201 = vpop.f32.mrf.mxu0
        %9202 = vmatprep.mubr.bf16.mxu0 %v4928
        %9203 = vmatmul.mubr.bf16.gmra.mxu0 %v4927
        %v9204 = vpop.f32.mrf.mxu0
        %v9205 = vadd.f32 %v9140, %v9204
        %v9206 = vpop.f32.mrf.mxu0
        %v9207 = vpop.f32.mrf.mxu0
        %v9208 = vadd.f32 %v9143, %v9207
        %v9209 = vpop.f32.mrf.mxu0
        %9210 = vdwg.mxu0
        %9211 = vmatprep.subr.bf16.mxu0 0
        %9212 = vmatpush1.bf16.xpose.msra.mxu0 0
        %9213 = vmatprep.subr.bf16.mxu0 0
        %9214 = vmatpush1.bf16.xpose.msra.mxu0 0
        %9215 = vmatprep.subr.bf16.mxu0 0
        %9216 = vmatpush1.bf16.xpose.msra.mxu0 0
        %9217 = vmatprep.subr.bf16.mxu0 0
        %9218 = vmatpush1.bf16.xpose.msra.mxu0 0
        %9219 = vmatprep.subr.bf16.mxu0 0
        %9220 = vmatpush1.bf16.xpose.msra.mxu0 0
        %9221 = vmatprep.subr.bf16.mxu0 0
        %9222 = vmatpush1.bf16.xpose.msra.mxu0 0
        %9223 = vmatprep.subr.bf16.mxu0 0
        %9224 = vmatpush1.bf16.xpose.msra.mxu0 0
        %9225 = vmatprep.subr.bf16.mxu0 %v1402
        %9226 = vmatpush1.bf16.xpose.msra.mxu0 %v1401
        %9227 = vmatprep.subr.bf16.mxu0 0
        %9228 = vmatpush2.bf16.xpose.msra.mxu0 0
        %9229 = vmatprep.subr.bf16.mxu0 0
        %9230 = vmatpush2.bf16.xpose.msra.mxu0 0
        %9231 = vmatprep.subr.bf16.mxu0 0
        %9232 = vmatpush2.bf16.xpose.msra.mxu0 0
        %9233 = vmatprep.subr.bf16.mxu0 0
        %9234 = vmatpush2.bf16.xpose.msra.mxu0 0
        %9235 = vmatprep.subr.bf16.mxu0 0
        %9236 = vmatpush2.bf16.xpose.msra.mxu0 0
        %9237 = vmatprep.subr.bf16.mxu0 0
        %9238 = vmatpush2.bf16.xpose.msra.mxu0 0
        %9239 = vmatprep.subr.bf16.mxu0 0
        %9240 = vmatpush2.bf16.xpose.msra.mxu0 0
        %9241 = vmatprep.subr.bf16.mxu0 0
        %9242 = vmatpush2.bf16.xpose.msra.mxu0 0
        %9243 = vmatprep.mubr.bf16.mxu0 %v4402
        %9244 = vmatmul.mubr.bf16.gmra.mxu0 %v4401
        %v9245 = vpop.f32.mrf.mxu0
        %v9246 = vadd.f32 %v9181, %v9245
        %v9247 = vpop.f32.mrf.mxu0
        %v9248 = vpop.f32.mrf.mxu0
        %v9249 = vadd.f32 %v9184, %v9248
        %v9250 = vpop.f32.mrf.mxu0
        %9251 = vmatprep.mubr.bf16.mxu0 %v4578
        %9252 = vmatmul.mubr.bf16.gmra.mxu0 %v4577
        %v9253 = vpop.f32.mrf.mxu0
        %v9254 = vadd.f32 %v9189, %v9253
        %v9255 = vpop.f32.mrf.mxu0
        %v9256 = vpop.f32.mrf.mxu0
        %v9257 = vadd.f32 %v9192, %v9256
        %v9258 = vpop.f32.mrf.mxu0
        %9259 = vmatprep.mubr.bf16.mxu0 %v4754
        %9260 = vmatmul.mubr.bf16.gmra.mxu0 %v4753
        %v9261 = vpop.f32.mrf.mxu0
        %v9262 = vadd.f32 %v9197, %v9261
        %v9263 = vpop.f32.mrf.mxu0
        %v9264 = vpop.f32.mrf.mxu0
        %v9265 = vadd.f32 %v9200, %v9264
        %v9266 = vpop.f32.mrf.mxu0
        %9267 = vmatprep.mubr.bf16.mxu0 %v4930
        %9268 = vmatmul.mubr.bf16.gmra.mxu0 %v4929
        %v9269 = vpop.f32.mrf.mxu0
        %v9270 = vadd.f32 %v9205, %v9269
        %v9271 = vpop.f32.mrf.mxu0
        %v9272 = vpop.f32.mrf.mxu0
        %v9273 = vadd.f32 %v9208, %v9272
        %v9274 = vpop.f32.mrf.mxu0
        %9275 = vdwg.mxu0
        %9276 = vmatprep.subr.bf16.mxu0 0
        %9277 = vmatpush1.bf16.xpose.msra.mxu0 0
        %9278 = vmatprep.subr.bf16.mxu0 0
        %9279 = vmatpush1.bf16.xpose.msra.mxu0 0
        %9280 = vmatprep.subr.bf16.mxu0 0
        %9281 = vmatpush1.bf16.xpose.msra.mxu0 0
        %9282 = vmatprep.subr.bf16.mxu0 0
        %9283 = vmatpush1.bf16.xpose.msra.mxu0 0
        %9284 = vmatprep.subr.bf16.mxu0 0
        %9285 = vmatpush1.bf16.xpose.msra.mxu0 0
        %9286 = vmatprep.subr.bf16.mxu0 0
        %9287 = vmatpush1.bf16.xpose.msra.mxu0 0
        %9288 = vmatprep.subr.bf16.mxu0 0
        %9289 = vmatpush1.bf16.xpose.msra.mxu0 0
        %9290 = vmatprep.subr.bf16.mxu0 %v1404
        %9291 = vmatpush1.bf16.xpose.msra.mxu0 %v1403
        %9292 = vmatprep.subr.bf16.mxu0 0
        %9293 = vmatpush2.bf16.xpose.msra.mxu0 0
        %9294 = vmatprep.subr.bf16.mxu0 0
        %9295 = vmatpush2.bf16.xpose.msra.mxu0 0
        %9296 = vmatprep.subr.bf16.mxu0 0
        %9297 = vmatpush2.bf16.xpose.msra.mxu0 0
        %9298 = vmatprep.subr.bf16.mxu0 0
        %9299 = vmatpush2.bf16.xpose.msra.mxu0 0
        %9300 = vmatprep.subr.bf16.mxu0 0
        %9301 = vmatpush2.bf16.xpose.msra.mxu0 0
        %9302 = vmatprep.subr.bf16.mxu0 0
        %9303 = vmatpush2.bf16.xpose.msra.mxu0 0
        %9304 = vmatprep.subr.bf16.mxu0 0
        %9305 = vmatpush2.bf16.xpose.msra.mxu0 0
        %9306 = vmatprep.subr.bf16.mxu0 0
        %9307 = vmatpush2.bf16.xpose.msra.mxu0 0
        %9308 = vmatprep.mubr.bf16.mxu0 %v4404
        %9309 = vmatmul.mubr.bf16.gmra.mxu0 %v4403
        %v9310 = vpop.f32.mrf.mxu0
        %v9311 = vadd.f32 %v9246, %v9310
        %v9312 = vpop.f32.mrf.mxu0
        %v9313 = vpop.f32.mrf.mxu0
        %v9314 = vadd.f32 %v9249, %v9313
        %v9315 = vpop.f32.mrf.mxu0
        %9316 = vmatprep.mubr.bf16.mxu0 %v4580
        %9317 = vmatmul.mubr.bf16.gmra.mxu0 %v4579
        %v9318 = vpop.f32.mrf.mxu0
        %v9319 = vadd.f32 %v9254, %v9318
        %v9320 = vpop.f32.mrf.mxu0
        %v9321 = vpop.f32.mrf.mxu0
        %v9322 = vadd.f32 %v9257, %v9321
        %v9323 = vpop.f32.mrf.mxu0
        %9324 = vmatprep.mubr.bf16.mxu0 %v4756
        %9325 = vmatmul.mubr.bf16.gmra.mxu0 %v4755
        %v9326 = vpop.f32.mrf.mxu0
        %v9327 = vadd.f32 %v9262, %v9326
        %v9328 = vpop.f32.mrf.mxu0
        %v9329 = vpop.f32.mrf.mxu0
        %v9330 = vadd.f32 %v9265, %v9329
        %v9331 = vpop.f32.mrf.mxu0
        %9332 = vmatprep.mubr.bf16.mxu0 %v4932
        %9333 = vmatmul.mubr.bf16.gmra.mxu0 %v4931
        %v9334 = vpop.f32.mrf.mxu0
        %v9335 = vadd.f32 %v9270, %v9334
        %v9336 = vpop.f32.mrf.mxu0
        %v9337 = vpop.f32.mrf.mxu0
        %v9338 = vadd.f32 %v9273, %v9337
        %v9339 = vpop.f32.mrf.mxu0
        %9340 = vdwg.mxu0
        %9341 = vmatprep.subr.bf16.mxu0 0
        %9342 = vmatpush1.bf16.xpose.msra.mxu0 0
        %9343 = vmatprep.subr.bf16.mxu0 0
        %9344 = vmatpush1.bf16.xpose.msra.mxu0 0
        %9345 = vmatprep.subr.bf16.mxu0 0
        %9346 = vmatpush1.bf16.xpose.msra.mxu0 0
        %9347 = vmatprep.subr.bf16.mxu0 0
        %9348 = vmatpush1.bf16.xpose.msra.mxu0 0
        %9349 = vmatprep.subr.bf16.mxu0 0
        %9350 = vmatpush1.bf16.xpose.msra.mxu0 0
        %9351 = vmatprep.subr.bf16.mxu0 0
        %9352 = vmatpush1.bf16.xpose.msra.mxu0 0
        %9353 = vmatprep.subr.bf16.mxu0 0
        %9354 = vmatpush1.bf16.xpose.msra.mxu0 0
        %9355 = vmatprep.subr.bf16.mxu0 %v1406
        %9356 = vmatpush1.bf16.xpose.msra.mxu0 %v1405
        %9357 = vmatprep.subr.bf16.mxu0 0
        %9358 = vmatpush2.bf16.xpose.msra.mxu0 0
        %9359 = vmatprep.subr.bf16.mxu0 0
        %9360 = vmatpush2.bf16.xpose.msra.mxu0 0
        %9361 = vmatprep.subr.bf16.mxu0 0
        %9362 = vmatpush2.bf16.xpose.msra.mxu0 0
        %9363 = vmatprep.subr.bf16.mxu0 0
        %9364 = vmatpush2.bf16.xpose.msra.mxu0 0
        %9365 = vmatprep.subr.bf16.mxu0 0
        %9366 = vmatpush2.bf16.xpose.msra.mxu0 0
        %9367 = vmatprep.subr.bf16.mxu0 0
        %9368 = vmatpush2.bf16.xpose.msra.mxu0 0
        %9369 = vmatprep.subr.bf16.mxu0 0
        %9370 = vmatpush2.bf16.xpose.msra.mxu0 0
        %9371 = vmatprep.subr.bf16.mxu0 0
        %9372 = vmatpush2.bf16.xpose.msra.mxu0 0
        %9373 = vmatprep.mubr.bf16.mxu0 %v4406
        %9374 = vmatmul.mubr.bf16.gmra.mxu0 %v4405
        %v9375 = vpop.f32.mrf.mxu0
        %v9376 = vadd.f32 %v9311, %v9375
        %v9377 = vpop.f32.mrf.mxu0
        %v9378 = vpop.f32.mrf.mxu0
        %v9379 = vadd.f32 %v9314, %v9378
        %v9380 = vpop.f32.mrf.mxu0
        %9381 = vmatprep.mubr.bf16.mxu0 %v4582
        %9382 = vmatmul.mubr.bf16.gmra.mxu0 %v4581
        %v9383 = vpop.f32.mrf.mxu0
        %v9384 = vadd.f32 %v9319, %v9383
        %v9385 = vpop.f32.mrf.mxu0
        %v9386 = vpop.f32.mrf.mxu0
        %v9387 = vadd.f32 %v9322, %v9386
        %v9388 = vpop.f32.mrf.mxu0
        %9389 = vmatprep.mubr.bf16.mxu0 %v4758
        %9390 = vmatmul.mubr.bf16.gmra.mxu0 %v4757
        %v9391 = vpop.f32.mrf.mxu0
        %v9392 = vadd.f32 %v9327, %v9391
        %v9393 = vpop.f32.mrf.mxu0
        %v9394 = vpop.f32.mrf.mxu0
        %v9395 = vadd.f32 %v9330, %v9394
        %v9396 = vpop.f32.mrf.mxu0
        %9397 = vmatprep.mubr.bf16.mxu0 %v4934
        %9398 = vmatmul.mubr.bf16.gmra.mxu0 %v4933
        %v9399 = vpop.f32.mrf.mxu0
        %v9400 = vadd.f32 %v9335, %v9399
        %v9401 = vpop.f32.mrf.mxu0
        %v9402 = vpop.f32.mrf.mxu0
        %v9403 = vadd.f32 %v9338, %v9402
        %v9404 = vpop.f32.mrf.mxu0
        %9405 = vdwg.mxu0
        %9406 = vmatprep.subr.bf16.mxu0 0
        %9407 = vmatpush1.bf16.xpose.msra.mxu0 0
        %9408 = vmatprep.subr.bf16.mxu0 0
        %9409 = vmatpush1.bf16.xpose.msra.mxu0 0
        %9410 = vmatprep.subr.bf16.mxu0 0
        %9411 = vmatpush1.bf16.xpose.msra.mxu0 0
        %9412 = vmatprep.subr.bf16.mxu0 0
        %9413 = vmatpush1.bf16.xpose.msra.mxu0 0
        %9414 = vmatprep.subr.bf16.mxu0 0
        %9415 = vmatpush1.bf16.xpose.msra.mxu0 0
        %9416 = vmatprep.subr.bf16.mxu0 0
        %9417 = vmatpush1.bf16.xpose.msra.mxu0 0
        %9418 = vmatprep.subr.bf16.mxu0 0
        %9419 = vmatpush1.bf16.xpose.msra.mxu0 0
        %9420 = vmatprep.subr.bf16.mxu0 %v1408
        %9421 = vmatpush1.bf16.xpose.msra.mxu0 %v1407
        %9422 = vmatprep.subr.bf16.mxu0 0
        %9423 = vmatpush2.bf16.xpose.msra.mxu0 0
        %9424 = vmatprep.subr.bf16.mxu0 0
        %9425 = vmatpush2.bf16.xpose.msra.mxu0 0
        %9426 = vmatprep.subr.bf16.mxu0 0
        %9427 = vmatpush2.bf16.xpose.msra.mxu0 0
        %9428 = vmatprep.subr.bf16.mxu0 0
        %9429 = vmatpush2.bf16.xpose.msra.mxu0 0
        %9430 = vmatprep.subr.bf16.mxu0 0
        %9431 = vmatpush2.bf16.xpose.msra.mxu0 0
        %9432 = vmatprep.subr.bf16.mxu0 0
        %9433 = vmatpush2.bf16.xpose.msra.mxu0 0
        %9434 = vmatprep.subr.bf16.mxu0 0
        %9435 = vmatpush2.bf16.xpose.msra.mxu0 0
        %9436 = vmatprep.subr.bf16.mxu0 0
        %9437 = vmatpush2.bf16.xpose.msra.mxu0 0
        %9438 = vmatprep.mubr.bf16.mxu0 %v4408
        %9439 = vmatmul.mubr.bf16.gmra.mxu0 %v4407
        %v9440 = vpop.f32.mrf.mxu0
        %v9441 = vadd.f32 %v9376, %v9440
        %v9442 = vpop.f32.mrf.mxu0
        %v9443 = vpop.f32.mrf.mxu0
        %v9444 = vadd.f32 %v9379, %v9443
        %v9445 = vpop.f32.mrf.mxu0
        %9446 = vmatprep.mubr.bf16.mxu0 %v4584
        %9447 = vmatmul.mubr.bf16.gmra.mxu0 %v4583
        %v9448 = vpop.f32.mrf.mxu0
        %v9449 = vadd.f32 %v9384, %v9448
        %v9450 = vpop.f32.mrf.mxu0
        %v9451 = vpop.f32.mrf.mxu0
        %v9452 = vadd.f32 %v9387, %v9451
        %v9453 = vpop.f32.mrf.mxu0
        %9454 = vmatprep.mubr.bf16.mxu0 %v4760
        %9455 = vmatmul.mubr.bf16.gmra.mxu0 %v4759
        %v9456 = vpop.f32.mrf.mxu0
        %v9457 = vadd.f32 %v9392, %v9456
        %v9458 = vpop.f32.mrf.mxu0
        %v9459 = vpop.f32.mrf.mxu0
        %v9460 = vadd.f32 %v9395, %v9459
        %v9461 = vpop.f32.mrf.mxu0
        %9462 = vmatprep.mubr.bf16.mxu0 %v4936
        %9463 = vmatmul.mubr.bf16.gmra.mxu0 %v4935
        %v9464 = vpop.f32.mrf.mxu0
        %v9465 = vadd.f32 %v9400, %v9464
        %v9466 = vpop.f32.mrf.mxu0
        %v9467 = vpop.f32.mrf.mxu0
        %v9468 = vadd.f32 %v9403, %v9467
        %v9469 = vpop.f32.mrf.mxu0
        %9470 = vdwg.mxu0
        %9471 = vmatprep.subr.bf16.mxu0 0
        %9472 = vmatpush1.bf16.xpose.msra.mxu0 0
        %9473 = vmatprep.subr.bf16.mxu0 0
        %9474 = vmatpush1.bf16.xpose.msra.mxu0 0
        %9475 = vmatprep.subr.bf16.mxu0 0
        %9476 = vmatpush1.bf16.xpose.msra.mxu0 0
        %9477 = vmatprep.subr.bf16.mxu0 0
        %9478 = vmatpush1.bf16.xpose.msra.mxu0 0
        %9479 = vmatprep.subr.bf16.mxu0 0
        %9480 = vmatpush1.bf16.xpose.msra.mxu0 0
        %9481 = vmatprep.subr.bf16.mxu0 0
        %9482 = vmatpush1.bf16.xpose.msra.mxu0 0
        %9483 = vmatprep.subr.bf16.mxu0 0
        %9484 = vmatpush1.bf16.xpose.msra.mxu0 0
        %9485 = vmatprep.subr.bf16.mxu0 %v1410
        %9486 = vmatpush1.bf16.xpose.msra.mxu0 %v1409
        %9487 = vmatprep.subr.bf16.mxu0 0
        %9488 = vmatpush2.bf16.xpose.msra.mxu0 0
        %9489 = vmatprep.subr.bf16.mxu0 0
        %9490 = vmatpush2.bf16.xpose.msra.mxu0 0
        %9491 = vmatprep.subr.bf16.mxu0 0
        %9492 = vmatpush2.bf16.xpose.msra.mxu0 0
        %9493 = vmatprep.subr.bf16.mxu0 0
        %9494 = vmatpush2.bf16.xpose.msra.mxu0 0
        %9495 = vmatprep.subr.bf16.mxu0 0
        %9496 = vmatpush2.bf16.xpose.msra.mxu0 0
        %9497 = vmatprep.subr.bf16.mxu0 0
        %9498 = vmatpush2.bf16.xpose.msra.mxu0 0
        %9499 = vmatprep.subr.bf16.mxu0 0
        %9500 = vmatpush2.bf16.xpose.msra.mxu0 0
        %9501 = vmatprep.subr.bf16.mxu0 0
        %9502 = vmatpush2.bf16.xpose.msra.mxu0 0
        %9503 = vmatprep.mubr.bf16.mxu0 %v4410
        %9504 = vmatmul.mubr.bf16.gmra.mxu0 %v4409
        %v9505 = vpop.f32.mrf.mxu0
        %v9506 = vadd.f32 %v9441, %v9505
        %v9507 = vpop.f32.mrf.mxu0
        %v9508 = vpop.f32.mrf.mxu0
        %v9509 = vadd.f32 %v9444, %v9508
        %v9510 = vpop.f32.mrf.mxu0
        %9511 = vmatprep.mubr.bf16.mxu0 %v4586
        %9512 = vmatmul.mubr.bf16.gmra.mxu0 %v4585
        %v9513 = vpop.f32.mrf.mxu0
        %v9514 = vadd.f32 %v9449, %v9513
        %v9515 = vpop.f32.mrf.mxu0
        %v9516 = vpop.f32.mrf.mxu0
        %v9517 = vadd.f32 %v9452, %v9516
        %v9518 = vpop.f32.mrf.mxu0
        %9519 = vmatprep.mubr.bf16.mxu0 %v4762
        %9520 = vmatmul.mubr.bf16.gmra.mxu0 %v4761
        %v9521 = vpop.f32.mrf.mxu0
        %v9522 = vadd.f32 %v9457, %v9521
        %v9523 = vpop.f32.mrf.mxu0
        %v9524 = vpop.f32.mrf.mxu0
        %v9525 = vadd.f32 %v9460, %v9524
        %v9526 = vpop.f32.mrf.mxu0
        %9527 = vmatprep.mubr.bf16.mxu0 %v4938
        %9528 = vmatmul.mubr.bf16.gmra.mxu0 %v4937
        %v9529 = vpop.f32.mrf.mxu0
        %v9530 = vadd.f32 %v9465, %v9529
        %v9531 = vpop.f32.mrf.mxu0
        %v9532 = vpop.f32.mrf.mxu0
        %v9533 = vadd.f32 %v9468, %v9532
        %v9534 = vpop.f32.mrf.mxu0
        %9535 = vdwg.mxu0
        %9536 = vmatprep.subr.bf16.mxu0 0
        %9537 = vmatpush1.bf16.xpose.msra.mxu0 0
        %9538 = vmatprep.subr.bf16.mxu0 0
        %9539 = vmatpush1.bf16.xpose.msra.mxu0 0
        %9540 = vmatprep.subr.bf16.mxu0 0
        %9541 = vmatpush1.bf16.xpose.msra.mxu0 0
        %9542 = vmatprep.subr.bf16.mxu0 0
        %9543 = vmatpush1.bf16.xpose.msra.mxu0 0
        %9544 = vmatprep.subr.bf16.mxu0 0
        %9545 = vmatpush1.bf16.xpose.msra.mxu0 0
        %9546 = vmatprep.subr.bf16.mxu0 0
        %9547 = vmatpush1.bf16.xpose.msra.mxu0 0
        %9548 = vmatprep.subr.bf16.mxu0 0
        %9549 = vmatpush1.bf16.xpose.msra.mxu0 0
        %9550 = vmatprep.subr.bf16.mxu0 %v1412
        %9551 = vmatpush1.bf16.xpose.msra.mxu0 %v1411
        %9552 = vmatprep.subr.bf16.mxu0 0
        %9553 = vmatpush2.bf16.xpose.msra.mxu0 0
        %9554 = vmatprep.subr.bf16.mxu0 0
        %9555 = vmatpush2.bf16.xpose.msra.mxu0 0
        %9556 = vmatprep.subr.bf16.mxu0 0
        %9557 = vmatpush2.bf16.xpose.msra.mxu0 0
        %9558 = vmatprep.subr.bf16.mxu0 0
        %9559 = vmatpush2.bf16.xpose.msra.mxu0 0
        %9560 = vmatprep.subr.bf16.mxu0 0
        %9561 = vmatpush2.bf16.xpose.msra.mxu0 0
        %9562 = vmatprep.subr.bf16.mxu0 0
        %9563 = vmatpush2.bf16.xpose.msra.mxu0 0
        %9564 = vmatprep.subr.bf16.mxu0 0
        %9565 = vmatpush2.bf16.xpose.msra.mxu0 0
        %9566 = vmatprep.subr.bf16.mxu0 0
        %9567 = vmatpush2.bf16.xpose.msra.mxu0 0
        %9568 = vmatprep.mubr.bf16.mxu0 %v4412
        %9569 = vmatmul.mubr.bf16.gmra.mxu0 %v4411
        %v9570 = vpop.f32.mrf.mxu0
        %v9571 = vadd.f32 %v9506, %v9570
        %v9572 = vpop.f32.mrf.mxu0
        %v9573 = vpop.f32.mrf.mxu0
        %v9574 = vadd.f32 %v9509, %v9573
        %v9575 = vpop.f32.mrf.mxu0
        %9576 = vmatprep.mubr.bf16.mxu0 %v4588
        %9577 = vmatmul.mubr.bf16.gmra.mxu0 %v4587
        %v9578 = vpop.f32.mrf.mxu0
        %v9579 = vadd.f32 %v9514, %v9578
        %v9580 = vpop.f32.mrf.mxu0
        %v9581 = vpop.f32.mrf.mxu0
        %v9582 = vadd.f32 %v9517, %v9581
        %v9583 = vpop.f32.mrf.mxu0
        %9584 = vmatprep.mubr.bf16.mxu0 %v4764
        %9585 = vmatmul.mubr.bf16.gmra.mxu0 %v4763
        %v9586 = vpop.f32.mrf.mxu0
        %v9587 = vadd.f32 %v9522, %v9586
        %v9588 = vpop.f32.mrf.mxu0
        %v9589 = vpop.f32.mrf.mxu0
        %v9590 = vadd.f32 %v9525, %v9589
        %v9591 = vpop.f32.mrf.mxu0
        %9592 = vmatprep.mubr.bf16.mxu0 %v4940
        %9593 = vmatmul.mubr.bf16.gmra.mxu0 %v4939
        %v9594 = vpop.f32.mrf.mxu0
        %v9595 = vadd.f32 %v9530, %v9594
        %v9596 = vpop.f32.mrf.mxu0
        %v9597 = vpop.f32.mrf.mxu0
        %v9598 = vadd.f32 %v9533, %v9597
        %v9599 = vpop.f32.mrf.mxu0
        %9600 = vdwg.mxu0
        %9601 = vmatprep.subr.bf16.mxu0 0
        %9602 = vmatpush1.bf16.xpose.msra.mxu0 0
        %9603 = vmatprep.subr.bf16.mxu0 0
        %9604 = vmatpush1.bf16.xpose.msra.mxu0 0
        %9605 = vmatprep.subr.bf16.mxu0 0
        %9606 = vmatpush1.bf16.xpose.msra.mxu0 0
        %9607 = vmatprep.subr.bf16.mxu0 0
        %9608 = vmatpush1.bf16.xpose.msra.mxu0 0
        %9609 = vmatprep.subr.bf16.mxu0 0
        %9610 = vmatpush1.bf16.xpose.msra.mxu0 0
        %9611 = vmatprep.subr.bf16.mxu0 0
        %9612 = vmatpush1.bf16.xpose.msra.mxu0 0
        %9613 = vmatprep.subr.bf16.mxu0 0
        %9614 = vmatpush1.bf16.xpose.msra.mxu0 0
        %9615 = vmatprep.subr.bf16.mxu0 %v1414
        %9616 = vmatpush1.bf16.xpose.msra.mxu0 %v1413
        %9617 = vmatprep.subr.bf16.mxu0 0
        %9618 = vmatpush2.bf16.xpose.msra.mxu0 0
        %9619 = vmatprep.subr.bf16.mxu0 0
        %9620 = vmatpush2.bf16.xpose.msra.mxu0 0
        %9621 = vmatprep.subr.bf16.mxu0 0
        %9622 = vmatpush2.bf16.xpose.msra.mxu0 0
        %9623 = vmatprep.subr.bf16.mxu0 0
        %9624 = vmatpush2.bf16.xpose.msra.mxu0 0
        %9625 = vmatprep.subr.bf16.mxu0 0
        %9626 = vmatpush2.bf16.xpose.msra.mxu0 0
        %9627 = vmatprep.subr.bf16.mxu0 0
        %9628 = vmatpush2.bf16.xpose.msra.mxu0 0
        %9629 = vmatprep.subr.bf16.mxu0 0
        %9630 = vmatpush2.bf16.xpose.msra.mxu0 0
        %9631 = vmatprep.subr.bf16.mxu0 0
        %9632 = vmatpush2.bf16.xpose.msra.mxu0 0
        %9633 = vmatprep.mubr.bf16.mxu0 %v4414
        %9634 = vmatmul.mubr.bf16.gmra.mxu0 %v4413
        %v9635 = vpop.f32.mrf.mxu0
        %v9636 = vadd.f32 %v9571, %v9635
        %v9637 = vpop.f32.mrf.mxu0
        %v9638 = vpop.f32.mrf.mxu0
        %v9639 = vadd.f32 %v9574, %v9638
        %v9640 = vpop.f32.mrf.mxu0
        %9641 = vmatprep.mubr.bf16.mxu0 %v4590
        %9642 = vmatmul.mubr.bf16.gmra.mxu0 %v4589
        %v9643 = vpop.f32.mrf.mxu0
        %v9644 = vadd.f32 %v9579, %v9643
        %v9645 = vpop.f32.mrf.mxu0
        %v9646 = vpop.f32.mrf.mxu0
        %v9647 = vadd.f32 %v9582, %v9646
        %v9648 = vpop.f32.mrf.mxu0
        %9649 = vmatprep.mubr.bf16.mxu0 %v4766
        %9650 = vmatmul.mubr.bf16.gmra.mxu0 %v4765
        %v9651 = vpop.f32.mrf.mxu0
        %v9652 = vadd.f32 %v9587, %v9651
        %v9653 = vpop.f32.mrf.mxu0
        %v9654 = vpop.f32.mrf.mxu0
        %v9655 = vadd.f32 %v9590, %v9654
        %v9656 = vpop.f32.mrf.mxu0
        %9657 = vmatprep.mubr.bf16.mxu0 %v4942
        %9658 = vmatmul.mubr.bf16.gmra.mxu0 %v4941
        %v9659 = vpop.f32.mrf.mxu0
        %v9660 = vadd.f32 %v9595, %v9659
        %v9661 = vpop.f32.mrf.mxu0
        %v9662 = vpop.f32.mrf.mxu0
        %v9663 = vadd.f32 %v9598, %v9662
        %v9664 = vpop.f32.mrf.mxu0
        %9665 = vdwg.mxu0
        %9666 = vmatprep.subr.bf16.mxu0 0
        %9667 = vmatpush1.bf16.xpose.msra.mxu0 0
        %9668 = vmatprep.subr.bf16.mxu0 0
        %9669 = vmatpush1.bf16.xpose.msra.mxu0 0
        %9670 = vmatprep.subr.bf16.mxu0 0
        %9671 = vmatpush1.bf16.xpose.msra.mxu0 0
        %9672 = vmatprep.subr.bf16.mxu0 0
        %9673 = vmatpush1.bf16.xpose.msra.mxu0 0
        %9674 = vmatprep.subr.bf16.mxu0 0
        %9675 = vmatpush1.bf16.xpose.msra.mxu0 0
        %9676 = vmatprep.subr.bf16.mxu0 0
        %9677 = vmatpush1.bf16.xpose.msra.mxu0 0
        %9678 = vmatprep.subr.bf16.mxu0 0
        %9679 = vmatpush1.bf16.xpose.msra.mxu0 0
        %9680 = vmatprep.subr.bf16.mxu0 %v1416
        %9681 = vmatpush1.bf16.xpose.msra.mxu0 %v1415
        %9682 = vmatprep.subr.bf16.mxu0 0
        %9683 = vmatpush2.bf16.xpose.msra.mxu0 0
        %9684 = vmatprep.subr.bf16.mxu0 0
        %9685 = vmatpush2.bf16.xpose.msra.mxu0 0
        %9686 = vmatprep.subr.bf16.mxu0 0
        %9687 = vmatpush2.bf16.xpose.msra.mxu0 0
        %9688 = vmatprep.subr.bf16.mxu0 0
        %9689 = vmatpush2.bf16.xpose.msra.mxu0 0
        %9690 = vmatprep.subr.bf16.mxu0 0
        %9691 = vmatpush2.bf16.xpose.msra.mxu0 0
        %9692 = vmatprep.subr.bf16.mxu0 0
        %9693 = vmatpush2.bf16.xpose.msra.mxu0 0
        %9694 = vmatprep.subr.bf16.mxu0 0
        %9695 = vmatpush2.bf16.xpose.msra.mxu0 0
        %9696 = vmatprep.subr.bf16.mxu0 0
        %9697 = vmatpush2.bf16.xpose.msra.mxu0 0
        %9698 = vmatprep.mubr.bf16.mxu0 %v4416
        %9699 = vmatmul.mubr.bf16.gmra.mxu0 %v4415
        %v9700 = vpop.f32.mrf.mxu0
        %v9701 = vadd.f32 %v9636, %v9700
        %v9702 = vpop.f32.mrf.mxu0
        %v9703 = vpop.f32.mrf.mxu0
        %v9704 = vadd.f32 %v9639, %v9703
        %v9705 = vpop.f32.mrf.mxu0
        %9706 = vmatprep.mubr.bf16.mxu0 %v4592
        %9707 = vmatmul.mubr.bf16.gmra.mxu0 %v4591
        %v9708 = vpop.f32.mrf.mxu0
        %v9709 = vadd.f32 %v9644, %v9708
        %v9710 = vpop.f32.mrf.mxu0
        %v9711 = vpop.f32.mrf.mxu0
        %v9712 = vadd.f32 %v9647, %v9711
        %v9713 = vpop.f32.mrf.mxu0
        %9714 = vmatprep.mubr.bf16.mxu0 %v4768
        %9715 = vmatmul.mubr.bf16.gmra.mxu0 %v4767
        %v9716 = vpop.f32.mrf.mxu0
        %v9717 = vadd.f32 %v9652, %v9716
        %v9718 = vpop.f32.mrf.mxu0
        %v9719 = vpop.f32.mrf.mxu0
        %v9720 = vadd.f32 %v9655, %v9719
        %v9721 = vpop.f32.mrf.mxu0
        %9722 = vmatprep.mubr.bf16.mxu0 %v4944
        %9723 = vmatmul.mubr.bf16.gmra.mxu0 %v4943
        %v9724 = vpop.f32.mrf.mxu0
        %v9725 = vadd.f32 %v9660, %v9724
        %v9726 = vpop.f32.mrf.mxu0
        %v9727 = vpop.f32.mrf.mxu0
        %v9728 = vadd.f32 %v9663, %v9727
        %v9729 = vpop.f32.mrf.mxu0
        %9730 = vdwg.mxu0
        %9731 = vmatprep.subr.bf16.mxu0 0
        %9732 = vmatpush1.bf16.xpose.msra.mxu0 0
        %9733 = vmatprep.subr.bf16.mxu0 0
        %9734 = vmatpush1.bf16.xpose.msra.mxu0 0
        %9735 = vmatprep.subr.bf16.mxu0 0
        %9736 = vmatpush1.bf16.xpose.msra.mxu0 0
        %9737 = vmatprep.subr.bf16.mxu0 0
        %9738 = vmatpush1.bf16.xpose.msra.mxu0 0
        %9739 = vmatprep.subr.bf16.mxu0 0
        %9740 = vmatpush1.bf16.xpose.msra.mxu0 0
        %9741 = vmatprep.subr.bf16.mxu0 0
        %9742 = vmatpush1.bf16.xpose.msra.mxu0 0
        %9743 = vmatprep.subr.bf16.mxu0 0
        %9744 = vmatpush1.bf16.xpose.msra.mxu0 0
        %9745 = vmatprep.subr.bf16.mxu0 %v1418
        %9746 = vmatpush1.bf16.xpose.msra.mxu0 %v1417
        %9747 = vmatprep.subr.bf16.mxu0 0
        %9748 = vmatpush2.bf16.xpose.msra.mxu0 0
        %9749 = vmatprep.subr.bf16.mxu0 0
        %9750 = vmatpush2.bf16.xpose.msra.mxu0 0
        %9751 = vmatprep.subr.bf16.mxu0 0
        %9752 = vmatpush2.bf16.xpose.msra.mxu0 0
        %9753 = vmatprep.subr.bf16.mxu0 0
        %9754 = vmatpush2.bf16.xpose.msra.mxu0 0
        %9755 = vmatprep.subr.bf16.mxu0 0
        %9756 = vmatpush2.bf16.xpose.msra.mxu0 0
        %9757 = vmatprep.subr.bf16.mxu0 0
        %9758 = vmatpush2.bf16.xpose.msra.mxu0 0
        %9759 = vmatprep.subr.bf16.mxu0 0
        %9760 = vmatpush2.bf16.xpose.msra.mxu0 0
        %9761 = vmatprep.subr.bf16.mxu0 0
        %9762 = vmatpush2.bf16.xpose.msra.mxu0 0
        %9763 = vmatprep.mubr.bf16.mxu0 %v4418
        %9764 = vmatmul.mubr.bf16.gmra.mxu0 %v4417
        %v9765 = vpop.f32.mrf.mxu0
        %v9766 = vadd.f32 %v9701, %v9765
        %v9767 = vpop.f32.mrf.mxu0
        %v9768 = vpop.f32.mrf.mxu0
        %v9769 = vadd.f32 %v9704, %v9768
        %v9770 = vpop.f32.mrf.mxu0
        %9771 = vmatprep.mubr.bf16.mxu0 %v4594
        %9772 = vmatmul.mubr.bf16.gmra.mxu0 %v4593
        %v9773 = vpop.f32.mrf.mxu0
        %v9774 = vadd.f32 %v9709, %v9773
        %v9775 = vpop.f32.mrf.mxu0
        %v9776 = vpop.f32.mrf.mxu0
        %v9777 = vadd.f32 %v9712, %v9776
        %v9778 = vpop.f32.mrf.mxu0
        %9779 = vmatprep.mubr.bf16.mxu0 %v4770
        %9780 = vmatmul.mubr.bf16.gmra.mxu0 %v4769
        %v9781 = vpop.f32.mrf.mxu0
        %v9782 = vadd.f32 %v9717, %v9781
        %v9783 = vpop.f32.mrf.mxu0
        %v9784 = vpop.f32.mrf.mxu0
        %v9785 = vadd.f32 %v9720, %v9784
        %v9786 = vpop.f32.mrf.mxu0
        %9787 = vmatprep.mubr.bf16.mxu0 %v4946
        %9788 = vmatmul.mubr.bf16.gmra.mxu0 %v4945
        %v9789 = vpop.f32.mrf.mxu0
        %v9790 = vadd.f32 %v9725, %v9789
        %v9791 = vpop.f32.mrf.mxu0
        %v9792 = vpop.f32.mrf.mxu0
        %v9793 = vadd.f32 %v9728, %v9792
        %v9794 = vpop.f32.mrf.mxu0
        %9795 = vdwg.mxu0
        %9796 = vmatprep.subr.bf16.mxu0 0
        %9797 = vmatpush1.bf16.xpose.msra.mxu0 0
        %9798 = vmatprep.subr.bf16.mxu0 0
        %9799 = vmatpush1.bf16.xpose.msra.mxu0 0
        %9800 = vmatprep.subr.bf16.mxu0 0
        %9801 = vmatpush1.bf16.xpose.msra.mxu0 0
        %9802 = vmatprep.subr.bf16.mxu0 0
        %9803 = vmatpush1.bf16.xpose.msra.mxu0 0
        %9804 = vmatprep.subr.bf16.mxu0 0
        %9805 = vmatpush1.bf16.xpose.msra.mxu0 0
        %9806 = vmatprep.subr.bf16.mxu0 0
        %9807 = vmatpush1.bf16.xpose.msra.mxu0 0
        %9808 = vmatprep.subr.bf16.mxu0 0
        %9809 = vmatpush1.bf16.xpose.msra.mxu0 0
        %9810 = vmatprep.subr.bf16.mxu0 %v1420
        %9811 = vmatpush1.bf16.xpose.msra.mxu0 %v1419
        %9812 = vmatprep.subr.bf16.mxu0 0
        %9813 = vmatpush2.bf16.xpose.msra.mxu0 0
        %9814 = vmatprep.subr.bf16.mxu0 0
        %9815 = vmatpush2.bf16.xpose.msra.mxu0 0
        %9816 = vmatprep.subr.bf16.mxu0 0
        %9817 = vmatpush2.bf16.xpose.msra.mxu0 0
        %9818 = vmatprep.subr.bf16.mxu0 0
        %9819 = vmatpush2.bf16.xpose.msra.mxu0 0
        %9820 = vmatprep.subr.bf16.mxu0 0
        %9821 = vmatpush2.bf16.xpose.msra.mxu0 0
        %9822 = vmatprep.subr.bf16.mxu0 0
        %9823 = vmatpush2.bf16.xpose.msra.mxu0 0
        %9824 = vmatprep.subr.bf16.mxu0 0
        %9825 = vmatpush2.bf16.xpose.msra.mxu0 0
        %9826 = vmatprep.subr.bf16.mxu0 0
        %9827 = vmatpush2.bf16.xpose.msra.mxu0 0
        %9828 = vmatprep.mubr.bf16.mxu0 %v4420
        %9829 = vmatmul.mubr.bf16.gmra.mxu0 %v4419
        %v9830 = vpop.f32.mrf.mxu0
        %v9831 = vadd.f32 %v9766, %v9830
        %v9832 = vpop.f32.mrf.mxu0
        %v9833 = vpop.f32.mrf.mxu0
        %v9834 = vadd.f32 %v9769, %v9833
        %v9835 = vpop.f32.mrf.mxu0
        %9836 = vmatprep.mubr.bf16.mxu0 %v4596
        %9837 = vmatmul.mubr.bf16.gmra.mxu0 %v4595
        %v9838 = vpop.f32.mrf.mxu0
        %v9839 = vadd.f32 %v9774, %v9838
        %v9840 = vpop.f32.mrf.mxu0
        %v9841 = vpop.f32.mrf.mxu0
        %v9842 = vadd.f32 %v9777, %v9841
        %v9843 = vpop.f32.mrf.mxu0
        %9844 = vmatprep.mubr.bf16.mxu0 %v4772
        %9845 = vmatmul.mubr.bf16.gmra.mxu0 %v4771
        %v9846 = vpop.f32.mrf.mxu0
        %v9847 = vadd.f32 %v9782, %v9846
        %v9848 = vpop.f32.mrf.mxu0
        %v9849 = vpop.f32.mrf.mxu0
        %v9850 = vadd.f32 %v9785, %v9849
        %v9851 = vpop.f32.mrf.mxu0
        %9852 = vmatprep.mubr.bf16.mxu0 %v4948
        %9853 = vmatmul.mubr.bf16.gmra.mxu0 %v4947
        %v9854 = vpop.f32.mrf.mxu0
        %v9855 = vadd.f32 %v9790, %v9854
        %v9856 = vpop.f32.mrf.mxu0
        %v9857 = vpop.f32.mrf.mxu0
        %v9858 = vadd.f32 %v9793, %v9857
        %v9859 = vpop.f32.mrf.mxu0
        %9860 = vdwg.mxu0
        %9861 = vmatprep.subr.bf16.mxu0 0
        %9862 = vmatpush1.bf16.xpose.msra.mxu0 0
        %9863 = vmatprep.subr.bf16.mxu0 0
        %9864 = vmatpush1.bf16.xpose.msra.mxu0 0
        %9865 = vmatprep.subr.bf16.mxu0 0
        %9866 = vmatpush1.bf16.xpose.msra.mxu0 0
        %9867 = vmatprep.subr.bf16.mxu0 0
        %9868 = vmatpush1.bf16.xpose.msra.mxu0 0
        %9869 = vmatprep.subr.bf16.mxu0 0
        %9870 = vmatpush1.bf16.xpose.msra.mxu0 0
        %9871 = vmatprep.subr.bf16.mxu0 0
        %9872 = vmatpush1.bf16.xpose.msra.mxu0 0
        %9873 = vmatprep.subr.bf16.mxu0 0
        %9874 = vmatpush1.bf16.xpose.msra.mxu0 0
        %9875 = vmatprep.subr.bf16.mxu0 %v1422
        %9876 = vmatpush1.bf16.xpose.msra.mxu0 %v1421
        %9877 = vmatprep.subr.bf16.mxu0 0
        %9878 = vmatpush2.bf16.xpose.msra.mxu0 0
        %9879 = vmatprep.subr.bf16.mxu0 0
        %9880 = vmatpush2.bf16.xpose.msra.mxu0 0
        %9881 = vmatprep.subr.bf16.mxu0 0
        %9882 = vmatpush2.bf16.xpose.msra.mxu0 0
        %9883 = vmatprep.subr.bf16.mxu0 0
        %9884 = vmatpush2.bf16.xpose.msra.mxu0 0
        %9885 = vmatprep.subr.bf16.mxu0 0
        %9886 = vmatpush2.bf16.xpose.msra.mxu0 0
        %9887 = vmatprep.subr.bf16.mxu0 0
        %9888 = vmatpush2.bf16.xpose.msra.mxu0 0
        %9889 = vmatprep.subr.bf16.mxu0 0
        %9890 = vmatpush2.bf16.xpose.msra.mxu0 0
        %9891 = vmatprep.subr.bf16.mxu0 0
        %9892 = vmatpush2.bf16.xpose.msra.mxu0 0
        %9893 = vmatprep.mubr.bf16.mxu0 %v4422
        %9894 = vmatmul.mubr.bf16.gmra.mxu0 %v4421
        %v9895 = vpop.f32.mrf.mxu0
        %v9896 = vadd.f32 %v9831, %v9895
        %v9897 = vpop.f32.mrf.mxu0
        %v9898 = vpop.f32.mrf.mxu0
        %v9899 = vadd.f32 %v9834, %v9898
        %v9900 = vpop.f32.mrf.mxu0
        %9901 = vmatprep.mubr.bf16.mxu0 %v4598
        %9902 = vmatmul.mubr.bf16.gmra.mxu0 %v4597
        %v9903 = vpop.f32.mrf.mxu0
        %v9904 = vadd.f32 %v9839, %v9903
        %v9905 = vpop.f32.mrf.mxu0
        %v9906 = vpop.f32.mrf.mxu0
        %v9907 = vadd.f32 %v9842, %v9906
        %v9908 = vpop.f32.mrf.mxu0
        %9909 = vmatprep.mubr.bf16.mxu0 %v4774
        %9910 = vmatmul.mubr.bf16.gmra.mxu0 %v4773
        %v9911 = vpop.f32.mrf.mxu0
        %v9912 = vadd.f32 %v9847, %v9911
        %v9913 = vpop.f32.mrf.mxu0
        %v9914 = vpop.f32.mrf.mxu0
        %v9915 = vadd.f32 %v9850, %v9914
        %v9916 = vpop.f32.mrf.mxu0
        %9917 = vmatprep.mubr.bf16.mxu0 %v4950
        %9918 = vmatmul.mubr.bf16.gmra.mxu0 %v4949
        %v9919 = vpop.f32.mrf.mxu0
        %v9920 = vadd.f32 %v9855, %v9919
        %v9921 = vpop.f32.mrf.mxu0
        %v9922 = vpop.f32.mrf.mxu0
        %v9923 = vadd.f32 %v9858, %v9922
        %v9924 = vpop.f32.mrf.mxu0
        %9925 = vdwg.mxu0
        %9926 = vmatprep.subr.bf16.mxu0 0
        %9927 = vmatpush1.bf16.xpose.msra.mxu0 0
        %9928 = vmatprep.subr.bf16.mxu0 0
        %9929 = vmatpush1.bf16.xpose.msra.mxu0 0
        %9930 = vmatprep.subr.bf16.mxu0 0
        %9931 = vmatpush1.bf16.xpose.msra.mxu0 0
        %9932 = vmatprep.subr.bf16.mxu0 0
        %9933 = vmatpush1.bf16.xpose.msra.mxu0 0
        %9934 = vmatprep.subr.bf16.mxu0 0
        %9935 = vmatpush1.bf16.xpose.msra.mxu0 0
        %9936 = vmatprep.subr.bf16.mxu0 0
        %9937 = vmatpush1.bf16.xpose.msra.mxu0 0
        %9938 = vmatprep.subr.bf16.mxu0 0
        %9939 = vmatpush1.bf16.xpose.msra.mxu0 0
        %9940 = vmatprep.subr.bf16.mxu0 %v1424
        %9941 = vmatpush1.bf16.xpose.msra.mxu0 %v1423
        %9942 = vmatprep.subr.bf16.mxu0 0
        %9943 = vmatpush2.bf16.xpose.msra.mxu0 0
        %9944 = vmatprep.subr.bf16.mxu0 0
        %9945 = vmatpush2.bf16.xpose.msra.mxu0 0
        %9946 = vmatprep.subr.bf16.mxu0 0
        %9947 = vmatpush2.bf16.xpose.msra.mxu0 0
        %9948 = vmatprep.subr.bf16.mxu0 0
        %9949 = vmatpush2.bf16.xpose.msra.mxu0 0
        %9950 = vmatprep.subr.bf16.mxu0 0
        %9951 = vmatpush2.bf16.xpose.msra.mxu0 0
        %9952 = vmatprep.subr.bf16.mxu0 0
        %9953 = vmatpush2.bf16.xpose.msra.mxu0 0
        %9954 = vmatprep.subr.bf16.mxu0 0
        %9955 = vmatpush2.bf16.xpose.msra.mxu0 0
        %9956 = vmatprep.subr.bf16.mxu0 0
        %9957 = vmatpush2.bf16.xpose.msra.mxu0 0
        %9958 = vmatprep.mubr.bf16.mxu0 %v4424
        %9959 = vmatmul.mubr.bf16.gmra.mxu0 %v4423
        %v9960 = vpop.f32.mrf.mxu0
        %v9961 = vadd.f32 %v9896, %v9960
        %v9962 = vpop.f32.mrf.mxu0
        %v9963 = vpop.f32.mrf.mxu0
        %v9964 = vadd.f32 %v9899, %v9963
        %v9965 = vpop.f32.mrf.mxu0
        %9966 = vmatprep.mubr.bf16.mxu0 %v4600
        %9967 = vmatmul.mubr.bf16.gmra.mxu0 %v4599
        %v9968 = vpop.f32.mrf.mxu0
        %v9969 = vadd.f32 %v9904, %v9968
        %v9970 = vpop.f32.mrf.mxu0
        %v9971 = vpop.f32.mrf.mxu0
        %v9972 = vadd.f32 %v9907, %v9971
        %v9973 = vpop.f32.mrf.mxu0
        %9974 = vmatprep.mubr.bf16.mxu0 %v4776
        %9975 = vmatmul.mubr.bf16.gmra.mxu0 %v4775
        %v9976 = vpop.f32.mrf.mxu0
        %v9977 = vadd.f32 %v9912, %v9976
        %v9978 = vpop.f32.mrf.mxu0
        %v9979 = vpop.f32.mrf.mxu0
        %v9980 = vadd.f32 %v9915, %v9979
        %v9981 = vpop.f32.mrf.mxu0
        %9982 = vmatprep.mubr.bf16.mxu0 %v4952
        %9983 = vmatmul.mubr.bf16.gmra.mxu0 %v4951
        %v9984 = vpop.f32.mrf.mxu0
        %v9985 = vadd.f32 %v9920, %v9984
        %v9986 = vpop.f32.mrf.mxu0
        %v9987 = vpop.f32.mrf.mxu0
        %v9988 = vadd.f32 %v9923, %v9987
        %v9989 = vpop.f32.mrf.mxu0
        %9990 = vdwg.mxu0
        %9991 = vmatprep.subr.bf16.mxu0 0
        %9992 = vmatpush1.bf16.xpose.msra.mxu0 0
        %9993 = vmatprep.subr.bf16.mxu0 0
        %9994 = vmatpush1.bf16.xpose.msra.mxu0 0
        %9995 = vmatprep.subr.bf16.mxu0 0
        %9996 = vmatpush1.bf16.xpose.msra.mxu0 0
        %9997 = vmatprep.subr.bf16.mxu0 0
        %9998 = vmatpush1.bf16.xpose.msra.mxu0 0
        %9999 = vmatprep.subr.bf16.mxu0 0
        %10000 = vmatpush1.bf16.xpose.msra.mxu0 0
        %10001 = vmatprep.subr.bf16.mxu0 0
        %10002 = vmatpush1.bf16.xpose.msra.mxu0 0
        %10003 = vmatprep.subr.bf16.mxu0 0
        %10004 = vmatpush1.bf16.xpose.msra.mxu0 0
        %10005 = vmatprep.subr.bf16.mxu0 %v1426
        %10006 = vmatpush1.bf16.xpose.msra.mxu0 %v1425
        %10007 = vmatprep.subr.bf16.mxu0 0
        %10008 = vmatpush2.bf16.xpose.msra.mxu0 0
        %10009 = vmatprep.subr.bf16.mxu0 0
        %10010 = vmatpush2.bf16.xpose.msra.mxu0 0
        %10011 = vmatprep.subr.bf16.mxu0 0
        %10012 = vmatpush2.bf16.xpose.msra.mxu0 0
        %10013 = vmatprep.subr.bf16.mxu0 0
        %10014 = vmatpush2.bf16.xpose.msra.mxu0 0
        %10015 = vmatprep.subr.bf16.mxu0 0
        %10016 = vmatpush2.bf16.xpose.msra.mxu0 0
        %10017 = vmatprep.subr.bf16.mxu0 0
        %10018 = vmatpush2.bf16.xpose.msra.mxu0 0
        %10019 = vmatprep.subr.bf16.mxu0 0
        %10020 = vmatpush2.bf16.xpose.msra.mxu0 0
        %10021 = vmatprep.subr.bf16.mxu0 0
        %10022 = vmatpush2.bf16.xpose.msra.mxu0 0
        %10023 = vmatprep.mubr.bf16.mxu0 %v4426
        %10024 = vmatmul.mubr.bf16.gmra.mxu0 %v4425
        %v10025 = vpop.f32.mrf.mxu0
        %v10026 = vadd.f32 %v9961, %v10025
        %v10027 = vpop.f32.mrf.mxu0
        %v10028 = vpop.f32.mrf.mxu0
        %v10029 = vadd.f32 %v9964, %v10028
        %v10030 = vpop.f32.mrf.mxu0
        %10031 = vmatprep.mubr.bf16.mxu0 %v4602
        %10032 = vmatmul.mubr.bf16.gmra.mxu0 %v4601
        %v10033 = vpop.f32.mrf.mxu0
        %v10034 = vadd.f32 %v9969, %v10033
        %v10035 = vpop.f32.mrf.mxu0
        %v10036 = vpop.f32.mrf.mxu0
        %v10037 = vadd.f32 %v9972, %v10036
        %v10038 = vpop.f32.mrf.mxu0
        %10039 = vmatprep.mubr.bf16.mxu0 %v4778
        %10040 = vmatmul.mubr.bf16.gmra.mxu0 %v4777
        %v10041 = vpop.f32.mrf.mxu0
        %v10042 = vadd.f32 %v9977, %v10041
        %v10043 = vpop.f32.mrf.mxu0
        %v10044 = vpop.f32.mrf.mxu0
        %v10045 = vadd.f32 %v9980, %v10044
        %v10046 = vpop.f32.mrf.mxu0
        %10047 = vmatprep.mubr.bf16.mxu0 %v4954
        %10048 = vmatmul.mubr.bf16.gmra.mxu0 %v4953
        %v10049 = vpop.f32.mrf.mxu0
        %v10050 = vadd.f32 %v9985, %v10049
        %v10051 = vpop.f32.mrf.mxu0
        %v10052 = vpop.f32.mrf.mxu0
        %v10053 = vadd.f32 %v9988, %v10052
        %v10054 = vpop.f32.mrf.mxu0
        %10055 = vdwg.mxu0
        %10056 = vmatprep.subr.bf16.mxu0 0
        %10057 = vmatpush1.bf16.xpose.msra.mxu0 0
        %10058 = vmatprep.subr.bf16.mxu0 0
        %10059 = vmatpush1.bf16.xpose.msra.mxu0 0
        %10060 = vmatprep.subr.bf16.mxu0 0
        %10061 = vmatpush1.bf16.xpose.msra.mxu0 0
        %10062 = vmatprep.subr.bf16.mxu0 0
        %10063 = vmatpush1.bf16.xpose.msra.mxu0 0
        %10064 = vmatprep.subr.bf16.mxu0 0
        %10065 = vmatpush1.bf16.xpose.msra.mxu0 0
        %10066 = vmatprep.subr.bf16.mxu0 0
        %10067 = vmatpush1.bf16.xpose.msra.mxu0 0
        %10068 = vmatprep.subr.bf16.mxu0 0
        %10069 = vmatpush1.bf16.xpose.msra.mxu0 0
        %10070 = vmatprep.subr.bf16.mxu0 %v1428
        %10071 = vmatpush1.bf16.xpose.msra.mxu0 %v1427
        %10072 = vmatprep.subr.bf16.mxu0 0
        %10073 = vmatpush2.bf16.xpose.msra.mxu0 0
        %10074 = vmatprep.subr.bf16.mxu0 0
        %10075 = vmatpush2.bf16.xpose.msra.mxu0 0
        %10076 = vmatprep.subr.bf16.mxu0 0
        %10077 = vmatpush2.bf16.xpose.msra.mxu0 0
        %10078 = vmatprep.subr.bf16.mxu0 0
        %10079 = vmatpush2.bf16.xpose.msra.mxu0 0
        %10080 = vmatprep.subr.bf16.mxu0 0
        %10081 = vmatpush2.bf16.xpose.msra.mxu0 0
        %10082 = vmatprep.subr.bf16.mxu0 0
        %10083 = vmatpush2.bf16.xpose.msra.mxu0 0
        %10084 = vmatprep.subr.bf16.mxu0 0
        %10085 = vmatpush2.bf16.xpose.msra.mxu0 0
        %10086 = vmatprep.subr.bf16.mxu0 0
        %10087 = vmatpush2.bf16.xpose.msra.mxu0 0
        %10088 = vmatprep.mubr.bf16.mxu0 %v4428
        %10089 = vmatmul.mubr.bf16.gmra.mxu0 %v4427
        %v10090 = vpop.f32.mrf.mxu0
        %v10091 = vadd.f32 %v10026, %v10090
        %v10092 = vpop.f32.mrf.mxu0
        %v10093 = vpop.f32.mrf.mxu0
        %v10094 = vadd.f32 %v10029, %v10093
        %v10095 = vpop.f32.mrf.mxu0
        %10096 = vmatprep.mubr.bf16.mxu0 %v4604
        %10097 = vmatmul.mubr.bf16.gmra.mxu0 %v4603
        %v10098 = vpop.f32.mrf.mxu0
        %v10099 = vadd.f32 %v10034, %v10098
        %v10100 = vpop.f32.mrf.mxu0
        %v10101 = vpop.f32.mrf.mxu0
        %v10102 = vadd.f32 %v10037, %v10101
        %v10103 = vpop.f32.mrf.mxu0
        %10104 = vmatprep.mubr.bf16.mxu0 %v4780
        %10105 = vmatmul.mubr.bf16.gmra.mxu0 %v4779
        %v10106 = vpop.f32.mrf.mxu0
        %v10107 = vadd.f32 %v10042, %v10106
        %v10108 = vpop.f32.mrf.mxu0
        %v10109 = vpop.f32.mrf.mxu0
        %v10110 = vadd.f32 %v10045, %v10109
        %v10111 = vpop.f32.mrf.mxu0
        %10112 = vmatprep.mubr.bf16.mxu0 %v4956
        %10113 = vmatmul.mubr.bf16.gmra.mxu0 %v4955
        %v10114 = vpop.f32.mrf.mxu0
        %v10115 = vadd.f32 %v10050, %v10114
        %v10116 = vpop.f32.mrf.mxu0
        %v10117 = vpop.f32.mrf.mxu0
        %v10118 = vadd.f32 %v10053, %v10117
        %v10119 = vpop.f32.mrf.mxu0
        %10120 = vdwg.mxu0
        %10121 = vmatprep.subr.bf16.mxu0 0
        %10122 = vmatpush1.bf16.xpose.msra.mxu0 0
        %10123 = vmatprep.subr.bf16.mxu0 0
        %10124 = vmatpush1.bf16.xpose.msra.mxu0 0
        %10125 = vmatprep.subr.bf16.mxu0 0
        %10126 = vmatpush1.bf16.xpose.msra.mxu0 0
        %10127 = vmatprep.subr.bf16.mxu0 0
        %10128 = vmatpush1.bf16.xpose.msra.mxu0 0
        %10129 = vmatprep.subr.bf16.mxu0 0
        %10130 = vmatpush1.bf16.xpose.msra.mxu0 0
        %10131 = vmatprep.subr.bf16.mxu0 0
        %10132 = vmatpush1.bf16.xpose.msra.mxu0 0
        %10133 = vmatprep.subr.bf16.mxu0 0
        %10134 = vmatpush1.bf16.xpose.msra.mxu0 0
        %10135 = vmatprep.subr.bf16.mxu0 %v1430
        %10136 = vmatpush1.bf16.xpose.msra.mxu0 %v1429
        %10137 = vmatprep.subr.bf16.mxu0 0
        %10138 = vmatpush2.bf16.xpose.msra.mxu0 0
        %10139 = vmatprep.subr.bf16.mxu0 0
        %10140 = vmatpush2.bf16.xpose.msra.mxu0 0
        %10141 = vmatprep.subr.bf16.mxu0 0
        %10142 = vmatpush2.bf16.xpose.msra.mxu0 0
        %10143 = vmatprep.subr.bf16.mxu0 0
        %10144 = vmatpush2.bf16.xpose.msra.mxu0 0
        %10145 = vmatprep.subr.bf16.mxu0 0
        %10146 = vmatpush2.bf16.xpose.msra.mxu0 0
        %10147 = vmatprep.subr.bf16.mxu0 0
        %10148 = vmatpush2.bf16.xpose.msra.mxu0 0
        %10149 = vmatprep.subr.bf16.mxu0 0
        %10150 = vmatpush2.bf16.xpose.msra.mxu0 0
        %10151 = vmatprep.subr.bf16.mxu0 0
        %10152 = vmatpush2.bf16.xpose.msra.mxu0 0
        %10153 = vmatprep.mubr.bf16.mxu0 %v4430
        %10154 = vmatmul.mubr.bf16.gmra.mxu0 %v4429
        %v10155 = vpop.f32.mrf.mxu0
        %v10156 = vadd.f32 %v10091, %v10155
        %v10157 = vpop.f32.mrf.mxu0
        %v10158 = vpop.f32.mrf.mxu0
        %v10159 = vadd.f32 %v10094, %v10158
        %v10160 = vpop.f32.mrf.mxu0
        %10161 = vmatprep.mubr.bf16.mxu0 %v4606
        %10162 = vmatmul.mubr.bf16.gmra.mxu0 %v4605
        %v10163 = vpop.f32.mrf.mxu0
        %v10164 = vadd.f32 %v10099, %v10163
        %v10165 = vpop.f32.mrf.mxu0
        %v10166 = vpop.f32.mrf.mxu0
        %v10167 = vadd.f32 %v10102, %v10166
        %v10168 = vpop.f32.mrf.mxu0
        %10169 = vmatprep.mubr.bf16.mxu0 %v4782
        %10170 = vmatmul.mubr.bf16.gmra.mxu0 %v4781
        %v10171 = vpop.f32.mrf.mxu0
        %v10172 = vadd.f32 %v10107, %v10171
        %v10173 = vpop.f32.mrf.mxu0
        %v10174 = vpop.f32.mrf.mxu0
        %v10175 = vadd.f32 %v10110, %v10174
        %v10176 = vpop.f32.mrf.mxu0
        %10177 = vmatprep.mubr.bf16.mxu0 %v4958
        %10178 = vmatmul.mubr.bf16.gmra.mxu0 %v4957
        %v10179 = vpop.f32.mrf.mxu0
        %v10180 = vadd.f32 %v10115, %v10179
        %v10181 = vpop.f32.mrf.mxu0
        %v10182 = vpop.f32.mrf.mxu0
        %v10183 = vadd.f32 %v10118, %v10182
        %v10184 = vpop.f32.mrf.mxu0
        %10185 = vdwg.mxu0
        %10186 = vmatprep.subr.bf16.mxu0 0
        %10187 = vmatpush1.bf16.xpose.msra.mxu0 0
        %10188 = vmatprep.subr.bf16.mxu0 0
        %10189 = vmatpush1.bf16.xpose.msra.mxu0 0
        %10190 = vmatprep.subr.bf16.mxu0 0
        %10191 = vmatpush1.bf16.xpose.msra.mxu0 0
        %10192 = vmatprep.subr.bf16.mxu0 0
        %10193 = vmatpush1.bf16.xpose.msra.mxu0 0
        %10194 = vmatprep.subr.bf16.mxu0 0
        %10195 = vmatpush1.bf16.xpose.msra.mxu0 0
        %10196 = vmatprep.subr.bf16.mxu0 0
        %10197 = vmatpush1.bf16.xpose.msra.mxu0 0
        %10198 = vmatprep.subr.bf16.mxu0 0
        %10199 = vmatpush1.bf16.xpose.msra.mxu0 0
        %10200 = vmatprep.subr.bf16.mxu0 %v1432
        %10201 = vmatpush1.bf16.xpose.msra.mxu0 %v1431
        %10202 = vmatprep.subr.bf16.mxu0 0
        %10203 = vmatpush2.bf16.xpose.msra.mxu0 0
        %10204 = vmatprep.subr.bf16.mxu0 0
        %10205 = vmatpush2.bf16.xpose.msra.mxu0 0
        %10206 = vmatprep.subr.bf16.mxu0 0
        %10207 = vmatpush2.bf16.xpose.msra.mxu0 0
        %10208 = vmatprep.subr.bf16.mxu0 0
        %10209 = vmatpush2.bf16.xpose.msra.mxu0 0
        %10210 = vmatprep.subr.bf16.mxu0 0
        %10211 = vmatpush2.bf16.xpose.msra.mxu0 0
        %10212 = vmatprep.subr.bf16.mxu0 0
        %10213 = vmatpush2.bf16.xpose.msra.mxu0 0
        %10214 = vmatprep.subr.bf16.mxu0 0
        %10215 = vmatpush2.bf16.xpose.msra.mxu0 0
        %10216 = vmatprep.subr.bf16.mxu0 0
        %10217 = vmatpush2.bf16.xpose.msra.mxu0 0
        %10218 = vmatprep.mubr.bf16.mxu0 %v4432
        %10219 = vmatmul.mubr.bf16.gmra.mxu0 %v4431
        %v10220 = vpop.f32.mrf.mxu0
        %v10221 = vadd.f32 %v10156, %v10220
        %v10222 = vpop.f32.mrf.mxu0
        %v10223 = vpop.f32.mrf.mxu0
        %v10224 = vadd.f32 %v10159, %v10223
        %v10225 = vpop.f32.mrf.mxu0
        %10226 = vmatprep.mubr.bf16.mxu0 %v4608
        %10227 = vmatmul.mubr.bf16.gmra.mxu0 %v4607
        %v10228 = vpop.f32.mrf.mxu0
        %v10229 = vadd.f32 %v10164, %v10228
        %v10230 = vpop.f32.mrf.mxu0
        %v10231 = vpop.f32.mrf.mxu0
        %v10232 = vadd.f32 %v10167, %v10231
        %v10233 = vpop.f32.mrf.mxu0
        %10234 = vmatprep.mubr.bf16.mxu0 %v4784
        %10235 = vmatmul.mubr.bf16.gmra.mxu0 %v4783
        %v10236 = vpop.f32.mrf.mxu0
        %v10237 = vadd.f32 %v10172, %v10236
        %v10238 = vpop.f32.mrf.mxu0
        %v10239 = vpop.f32.mrf.mxu0
        %v10240 = vadd.f32 %v10175, %v10239
        %v10241 = vpop.f32.mrf.mxu0
        %10242 = vmatprep.mubr.bf16.mxu0 %v4960
        %10243 = vmatmul.mubr.bf16.gmra.mxu0 %v4959
        %v10244 = vpop.f32.mrf.mxu0
        %v10245 = vadd.f32 %v10180, %v10244
        %v10246 = vpop.f32.mrf.mxu0
        %v10247 = vpop.f32.mrf.mxu0
        %v10248 = vadd.f32 %v10183, %v10247
        %v10249 = vpop.f32.mrf.mxu0
        %10250 = vdwg.mxu0
        %10251 = vmatprep.subr.bf16.mxu0 0
        %10252 = vmatpush1.bf16.xpose.msra.mxu0 0
        %10253 = vmatprep.subr.bf16.mxu0 0
        %10254 = vmatpush1.bf16.xpose.msra.mxu0 0
        %10255 = vmatprep.subr.bf16.mxu0 0
        %10256 = vmatpush1.bf16.xpose.msra.mxu0 0
        %10257 = vmatprep.subr.bf16.mxu0 0
        %10258 = vmatpush1.bf16.xpose.msra.mxu0 0
        %10259 = vmatprep.subr.bf16.mxu0 0
        %10260 = vmatpush1.bf16.xpose.msra.mxu0 0
        %10261 = vmatprep.subr.bf16.mxu0 0
        %10262 = vmatpush1.bf16.xpose.msra.mxu0 0
        %10263 = vmatprep.subr.bf16.mxu0 0
        %10264 = vmatpush1.bf16.xpose.msra.mxu0 0
        %10265 = vmatprep.subr.bf16.mxu0 %v1434
        %10266 = vmatpush1.bf16.xpose.msra.mxu0 %v1433
        %10267 = vmatprep.subr.bf16.mxu0 0
        %10268 = vmatpush2.bf16.xpose.msra.mxu0 0
        %10269 = vmatprep.subr.bf16.mxu0 0
        %10270 = vmatpush2.bf16.xpose.msra.mxu0 0
        %10271 = vmatprep.subr.bf16.mxu0 0
        %10272 = vmatpush2.bf16.xpose.msra.mxu0 0
        %10273 = vmatprep.subr.bf16.mxu0 0
        %10274 = vmatpush2.bf16.xpose.msra.mxu0 0
        %10275 = vmatprep.subr.bf16.mxu0 0
        %10276 = vmatpush2.bf16.xpose.msra.mxu0 0
        %10277 = vmatprep.subr.bf16.mxu0 0
        %10278 = vmatpush2.bf16.xpose.msra.mxu0 0
        %10279 = vmatprep.subr.bf16.mxu0 0
        %10280 = vmatpush2.bf16.xpose.msra.mxu0 0
        %10281 = vmatprep.subr.bf16.mxu0 0
        %10282 = vmatpush2.bf16.xpose.msra.mxu0 0
        %10283 = vmatprep.mubr.bf16.mxu0 %v4434
        %10284 = vmatmul.mubr.bf16.gmra.mxu0 %v4433
        %v10285 = vpop.f32.mrf.mxu0
        %v10286 = vadd.f32 %v10221, %v10285
        %v10287 = vpop.f32.mrf.mxu0
        %v10288 = vpop.f32.mrf.mxu0
        %v10289 = vadd.f32 %v10224, %v10288
        %v10290 = vpop.f32.mrf.mxu0
        %10291 = vmatprep.mubr.bf16.mxu0 %v4610
        %10292 = vmatmul.mubr.bf16.gmra.mxu0 %v4609
        %v10293 = vpop.f32.mrf.mxu0
        %v10294 = vadd.f32 %v10229, %v10293
        %v10295 = vpop.f32.mrf.mxu0
        %v10296 = vpop.f32.mrf.mxu0
        %v10297 = vadd.f32 %v10232, %v10296
        %v10298 = vpop.f32.mrf.mxu0
        %10299 = vmatprep.mubr.bf16.mxu0 %v4786
        %10300 = vmatmul.mubr.bf16.gmra.mxu0 %v4785
        %v10301 = vpop.f32.mrf.mxu0
        %v10302 = vadd.f32 %v10237, %v10301
        %v10303 = vpop.f32.mrf.mxu0
        %v10304 = vpop.f32.mrf.mxu0
        %v10305 = vadd.f32 %v10240, %v10304
        %v10306 = vpop.f32.mrf.mxu0
        %10307 = vmatprep.mubr.bf16.mxu0 %v4962
        %10308 = vmatmul.mubr.bf16.gmra.mxu0 %v4961
        %v10309 = vpop.f32.mrf.mxu0
        %v10310 = vadd.f32 %v10245, %v10309
        %v10311 = vpop.f32.mrf.mxu0
        %v10312 = vpop.f32.mrf.mxu0
        %v10313 = vadd.f32 %v10248, %v10312
        %v10314 = vpop.f32.mrf.mxu0
        %10315 = vdwg.mxu0
        %10316 = vmatprep.subr.bf16.mxu0 0
        %10317 = vmatpush1.bf16.xpose.msra.mxu0 0
        %10318 = vmatprep.subr.bf16.mxu0 0
        %10319 = vmatpush1.bf16.xpose.msra.mxu0 0
        %10320 = vmatprep.subr.bf16.mxu0 0
        %10321 = vmatpush1.bf16.xpose.msra.mxu0 0
        %10322 = vmatprep.subr.bf16.mxu0 0
        %10323 = vmatpush1.bf16.xpose.msra.mxu0 0
        %10324 = vmatprep.subr.bf16.mxu0 0
        %10325 = vmatpush1.bf16.xpose.msra.mxu0 0
        %10326 = vmatprep.subr.bf16.mxu0 0
        %10327 = vmatpush1.bf16.xpose.msra.mxu0 0
        %10328 = vmatprep.subr.bf16.mxu0 0
        %10329 = vmatpush1.bf16.xpose.msra.mxu0 0
        %10330 = vmatprep.subr.bf16.mxu0 %v1436
        %10331 = vmatpush1.bf16.xpose.msra.mxu0 %v1435
        %10332 = vmatprep.subr.bf16.mxu0 0
        %10333 = vmatpush2.bf16.xpose.msra.mxu0 0
        %10334 = vmatprep.subr.bf16.mxu0 0
        %10335 = vmatpush2.bf16.xpose.msra.mxu0 0
        %10336 = vmatprep.subr.bf16.mxu0 0
        %10337 = vmatpush2.bf16.xpose.msra.mxu0 0
        %10338 = vmatprep.subr.bf16.mxu0 0
        %10339 = vmatpush2.bf16.xpose.msra.mxu0 0
        %10340 = vmatprep.subr.bf16.mxu0 0
        %10341 = vmatpush2.bf16.xpose.msra.mxu0 0
        %10342 = vmatprep.subr.bf16.mxu0 0
        %10343 = vmatpush2.bf16.xpose.msra.mxu0 0
        %10344 = vmatprep.subr.bf16.mxu0 0
        %10345 = vmatpush2.bf16.xpose.msra.mxu0 0
        %10346 = vmatprep.subr.bf16.mxu0 0
        %10347 = vmatpush2.bf16.xpose.msra.mxu0 0
        %10348 = vmatprep.mubr.bf16.mxu0 %v4436
        %10349 = vmatmul.mubr.bf16.gmra.mxu0 %v4435
        %v10350 = vpop.f32.mrf.mxu0
        %v10351 = vadd.f32 %v10286, %v10350
        %v10352 = vpop.f32.mrf.mxu0
        %v10353 = vpop.f32.mrf.mxu0
        %v10354 = vadd.f32 %v10289, %v10353
        %v10355 = vpop.f32.mrf.mxu0
        %10356 = vmatprep.mubr.bf16.mxu0 %v4612
        %10357 = vmatmul.mubr.bf16.gmra.mxu0 %v4611
        %v10358 = vpop.f32.mrf.mxu0
        %v10359 = vadd.f32 %v10294, %v10358
        %v10360 = vpop.f32.mrf.mxu0
        %v10361 = vpop.f32.mrf.mxu0
        %v10362 = vadd.f32 %v10297, %v10361
        %v10363 = vpop.f32.mrf.mxu0
        %10364 = vmatprep.mubr.bf16.mxu0 %v4788
        %10365 = vmatmul.mubr.bf16.gmra.mxu0 %v4787
        %v10366 = vpop.f32.mrf.mxu0
        %v10367 = vadd.f32 %v10302, %v10366
        %v10368 = vpop.f32.mrf.mxu0
        %v10369 = vpop.f32.mrf.mxu0
        %v10370 = vadd.f32 %v10305, %v10369
        %v10371 = vpop.f32.mrf.mxu0
        %10372 = vmatprep.mubr.bf16.mxu0 %v4964
        %10373 = vmatmul.mubr.bf16.gmra.mxu0 %v4963
        %v10374 = vpop.f32.mrf.mxu0
        %v10375 = vadd.f32 %v10310, %v10374
        %v10376 = vpop.f32.mrf.mxu0
        %v10377 = vpop.f32.mrf.mxu0
        %v10378 = vadd.f32 %v10313, %v10377
        %v10379 = vpop.f32.mrf.mxu0
        %10380 = vdwg.mxu0
        %10381 = vmatprep.subr.bf16.mxu0 0
        %10382 = vmatpush1.bf16.xpose.msra.mxu0 0
        %10383 = vmatprep.subr.bf16.mxu0 0
        %10384 = vmatpush1.bf16.xpose.msra.mxu0 0
        %10385 = vmatprep.subr.bf16.mxu0 0
        %10386 = vmatpush1.bf16.xpose.msra.mxu0 0
        %10387 = vmatprep.subr.bf16.mxu0 0
        %10388 = vmatpush1.bf16.xpose.msra.mxu0 0
        %10389 = vmatprep.subr.bf16.mxu0 0
        %10390 = vmatpush1.bf16.xpose.msra.mxu0 0
        %10391 = vmatprep.subr.bf16.mxu0 0
        %10392 = vmatpush1.bf16.xpose.msra.mxu0 0
        %10393 = vmatprep.subr.bf16.mxu0 0
        %10394 = vmatpush1.bf16.xpose.msra.mxu0 0
        %10395 = vmatprep.subr.bf16.mxu0 %v1438
        %10396 = vmatpush1.bf16.xpose.msra.mxu0 %v1437
        %10397 = vmatprep.subr.bf16.mxu0 0
        %10398 = vmatpush2.bf16.xpose.msra.mxu0 0
        %10399 = vmatprep.subr.bf16.mxu0 0
        %10400 = vmatpush2.bf16.xpose.msra.mxu0 0
        %10401 = vmatprep.subr.bf16.mxu0 0
        %10402 = vmatpush2.bf16.xpose.msra.mxu0 0
        %10403 = vmatprep.subr.bf16.mxu0 0
        %10404 = vmatpush2.bf16.xpose.msra.mxu0 0
        %10405 = vmatprep.subr.bf16.mxu0 0
        %10406 = vmatpush2.bf16.xpose.msra.mxu0 0
        %10407 = vmatprep.subr.bf16.mxu0 0
        %10408 = vmatpush2.bf16.xpose.msra.mxu0 0
        %10409 = vmatprep.subr.bf16.mxu0 0
        %10410 = vmatpush2.bf16.xpose.msra.mxu0 0
        %10411 = vmatprep.subr.bf16.mxu0 0
        %10412 = vmatpush2.bf16.xpose.msra.mxu0 0
        %10413 = vmatprep.mubr.bf16.mxu0 %v4438
        %10414 = vmatmul.mubr.bf16.gmra.mxu0 %v4437
        %v10415 = vpop.f32.mrf.mxu0
        %v10416 = vadd.f32 %v10351, %v10415
        %v10417 = vpop.f32.mrf.mxu0
        %v10418 = vpop.f32.mrf.mxu0
        %v10419 = vadd.f32 %v10354, %v10418
        %v10420 = vpop.f32.mrf.mxu0
        %10421 = vmatprep.mubr.bf16.mxu0 %v4614
        %10422 = vmatmul.mubr.bf16.gmra.mxu0 %v4613
        %v10423 = vpop.f32.mrf.mxu0
        %v10424 = vadd.f32 %v10359, %v10423
        %v10425 = vpop.f32.mrf.mxu0
        %v10426 = vpop.f32.mrf.mxu0
        %v10427 = vadd.f32 %v10362, %v10426
        %v10428 = vpop.f32.mrf.mxu0
        %10429 = vmatprep.mubr.bf16.mxu0 %v4790
        %10430 = vmatmul.mubr.bf16.gmra.mxu0 %v4789
        %v10431 = vpop.f32.mrf.mxu0
        %v10432 = vadd.f32 %v10367, %v10431
        %v10433 = vpop.f32.mrf.mxu0
        %v10434 = vpop.f32.mrf.mxu0
        %v10435 = vadd.f32 %v10370, %v10434
        %v10436 = vpop.f32.mrf.mxu0
        %10437 = vmatprep.mubr.bf16.mxu0 %v4966
        %10438 = vmatmul.mubr.bf16.gmra.mxu0 %v4965
        %v10439 = vpop.f32.mrf.mxu0
        %v10440 = vadd.f32 %v10375, %v10439
        %v10441 = vpop.f32.mrf.mxu0
        %v10442 = vpop.f32.mrf.mxu0
        %v10443 = vadd.f32 %v10378, %v10442
        %v10444 = vpop.f32.mrf.mxu0
        %10445 = vdwg.mxu0
        %10446 = vmatprep.subr.bf16.mxu0 0
        %10447 = vmatpush1.bf16.xpose.msra.mxu0 0
        %10448 = vmatprep.subr.bf16.mxu0 0
        %10449 = vmatpush1.bf16.xpose.msra.mxu0 0
        %10450 = vmatprep.subr.bf16.mxu0 0
        %10451 = vmatpush1.bf16.xpose.msra.mxu0 0
        %10452 = vmatprep.subr.bf16.mxu0 0
        %10453 = vmatpush1.bf16.xpose.msra.mxu0 0
        %10454 = vmatprep.subr.bf16.mxu0 0
        %10455 = vmatpush1.bf16.xpose.msra.mxu0 0
        %10456 = vmatprep.subr.bf16.mxu0 0
        %10457 = vmatpush1.bf16.xpose.msra.mxu0 0
        %10458 = vmatprep.subr.bf16.mxu0 0
        %10459 = vmatpush1.bf16.xpose.msra.mxu0 0
        %10460 = vmatprep.subr.bf16.mxu0 %v1440
        %10461 = vmatpush1.bf16.xpose.msra.mxu0 %v1439
        %10462 = vmatprep.subr.bf16.mxu0 0
        %10463 = vmatpush2.bf16.xpose.msra.mxu0 0
        %10464 = vmatprep.subr.bf16.mxu0 0
        %10465 = vmatpush2.bf16.xpose.msra.mxu0 0
        %10466 = vmatprep.subr.bf16.mxu0 0
        %10467 = vmatpush2.bf16.xpose.msra.mxu0 0
        %10468 = vmatprep.subr.bf16.mxu0 0
        %10469 = vmatpush2.bf16.xpose.msra.mxu0 0
        %10470 = vmatprep.subr.bf16.mxu0 0
        %10471 = vmatpush2.bf16.xpose.msra.mxu0 0
        %10472 = vmatprep.subr.bf16.mxu0 0
        %10473 = vmatpush2.bf16.xpose.msra.mxu0 0
        %10474 = vmatprep.subr.bf16.mxu0 0
        %10475 = vmatpush2.bf16.xpose.msra.mxu0 0
        %10476 = vmatprep.subr.bf16.mxu0 0
        %10477 = vmatpush2.bf16.xpose.msra.mxu0 0
        %10478 = vmatprep.mubr.bf16.mxu0 %v4440
        %10479 = vmatmul.mubr.bf16.gmra.mxu0 %v4439
        %v10480 = vpop.f32.mrf.mxu0
        %v10481 = vadd.f32 %v10416, %v10480
        %v10482 = vpop.f32.mrf.mxu0
        %v10483 = vpop.f32.mrf.mxu0
        %v10484 = vadd.f32 %v10419, %v10483
        %v10485 = vpop.f32.mrf.mxu0
        %10486 = vmatprep.mubr.bf16.mxu0 %v4616
        %10487 = vmatmul.mubr.bf16.gmra.mxu0 %v4615
        %v10488 = vpop.f32.mrf.mxu0
        %v10489 = vadd.f32 %v10424, %v10488
        %v10490 = vpop.f32.mrf.mxu0
        %v10491 = vpop.f32.mrf.mxu0
        %v10492 = vadd.f32 %v10427, %v10491
        %v10493 = vpop.f32.mrf.mxu0
        %10494 = vmatprep.mubr.bf16.mxu0 %v4792
        %10495 = vmatmul.mubr.bf16.gmra.mxu0 %v4791
        %v10496 = vpop.f32.mrf.mxu0
        %v10497 = vadd.f32 %v10432, %v10496
        %v10498 = vpop.f32.mrf.mxu0
        %v10499 = vpop.f32.mrf.mxu0
        %v10500 = vadd.f32 %v10435, %v10499
        %v10501 = vpop.f32.mrf.mxu0
        %10502 = vmatprep.mubr.bf16.mxu0 %v4968
        %10503 = vmatmul.mubr.bf16.gmra.mxu0 %v4967
        %v10504 = vpop.f32.mrf.mxu0
        %v10505 = vadd.f32 %v10440, %v10504
        %v10506 = vpop.f32.mrf.mxu0
        %v10507 = vpop.f32.mrf.mxu0
        %v10508 = vadd.f32 %v10443, %v10507
        %v10509 = vpop.f32.mrf.mxu0
        %10510 = vdwg.mxu0
        %10511 = vmatprep.subr.bf16.mxu0 0
        %10512 = vmatpush1.bf16.xpose.msra.mxu0 0
        %10513 = vmatprep.subr.bf16.mxu0 0
        %10514 = vmatpush1.bf16.xpose.msra.mxu0 0
        %10515 = vmatprep.subr.bf16.mxu0 0
        %10516 = vmatpush1.bf16.xpose.msra.mxu0 0
        %10517 = vmatprep.subr.bf16.mxu0 0
        %10518 = vmatpush1.bf16.xpose.msra.mxu0 0
        %10519 = vmatprep.subr.bf16.mxu0 0
        %10520 = vmatpush1.bf16.xpose.msra.mxu0 0
        %10521 = vmatprep.subr.bf16.mxu0 0
        %10522 = vmatpush1.bf16.xpose.msra.mxu0 0
        %10523 = vmatprep.subr.bf16.mxu0 0
        %10524 = vmatpush1.bf16.xpose.msra.mxu0 0
        %10525 = vmatprep.subr.bf16.mxu0 %v1442
        %10526 = vmatpush1.bf16.xpose.msra.mxu0 %v1441
        %10527 = vmatprep.subr.bf16.mxu0 0
        %10528 = vmatpush2.bf16.xpose.msra.mxu0 0
        %10529 = vmatprep.subr.bf16.mxu0 0
        %10530 = vmatpush2.bf16.xpose.msra.mxu0 0
        %10531 = vmatprep.subr.bf16.mxu0 0
        %10532 = vmatpush2.bf16.xpose.msra.mxu0 0
        %10533 = vmatprep.subr.bf16.mxu0 0
        %10534 = vmatpush2.bf16.xpose.msra.mxu0 0
        %10535 = vmatprep.subr.bf16.mxu0 0
        %10536 = vmatpush2.bf16.xpose.msra.mxu0 0
        %10537 = vmatprep.subr.bf16.mxu0 0
        %10538 = vmatpush2.bf16.xpose.msra.mxu0 0
        %10539 = vmatprep.subr.bf16.mxu0 0
        %10540 = vmatpush2.bf16.xpose.msra.mxu0 0
        %10541 = vmatprep.subr.bf16.mxu0 0
        %10542 = vmatpush2.bf16.xpose.msra.mxu0 0
        %10543 = vmatprep.mubr.bf16.mxu0 %v4442
        %10544 = vmatmul.mubr.bf16.gmra.mxu0 %v4441
        %v10545 = vpop.f32.mrf.mxu0
        %v10546 = vadd.f32 %v10481, %v10545
        %v10547 = vpop.f32.mrf.mxu0
        %v10548 = vpop.f32.mrf.mxu0
        %v10549 = vadd.f32 %v10484, %v10548
        %v10550 = vpop.f32.mrf.mxu0
        %10551 = vmatprep.mubr.bf16.mxu0 %v4618
        %10552 = vmatmul.mubr.bf16.gmra.mxu0 %v4617
        %v10553 = vpop.f32.mrf.mxu0
        %v10554 = vadd.f32 %v10489, %v10553
        %v10555 = vpop.f32.mrf.mxu0
        %v10556 = vpop.f32.mrf.mxu0
        %v10557 = vadd.f32 %v10492, %v10556
        %v10558 = vpop.f32.mrf.mxu0
        %10559 = vmatprep.mubr.bf16.mxu0 %v4794
        %10560 = vmatmul.mubr.bf16.gmra.mxu0 %v4793
        %v10561 = vpop.f32.mrf.mxu0
        %v10562 = vadd.f32 %v10497, %v10561
        %v10563 = vpop.f32.mrf.mxu0
        %v10564 = vpop.f32.mrf.mxu0
        %v10565 = vadd.f32 %v10500, %v10564
        %v10566 = vpop.f32.mrf.mxu0
        %10567 = vmatprep.mubr.bf16.mxu0 %v4970
        %10568 = vmatmul.mubr.bf16.gmra.mxu0 %v4969
        %v10569 = vpop.f32.mrf.mxu0
        %v10570 = vadd.f32 %v10505, %v10569
        %v10571 = vpop.f32.mrf.mxu0
        %v10572 = vpop.f32.mrf.mxu0
        %v10573 = vadd.f32 %v10508, %v10572
        %v10574 = vpop.f32.mrf.mxu0
        %10575 = vdwg.mxu0
        %10576 = vmatprep.subr.bf16.mxu0 0
        %10577 = vmatpush1.bf16.xpose.msra.mxu0 0
        %10578 = vmatprep.subr.bf16.mxu0 0
        %10579 = vmatpush1.bf16.xpose.msra.mxu0 0
        %10580 = vmatprep.subr.bf16.mxu0 0
        %10581 = vmatpush1.bf16.xpose.msra.mxu0 0
        %10582 = vmatprep.subr.bf16.mxu0 0
        %10583 = vmatpush1.bf16.xpose.msra.mxu0 0
        %10584 = vmatprep.subr.bf16.mxu0 0
        %10585 = vmatpush1.bf16.xpose.msra.mxu0 0
        %10586 = vmatprep.subr.bf16.mxu0 0
        %10587 = vmatpush1.bf16.xpose.msra.mxu0 0
        %10588 = vmatprep.subr.bf16.mxu0 0
        %10589 = vmatpush1.bf16.xpose.msra.mxu0 0
        %10590 = vmatprep.subr.bf16.mxu0 %v1444
        %10591 = vmatpush1.bf16.xpose.msra.mxu0 %v1443
        %10592 = vmatprep.subr.bf16.mxu0 0
        %10593 = vmatpush2.bf16.xpose.msra.mxu0 0
        %10594 = vmatprep.subr.bf16.mxu0 0
        %10595 = vmatpush2.bf16.xpose.msra.mxu0 0
        %10596 = vmatprep.subr.bf16.mxu0 0
        %10597 = vmatpush2.bf16.xpose.msra.mxu0 0
        %10598 = vmatprep.subr.bf16.mxu0 0
        %10599 = vmatpush2.bf16.xpose.msra.mxu0 0
        %10600 = vmatprep.subr.bf16.mxu0 0
        %10601 = vmatpush2.bf16.xpose.msra.mxu0 0
        %10602 = vmatprep.subr.bf16.mxu0 0
        %10603 = vmatpush2.bf16.xpose.msra.mxu0 0
        %10604 = vmatprep.subr.bf16.mxu0 0
        %10605 = vmatpush2.bf16.xpose.msra.mxu0 0
        %10606 = vmatprep.subr.bf16.mxu0 0
        %10607 = vmatpush2.bf16.xpose.msra.mxu0 0
        %10608 = vmatprep.mubr.bf16.mxu0 %v4444
        %10609 = vmatmul.mubr.bf16.gmra.mxu0 %v4443
        %v10610 = vpop.f32.mrf.mxu0
        %v10611 = vadd.f32 %v10546, %v10610
        %v10612 = vpop.f32.mrf.mxu0
        %v10613 = vpop.f32.mrf.mxu0
        %v10614 = vadd.f32 %v10549, %v10613
        %v10615 = vpop.f32.mrf.mxu0
        %10616 = vmatprep.mubr.bf16.mxu0 %v4620
        %10617 = vmatmul.mubr.bf16.gmra.mxu0 %v4619
        %v10618 = vpop.f32.mrf.mxu0
        %v10619 = vadd.f32 %v10554, %v10618
        %v10620 = vpop.f32.mrf.mxu0
        %v10621 = vpop.f32.mrf.mxu0
        %v10622 = vadd.f32 %v10557, %v10621
        %v10623 = vpop.f32.mrf.mxu0
        %10624 = vmatprep.mubr.bf16.mxu0 %v4796
        %10625 = vmatmul.mubr.bf16.gmra.mxu0 %v4795
        %v10626 = vpop.f32.mrf.mxu0
        %v10627 = vadd.f32 %v10562, %v10626
        %v10628 = vpop.f32.mrf.mxu0
        %v10629 = vpop.f32.mrf.mxu0
        %v10630 = vadd.f32 %v10565, %v10629
        %v10631 = vpop.f32.mrf.mxu0
        %10632 = vmatprep.mubr.bf16.mxu0 %v4972
        %10633 = vmatmul.mubr.bf16.gmra.mxu0 %v4971
        %v10634 = vpop.f32.mrf.mxu0
        %v10635 = vadd.f32 %v10570, %v10634
        %v10636 = vpop.f32.mrf.mxu0
        %v10637 = vpop.f32.mrf.mxu0
        %v10638 = vadd.f32 %v10573, %v10637
        %v10639 = vpop.f32.mrf.mxu0
        %10640 = vdwg.mxu0
        %10641 = vmatprep.subr.bf16.mxu0 0
        %10642 = vmatpush1.bf16.xpose.msra.mxu0 0
        %10643 = vmatprep.subr.bf16.mxu0 0
        %10644 = vmatpush1.bf16.xpose.msra.mxu0 0
        %10645 = vmatprep.subr.bf16.mxu0 0
        %10646 = vmatpush1.bf16.xpose.msra.mxu0 0
        %10647 = vmatprep.subr.bf16.mxu0 0
        %10648 = vmatpush1.bf16.xpose.msra.mxu0 0
        %10649 = vmatprep.subr.bf16.mxu0 0
        %10650 = vmatpush1.bf16.xpose.msra.mxu0 0
        %10651 = vmatprep.subr.bf16.mxu0 0
        %10652 = vmatpush1.bf16.xpose.msra.mxu0 0
        %10653 = vmatprep.subr.bf16.mxu0 0
        %10654 = vmatpush1.bf16.xpose.msra.mxu0 0
        %10655 = vmatprep.subr.bf16.mxu0 %v1446
        %10656 = vmatpush1.bf16.xpose.msra.mxu0 %v1445
        %10657 = vmatprep.subr.bf16.mxu0 0
        %10658 = vmatpush2.bf16.xpose.msra.mxu0 0
        %10659 = vmatprep.subr.bf16.mxu0 0
        %10660 = vmatpush2.bf16.xpose.msra.mxu0 0
        %10661 = vmatprep.subr.bf16.mxu0 0
        %10662 = vmatpush2.bf16.xpose.msra.mxu0 0
        %10663 = vmatprep.subr.bf16.mxu0 0
        %10664 = vmatpush2.bf16.xpose.msra.mxu0 0
        %10665 = vmatprep.subr.bf16.mxu0 0
        %10666 = vmatpush2.bf16.xpose.msra.mxu0 0
        %10667 = vmatprep.subr.bf16.mxu0 0
        %10668 = vmatpush2.bf16.xpose.msra.mxu0 0
        %10669 = vmatprep.subr.bf16.mxu0 0
        %10670 = vmatpush2.bf16.xpose.msra.mxu0 0
        %10671 = vmatprep.subr.bf16.mxu0 0
        %10672 = vmatpush2.bf16.xpose.msra.mxu0 0
        %10673 = vmatprep.mubr.bf16.mxu0 %v4446
        %10674 = vmatmul.mubr.bf16.gmra.mxu0 %v4445
        %v10675 = vpop.f32.mrf.mxu0
        %v10676 = vadd.f32 %v10611, %v10675
        %v10677 = vpop.f32.mrf.mxu0
        %v10678 = vpop.f32.mrf.mxu0
        %v10679 = vadd.f32 %v10614, %v10678
        %v10680 = vpop.f32.mrf.mxu0
        %10681 = vmatprep.mubr.bf16.mxu0 %v4622
        %10682 = vmatmul.mubr.bf16.gmra.mxu0 %v4621
        %v10683 = vpop.f32.mrf.mxu0
        %v10684 = vadd.f32 %v10619, %v10683
        %v10685 = vpop.f32.mrf.mxu0
        %v10686 = vpop.f32.mrf.mxu0
        %v10687 = vadd.f32 %v10622, %v10686
        %v10688 = vpop.f32.mrf.mxu0
        %10689 = vmatprep.mubr.bf16.mxu0 %v4798
        %10690 = vmatmul.mubr.bf16.gmra.mxu0 %v4797
        %v10691 = vpop.f32.mrf.mxu0
        %v10692 = vadd.f32 %v10627, %v10691
        %v10693 = vpop.f32.mrf.mxu0
        %v10694 = vpop.f32.mrf.mxu0
        %v10695 = vadd.f32 %v10630, %v10694
        %v10696 = vpop.f32.mrf.mxu0
        %10697 = vmatprep.mubr.bf16.mxu0 %v4974
        %10698 = vmatmul.mubr.bf16.gmra.mxu0 %v4973
        %v10699 = vpop.f32.mrf.mxu0
        %v10700 = vadd.f32 %v10635, %v10699
        %v10701 = vpop.f32.mrf.mxu0
        %v10702 = vpop.f32.mrf.mxu0
        %v10703 = vadd.f32 %v10638, %v10702
        %v10704 = vpop.f32.mrf.mxu0
        %10705 = vdwg.mxu0
        %10706 = vmatprep.subr.bf16.mxu0 0
        %10707 = vmatpush1.bf16.xpose.msra.mxu0 0
        %10708 = vmatprep.subr.bf16.mxu0 0
        %10709 = vmatpush1.bf16.xpose.msra.mxu0 0
        %10710 = vmatprep.subr.bf16.mxu0 0
        %10711 = vmatpush1.bf16.xpose.msra.mxu0 0
        %10712 = vmatprep.subr.bf16.mxu0 0
        %10713 = vmatpush1.bf16.xpose.msra.mxu0 0
        %10714 = vmatprep.subr.bf16.mxu0 0
        %10715 = vmatpush1.bf16.xpose.msra.mxu0 0
        %10716 = vmatprep.subr.bf16.mxu0 0
        %10717 = vmatpush1.bf16.xpose.msra.mxu0 0
        %10718 = vmatprep.subr.bf16.mxu0 0
        %10719 = vmatpush1.bf16.xpose.msra.mxu0 0
        %10720 = vmatprep.subr.bf16.mxu0 %v1448
        %10721 = vmatpush1.bf16.xpose.msra.mxu0 %v1447
        %10722 = vmatprep.subr.bf16.mxu0 0
        %10723 = vmatpush2.bf16.xpose.msra.mxu0 0
        %10724 = vmatprep.subr.bf16.mxu0 0
        %10725 = vmatpush2.bf16.xpose.msra.mxu0 0
        %10726 = vmatprep.subr.bf16.mxu0 0
        %10727 = vmatpush2.bf16.xpose.msra.mxu0 0
        %10728 = vmatprep.subr.bf16.mxu0 0
        %10729 = vmatpush2.bf16.xpose.msra.mxu0 0
        %10730 = vmatprep.subr.bf16.mxu0 0
        %10731 = vmatpush2.bf16.xpose.msra.mxu0 0
        %10732 = vmatprep.subr.bf16.mxu0 0
        %10733 = vmatpush2.bf16.xpose.msra.mxu0 0
        %10734 = vmatprep.subr.bf16.mxu0 0
        %10735 = vmatpush2.bf16.xpose.msra.mxu0 0
        %10736 = vmatprep.subr.bf16.mxu0 0
        %10737 = vmatpush2.bf16.xpose.msra.mxu0 0
        %10738 = vmatprep.mubr.bf16.mxu0 %v4448
        %10739 = vmatmul.mubr.bf16.gmra.mxu0 %v4447
        %v10740 = vpop.f32.mrf.mxu0
        %v10741 = vadd.f32 %v10676, %v10740
        %v10742 = vpop.f32.mrf.mxu0
        %v10743 = vpop.f32.mrf.mxu0
        %v10744 = vadd.f32 %v10679, %v10743
        %v10745 = vpop.f32.mrf.mxu0
        %10746 = vmatprep.mubr.bf16.mxu0 %v4624
        %10747 = vmatmul.mubr.bf16.gmra.mxu0 %v4623
        %v10748 = vpop.f32.mrf.mxu0
        %v10749 = vadd.f32 %v10684, %v10748
        %v10750 = vpop.f32.mrf.mxu0
        %v10751 = vpop.f32.mrf.mxu0
        %v10752 = vadd.f32 %v10687, %v10751
        %v10753 = vpop.f32.mrf.mxu0
        %10754 = vmatprep.mubr.bf16.mxu0 %v4800
        %10755 = vmatmul.mubr.bf16.gmra.mxu0 %v4799
        %v10756 = vpop.f32.mrf.mxu0
        %v10757 = vadd.f32 %v10692, %v10756
        %v10758 = vpop.f32.mrf.mxu0
        %v10759 = vpop.f32.mrf.mxu0
        %v10760 = vadd.f32 %v10695, %v10759
        %v10761 = vpop.f32.mrf.mxu0
        %10762 = vmatprep.mubr.bf16.mxu0 %v4976
        %10763 = vmatmul.mubr.bf16.gmra.mxu0 %v4975
        %v10764 = vpop.f32.mrf.mxu0
        %v10765 = vadd.f32 %v10700, %v10764
        %v10766 = vpop.f32.mrf.mxu0
        %v10767 = vpop.f32.mrf.mxu0
        %v10768 = vadd.f32 %v10703, %v10767
        %v10769 = vpop.f32.mrf.mxu0
        %10770 = vdwg.mxu0
        %10771 = vmatprep.subr.bf16.mxu0 0
        %10772 = vmatpush1.bf16.xpose.msra.mxu0 0
        %10773 = vmatprep.subr.bf16.mxu0 0
        %10774 = vmatpush1.bf16.xpose.msra.mxu0 0
        %10775 = vmatprep.subr.bf16.mxu0 0
        %10776 = vmatpush1.bf16.xpose.msra.mxu0 0
        %10777 = vmatprep.subr.bf16.mxu0 0
        %10778 = vmatpush1.bf16.xpose.msra.mxu0 0
        %10779 = vmatprep.subr.bf16.mxu0 0
        %10780 = vmatpush1.bf16.xpose.msra.mxu0 0
        %10781 = vmatprep.subr.bf16.mxu0 0
        %10782 = vmatpush1.bf16.xpose.msra.mxu0 0
        %10783 = vmatprep.subr.bf16.mxu0 0
        %10784 = vmatpush1.bf16.xpose.msra.mxu0 0
        %10785 = vmatprep.subr.bf16.mxu0 %v1450
        %10786 = vmatpush1.bf16.xpose.msra.mxu0 %v1449
        %10787 = vmatprep.subr.bf16.mxu0 0
        %10788 = vmatpush2.bf16.xpose.msra.mxu0 0
        %10789 = vmatprep.subr.bf16.mxu0 0
        %10790 = vmatpush2.bf16.xpose.msra.mxu0 0
        %10791 = vmatprep.subr.bf16.mxu0 0
        %10792 = vmatpush2.bf16.xpose.msra.mxu0 0
        %10793 = vmatprep.subr.bf16.mxu0 0
        %10794 = vmatpush2.bf16.xpose.msra.mxu0 0
        %10795 = vmatprep.subr.bf16.mxu0 0
        %10796 = vmatpush2.bf16.xpose.msra.mxu0 0
        %10797 = vmatprep.subr.bf16.mxu0 0
        %10798 = vmatpush2.bf16.xpose.msra.mxu0 0
        %10799 = vmatprep.subr.bf16.mxu0 0
        %10800 = vmatpush2.bf16.xpose.msra.mxu0 0
        %10801 = vmatprep.subr.bf16.mxu0 0
        %10802 = vmatpush2.bf16.xpose.msra.mxu0 0
        %10803 = vmatprep.mubr.bf16.mxu0 %v4450
        %10804 = vmatmul.mubr.bf16.gmra.mxu0 %v4449
        %v10805 = vpop.f32.mrf.mxu0
        %v10806 = vadd.f32 %v10741, %v10805
        %v10807 = vpop.f32.mrf.mxu0
        %v10808 = vpop.f32.mrf.mxu0
        %v10809 = vadd.f32 %v10744, %v10808
        %v10810 = vpop.f32.mrf.mxu0
        %10811 = vmatprep.mubr.bf16.mxu0 %v4626
        %10812 = vmatmul.mubr.bf16.gmra.mxu0 %v4625
        %v10813 = vpop.f32.mrf.mxu0
        %v10814 = vadd.f32 %v10749, %v10813
        %v10815 = vpop.f32.mrf.mxu0
        %v10816 = vpop.f32.mrf.mxu0
        %v10817 = vadd.f32 %v10752, %v10816
        %v10818 = vpop.f32.mrf.mxu0
        %10819 = vmatprep.mubr.bf16.mxu0 %v4802
        %10820 = vmatmul.mubr.bf16.gmra.mxu0 %v4801
        %v10821 = vpop.f32.mrf.mxu0
        %v10822 = vadd.f32 %v10757, %v10821
        %v10823 = vpop.f32.mrf.mxu0
        %v10824 = vpop.f32.mrf.mxu0
        %v10825 = vadd.f32 %v10760, %v10824
        %v10826 = vpop.f32.mrf.mxu0
        %10827 = vmatprep.mubr.bf16.mxu0 %v4978
        %10828 = vmatmul.mubr.bf16.gmra.mxu0 %v4977
        %v10829 = vpop.f32.mrf.mxu0
        %v10830 = vadd.f32 %v10765, %v10829
        %v10831 = vpop.f32.mrf.mxu0
        %v10832 = vpop.f32.mrf.mxu0
        %v10833 = vadd.f32 %v10768, %v10832
        %v10834 = vpop.f32.mrf.mxu0
        %10835 = vdwg.mxu0
        %10836 = vmatprep.subr.bf16.mxu0 0
        %10837 = vmatpush1.bf16.xpose.msra.mxu0 0
        %10838 = vmatprep.subr.bf16.mxu0 0
        %10839 = vmatpush1.bf16.xpose.msra.mxu0 0
        %10840 = vmatprep.subr.bf16.mxu0 0
        %10841 = vmatpush1.bf16.xpose.msra.mxu0 0
        %10842 = vmatprep.subr.bf16.mxu0 0
        %10843 = vmatpush1.bf16.xpose.msra.mxu0 0
        %10844 = vmatprep.subr.bf16.mxu0 0
        %10845 = vmatpush1.bf16.xpose.msra.mxu0 0
        %10846 = vmatprep.subr.bf16.mxu0 0
        %10847 = vmatpush1.bf16.xpose.msra.mxu0 0
        %10848 = vmatprep.subr.bf16.mxu0 0
        %10849 = vmatpush1.bf16.xpose.msra.mxu0 0
        %10850 = vmatprep.subr.bf16.mxu0 %v1452
        %10851 = vmatpush1.bf16.xpose.msra.mxu0 %v1451
        %10852 = vmatprep.subr.bf16.mxu0 0
        %10853 = vmatpush2.bf16.xpose.msra.mxu0 0
        %10854 = vmatprep.subr.bf16.mxu0 0
        %10855 = vmatpush2.bf16.xpose.msra.mxu0 0
        %10856 = vmatprep.subr.bf16.mxu0 0
        %10857 = vmatpush2.bf16.xpose.msra.mxu0 0
        %10858 = vmatprep.subr.bf16.mxu0 0
        %10859 = vmatpush2.bf16.xpose.msra.mxu0 0
        %10860 = vmatprep.subr.bf16.mxu0 0
        %10861 = vmatpush2.bf16.xpose.msra.mxu0 0
        %10862 = vmatprep.subr.bf16.mxu0 0
        %10863 = vmatpush2.bf16.xpose.msra.mxu0 0
        %10864 = vmatprep.subr.bf16.mxu0 0
        %10865 = vmatpush2.bf16.xpose.msra.mxu0 0
        %10866 = vmatprep.subr.bf16.mxu0 0
        %10867 = vmatpush2.bf16.xpose.msra.mxu0 0
        %10868 = vmatprep.mubr.bf16.mxu0 %v4452
        %10869 = vmatmul.mubr.bf16.gmra.mxu0 %v4451
        %v10870 = vpop.f32.mrf.mxu0
        %v10871 = vadd.f32 %v10806, %v10870
        %v10872 = vpop.f32.mrf.mxu0
        %v10873 = vpop.f32.mrf.mxu0
        %v10874 = vadd.f32 %v10809, %v10873
        %v10875 = vpop.f32.mrf.mxu0
        %10876 = vmatprep.mubr.bf16.mxu0 %v4628
        %10877 = vmatmul.mubr.bf16.gmra.mxu0 %v4627
        %v10878 = vpop.f32.mrf.mxu0
        %v10879 = vadd.f32 %v10814, %v10878
        %v10880 = vpop.f32.mrf.mxu0
        %v10881 = vpop.f32.mrf.mxu0
        %v10882 = vadd.f32 %v10817, %v10881
        %v10883 = vpop.f32.mrf.mxu0
        %10884 = vmatprep.mubr.bf16.mxu0 %v4804
        %10885 = vmatmul.mubr.bf16.gmra.mxu0 %v4803
        %v10886 = vpop.f32.mrf.mxu0
        %v10887 = vadd.f32 %v10822, %v10886
        %v10888 = vpop.f32.mrf.mxu0
        %v10889 = vpop.f32.mrf.mxu0
        %v10890 = vadd.f32 %v10825, %v10889
        %v10891 = vpop.f32.mrf.mxu0
        %10892 = vmatprep.mubr.bf16.mxu0 %v4980
        %10893 = vmatmul.mubr.bf16.gmra.mxu0 %v4979
        %v10894 = vpop.f32.mrf.mxu0
        %v10895 = vadd.f32 %v10830, %v10894
        %v10896 = vpop.f32.mrf.mxu0
        %v10897 = vpop.f32.mrf.mxu0
        %v10898 = vadd.f32 %v10833, %v10897
        %v10899 = vpop.f32.mrf.mxu0
        %10900 = vdwg.mxu0
        %10901 = vmatprep.subr.bf16.mxu0 0
        %10902 = vmatpush1.bf16.xpose.msra.mxu0 0
        %10903 = vmatprep.subr.bf16.mxu0 0
        %10904 = vmatpush1.bf16.xpose.msra.mxu0 0
        %10905 = vmatprep.subr.bf16.mxu0 0
        %10906 = vmatpush1.bf16.xpose.msra.mxu0 0
        %10907 = vmatprep.subr.bf16.mxu0 0
        %10908 = vmatpush1.bf16.xpose.msra.mxu0 0
        %10909 = vmatprep.subr.bf16.mxu0 0
        %10910 = vmatpush1.bf16.xpose.msra.mxu0 0
        %10911 = vmatprep.subr.bf16.mxu0 0
        %10912 = vmatpush1.bf16.xpose.msra.mxu0 0
        %10913 = vmatprep.subr.bf16.mxu0 0
        %10914 = vmatpush1.bf16.xpose.msra.mxu0 0
        %10915 = vmatprep.subr.bf16.mxu0 %v1454
        %10916 = vmatpush1.bf16.xpose.msra.mxu0 %v1453
        %10917 = vmatprep.subr.bf16.mxu0 0
        %10918 = vmatpush2.bf16.xpose.msra.mxu0 0
        %10919 = vmatprep.subr.bf16.mxu0 0
        %10920 = vmatpush2.bf16.xpose.msra.mxu0 0
        %10921 = vmatprep.subr.bf16.mxu0 0
        %10922 = vmatpush2.bf16.xpose.msra.mxu0 0
        %10923 = vmatprep.subr.bf16.mxu0 0
        %10924 = vmatpush2.bf16.xpose.msra.mxu0 0
        %10925 = vmatprep.subr.bf16.mxu0 0
        %10926 = vmatpush2.bf16.xpose.msra.mxu0 0
        %10927 = vmatprep.subr.bf16.mxu0 0
        %10928 = vmatpush2.bf16.xpose.msra.mxu0 0
        %10929 = vmatprep.subr.bf16.mxu0 0
        %10930 = vmatpush2.bf16.xpose.msra.mxu0 0
        %10931 = vmatprep.subr.bf16.mxu0 0
        %10932 = vmatpush2.bf16.xpose.msra.mxu0 0
        %10933 = vmatprep.mubr.bf16.mxu0 %v4454
        %10934 = vmatmul.mubr.bf16.gmra.mxu0 %v4453
        %v10935 = vpop.f32.mrf.mxu0
        %v10936 = vadd.f32 %v10871, %v10935
        %v10937 = vpop.f32.mrf.mxu0
        %v10938 = vpop.f32.mrf.mxu0
        %v10939 = vadd.f32 %v10874, %v10938
        %v10940 = vpop.f32.mrf.mxu0
        %10941 = vmatprep.mubr.bf16.mxu0 %v4630
        %10942 = vmatmul.mubr.bf16.gmra.mxu0 %v4629
        %v10943 = vpop.f32.mrf.mxu0
        %v10944 = vadd.f32 %v10879, %v10943
        %v10945 = vpop.f32.mrf.mxu0
        %v10946 = vpop.f32.mrf.mxu0
        %v10947 = vadd.f32 %v10882, %v10946
        %v10948 = vpop.f32.mrf.mxu0
        %10949 = vmatprep.mubr.bf16.mxu0 %v4806
        %10950 = vmatmul.mubr.bf16.gmra.mxu0 %v4805
        %v10951 = vpop.f32.mrf.mxu0
        %v10952 = vadd.f32 %v10887, %v10951
        %v10953 = vpop.f32.mrf.mxu0
        %v10954 = vpop.f32.mrf.mxu0
        %v10955 = vadd.f32 %v10890, %v10954
        %v10956 = vpop.f32.mrf.mxu0
        %10957 = vmatprep.mubr.bf16.mxu0 %v4982
        %10958 = vmatmul.mubr.bf16.gmra.mxu0 %v4981
        %v10959 = vpop.f32.mrf.mxu0
        %v10960 = vadd.f32 %v10895, %v10959
        %v10961 = vpop.f32.mrf.mxu0
        %v10962 = vpop.f32.mrf.mxu0
        %v10963 = vadd.f32 %v10898, %v10962
        %v10964 = vpop.f32.mrf.mxu0
        %10965 = vdwg.mxu0
        %10966 = vmatprep.subr.bf16.mxu0 0
        %10967 = vmatpush1.bf16.xpose.msra.mxu0 0
        %10968 = vmatprep.subr.bf16.mxu0 0
        %10969 = vmatpush1.bf16.xpose.msra.mxu0 0
        %10970 = vmatprep.subr.bf16.mxu0 0
        %10971 = vmatpush1.bf16.xpose.msra.mxu0 0
        %10972 = vmatprep.subr.bf16.mxu0 0
        %10973 = vmatpush1.bf16.xpose.msra.mxu0 0
        %10974 = vmatprep.subr.bf16.mxu0 0
        %10975 = vmatpush1.bf16.xpose.msra.mxu0 0
        %10976 = vmatprep.subr.bf16.mxu0 0
        %10977 = vmatpush1.bf16.xpose.msra.mxu0 0
        %10978 = vmatprep.subr.bf16.mxu0 0
        %10979 = vmatpush1.bf16.xpose.msra.mxu0 0
        %10980 = vmatprep.subr.bf16.mxu0 %v1456
        %10981 = vmatpush1.bf16.xpose.msra.mxu0 %v1455
        %10982 = vmatprep.subr.bf16.mxu0 0
        %10983 = vmatpush2.bf16.xpose.msra.mxu0 0
        %10984 = vmatprep.subr.bf16.mxu0 0
        %10985 = vmatpush2.bf16.xpose.msra.mxu0 0
        %10986 = vmatprep.subr.bf16.mxu0 0
        %10987 = vmatpush2.bf16.xpose.msra.mxu0 0
        %10988 = vmatprep.subr.bf16.mxu0 0
        %10989 = vmatpush2.bf16.xpose.msra.mxu0 0
        %10990 = vmatprep.subr.bf16.mxu0 0
        %10991 = vmatpush2.bf16.xpose.msra.mxu0 0
        %10992 = vmatprep.subr.bf16.mxu0 0
        %10993 = vmatpush2.bf16.xpose.msra.mxu0 0
        %10994 = vmatprep.subr.bf16.mxu0 0
        %10995 = vmatpush2.bf16.xpose.msra.mxu0 0
        %10996 = vmatprep.subr.bf16.mxu0 0
        %10997 = vmatpush2.bf16.xpose.msra.mxu0 0
        %10998 = vmatprep.mubr.bf16.mxu0 %v4456
        %10999 = vmatmul.mubr.bf16.gmra.mxu0 %v4455
        %v11000 = vpop.f32.mrf.mxu0
        %v11001 = vadd.f32 %v10936, %v11000
        %v11002 = vpop.f32.mrf.mxu0
        %v11003 = vpop.f32.mrf.mxu0
        %v11004 = vadd.f32 %v10939, %v11003
        %v11005 = vpop.f32.mrf.mxu0
        %11006 = vmatprep.mubr.bf16.mxu0 %v4632
        %11007 = vmatmul.mubr.bf16.gmra.mxu0 %v4631
        %v11008 = vpop.f32.mrf.mxu0
        %v11009 = vadd.f32 %v10944, %v11008
        %v11010 = vpop.f32.mrf.mxu0
        %v11011 = vpop.f32.mrf.mxu0
        %v11012 = vadd.f32 %v10947, %v11011
        %v11013 = vpop.f32.mrf.mxu0
        %11014 = vmatprep.mubr.bf16.mxu0 %v4808
        %11015 = vmatmul.mubr.bf16.gmra.mxu0 %v4807
        %v11016 = vpop.f32.mrf.mxu0
        %v11017 = vadd.f32 %v10952, %v11016
        %v11018 = vpop.f32.mrf.mxu0
        %v11019 = vpop.f32.mrf.mxu0
        %v11020 = vadd.f32 %v10955, %v11019
        %v11021 = vpop.f32.mrf.mxu0
        %11022 = vmatprep.mubr.bf16.mxu0 %v4984
        %11023 = vmatmul.mubr.bf16.gmra.mxu0 %v4983
        %v11024 = vpop.f32.mrf.mxu0
        %v11025 = vadd.f32 %v10960, %v11024
        %v11026 = vpop.f32.mrf.mxu0
        %v11027 = vpop.f32.mrf.mxu0
        %v11028 = vadd.f32 %v10963, %v11027
        %v11029 = vpop.f32.mrf.mxu0
        %11030 = vdwg.mxu0
        %11031 = vmatprep.subr.bf16.mxu0 0
        %11032 = vmatpush1.bf16.xpose.msra.mxu0 0
        %11033 = vmatprep.subr.bf16.mxu0 0
        %11034 = vmatpush1.bf16.xpose.msra.mxu0 0
        %11035 = vmatprep.subr.bf16.mxu0 0
        %11036 = vmatpush1.bf16.xpose.msra.mxu0 0
        %11037 = vmatprep.subr.bf16.mxu0 0
        %11038 = vmatpush1.bf16.xpose.msra.mxu0 0
        %11039 = vmatprep.subr.bf16.mxu0 0
        %11040 = vmatpush1.bf16.xpose.msra.mxu0 0
        %11041 = vmatprep.subr.bf16.mxu0 0
        %11042 = vmatpush1.bf16.xpose.msra.mxu0 0
        %11043 = vmatprep.subr.bf16.mxu0 0
        %11044 = vmatpush1.bf16.xpose.msra.mxu0 0
        %11045 = vmatprep.subr.bf16.mxu0 %v1458
        %11046 = vmatpush1.bf16.xpose.msra.mxu0 %v1457
        %11047 = vmatprep.subr.bf16.mxu0 0
        %11048 = vmatpush2.bf16.xpose.msra.mxu0 0
        %11049 = vmatprep.subr.bf16.mxu0 0
        %11050 = vmatpush2.bf16.xpose.msra.mxu0 0
        %11051 = vmatprep.subr.bf16.mxu0 0
        %11052 = vmatpush2.bf16.xpose.msra.mxu0 0
        %11053 = vmatprep.subr.bf16.mxu0 0
        %11054 = vmatpush2.bf16.xpose.msra.mxu0 0
        %11055 = vmatprep.subr.bf16.mxu0 0
        %11056 = vmatpush2.bf16.xpose.msra.mxu0 0
        %11057 = vmatprep.subr.bf16.mxu0 0
        %11058 = vmatpush2.bf16.xpose.msra.mxu0 0
        %11059 = vmatprep.subr.bf16.mxu0 0
        %11060 = vmatpush2.bf16.xpose.msra.mxu0 0
        %11061 = vmatprep.subr.bf16.mxu0 0
        %11062 = vmatpush2.bf16.xpose.msra.mxu0 0
        %11063 = vmatprep.mubr.bf16.mxu0 %v4458
        %11064 = vmatmul.mubr.bf16.gmra.mxu0 %v4457
        %v11065 = vpop.f32.mrf.mxu0
        %v11066 = vadd.f32 %v11001, %v11065
        %v11067 = vpop.f32.mrf.mxu0
        %v11068 = vpop.f32.mrf.mxu0
        %v11069 = vadd.f32 %v11004, %v11068
        %v11070 = vpop.f32.mrf.mxu0
        %11071 = vmatprep.mubr.bf16.mxu0 %v4634
        %11072 = vmatmul.mubr.bf16.gmra.mxu0 %v4633
        %v11073 = vpop.f32.mrf.mxu0
        %v11074 = vadd.f32 %v11009, %v11073
        %v11075 = vpop.f32.mrf.mxu0
        %v11076 = vpop.f32.mrf.mxu0
        %v11077 = vadd.f32 %v11012, %v11076
        %v11078 = vpop.f32.mrf.mxu0
        %11079 = vmatprep.mubr.bf16.mxu0 %v4810
        %11080 = vmatmul.mubr.bf16.gmra.mxu0 %v4809
        %v11081 = vpop.f32.mrf.mxu0
        %v11082 = vadd.f32 %v11017, %v11081
        %v11083 = vpop.f32.mrf.mxu0
        %v11084 = vpop.f32.mrf.mxu0
        %v11085 = vadd.f32 %v11020, %v11084
        %v11086 = vpop.f32.mrf.mxu0
        %11087 = vmatprep.mubr.bf16.mxu0 %v4986
        %11088 = vmatmul.mubr.bf16.gmra.mxu0 %v4985
        %v11089 = vpop.f32.mrf.mxu0
        %v11090 = vadd.f32 %v11025, %v11089
        %v11091 = vpop.f32.mrf.mxu0
        %v11092 = vpop.f32.mrf.mxu0
        %v11093 = vadd.f32 %v11028, %v11092
        %v11094 = vpop.f32.mrf.mxu0
        %11095 = vdwg.mxu0
        %11096 = vmatprep.subr.bf16.mxu0 0
        %11097 = vmatpush1.bf16.xpose.msra.mxu0 0
        %11098 = vmatprep.subr.bf16.mxu0 0
        %11099 = vmatpush1.bf16.xpose.msra.mxu0 0
        %11100 = vmatprep.subr.bf16.mxu0 0
        %11101 = vmatpush1.bf16.xpose.msra.mxu0 0
        %11102 = vmatprep.subr.bf16.mxu0 0
        %11103 = vmatpush1.bf16.xpose.msra.mxu0 0
        %11104 = vmatprep.subr.bf16.mxu0 0
        %11105 = vmatpush1.bf16.xpose.msra.mxu0 0
        %11106 = vmatprep.subr.bf16.mxu0 0
        %11107 = vmatpush1.bf16.xpose.msra.mxu0 0
        %11108 = vmatprep.subr.bf16.mxu0 0
        %11109 = vmatpush1.bf16.xpose.msra.mxu0 0
        %11110 = vmatprep.subr.bf16.mxu0 %v1460
        %11111 = vmatpush1.bf16.xpose.msra.mxu0 %v1459
        %11112 = vmatprep.subr.bf16.mxu0 0
        %11113 = vmatpush2.bf16.xpose.msra.mxu0 0
        %11114 = vmatprep.subr.bf16.mxu0 0
        %11115 = vmatpush2.bf16.xpose.msra.mxu0 0
        %11116 = vmatprep.subr.bf16.mxu0 0
        %11117 = vmatpush2.bf16.xpose.msra.mxu0 0
        %11118 = vmatprep.subr.bf16.mxu0 0
        %11119 = vmatpush2.bf16.xpose.msra.mxu0 0
        %11120 = vmatprep.subr.bf16.mxu0 0
        %11121 = vmatpush2.bf16.xpose.msra.mxu0 0
        %11122 = vmatprep.subr.bf16.mxu0 0
        %11123 = vmatpush2.bf16.xpose.msra.mxu0 0
        %11124 = vmatprep.subr.bf16.mxu0 0
        %11125 = vmatpush2.bf16.xpose.msra.mxu0 0
        %11126 = vmatprep.subr.bf16.mxu0 0
        %11127 = vmatpush2.bf16.xpose.msra.mxu0 0
        %11128 = vmatprep.mubr.bf16.mxu0 %v4460
        %11129 = vmatmul.mubr.bf16.gmra.mxu0 %v4459
        %v11130 = vpop.f32.mrf.mxu0
        %v11131 = vadd.f32 %v11066, %v11130
        %v11132 = vpop.f32.mrf.mxu0
        %v11133 = vpop.f32.mrf.mxu0
        %v11134 = vadd.f32 %v11069, %v11133
        %v11135 = vpop.f32.mrf.mxu0
        %11136 = vmatprep.mubr.bf16.mxu0 %v4636
        %11137 = vmatmul.mubr.bf16.gmra.mxu0 %v4635
        %v11138 = vpop.f32.mrf.mxu0
        %v11139 = vadd.f32 %v11074, %v11138
        %v11140 = vpop.f32.mrf.mxu0
        %v11141 = vpop.f32.mrf.mxu0
        %v11142 = vadd.f32 %v11077, %v11141
        %v11143 = vpop.f32.mrf.mxu0
        %11144 = vmatprep.mubr.bf16.mxu0 %v4812
        %11145 = vmatmul.mubr.bf16.gmra.mxu0 %v4811
        %v11146 = vpop.f32.mrf.mxu0
        %v11147 = vadd.f32 %v11082, %v11146
        %v11148 = vpop.f32.mrf.mxu0
        %v11149 = vpop.f32.mrf.mxu0
        %v11150 = vadd.f32 %v11085, %v11149
        %v11151 = vpop.f32.mrf.mxu0
        %11152 = vmatprep.mubr.bf16.mxu0 %v4988
        %11153 = vmatmul.mubr.bf16.gmra.mxu0 %v4987
        %v11154 = vpop.f32.mrf.mxu0
        %v11155 = vadd.f32 %v11090, %v11154
        %v11156 = vpop.f32.mrf.mxu0
        %v11157 = vpop.f32.mrf.mxu0
        %v11158 = vadd.f32 %v11093, %v11157
        %v11159 = vpop.f32.mrf.mxu0
        %11160 = vdwg.mxu0
        %11161 = vmatprep.subr.bf16.mxu0 0
        %11162 = vmatpush1.bf16.xpose.msra.mxu0 0
        %11163 = vmatprep.subr.bf16.mxu0 0
        %11164 = vmatpush1.bf16.xpose.msra.mxu0 0
        %11165 = vmatprep.subr.bf16.mxu0 0
        %11166 = vmatpush1.bf16.xpose.msra.mxu0 0
        %11167 = vmatprep.subr.bf16.mxu0 0
        %11168 = vmatpush1.bf16.xpose.msra.mxu0 0
        %11169 = vmatprep.subr.bf16.mxu0 0
        %11170 = vmatpush1.bf16.xpose.msra.mxu0 0
        %11171 = vmatprep.subr.bf16.mxu0 0
        %11172 = vmatpush1.bf16.xpose.msra.mxu0 0
        %11173 = vmatprep.subr.bf16.mxu0 0
        %11174 = vmatpush1.bf16.xpose.msra.mxu0 0
        %11175 = vmatprep.subr.bf16.mxu0 %v1462
        %11176 = vmatpush1.bf16.xpose.msra.mxu0 %v1461
        %11177 = vmatprep.subr.bf16.mxu0 0
        %11178 = vmatpush2.bf16.xpose.msra.mxu0 0
        %11179 = vmatprep.subr.bf16.mxu0 0
        %11180 = vmatpush2.bf16.xpose.msra.mxu0 0
        %11181 = vmatprep.subr.bf16.mxu0 0
        %11182 = vmatpush2.bf16.xpose.msra.mxu0 0
        %11183 = vmatprep.subr.bf16.mxu0 0
        %11184 = vmatpush2.bf16.xpose.msra.mxu0 0
        %11185 = vmatprep.subr.bf16.mxu0 0
        %11186 = vmatpush2.bf16.xpose.msra.mxu0 0
        %11187 = vmatprep.subr.bf16.mxu0 0
        %11188 = vmatpush2.bf16.xpose.msra.mxu0 0
        %11189 = vmatprep.subr.bf16.mxu0 0
        %11190 = vmatpush2.bf16.xpose.msra.mxu0 0
        %11191 = vmatprep.subr.bf16.mxu0 0
        %11192 = vmatpush2.bf16.xpose.msra.mxu0 0
        %11193 = vmatprep.mubr.bf16.mxu0 %v4462
        %11194 = vmatmul.mubr.bf16.gmra.mxu0 %v4461
        %v11195 = vpop.f32.mrf.mxu0
        %v11196 = vadd.f32 %v11131, %v11195
        %v11197 = vpop.f32.mrf.mxu0
        %v11198 = vpop.f32.mrf.mxu0
        %v11199 = vadd.f32 %v11134, %v11198
        %v11200 = vpop.f32.mrf.mxu0
        %11201 = vmatprep.mubr.bf16.mxu0 %v4638
        %11202 = vmatmul.mubr.bf16.gmra.mxu0 %v4637
        %v11203 = vpop.f32.mrf.mxu0
        %v11204 = vadd.f32 %v11139, %v11203
        %v11205 = vpop.f32.mrf.mxu0
        %v11206 = vpop.f32.mrf.mxu0
        %v11207 = vadd.f32 %v11142, %v11206
        %v11208 = vpop.f32.mrf.mxu0
        %11209 = vmatprep.mubr.bf16.mxu0 %v4814
        %11210 = vmatmul.mubr.bf16.gmra.mxu0 %v4813
        %v11211 = vpop.f32.mrf.mxu0
        %v11212 = vadd.f32 %v11147, %v11211
        %v11213 = vpop.f32.mrf.mxu0
        %v11214 = vpop.f32.mrf.mxu0
        %v11215 = vadd.f32 %v11150, %v11214
        %v11216 = vpop.f32.mrf.mxu0
        %11217 = vmatprep.mubr.bf16.mxu0 %v4990
        %11218 = vmatmul.mubr.bf16.gmra.mxu0 %v4989
        %v11219 = vpop.f32.mrf.mxu0
        %v11220 = vadd.f32 %v11155, %v11219
        %v11221 = vpop.f32.mrf.mxu0
        %v11222 = vpop.f32.mrf.mxu0
        %v11223 = vadd.f32 %v11158, %v11222
        %v11224 = vpop.f32.mrf.mxu0
        %11225 = vdwg.mxu0
        %11226 = vmatprep.subr.bf16.mxu0 0
        %11227 = vmatpush1.bf16.xpose.msra.mxu0 0
        %11228 = vmatprep.subr.bf16.mxu0 0
        %11229 = vmatpush1.bf16.xpose.msra.mxu0 0
        %11230 = vmatprep.subr.bf16.mxu0 0
        %11231 = vmatpush1.bf16.xpose.msra.mxu0 0
        %11232 = vmatprep.subr.bf16.mxu0 0
        %11233 = vmatpush1.bf16.xpose.msra.mxu0 0
        %11234 = vmatprep.subr.bf16.mxu0 0
        %11235 = vmatpush1.bf16.xpose.msra.mxu0 0
        %11236 = vmatprep.subr.bf16.mxu0 0
        %11237 = vmatpush1.bf16.xpose.msra.mxu0 0
        %11238 = vmatprep.subr.bf16.mxu0 0
        %11239 = vmatpush1.bf16.xpose.msra.mxu0 0
        %11240 = vmatprep.subr.bf16.mxu0 %v1464
        %11241 = vmatpush1.bf16.xpose.msra.mxu0 %v1463
        %11242 = vmatprep.subr.bf16.mxu0 0
        %11243 = vmatpush2.bf16.xpose.msra.mxu0 0
        %11244 = vmatprep.subr.bf16.mxu0 0
        %11245 = vmatpush2.bf16.xpose.msra.mxu0 0
        %11246 = vmatprep.subr.bf16.mxu0 0
        %11247 = vmatpush2.bf16.xpose.msra.mxu0 0
        %11248 = vmatprep.subr.bf16.mxu0 0
        %11249 = vmatpush2.bf16.xpose.msra.mxu0 0
        %11250 = vmatprep.subr.bf16.mxu0 0
        %11251 = vmatpush2.bf16.xpose.msra.mxu0 0
        %11252 = vmatprep.subr.bf16.mxu0 0
        %11253 = vmatpush2.bf16.xpose.msra.mxu0 0
        %11254 = vmatprep.subr.bf16.mxu0 0
        %11255 = vmatpush2.bf16.xpose.msra.mxu0 0
        %11256 = vmatprep.subr.bf16.mxu0 0
        %11257 = vmatpush2.bf16.xpose.msra.mxu0 0
        %11258 = vmatprep.mubr.bf16.mxu0 %v4464
        %11259 = vmatmul.mubr.bf16.gmra.mxu0 %v4463
        %v11260 = vpop.f32.mrf.mxu0
        %v11261 = vadd.f32 %v11196, %v11260
        %v11262 = vpop.f32.mrf.mxu0
        %v11263 = vpop.f32.mrf.mxu0
        %v11264 = vadd.f32 %v11199, %v11263
        %v11265 = vpop.f32.mrf.mxu0
        %11266 = vmatprep.mubr.bf16.mxu0 %v4640
        %11267 = vmatmul.mubr.bf16.gmra.mxu0 %v4639
        %v11268 = vpop.f32.mrf.mxu0
        %v11269 = vadd.f32 %v11204, %v11268
        %v11270 = vpop.f32.mrf.mxu0
        %v11271 = vpop.f32.mrf.mxu0
        %v11272 = vadd.f32 %v11207, %v11271
        %v11273 = vpop.f32.mrf.mxu0
        %11274 = vmatprep.mubr.bf16.mxu0 %v4816
        %11275 = vmatmul.mubr.bf16.gmra.mxu0 %v4815
        %v11276 = vpop.f32.mrf.mxu0
        %v11277 = vadd.f32 %v11212, %v11276
        %v11278 = vpop.f32.mrf.mxu0
        %v11279 = vpop.f32.mrf.mxu0
        %v11280 = vadd.f32 %v11215, %v11279
        %v11281 = vpop.f32.mrf.mxu0
        %11282 = vmatprep.mubr.bf16.mxu0 %v4992
        %11283 = vmatmul.mubr.bf16.gmra.mxu0 %v4991
        %v11284 = vpop.f32.mrf.mxu0
        %v11285 = vadd.f32 %v11220, %v11284
        %v11286 = vpop.f32.mrf.mxu0
        %v11287 = vpop.f32.mrf.mxu0
        %v11288 = vadd.f32 %v11223, %v11287
        %v11289 = vpop.f32.mrf.mxu0
        %11290 = vdwg.mxu0
        %11291 = vmatprep.subr.bf16.mxu0 0
        %11292 = vmatpush1.bf16.xpose.msra.mxu0 0
        %11293 = vmatprep.subr.bf16.mxu0 0
        %11294 = vmatpush1.bf16.xpose.msra.mxu0 0
        %11295 = vmatprep.subr.bf16.mxu0 0
        %11296 = vmatpush1.bf16.xpose.msra.mxu0 0
        %11297 = vmatprep.subr.bf16.mxu0 0
        %11298 = vmatpush1.bf16.xpose.msra.mxu0 0
        %11299 = vmatprep.subr.bf16.mxu0 0
        %11300 = vmatpush1.bf16.xpose.msra.mxu0 0
        %11301 = vmatprep.subr.bf16.mxu0 0
        %11302 = vmatpush1.bf16.xpose.msra.mxu0 0
        %11303 = vmatprep.subr.bf16.mxu0 0
        %11304 = vmatpush1.bf16.xpose.msra.mxu0 0
        %11305 = vmatprep.subr.bf16.mxu0 %v1466
        %11306 = vmatpush1.bf16.xpose.msra.mxu0 %v1465
        %11307 = vmatprep.subr.bf16.mxu0 0
        %11308 = vmatpush2.bf16.xpose.msra.mxu0 0
        %11309 = vmatprep.subr.bf16.mxu0 0
        %11310 = vmatpush2.bf16.xpose.msra.mxu0 0
        %11311 = vmatprep.subr.bf16.mxu0 0
        %11312 = vmatpush2.bf16.xpose.msra.mxu0 0
        %11313 = vmatprep.subr.bf16.mxu0 0
        %11314 = vmatpush2.bf16.xpose.msra.mxu0 0
        %11315 = vmatprep.subr.bf16.mxu0 0
        %11316 = vmatpush2.bf16.xpose.msra.mxu0 0
        %11317 = vmatprep.subr.bf16.mxu0 0
        %11318 = vmatpush2.bf16.xpose.msra.mxu0 0
        %11319 = vmatprep.subr.bf16.mxu0 0
        %11320 = vmatpush2.bf16.xpose.msra.mxu0 0
        %11321 = vmatprep.subr.bf16.mxu0 0
        %11322 = vmatpush2.bf16.xpose.msra.mxu0 0
        %11323 = vmatprep.mubr.bf16.mxu0 %v4466
        %11324 = vmatmul.mubr.bf16.gmra.mxu0 %v4465
        %v11325 = vpop.f32.mrf.mxu0
        %v11326 = vadd.f32 %v11261, %v11325
        %v11327 = vpop.f32.mrf.mxu0
        %v11328 = vpop.f32.mrf.mxu0
        %v11329 = vadd.f32 %v11264, %v11328
        %v11330 = vpop.f32.mrf.mxu0
        %11331 = vmatprep.mubr.bf16.mxu0 %v4642
        %11332 = vmatmul.mubr.bf16.gmra.mxu0 %v4641
        %v11333 = vpop.f32.mrf.mxu0
        %v11334 = vadd.f32 %v11269, %v11333
        %v11335 = vpop.f32.mrf.mxu0
        %v11336 = vpop.f32.mrf.mxu0
        %v11337 = vadd.f32 %v11272, %v11336
        %v11338 = vpop.f32.mrf.mxu0
        %11339 = vmatprep.mubr.bf16.mxu0 %v4818
        %11340 = vmatmul.mubr.bf16.gmra.mxu0 %v4817
        %v11341 = vpop.f32.mrf.mxu0
        %v11342 = vadd.f32 %v11277, %v11341
        %v11343 = vpop.f32.mrf.mxu0
        %v11344 = vpop.f32.mrf.mxu0
        %v11345 = vadd.f32 %v11280, %v11344
        %v11346 = vpop.f32.mrf.mxu0
        %11347 = vmatprep.mubr.bf16.mxu0 %v4994
        %11348 = vmatmul.mubr.bf16.gmra.mxu0 %v4993
        %v11349 = vpop.f32.mrf.mxu0
        %v11350 = vadd.f32 %v11285, %v11349
        %v11351 = vpop.f32.mrf.mxu0
        %v11352 = vpop.f32.mrf.mxu0
        %v11353 = vadd.f32 %v11288, %v11352
        %v11354 = vpop.f32.mrf.mxu0
        %11355 = vdwg.mxu0
        %11356 = vmatprep.subr.bf16.mxu0 0
        %11357 = vmatpush1.bf16.xpose.msra.mxu0 0
        %11358 = vmatprep.subr.bf16.mxu0 0
        %11359 = vmatpush1.bf16.xpose.msra.mxu0 0
        %11360 = vmatprep.subr.bf16.mxu0 0
        %11361 = vmatpush1.bf16.xpose.msra.mxu0 0
        %11362 = vmatprep.subr.bf16.mxu0 0
        %11363 = vmatpush1.bf16.xpose.msra.mxu0 0
        %11364 = vmatprep.subr.bf16.mxu0 0
        %11365 = vmatpush1.bf16.xpose.msra.mxu0 0
        %11366 = vmatprep.subr.bf16.mxu0 0
        %11367 = vmatpush1.bf16.xpose.msra.mxu0 0
        %11368 = vmatprep.subr.bf16.mxu0 0
        %11369 = vmatpush1.bf16.xpose.msra.mxu0 0
        %11370 = vmatprep.subr.bf16.mxu0 %v1468
        %11371 = vmatpush1.bf16.xpose.msra.mxu0 %v1467
        %11372 = vmatprep.subr.bf16.mxu0 0
        %11373 = vmatpush2.bf16.xpose.msra.mxu0 0
        %11374 = vmatprep.subr.bf16.mxu0 0
        %11375 = vmatpush2.bf16.xpose.msra.mxu0 0
        %11376 = vmatprep.subr.bf16.mxu0 0
        %11377 = vmatpush2.bf16.xpose.msra.mxu0 0
        %11378 = vmatprep.subr.bf16.mxu0 0
        %11379 = vmatpush2.bf16.xpose.msra.mxu0 0
        %11380 = vmatprep.subr.bf16.mxu0 0
        %11381 = vmatpush2.bf16.xpose.msra.mxu0 0
        %11382 = vmatprep.subr.bf16.mxu0 0
        %11383 = vmatpush2.bf16.xpose.msra.mxu0 0
        %11384 = vmatprep.subr.bf16.mxu0 0
        %11385 = vmatpush2.bf16.xpose.msra.mxu0 0
        %11386 = vmatprep.subr.bf16.mxu0 0
        %11387 = vmatpush2.bf16.xpose.msra.mxu0 0
        %11388 = vmatprep.mubr.bf16.mxu0 %v4468
        %11389 = vmatmul.mubr.bf16.gmra.mxu0 %v4467
        %v11390 = vpop.f32.mrf.mxu0
        %v11391 = vadd.f32 %v11326, %v11390
        %v11392 = vpop.f32.mrf.mxu0
        %v11393 = vpop.f32.mrf.mxu0
        %v11394 = vadd.f32 %v11329, %v11393
        %v11395 = vpop.f32.mrf.mxu0
        %11396 = vmatprep.mubr.bf16.mxu0 %v4644
        %11397 = vmatmul.mubr.bf16.gmra.mxu0 %v4643
        %v11398 = vpop.f32.mrf.mxu0
        %v11399 = vadd.f32 %v11334, %v11398
        %v11400 = vpop.f32.mrf.mxu0
        %v11401 = vpop.f32.mrf.mxu0
        %v11402 = vadd.f32 %v11337, %v11401
        %v11403 = vpop.f32.mrf.mxu0
        %11404 = vmatprep.mubr.bf16.mxu0 %v4820
        %11405 = vmatmul.mubr.bf16.gmra.mxu0 %v4819
        %v11406 = vpop.f32.mrf.mxu0
        %v11407 = vadd.f32 %v11342, %v11406
        %v11408 = vpop.f32.mrf.mxu0
        %v11409 = vpop.f32.mrf.mxu0
        %v11410 = vadd.f32 %v11345, %v11409
        %v11411 = vpop.f32.mrf.mxu0
        %11412 = vmatprep.mubr.bf16.mxu0 %v4996
        %11413 = vmatmul.mubr.bf16.gmra.mxu0 %v4995
        %v11414 = vpop.f32.mrf.mxu0
        %v11415 = vadd.f32 %v11350, %v11414
        %v11416 = vpop.f32.mrf.mxu0
        %v11417 = vpop.f32.mrf.mxu0
        %v11418 = vadd.f32 %v11353, %v11417
        %v11419 = vpop.f32.mrf.mxu0
        %11420 = vdwg.mxu0
        %v11421 = vadd.f32 %v1469, %v11391
        %v11422 = vadd.f32 %v1470, %v11394
        %v11423 = vadd.f32 %v1471, %v11399
        %v11424 = vadd.f32 %v1472, %v11402
        %v11425 = vadd.f32 %v1473, %v11407
        %v11426 = vadd.f32 %v1474, %v11410
        %v11427 = vadd.f32 %v1475, %v11415
        %v11428 = vadd.f32 %v1476, %v11418
        %vm11429 = vcmask 15360
        %11430 = vst.msk [vmem:[#allocation2] sm:$0xff] %vm11429, %v11421
        %11431 = vst.msk [vmem:[#allocation2 + $0x8] sm:$0xff] %vm11429, %v11422
        %11432 = vst.msk [vmem:[#allocation2 + $0x10] sm:$0xff] %vm11429, %v11423
        %11433 = vst.msk [vmem:[#allocation2 + $0x18] sm:$0xff] %vm11429, %v11424
        %11434 = vst.msk [vmem:[#allocation2 + $0x20] sm:$0xff] %vm11429, %v11425
        %11435 = vst.msk [vmem:[#allocation2 + $0x28] sm:$0xff] %vm11429, %v11426
        %11436 = vst.msk [vmem:[#allocation2 + $0x30] sm:$0xff] %vm11429, %v11427
        %11437 = vst.msk [vmem:[#allocation2 + $0x38] sm:$0xff] %vm11429, %v11428
        %p11438 = scmp.eq.s32.totalorder %s21, 3
        // Predicated region
        $region53: #{mlp_forward.1} parent=39 // pred_check
          %p11439 = pneg %p11438
        $region54: #{mlp_forward.1} parent=39 // pred_check_branch
          %11441 = sbr.rel (%p11439) target = $region56
        $region55: #{mlp_forward.1} parent=39 // pred_region
          %v11442 = vld [vmem:[#allocation2] sm:$0xff]
          %v11443 = vld [vmem:[#allocation2 + $0x8] sm:$0xff]
          %v11444 = vld [vmem:[#allocation2 + $0x10] sm:$0xff]
          %v11445 = vld [vmem:[#allocation2 + $0x18] sm:$0xff]
          %v11446 = vld [vmem:[#allocation2 + $0x20] sm:$0xff]
          %v11447 = vld [vmem:[#allocation2 + $0x28] sm:$0xff]
          %v11448 = vld [vmem:[#allocation2 + $0x30] sm:$0xff]
          %v11449 = vld [vmem:[#allocation2 + $0x38] sm:$0xff]
          %v11450 = vld [vmem:[%s2] sm:$0xff]
          %v11451 = vld [vmem:[%s2 + $0x8] sm:$0xff]
          %v11452 = vld [vmem:[%s2 + $0x10] sm:$0xff]
          %v11453 = vld [vmem:[%s2 + $0x18] sm:$0xff]
          %v11454 = vld [vmem:[%s2 + $0x20] sm:$0xff]
          %v11455 = vld [vmem:[%s2 + $0x28] sm:$0xff]
          %v11456 = vld [vmem:[%s2 + $0x30] sm:$0xff]
          %v11457 = vld [vmem:[%s2 + $0x38] sm:$0xff]
          %11459 = vset.pattern.permute.xlu0 0
          %11460 = vperm.xlu0 %11459, %v11450
          %v11461 = vpop.permute.xlu0 %11460
          %11464 = vset.pattern.permute.xlu0 0
          %11465 = vperm.xlu0 %11464, %v11451
          %v11466 = vpop.permute.xlu0 %11465
          %11469 = vset.pattern.permute.xlu0 0
          %11470 = vperm.xlu0 %11469, %v11452
          %v11471 = vpop.permute.xlu0 %11470
          %11474 = vset.pattern.permute.xlu0 0
          %11475 = vperm.xlu0 %11474, %v11453
          %v11476 = vpop.permute.xlu0 %11475
          %11479 = vset.pattern.permute.xlu0 0
          %11480 = vperm.xlu0 %11479, %v11454
          %v11481 = vpop.permute.xlu0 %11480
          %11484 = vset.pattern.permute.xlu0 0
          %11485 = vperm.xlu0 %11484, %v11455
          %v11486 = vpop.permute.xlu0 %11485
          %11489 = vset.pattern.permute.xlu0 0
          %11490 = vperm.xlu0 %11489, %v11456
          %v11491 = vpop.permute.xlu0 %11490
          %11494 = vset.pattern.permute.xlu0 0
          %11495 = vperm.xlu0 %11494, %v11457
          %v11496 = vpop.permute.xlu0 %11495
          %v11498 = vadd.f32 %v11442, %v11461
          %v11499 = vadd.f32 %v11443, %v11466
          %v11500 = vadd.f32 %v11444, %v11471
          %v11501 = vadd.f32 %v11445, %v11476
          %v11502 = vadd.f32 %v11446, %v11481
          %v11503 = vadd.f32 %v11447, %v11486
          %v11504 = vadd.f32 %v11448, %v11491
          %v11505 = vadd.f32 %v11449, %v11496
          %v11506 = vmax.f32 %v11498, 0.0
          %v11507 = vmax.f32 %v11499, 0.0
          %v11508 = vmax.f32 %v11500, 0.0
          %v11509 = vmax.f32 %v11501, 0.0
          %v11510 = vmax.f32 %v11502, 0.0
          %v11511 = vmax.f32 %v11503, 0.0
          %v11512 = vmax.f32 %v11504, 0.0
          %v11513 = vmax.f32 %v11505, 0.0
          %v11514 = vld [vmem:[%s3] sm:$0xff]
          %v11515 = vld [vmem:[%s3 + $0x8] sm:$0xff]
          %v11516 = vld [vmem:[%s3 + $0x10] sm:$0xff]
          %v11517 = vld [vmem:[%s3 + $0x18] sm:$0xff]
          %v11518 = vld [vmem:[%s3 + $0x20] sm:$0xff]
          %v11519 = vld [vmem:[%s3 + $0x28] sm:$0xff]
          %v11520 = vld [vmem:[%s3 + $0x30] sm:$0xff]
          %v11521 = vld [vmem:[%s3 + $0x38] sm:$0xff]
          %v11522 = vld [vmem:[#allocation6] sm:$0x1]
          %v11524 = vlaneseq
          %v11525 = vshrl.u32 %v11524, 7
          %v11526 = vsub.s32 0, %v11525
          %v11527 = vrot.slane %v11522, %v11526
          %11529 = vxpose.xlu0.b32.start [1/16] %v11506, 128
          %11530 = vxpose.xlu0.b32.cont [2/16] %v11507, 128
          %11531 = vxpose.xlu0.b32.cont [3/16] %v11508, 128
          %11532 = vxpose.xlu0.b32.cont [4/16] %v11509, 128
          %11533 = vxpose.xlu0.b32.cont [5/16] %v11510, 128
          %11534 = vxpose.xlu0.b32.cont [6/16] %v11511, 128
          %11535 = vxpose.xlu0.b32.cont [7/16] %v11512, 128
          %11536 = vxpose.xlu0.b32.cont [8/16] %v11513, 128
          %11537 = vxpose.xlu0.b32.cont [9/16] 0.0, 128
          %11538 = vxpose.xlu0.b32.cont [10/16] 0.0, 128
          %11539 = vxpose.xlu0.b32.cont [11/16] 0.0, 128
          %11540 = vxpose.xlu0.b32.cont [12/16] 0.0, 128
          %11541 = vxpose.xlu0.b32.cont [13/16] 0.0, 128
          %11542 = vxpose.xlu0.b32.cont [14/16] 0.0, 128
          %11543 = vxpose.xlu0.b32.cont [15/16] 0.0, 128
          %11544 = vxpose.xlu0.b32.end [16/16] 0.0, 128
          %v11545 = vpop.trf.xlu0
          %v11546 = vpop.trf.xlu0
          %v11547 = vpop.trf.xlu0
          %v11548 = vpop.trf.xlu0
          %v11549 = vpop.trf.xlu0
          %v11550 = vpop.trf.xlu0
          %v11551 = vpop.trf.xlu0
          %v11552 = vpop.trf.xlu0
          %v11553 = vpop.trf.xlu0
          %v11554 = vpop.trf.xlu0
          %v11555 = vpop.trf.xlu0
          %v11556 = vpop.trf.xlu0
          %v11557 = vpop.trf.xlu0
          %v11558 = vpop.trf.xlu0
          %v11559 = vpop.trf.xlu0
          %v11560 = vpop.trf.xlu0
          %vm11561 = vcmask 523264
          %v11563 = vsel %vm11561, %v11545, 0
          %11565 = vmatprep.subr.mxu0 0.0
          %11566 = vmatpush1.msra.mxu0 0.0
          %11567 = vmatprep.subr.mxu0 0.0
          %11568 = vmatpush1.msra.mxu0 0.0
          %11569 = vmatprep.subr.mxu0 0.0
          %11570 = vmatpush1.msra.mxu0 0.0
          %11571 = vmatprep.subr.mxu0 0.0
          %11572 = vmatpush1.msra.mxu0 0.0
          %11573 = vmatprep.subr.mxu0 0.0
          %11574 = vmatpush1.msra.mxu0 0.0
          %11575 = vmatprep.subr.mxu0 0.0
          %11576 = vmatpush1.msra.mxu0 0.0
          %11577 = vmatprep.subr.mxu0 0.0
          %11578 = vmatpush1.msra.mxu0 0.0
          %11579 = vmatprep.subr.mxu0 0.0
          %11580 = vmatpush1.msra.mxu0 0.0
          %11581 = vmatprep.subr.mxu0 0.0
          %11582 = vmatpush1.msra.mxu0 %v11521
          %11583 = vmatprep.subr.mxu0 0.0
          %11584 = vmatpush1.msra.mxu0 %v11520
          %11585 = vmatprep.subr.mxu0 0.0
          %11586 = vmatpush1.msra.mxu0 %v11519
          %11587 = vmatprep.subr.mxu0 0.0
          %11588 = vmatpush1.msra.mxu0 %v11518
          %11589 = vmatprep.subr.mxu0 0.0
          %11590 = vmatpush1.msra.mxu0 %v11517
          %11591 = vmatprep.subr.mxu0 0.0
          %11592 = vmatpush1.msra.mxu0 %v11516
          %11593 = vmatprep.subr.mxu0 0.0
          %11594 = vmatpush1.msra.mxu0 %v11515
          %11595 = vmatprep.subr.mxu0 0.0
          %11596 = vmatpush1.msra.mxu0 %v11514
          %11597 = vmatprep.subr.mxu0 0.0
          %11598 = vmatpush2.msra.mxu0 0.0
          %11599 = vmatprep.subr.mxu0 0.0
          %11600 = vmatpush2.msra.mxu0 0.0
          %11601 = vmatprep.subr.mxu0 0.0
          %11602 = vmatpush2.msra.mxu0 0.0
          %11603 = vmatprep.subr.mxu0 0.0
          %11604 = vmatpush2.msra.mxu0 0.0
          %11605 = vmatprep.subr.mxu0 0.0
          %11606 = vmatpush2.msra.mxu0 0.0
          %11607 = vmatprep.subr.mxu0 0.0
          %11608 = vmatpush2.msra.mxu0 0.0
          %11609 = vmatprep.subr.mxu0 0.0
          %11610 = vmatpush2.msra.mxu0 0.0
          %11611 = vmatprep.subr.mxu0 0.0
          %11612 = vmatpush2.msra.mxu0 0.0
          %11613 = vmatprep.subr.mxu0 0.0
          %11614 = vmatpush2.msra.mxu0 0.0
          %11615 = vmatprep.subr.mxu0 0.0
          %11616 = vmatpush2.msra.mxu0 0.0
          %11617 = vmatprep.subr.mxu0 0.0
          %11618 = vmatpush2.msra.mxu0 0.0
          %11619 = vmatprep.subr.mxu0 0.0
          %11620 = vmatpush2.msra.mxu0 0.0
          %11621 = vmatprep.subr.mxu0 0.0
          %11622 = vmatpush2.msra.mxu0 0.0
          %11623 = vmatprep.subr.mxu0 0.0
          %11624 = vmatpush2.msra.mxu0 0.0
          %11625 = vmatprep.subr.mxu0 0.0
          %11626 = vmatpush2.msra.mxu0 0.0
          %11627 = vmatprep.subr.mxu0 0.0
          %11628 = vmatpush2.msra.mxu0 0.0
          %11629 = vmatprep.mubr.f32.mxu0 0.0
          %11630 = vmatmul.mubr.f32.gmra.mxu0 %v11563
          %v11631 = vpop.f32.mrf.mxu0
          %v11632 = vadd.f32 %v11527, %v11631
          %v11633 = vpop.f32.mrf.mxu0
          %11634 = vdwg.mxu0
          %vm11635 = vcmask 25600
          %11636 = vst.msk [vmem:[#allocation8] sm:$0x3] %vm11635, %v11632
        $region56: #{mlp_forward.1} parent=39 // pred_fallthru
          _
        // Predicated region
        $region57: #{mlp_forward.1} parent=39 // pred_check
          %p11637 = pneg %p149
        $region58: #{mlp_forward.1} parent=39 // pred_check_branch
          %11639 = sbr.rel (%p11637) target = $region60
        $region59: #{mlp_forward.1} parent=39 // pred_region
          %s11641 = ssub.s32 32, 32
          %11642 = vsyncadd [#allocation5], %s11641
          %s11644 = sshll.u32 [#allocation8], 4
          %s11645 = int_to_ptr.vmem [resolvable:$true] %s11644
          %11647 = dma.vmem_to_hbm [thread:$0]  %s11645, 32, %s5, [#allocation5]
        $region60: #{mlp_forward.1} parent=39 // pred_fallthru
          _
        // Predicated region
        $region61: #{mlp_forward.1} parent=39 // pred_check
          %p11648 = pneg %p149
        $region62: #{mlp_forward.1} parent=39 // pred_check_branch
          %11650 = sbr.rel (%p11648) target = $region64
        $region63: #{mlp_forward.1} parent=39 // pred_region
          %11651 = dma.done [#allocation5], 32
        $region64: #{mlp_forward.1} parent=39 // pred_fallthru
          _
      $region40: #{mlp_forward.1} parent=5 // pred_fallthru
        _
      %p11652 = scmp.le.s32.totalorder 2, %s16
      // Predicated region
      $region65: #{mlp_forward.1} parent=5 // pred_check
        %p11653 = pneg %p11652
      $region66: #{mlp_forward.1} parent=5 // pred_check_branch
        %11655 = sbr.rel (%p11653) target = $region68
      $region67: #{mlp_forward.1} parent=5 // pred_region
        %s11656 = ssub.s32 %s16, 2
      $region68: #{mlp_forward.1} parent=5 // pred_fallthru
        _
    $region6: #{mlp_forward.1} parent=1 // loop_footer
      %s20 = sadd.s32 1, %s16
    $region7: #{mlp_forward.1} parent=1 // loop_footer_branch
      %15 = sbr.rel target = $region3
    $region8: #{mlp_forward.1} parent=1 // loop_exit
      _
    %11657 = vsyncpa [#allocation4], 1
    %s11658 = scalar_lea.sflag [#allocation4], 1
    %11659 = vsyncpa %s11658, 1
    %11660 = vsyncpa [#allocation7], 1
    %11661 = vsyncpa [#allocation5], 1
    %s11662 = scalar_lea.sflag [#allocation5], 1
    %11663 = vsyncpa %s11662, 1

</llo_original>
